<compile_context>
chip_gen: v7x
topology: tpu7x:2x2x1
jax: 0.10.0
libtpu: 0.0.40
codegen_flags: <defaults>
</compile_context>

<pallas_src>
import functools
import math

import jax
import jax.numpy as jnp
from jax.experimental import pallas as pl
from jax.experimental.pallas import tpu as pltpu


# ---------------------------------------------------------------------------
# In-kernel building blocks (pure jnp, traced inside the Pallas kernel body)
# ---------------------------------------------------------------------------

def _layernorm(x, gamma, beta, eps=1e-5):
    # x: (R, C); gamma/beta: (1, C)
    mean = jnp.mean(x, axis=-1, keepdims=True)
    var = jnp.mean((x - mean) ** 2, axis=-1, keepdims=True)
    return (x - mean) * jax.lax.rsqrt(var + eps) * gamma + beta


def _gelu_exact(x):
    # PyTorch nn.GELU() default (exact, erf-based).
    return 0.5 * x * (1.0 + jax.lax.erf(x / jnp.sqrt(2.0).astype(x.dtype)))


def _mha(q2, k2, v2, tb, n, m, num_heads, head_dim):
    """Multi-head attention core on already-projected activations.

    q2: (tb*n, C), k2/v2: (tb*m, C), head-major channel layout (c = h*hd + d).
    The softmax scale is already folded into the Q projection weights.
    Returns (tb*n, C).
    """
    C = num_heads * head_dim
    # heads -> leading batch dim so score / PV matmuls are plain batched dots
    # (same 'bqd,bkd->bqk' pattern as the reference flash kernel).
    q = jnp.transpose(q2.reshape(tb, n, num_heads, head_dim), (0, 2, 1, 3))
    k = jnp.transpose(k2.reshape(tb, m, num_heads, head_dim), (0, 2, 1, 3))
    v = jnp.transpose(v2.reshape(tb, m, num_heads, head_dim), (0, 2, 1, 3))
    q = q.reshape(tb * num_heads, n, head_dim)
    k = k.reshape(tb * num_heads, m, head_dim)
    v = v.reshape(tb * num_heads, m, head_dim)

    s = jnp.einsum('bnd,bmd->bnm', q, k, preferred_element_type=jnp.float32)
    s = s - jnp.max(s, axis=-1, keepdims=True)
    e = jnp.exp(s)
    p = e * pl.reciprocal(jnp.sum(e, axis=-1, keepdims=True), approx=True)
    o = jnp.einsum('bnm,bmd->bnd', p, v, preferred_element_type=jnp.float32)

    o = jnp.transpose(o.reshape(tb, num_heads, n, head_dim), (0, 2, 1, 3))
    return o.reshape(tb * n, C)


# ---------------------------------------------------------------------------
# Kernel
# ---------------------------------------------------------------------------

def decoder_layer_kernel(num_heads,
                         x_ref, mem_ref,
                         n1g_ref, n1b_ref, n2g_ref, n2b_ref,
                         sa_wqkv_ref, sa_wp_ref, sa_bp_ref,
                         ca_wq_ref, ca_wkv_ref, ca_wp_ref, ca_bp_ref,
                         w1_ref, b1_ref, w2_ref, b2_ref,
                         o_ref):
    tb, n, C = x_ref.shape
    m = mem_ref.shape[1]
    hd = C // num_heads
    R = tb * n

    x = x_ref[...].reshape(R, C)          # all block_b batch rows folded
    mem = mem_ref[...].reshape(tb * m, C)

    # ---- norm1 + fused self-attention (QKV in one matmul) ------------------
    qn = _layernorm(x, n1g_ref[...], n1b_ref[...])
    qkv = jnp.dot(qn, sa_wqkv_ref[...], preferred_element_type=jnp.float32)  # (R, 3C)
    sa_ctx = _mha(qkv[:, :C], qkv[:, C:2 * C], qkv[:, 2 * C:],
                  tb, n, n, num_heads, hd)
    sa = jnp.dot(sa_ctx, sa_wp_ref[...],
                 preferred_element_type=jnp.float32) + sa_bp_ref[...]
    qc = x + sa

    # ---- norm2 + fused cross-attention (KV in one matmul) ------------------
    qc = _layernorm(qc, n2g_ref[...], n2b_ref[...])
    cq = jnp.dot(qc, ca_wq_ref[...], preferred_element_type=jnp.float32)     # (R, C)
    ckv = jnp.dot(mem, ca_wkv_ref[...], preferred_element_type=jnp.float32)  # (tb*m, 2C)
    ca_ctx = _mha(cq, ckv[:, :C], ckv[:, C:], tb, n, m, num_heads, hd)
    vc = jnp.dot(ca_ctx, ca_wp_ref[...],
                 preferred_element_type=jnp.float32) + ca_bp_ref[...]

    # ---- fused MLP: mlp(vc) and mlp(qc) share weights -> one matmul pass ---
    both = jnp.concatenate([vc, qc], axis=0)                                  # (2R, C)
    h = jnp.dot(both, w1_ref[...], preferred_element_type=jnp.float32) + b1_ref[...]
    h = _gelu_exact(h)
    y = jnp.dot(h, w2_ref[...], preferred_element_type=jnp.float32) + b2_ref[...]
    out = y[:R] + y[R:]

    o_ref[...] = out.reshape(tb, n, C).astype(o_ref.dtype)


# ---------------------------------------------------------------------------
# Wrapper
# ---------------------------------------------------------------------------

def _pick_block_b(B, N):
    # Fold multiple batch elements per grid step so matmul row blocks are
    # denser (target >= ~128 rows); block_b must divide B.
    target = max(1, 128 // max(N, 1))
    bb = 1
    for d in range(1, B + 1):
        if B % d == 0 and d <= target:
            bb = d
    return bb


def transformer_decoder_layer(x, mem, params, num_heads, block_b=None):
    (n1g, n1b, n2g, n2b,
     sa_wq, sa_wk, sa_wv, sa_wp, sa_bp,
     ca_wq, ca_wk, ca_wv, ca_wp, ca_bp,
     w1, b1, w2, b2) = params

    B, N, C = x.shape
    _, M, _ = mem.shape
    assert C % num_heads == 0
    scale = (C // num_heads) ** -0.5

    if block_b is None:
        block_b = _pick_block_b(B, N)
    assert B % block_b == 0

    # One-time host-side weight packing:
    #   * fold the softmax scale into Wq,
    #   * fuse self-attn Q/K/V -> (C, 3C) and cross-attn K/V -> (C, 2C),
    #   * pre-transpose everything to (in_features, out_features) so the
    #     kernel computes x @ W with no in-kernel transposes.
    sa_wqkv = jnp.concatenate([sa_wq * scale, sa_wk, sa_wv], axis=0).T   # (C, 3C)
    ca_wkv = jnp.concatenate([ca_wk, ca_wv], axis=0).T                   # (C, 2C)
    packed = (n1g, n1b, n2g, n2b,
              sa_wqkv, sa_wp.T, sa_bp,
              (ca_wq * scale).T, ca_wkv, ca_wp.T, ca_bp,
              w1.T, b1, w2.T, b2)

    def const_spec(a):
        # Constant-index weight blocks: loaded once, resident across the grid.
        return pl.BlockSpec(a.shape, lambda b, _nd=a.ndim: (0,) * _nd)

    in_specs = ([pl.BlockSpec((block_b, N, C), lambda b: (b, 0, 0)),
                 pl.BlockSpec((block_b, M, C), lambda b: (b, 0, 0))]
                + [const_spec(p) for p in packed])

    # TODO(synk): for production d_model, pad C to a multiple of 128 (lane-
    # dense vregs / unmasked stores) and cast matmul inputs to bf16 on
    # v6e/v7x; kept exact f32 at C=32 to preserve the module's numerics.
    return pl.pallas_call(
        functools.partial(decoder_layer_kernel, num_heads),
        out_shape=jax.ShapeDtypeStruct((B, N, C), x.dtype),
        grid=(B // block_b,),
        in_specs=in_specs,
        out_specs=pl.BlockSpec((block_b, N, C), lambda b: (b, 0, 0)),
        compiler_params=pltpu.CompilerParams(
            dimension_semantics=("parallel",),
            vmem_limit_bytes=32 * 1024 * 1024),
    )(x, mem, *packed)


# ---------------------------------------------------------------------------
# Pure-JAX reference (mirrors the PyTorch forward exactly; unpacked weights)
# ---------------------------------------------------------------------------

def reference(x, mem, p, num_heads):
    (n1g, n1b, n2g, n2b,
     sa_wq, sa_wk, sa_wv, sa_wp, sa_bp,
     ca_wq, ca_wk, ca_wv, ca_wp, ca_bp,
     w1, b1, w2, b2) = p

    def ln(x, g, b):
        mean = x.mean(-1, keepdims=True)
        var = ((x - mean) ** 2).mean(-1, keepdims=True)
        return (x - mean) / jnp.sqrt(var + 1e-5) * g[0] + b[0]

    def attn(q, k, v, wq, wk, wv, wp, bp, H):
        B, N, C = q.shape
        M = k.shape[1]
        hd = C // H
        scale = hd ** -0.5
        qp = (q @ wq.T).reshape(B, N, H, hd)
        kp = (k @ wk.T).reshape(B, M, H, hd)
        vp = (v @ wv.T).reshape(B, M, H, hd)
        a = jnp.einsum('bnkc,bmkc->bknm', qp, kp) * scale
        a = jax.nn.softmax(a, axis=-1)
        o = jnp.einsum('bknm,bmkc->bnkc', a, vp).reshape(B, N, C)
        return o @ wp.T + bp[0]

    def mlp(x):
        h = x @ w1.T + b1[0]
        h = 0.5 * h * (1.0 + jax.lax.erf(h / jnp.sqrt(2.0)))
        return h @ w2.T + b2[0]

    q = ln(x, n1g, n1b)
    qc = x + attn(q, q, q, sa_wq, sa_wk, sa_wv, sa_wp, sa_bp, num_heads)
    qc = ln(qc, n2g, n2b)
    vc = attn(qc, mem, mem, ca_wq, ca_wk, ca_wv, ca_wp, ca_bp, num_heads)
    return mlp(vc) + mlp(qc)


# ---------------------------------------------------------------------------
# Parameter init + main
# ---------------------------------------------------------------------------

def init_params(key, d_model):
    C = d_model
    keys = jax.random.split(key, 16)

    def lin_w(k, out_f, in_f):
        bound = 1.0 / math.sqrt(in_f)
        return jax.random.uniform(k, (out_f, in_f), jnp.float32, -bound, bound)

    def lin_b(k, out_f, in_f):
        bound = 1.0 / math.sqrt(in_f)
        return jax.random.uniform(k, (1, out_f), jnp.float32, -bound, bound)

    n1g = jnp.ones((1, C), jnp.float32)
    n1b = jnp.zeros((1, C), jnp.float32)
    n2g = jnp.ones((1, C), jnp.float32)
    n2b = jnp.zeros((1, C), jnp.float32)

    # self-attention (q/k/v have no bias; proj has bias)
    sa_wq = lin_w(keys[0], C, C)
    sa_wk = lin_w(keys[1], C, C)
    sa_wv = lin_w(keys[2], C, C)
    sa_wp = lin_w(keys[3], C, C)
    sa_bp = lin_b(keys[4], C, C)

    # cross-attention
    ca_wq = lin_w(keys[5], C, C)
    ca_wk = lin_w(keys[6], C, C)
    ca_wv = lin_w(keys[7], C, C)
    ca_wp = lin_w(keys[8], C, C)
    ca_bp = lin_b(keys[9], C, C)

    # MLP
    w1 = lin_w(keys[10], 4 * C, C)
    b1 = lin_b(keys[11], 4 * C, C)
    w2 = lin_w(keys[12], C, 4 * C)
    b2 = lin_b(keys[13], C, 4 * C)

    return (n1g, n1b, n2g, n2b,
            sa_wq, sa_wk, sa_wv, sa_wp, sa_bp,
            ca_wq, ca_wk, ca_wv, ca_wp, ca_bp,
            w1, b1, w2, b2)


if __name__ == "__main__":
    B, N, M, d_model, nhead = 2, 8, 8, 32, 8

    root = jax.random.PRNGKey(0)
    kx, kmem, kp = jax.random.split(root, 3)

    x = jax.random.normal(kx, (B, N, d_model), jnp.float32)
    mem = jax.random.normal(kmem, (B, M, d_model), jnp.float32)
    params = init_params(kp, d_model)

    out = transformer_decoder_layer(x, mem, params, nhead)
    out = jax.block_until_ready(out)

    ref = jax.block_until_ready(reference(x, mem, params, nhead))
    assert out.shape == (B, N, d_model)
    # Tolerance relaxed from 1e-4 because the kernel uses the EUP approximate
    # reciprocal for the softmax denominator (pl.reciprocal(approx=True)).
    assert jnp.allclose(out, ref, rtol=5e-3, atol=5e-3), \
        f"max abs err {jnp.max(jnp.abs(out - ref))}"

    print("KERNEL_OK")
</pallas_src>

<mosaic_0001>
module attributes {stable_mosaic.version = 11 : i64} {
  func.func @decoder_layer_kernel(%arg0: i32, %arg1: memref<2x8x32xf32, #tpu.memory_space<vmem>>, %arg2: memref<2x8x32xf32, #tpu.memory_space<vmem>>, %arg3: memref<1x32xf32, #tpu.memory_space<vmem>>, %arg4: memref<1x32xf32, #tpu.memory_space<vmem>>, %arg5: memref<1x32xf32, #tpu.memory_space<vmem>>, %arg6: memref<1x32xf32, #tpu.memory_space<vmem>>, %arg7: memref<32x96xf32, #tpu.memory_space<vmem>>, %arg8: memref<32x32xf32, #tpu.memory_space<vmem>>, %arg9: memref<1x32xf32, #tpu.memory_space<vmem>>, %arg10: memref<32x32xf32, #tpu.memory_space<vmem>>, %arg11: memref<32x64xf32, #tpu.memory_space<vmem>>, %arg12: memref<32x32xf32, #tpu.memory_space<vmem>>, %arg13: memref<1x32xf32, #tpu.memory_space<vmem>>, %arg14: memref<32x128xf32, #tpu.memory_space<vmem>>, %arg15: memref<1x128xf32, #tpu.memory_space<vmem>>, %arg16: memref<128x32xf32, #tpu.memory_space<vmem>>, %arg17: memref<1x32xf32, #tpu.memory_space<vmem>>, %arg18: memref<2x8x32xf32, #tpu.memory_space<vmem>>) attributes {dimension_semantics = [#tpu.dimension_semantics<parallel>], iteration_bounds = array<i64: 1>, scalar_prefetch = 0 : i64, scratch_operands = 0 : i64, tpu.core_type = #tpu.core_type<tc>, window_params = [{transform_indices = @transform_0, window_bounds = array<i64: 2, 8, 32>}, {transform_indices = @transform_1, window_bounds = array<i64: 2, 8, 32>}, {pipeline_mode = #tpu.pipeline_mode<synchronous>, transform_indices = @transform_2, window_bounds = array<i64: 1, 32>}, {pipeline_mode = #tpu.pipeline_mode<synchronous>, transform_indices = @transform_3, window_bounds = array<i64: 1, 32>}, {pipeline_mode = #tpu.pipeline_mode<synchronous>, transform_indices = @transform_4, window_bounds = array<i64: 1, 32>}, {pipeline_mode = #tpu.pipeline_mode<synchronous>, transform_indices = @transform_5, window_bounds = array<i64: 1, 32>}, {pipeline_mode = #tpu.pipeline_mode<synchronous>, transform_indices = @transform_6, window_bounds = array<i64: 32, 96>}, {pipeline_mode = #tpu.pipeline_mode<synchronous>, transform_indices = @transform_7, window_bounds = array<i64: 32, 32>}, {pipeline_mode = #tpu.pipeline_mode<synchronous>, transform_indices = @transform_8, window_bounds = array<i64: 1, 32>}, {pipeline_mode = #tpu.pipeline_mode<synchronous>, transform_indices = @transform_9, window_bounds = array<i64: 32, 32>}, {pipeline_mode = #tpu.pipeline_mode<synchronous>, transform_indices = @transform_10, window_bounds = array<i64: 32, 64>}, {pipeline_mode = #tpu.pipeline_mode<synchronous>, transform_indices = @transform_11, window_bounds = array<i64: 32, 32>}, {pipeline_mode = #tpu.pipeline_mode<synchronous>, transform_indices = @transform_12, window_bounds = array<i64: 1, 32>}, {pipeline_mode = #tpu.pipeline_mode<synchronous>, transform_indices = @transform_13, window_bounds = array<i64: 32, 128>}, {pipeline_mode = #tpu.pipeline_mode<synchronous>, transform_indices = @transform_14, window_bounds = array<i64: 1, 128>}, {pipeline_mode = #tpu.pipeline_mode<synchronous>, transform_indices = @transform_15, window_bounds = array<i64: 128, 32>}, {pipeline_mode = #tpu.pipeline_mode<synchronous>, transform_indices = @transform_16, window_bounds = array<i64: 1, 32>}, {transform_indices = @transform_17, window_bounds = array<i64: 2, 8, 32>}]} {
    %c0 = arith.constant 0 : index
    %c0_0 = arith.constant 0 : index
    %c0_1 = arith.constant 0 : index
    %0 = vector.load %arg1[%c0, %c0_0, %c0_1] : memref<2x8x32xf32, #tpu.memory_space<vmem>>, vector<2x8x32xf32>
    %1 = vector.shape_cast %0 : vector<2x8x32xf32> to vector<16x32xf32>
    %c0_2 = arith.constant 0 : index
    %c0_3 = arith.constant 0 : index
    %c0_4 = arith.constant 0 : index
    %2 = vector.load %arg2[%c0_2, %c0_3, %c0_4] : memref<2x8x32xf32, #tpu.memory_space<vmem>>, vector<2x8x32xf32>
    %3 = vector.shape_cast %2 : vector<2x8x32xf32> to vector<16x32xf32>
    %c0_5 = arith.constant 0 : index
    %c0_6 = arith.constant 0 : index
    %4 = vector.load %arg3[%c0_5, %c0_6] : memref<1x32xf32, #tpu.memory_space<vmem>>, vector<1x32xf32>
    %c0_7 = arith.constant 0 : index
    %c0_8 = arith.constant 0 : index
    %5 = vector.load %arg4[%c0_7, %c0_8] : memref<1x32xf32, #tpu.memory_space<vmem>>, vector<1x32xf32>
    %cst = arith.constant dense<0.000000e+00> : vector<16xf32>
    %6 = vector.multi_reduction <add>, %1, %cst [1] : vector<16x32xf32> to vector<16xf32>
    %7 = vector.shape_cast %6 : vector<16xf32> to vector<16x1xf32>
    %cst_9 = arith.constant 3.200000e+01 : f32
    %8 = vector.broadcast %cst_9 : f32 to vector<16x1xf32>
    %9 = arith.divf %7, %8 : vector<16x1xf32>
    %10 = vector.broadcast %9 : vector<16x1xf32> to vector<16x32xf32>
    %11 = arith.subf %1, %10 : vector<16x32xf32>
    %12 = arith.mulf %11, %11 : vector<16x32xf32>
    %cst_10 = arith.constant dense<0.000000e+00> : vector<16xf32>
    %13 = vector.multi_reduction <add>, %12, %cst_10 [1] : vector<16x32xf32> to vector<16xf32>
    %14 = vector.shape_cast %13 : vector<16xf32> to vector<16x1xf32>
    %cst_11 = arith.constant 3.200000e+01 : f32
    %15 = vector.broadcast %cst_11 : f32 to vector<16x1xf32>
    %16 = arith.divf %14, %15 : vector<16x1xf32>
    %17 = vector.broadcast %9 : vector<16x1xf32> to vector<16x32xf32>
    %18 = arith.subf %1, %17 : vector<16x32xf32>
    %cst_12 = arith.constant 9.99999974E-6 : f32
    %19 = vector.broadcast %cst_12 : f32 to vector<16x1xf32>
    %20 = arith.addf %16, %19 : vector<16x1xf32>
    %21 = math.rsqrt %20 : vector<16x1xf32>
    %22 = vector.broadcast %21 : vector<16x1xf32> to vector<16x32xf32>
    %23 = arith.mulf %18, %22 : vector<16x32xf32>
    %24 = vector.broadcast %4 : vector<1x32xf32> to vector<16x32xf32>
    %25 = arith.mulf %23, %24 : vector<16x32xf32>
    %26 = vector.broadcast %5 : vector<1x32xf32> to vector<16x32xf32>
    %27 = arith.addf %25, %26 : vector<16x32xf32>
    %c0_13 = arith.constant 0 : index
    %c0_14 = arith.constant 0 : index
    %28 = vector.load %arg7[%c0_13, %c0_14] : memref<32x96xf32, #tpu.memory_space<vmem>>, vector<32x96xf32>
    %cst_15 = arith.constant dense<0.000000e+00> : vector<16x96xf32>
    %29 = tpu.matmul %27, %28, %cst_15 {dimension_numbers = #tpu.dot_dimension_numbers<[1], [0], [0], [1], [0, 0, 1, 1], [], []>} : vector<16x32xf32>, vector<32x96xf32>, vector<16x96xf32> -> vector<16x96xf32>
    %30 = vector.extract_strided_slice %29 {offsets = [0, 0], sizes = [16, 32], strides = [1, 1]} : vector<16x96xf32> to vector<16x32xf32>
    %31 = vector.extract_strided_slice %29 {offsets = [0, 32], sizes = [16, 32], strides = [1, 1]} : vector<16x96xf32> to vector<16x32xf32>
    %32 = vector.extract_strided_slice %29 {offsets = [0, 64], sizes = [16, 32], strides = [1, 1]} : vector<16x96xf32> to vector<16x32xf32>
    %33 = vector.shape_cast %30 : vector<16x32xf32> to vector<2x8x8x4xf32>
    %34 = tpu.transpose %33, [0, 2, 1, 3] : vector<2x8x8x4xf32> -> vector<2x8x8x4xf32>
    %35 = vector.shape_cast %31 : vector<16x32xf32> to vector<2x8x8x4xf32>
    %36 = tpu.transpose %35, [0, 2, 1, 3] : vector<2x8x8x4xf32> -> vector<2x8x8x4xf32>
    %37 = vector.shape_cast %32 : vector<16x32xf32> to vector<2x8x8x4xf32>
    %38 = tpu.transpose %37, [0, 2, 1, 3] : vector<2x8x8x4xf32> -> vector<2x8x8x4xf32>
    %39 = vector.shape_cast %34 : vector<2x8x8x4xf32> to vector<16x8x4xf32>
    %40 = vector.shape_cast %36 : vector<2x8x8x4xf32> to vector<16x8x4xf32>
    %41 = vector.shape_cast %38 : vector<2x8x8x4xf32> to vector<16x8x4xf32>
    "tpu.trace_start"() <{level = 10 : i32, message = "bnd,bmd->bnm"}> : () -> ()
    %cst_16 = arith.constant dense<0.000000e+00> : vector<16x8x8xf32>
    %42 = tpu.matmul %39, %40, %cst_16 {dimension_numbers = #tpu.dot_dimension_numbers<[2], [2], [1], [1], [0, 0, 0, 1, 1, 1], [0], [0]>} : vector<16x8x4xf32>, vector<16x8x4xf32>, vector<16x8x8xf32> -> vector<16x8x8xf32>
    "tpu.trace_stop"() : () -> ()
    %cst_17 = arith.constant dense<0xFF800000> : vector<16x8xf32>
    %43 = vector.multi_reduction <maximumf>, %42, %cst_17 [2] : vector<16x8x8xf32> to vector<16x8xf32>
    %44 = vector.shape_cast %43 : vector<16x8xf32> to vector<16x8x1xf32>
    %45 = vector.broadcast %44 : vector<16x8x1xf32> to vector<16x8x8xf32>
    %46 = arith.subf %42, %45 : vector<16x8x8xf32>
    %47 = math.exp %46 : vector<16x8x8xf32>
    %cst_18 = arith.constant dense<0.000000e+00> : vector<16x8xf32>
    %48 = vector.multi_reduction <add>, %47, %cst_18 [2] : vector<16x8x8xf32> to vector<16x8xf32>
    %49 = vector.shape_cast %48 : vector<16x8xf32> to vector<16x8x1xf32>
    %50 = tpu.reciprocal %49 {approx = true} : vector<16x8x1xf32> -> vector<16x8x1xf32>
    %51 = vector.broadcast %50 : vector<16x8x1xf32> to vector<16x8x8xf32>
    %52 = arith.mulf %47, %51 : vector<16x8x8xf32>
    "tpu.trace_start"() <{level = 10 : i32, message = "bnm,bmd->bnd"}> : () -> ()
    %cst_19 = arith.constant dense<0.000000e+00> : vector<16x8x4xf32>
    %53 = tpu.matmul %52, %41, %cst_19 {dimension_numbers = #tpu.dot_dimension_numbers<[2], [1], [1], [2], [0, 0, 0, 1, 1, 2], [0], [0]>} : vector<16x8x8xf32>, vector<16x8x4xf32>, vector<16x8x4xf32> -> vector<16x8x4xf32>
    "tpu.trace_stop"() : () -> ()
    %54 = vector.shape_cast %53 : vector<16x8x4xf32> to vector<2x8x8x4xf32>
    %55 = tpu.transpose %54, [0, 2, 1, 3] : vector<2x8x8x4xf32> -> vector<2x8x8x4xf32>
    %56 = vector.shape_cast %55 : vector<2x8x8x4xf32> to vector<16x32xf32>
    %c0_20 = arith.constant 0 : index
    %c0_21 = arith.constant 0 : index
    %57 = vector.load %arg8[%c0_20, %c0_21] : memref<32x32xf32, #tpu.memory_space<vmem>>, vector<32x32xf32>
    %cst_22 = arith.constant dense<0.000000e+00> : vector<16x32xf32>
    %58 = tpu.matmul %56, %57, %cst_22 {dimension_numbers = #tpu.dot_dimension_numbers<[1], [0], [0], [1], [0, 0, 1, 1], [], []>} : vector<16x32xf32>, vector<32x32xf32>, vector<16x32xf32> -> vector<16x32xf32>
    %c0_23 = arith.constant 0 : index
    %c0_24 = arith.constant 0 : index
    %59 = vector.load %arg9[%c0_23, %c0_24] : memref<1x32xf32, #tpu.memory_space<vmem>>, vector<1x32xf32>
    %60 = vector.broadcast %59 : vector<1x32xf32> to vector<16x32xf32>
    %61 = arith.addf %58, %60 : vector<16x32xf32>
    %62 = arith.addf %1, %61 : vector<16x32xf32>
    %c0_25 = arith.constant 0 : index
    %c0_26 = arith.constant 0 : index
    %63 = vector.load %arg5[%c0_25, %c0_26] : memref<1x32xf32, #tpu.memory_space<vmem>>, vector<1x32xf32>
    %c0_27 = arith.constant 0 : index
    %c0_28 = arith.constant 0 : index
    %64 = vector.load %arg6[%c0_27, %c0_28] : memref<1x32xf32, #tpu.memory_space<vmem>>, vector<1x32xf32>
    %cst_29 = arith.constant dense<0.000000e+00> : vector<16xf32>
    %65 = vector.multi_reduction <add>, %62, %cst_29 [1] : vector<16x32xf32> to vector<16xf32>
    %66 = vector.shape_cast %65 : vector<16xf32> to vector<16x1xf32>
    %cst_30 = arith.constant 3.200000e+01 : f32
    %67 = vector.broadcast %cst_30 : f32 to vector<16x1xf32>
    %68 = arith.divf %66, %67 : vector<16x1xf32>
    %69 = vector.broadcast %68 : vector<16x1xf32> to vector<16x32xf32>
    %70 = arith.subf %62, %69 : vector<16x32xf32>
    %71 = arith.mulf %70, %70 : vector<16x32xf32>
    %cst_31 = arith.constant dense<0.000000e+00> : vector<16xf32>
    %72 = vector.multi_reduction <add>, %71, %cst_31 [1] : vector<16x32xf32> to vector<16xf32>
    %73 = vector.shape_cast %72 : vector<16xf32> to vector<16x1xf32>
    %cst_32 = arith.constant 3.200000e+01 : f32
    %74 = vector.broadcast %cst_32 : f32 to vector<16x1xf32>
    %75 = arith.divf %73, %74 : vector<16x1xf32>
    %76 = vector.broadcast %68 : vector<16x1xf32> to vector<16x32xf32>
    %77 = arith.subf %62, %76 : vector<16x32xf32>
    %cst_33 = arith.constant 9.99999974E-6 : f32
    %78 = vector.broadcast %cst_33 : f32 to vector<16x1xf32>
    %79 = arith.addf %75, %78 : vector<16x1xf32>
    %80 = math.rsqrt %79 : vector<16x1xf32>
    %81 = vector.broadcast %80 : vector<16x1xf32> to vector<16x32xf32>
    %82 = arith.mulf %77, %81 : vector<16x32xf32>
    %83 = vector.broadcast %63 : vector<1x32xf32> to vector<16x32xf32>
    %84 = arith.mulf %82, %83 : vector<16x32xf32>
    %85 = vector.broadcast %64 : vector<1x32xf32> to vector<16x32xf32>
    %86 = arith.addf %84, %85 : vector<16x32xf32>
    %c0_34 = arith.constant 0 : index
    %c0_35 = arith.constant 0 : index
    %87 = vector.load %arg10[%c0_34, %c0_35] : memref<32x32xf32, #tpu.memory_space<vmem>>, vector<32x32xf32>
    %cst_36 = arith.constant dense<0.000000e+00> : vector<16x32xf32>
    %88 = tpu.matmul %86, %87, %cst_36 {dimension_numbers = #tpu.dot_dimension_numbers<[1], [0], [0], [1], [0, 0, 1, 1], [], []>} : vector<16x32xf32>, vector<32x32xf32>, vector<16x32xf32> -> vector<16x32xf32>
    %c0_37 = arith.constant 0 : index
    %c0_38 = arith.constant 0 : index
    %89 = vector.load %arg11[%c0_37, %c0_38] : memref<32x64xf32, #tpu.memory_space<vmem>>, vector<32x64xf32>
    %cst_39 = arith.constant dense<0.000000e+00> : vector<16x64xf32>
    %90 = tpu.matmul %3, %89, %cst_39 {dimension_numbers = #tpu.dot_dimension_numbers<[1], [0], [0], [1], [0, 0, 1, 1], [], []>} : vector<16x32xf32>, vector<32x64xf32>, vector<16x64xf32> -> vector<16x64xf32>
    %91 = vector.extract_strided_slice %90 {offsets = [0, 0], sizes = [16, 32], strides = [1, 1]} : vector<16x64xf32> to vector<16x32xf32>
    %92 = vector.extract_strided_slice %90 {offsets = [0, 32], sizes = [16, 32], strides = [1, 1]} : vector<16x64xf32> to vector<16x32xf32>
    %93 = vector.shape_cast %88 : vector<16x32xf32> to vector<2x8x8x4xf32>
    %94 = tpu.transpose %93, [0, 2, 1, 3] : vector<2x8x8x4xf32> -> vector<2x8x8x4xf32>
    %95 = vector.shape_cast %91 : vector<16x32xf32> to vector<2x8x8x4xf32>
    %96 = tpu.transpose %95, [0, 2, 1, 3] : vector<2x8x8x4xf32> -> vector<2x8x8x4xf32>
    %97 = vector.shape_cast %92 : vector<16x32xf32> to vector<2x8x8x4xf32>
    %98 = tpu.transpose %97, [0, 2, 1, 3] : vector<2x8x8x4xf32> -> vector<2x8x8x4xf32>
    %99 = vector.shape_cast %94 : vector<2x8x8x4xf32> to vector<16x8x4xf32>
    %100 = vector.shape_cast %96 : vector<2x8x8x4xf32> to vector<16x8x4xf32>
    %101 = vector.shape_cast %98 : vector<2x8x8x4xf32> to vector<16x8x4xf32>
    "tpu.trace_start"() <{level = 10 : i32, message = "bnd,bmd->bnm"}> : () -> ()
    %cst_40 = arith.constant dense<0.000000e+00> : vector<16x8x8xf32>
    %102 = tpu.matmul %99, %100, %cst_40 {dimension_numbers = #tpu.dot_dimension_numbers<[2], [2], [1], [1], [0, 0, 0, 1, 1, 1], [0], [0]>} : vector<16x8x4xf32>, vector<16x8x4xf32>, vector<16x8x8xf32> -> vector<16x8x8xf32>
    "tpu.trace_stop"() : () -> ()
    %cst_41 = arith.constant dense<0xFF800000> : vector<16x8xf32>
    %103 = vector.multi_reduction <maximumf>, %102, %cst_41 [2] : vector<16x8x8xf32> to vector<16x8xf32>
    %104 = vector.shape_cast %103 : vector<16x8xf32> to vector<16x8x1xf32>
    %105 = vector.broadcast %104 : vector<16x8x1xf32> to vector<16x8x8xf32>
    %106 = arith.subf %102, %105 : vector<16x8x8xf32>
    %107 = math.exp %106 : vector<16x8x8xf32>
    %cst_42 = arith.constant dense<0.000000e+00> : vector<16x8xf32>
    %108 = vector.multi_reduction <add>, %107, %cst_42 [2] : vector<16x8x8xf32> to vector<16x8xf32>
    %109 = vector.shape_cast %108 : vector<16x8xf32> to vector<16x8x1xf32>
    %110 = tpu.reciprocal %109 {approx = true} : vector<16x8x1xf32> -> vector<16x8x1xf32>
    %111 = vector.broadcast %110 : vector<16x8x1xf32> to vector<16x8x8xf32>
    %112 = arith.mulf %107, %111 : vector<16x8x8xf32>
    "tpu.trace_start"() <{level = 10 : i32, message = "bnm,bmd->bnd"}> : () -> ()
    %cst_43 = arith.constant dense<0.000000e+00> : vector<16x8x4xf32>
    %113 = tpu.matmul %112, %101, %cst_43 {dimension_numbers = #tpu.dot_dimension_numbers<[2], [1], [1], [2], [0, 0, 0, 1, 1, 2], [0], [0]>} : vector<16x8x8xf32>, vector<16x8x4xf32>, vector<16x8x4xf32> -> vector<16x8x4xf32>
    "tpu.trace_stop"() : () -> ()
    %114 = vector.shape_cast %113 : vector<16x8x4xf32> to vector<2x8x8x4xf32>
    %115 = tpu.transpose %114, [0, 2, 1, 3] : vector<2x8x8x4xf32> -> vector<2x8x8x4xf32>
    %116 = vector.shape_cast %115 : vector<2x8x8x4xf32> to vector<16x32xf32>
    %c0_44 = arith.constant 0 : index
    %c0_45 = arith.constant 0 : index
    %117 = vector.load %arg12[%c0_44, %c0_45] : memref<32x32xf32, #tpu.memory_space<vmem>>, vector<32x32xf32>
    %cst_46 = arith.constant dense<0.000000e+00> : vector<16x32xf32>
    %118 = tpu.matmul %116, %117, %cst_46 {dimension_numbers = #tpu.dot_dimension_numbers<[1], [0], [0], [1], [0, 0, 1, 1], [], []>} : vector<16x32xf32>, vector<32x32xf32>, vector<16x32xf32> -> vector<16x32xf32>
    %c0_47 = arith.constant 0 : index
    %c0_48 = arith.constant 0 : index
    %119 = vector.load %arg13[%c0_47, %c0_48] : memref<1x32xf32, #tpu.memory_space<vmem>>, vector<1x32xf32>
    %120 = vector.broadcast %119 : vector<1x32xf32> to vector<16x32xf32>
    %121 = arith.addf %118, %120 : vector<16x32xf32>
    %122 = tpu.concatenate %121, %86 in 0 : vector<16x32xf32>, vector<16x32xf32> -> vector<32x32xf32>
    %c0_49 = arith.constant 0 : index
    %c0_50 = arith.constant 0 : index
    %123 = vector.load %arg14[%c0_49, %c0_50] : memref<32x128xf32, #tpu.memory_space<vmem>>, vector<32x128xf32>
    %cst_51 = arith.constant dense<0.000000e+00> : vector<32x128xf32>
    %124 = tpu.matmul %122, %123, %cst_51 {dimension_numbers = #tpu.dot_dimension_numbers<[1], [0], [0], [1], [0, 0, 1, 1], [], []>} : vector<32x32xf32>, vector<32x128xf32>, vector<32x128xf32> -> vector<32x128xf32>
    %c0_52 = arith.constant 0 : index
    %c0_53 = arith.constant 0 : index
    %125 = vector.load %arg15[%c0_52, %c0_53] : memref<1x128xf32, #tpu.memory_space<vmem>>, vector<1x128xf32>
    %126 = vector.broadcast %125 : vector<1x128xf32> to vector<32x128xf32>
    %127 = arith.addf %124, %126 : vector<32x128xf32>
    %cst_54 = arith.constant 5.000000e-01 : f32
    %128 = vector.broadcast %cst_54 : f32 to vector<32x128xf32>
    %129 = arith.mulf %128, %127 : vector<32x128xf32>
    %cst_55 = arith.constant 2.000000e+00 : f32
    %130 = math.sqrt %cst_55 : f32
    %131 = vector.broadcast %130 : f32 to vector<32x128xf32>
    %132 = arith.divf %127, %131 : vector<32x128xf32>
    %133 = math.erf %132 : vector<32x128xf32>
    %cst_56 = arith.constant 1.000000e+00 : f32
    %134 = vector.broadcast %cst_56 : f32 to vector<32x128xf32>
    %135 = arith.addf %134, %133 : vector<32x128xf32>
    %136 = arith.mulf %129, %135 : vector<32x128xf32>
    %c0_57 = arith.constant 0 : index
    %c0_58 = arith.constant 0 : index
    %137 = vector.load %arg16[%c0_57, %c0_58] : memref<128x32xf32, #tpu.memory_space<vmem>>, vector<128x32xf32>
    %cst_59 = arith.constant dense<0.000000e+00> : vector<32x32xf32>
    %138 = tpu.matmul %136, %137, %cst_59 {dimension_numbers = #tpu.dot_dimension_numbers<[1], [0], [0], [1], [0, 0, 1, 1], [], []>} : vector<32x128xf32>, vector<128x32xf32>, vector<32x32xf32> -> vector<32x32xf32>
    %c0_60 = arith.constant 0 : index
    %c0_61 = arith.constant 0 : index
    %139 = vector.load %arg17[%c0_60, %c0_61] : memref<1x32xf32, #tpu.memory_space<vmem>>, vector<1x32xf32>
    %140 = vector.broadcast %139 : vector<1x32xf32> to vector<32x32xf32>
    %141 = arith.addf %138, %140 : vector<32x32xf32>
    %142 = vector.extract_strided_slice %141 {offsets = [0, 0], sizes = [16, 32], strides = [1, 1]} : vector<32x32xf32> to vector<16x32xf32>
    %143 = vector.extract_strided_slice %141 {offsets = [16, 0], sizes = [16, 32], strides = [1, 1]} : vector<32x32xf32> to vector<16x32xf32>
    %144 = arith.addf %142, %143 : vector<16x32xf32>
    %145 = vector.shape_cast %144 : vector<16x32xf32> to vector<2x8x32xf32>
    %c0_62 = arith.constant 0 : index
    %c0_63 = arith.constant 0 : index
    %c0_64 = arith.constant 0 : index
    %146 = vector.load %arg18[%c0_62, %c0_63, %c0_64] : memref<2x8x32xf32, #tpu.memory_space<vmem>>, vector<2x8x32xf32>
    tpu.vector_store %arg18[%c0_62, %c0_63, %c0_64], %145 {strides = array<i32>} : memref<2x8x32xf32, #tpu.memory_space<vmem>>, vector<2x8x32xf32>,
    return
  }
  func.func @transform_0(%arg0: i32) -> (i32, i32, i32) {
    %c0_i32 = arith.constant 0 : i32
    %c0_i32_0 = arith.constant 0 : i32
    %c0_i32_1 = arith.constant 0 : i32
    return %arg0, %c0_i32, %c0_i32_0 : i32, i32, i32
  }
  func.func @transform_1(%arg0: i32) -> (i32, i32, i32) {
    %c0_i32 = arith.constant 0 : i32
    %c0_i32_0 = arith.constant 0 : i32
    %c0_i32_1 = arith.constant 0 : i32
    return %arg0, %c0_i32, %c0_i32_0 : i32, i32, i32
  }
  func.func @transform_2(%arg0: i32) -> (i32, i32) {
    %c0_i32 = arith.constant 0 : i32
    %c0_i32_0 = arith.constant 0 : i32
    %c0_i32_1 = arith.constant 0 : i32
    return %c0_i32, %c0_i32_0 : i32, i32
  }
  func.func @transform_3(%arg0: i32) -> (i32, i32) {
    %c0_i32 = arith.constant 0 : i32
    %c0_i32_0 = arith.constant 0 : i32
    %c0_i32_1 = arith.constant 0 : i32
    return %c0_i32, %c0_i32_0 : i32, i32
  }
  func.func @transform_4(%arg0: i32) -> (i32, i32) {
    %c0_i32 = arith.constant 0 : i32
    %c0_i32_0 = arith.constant 0 : i32
    %c0_i32_1 = arith.constant 0 : i32
    return %c0_i32, %c0_i32_0 : i32, i32
  }
  func.func @transform_5(%arg0: i32) -> (i32, i32) {
    %c0_i32 = arith.constant 0 : i32
    %c0_i32_0 = arith.constant 0 : i32
    %c0_i32_1 = arith.constant 0 : i32
    return %c0_i32, %c0_i32_0 : i32, i32
  }
  func.func @transform_6(%arg0: i32) -> (i32, i32) {
    %c0_i32 = arith.constant 0 : i32
    %c0_i32_0 = arith.constant 0 : i32
    %c0_i32_1 = arith.constant 0 : i32
    return %c0_i32, %c0_i32_0 : i32, i32
  }
  func.func @transform_7(%arg0: i32) -> (i32, i32) {
    %c0_i32 = arith.constant 0 : i32
    %c0_i32_0 = arith.constant 0 : i32
    %c0_i32_1 = arith.constant 0 : i32
    return %c0_i32, %c0_i32_0 : i32, i32
  }
  func.func @transform_8(%arg0: i32) -> (i32, i32) {
    %c0_i32 = arith.constant 0 : i32
    %c0_i32_0 = arith.constant 0 : i32
    %c0_i32_1 = arith.constant 0 : i32
    return %c0_i32, %c0_i32_0 : i32, i32
  }
  func.func @transform_9(%arg0: i32) -> (i32, i32) {
    %c0_i32 = arith.constant 0 : i32
    %c0_i32_0 = arith.constant 0 : i32
    %c0_i32_1 = arith.constant 0 : i32
    return %c0_i32, %c0_i32_0 : i32, i32
  }
  func.func @transform_10(%arg0: i32) -> (i32, i32) {
    %c0_i32 = arith.constant 0 : i32
    %c0_i32_0 = arith.constant 0 : i32
    %c0_i32_1 = arith.constant 0 : i32
    return %c0_i32, %c0_i32_0 : i32, i32
  }
  func.func @transform_11(%arg0: i32) -> (i32, i32) {
    %c0_i32 = arith.constant 0 : i32
    %c0_i32_0 = arith.constant 0 : i32
    %c0_i32_1 = arith.constant 0 : i32
    return %c0_i32, %c0_i32_0 : i32, i32
  }
  func.func @transform_12(%arg0: i32) -> (i32, i32) {
    %c0_i32 = arith.constant 0 : i32
    %c0_i32_0 = arith.constant 0 : i32
    %c0_i32_1 = arith.constant 0 : i32
    return %c0_i32, %c0_i32_0 : i32, i32
  }
  func.func @transform_13(%arg0: i32) -> (i32, i32) {
    %c0_i32 = arith.constant 0 : i32
    %c0_i32_0 = arith.constant 0 : i32
    %c0_i32_1 = arith.constant 0 : i32
    return %c0_i32, %c0_i32_0 : i32, i32
  }
  func.func @transform_14(%arg0: i32) -> (i32, i32) {
    %c0_i32 = arith.constant 0 : i32
    %c0_i32_0 = arith.constant 0 : i32
    %c0_i32_1 = arith.constant 0 : i32
    return %c0_i32, %c0_i32_0 : i32, i32
  }
  func.func @transform_15(%arg0: i32) -> (i32, i32) {
    %c0_i32 = arith.constant 0 : i32
    %c0_i32_0 = arith.constant 0 : i32
    %c0_i32_1 = arith.constant 0 : i32
    return %c0_i32, %c0_i32_0 : i32, i32
  }
  func.func @transform_16(%arg0: i32) -> (i32, i32) {
    %c0_i32 = arith.constant 0 : i32
    %c0_i32_0 = arith.constant 0 : i32
    %c0_i32_1 = arith.constant 0 : i32
    return %c0_i32, %c0_i32_0 : i32, i32
  }
  func.func @transform_17(%arg0: i32) -> (i32, i32, i32) {
    %c0_i32 = arith.constant 0 : i32
    %c0_i32_0 = arith.constant 0 : i32
    %c0_i32_1 = arith.constant 0 : i32
    return %arg0, %c0_i32, %c0_i32_0 : i32, i32, i32
  }
}

</mosaic_0001>

<llo_original>
// kernel: tpu_custom_call.1
$region0: #{tpu_custom_call.1}
  #allocation0 [shape = 'u32[]', space=smem, size = 0x4, offset = 0x4, fixed_abs, tag = 'smem constant byte address 0x4 - core index']
  #allocation1 [shape = 'u32[144,128]{1,0:T(1,128)}', space=vmem, size = 0x12000, scoped, tag = 'internal scratch']
  %s0 = inlined_call_operand.hbm [shape: f32[2,8,32], index: 0, kind: input, shape index: {}]
  %s1 = inlined_call_operand.hbm [shape: f32[2,8,32], index: 1, kind: input, shape index: {}]
  %s2 = inlined_call_operand.vmem [shape: f32[1,32], index: 2, kind: input, shape index: {}]
  %s3 = inlined_call_operand.vmem [shape: f32[1,32], index: 3, kind: input, shape index: {}]
  %s4 = inlined_call_operand.vmem [shape: f32[1,32], index: 4, kind: input, shape index: {}]
  %s5 = inlined_call_operand.vmem [shape: f32[1,32], index: 5, kind: input, shape index: {}]
  %s6 = inlined_call_operand.vmem [shape: f32[32,96], index: 6, kind: input, shape index: {}]
  %s7 = inlined_call_operand.vmem [shape: f32[32,32], index: 7, kind: input, shape index: {}]
  %s8 = inlined_call_operand.vmem [shape: f32[1,32], index: 8, kind: input, shape index: {}]
  %s9 = inlined_call_operand.vmem [shape: f32[32,32], index: 9, kind: input, shape index: {}]
  %s10 = inlined_call_operand.vmem [shape: f32[32,64], index: 10, kind: input, shape index: {}]
  %s11 = inlined_call_operand.vmem [shape: f32[32,32], index: 11, kind: input, shape index: {}]
  %s12 = inlined_call_operand.vmem [shape: f32[1,32], index: 12, kind: input, shape index: {}]
  %s13 = inlined_call_operand.hbm [shape: f32[32,128], index: 13, kind: input, shape index: {}]
  %s14 = inlined_call_operand.vmem [shape: f32[1,128], index: 14, kind: input, shape index: {}]
  %s15 = inlined_call_operand.vmem [shape: f32[128,32], index: 15, kind: input, shape index: {}]
  %s16 = inlined_call_operand.vmem [shape: f32[1,32], index: 16, kind: input, shape index: {}]
  %s17 = inlined_call_operand.hbm [shape: f32[2,8,32], index: 17, kind: output, shape index: {}]
  %s18 = sld [smem:[#allocation0]]
  $region90: #{tpu_custom_call.1} parent=0
    _
  %s20 = ssub.s32 1, %s18
  %s21 = scalar_select 0, %s20, %s18
  $region1: #{tpu_custom_call.1} parent=0
    #allocation2 [shape = 'u8[8192]{0}', space=vmem, size = 0x2000, scoped, tag = 'input window, operand 0, single buffered']
    #allocation3 [shape = 's32[1]{0}', space=sflag, size = 0x4, scoped, tag = 'scoped memory for tpu_custom_call.1']
    #allocation4 [shape = 's32[1]{0}', space=sflag, size = 0x4, scoped, tag = 'scoped memory for tpu_custom_call.1']
    #allocation5 [shape = 'u8[8192]{0}', space=vmem, size = 0x2000, scoped, tag = 'input window, operand 1, single buffered']
    #allocation6 [shape = 's32[1]{0}', space=sflag, size = 0x4, scoped, tag = 'scoped memory for tpu_custom_call.1']
    #allocation7 [shape = 'u8[16384]{0}', space=vmem, size = 0x4000, scoped, tag = 'input window, operand 13, single buffered']
    #allocation8 [shape = 'u8[8192]{0}', space=vmem, size = 0x2000, scoped, tag = 'output window, operand 0, single buffered']
    %22 = vsyncpa [#allocation3], 0
    %23 = vsyncpa [#allocation6], 0
    %24 = vsyncpa [#allocation4], 0
    // Predicated region
    $region2: #{tpu_custom_call.1} parent=1 // pred_check
      _
    $region3: #{tpu_custom_call.1} parent=1 // pred_check_branch
      %26 = sbr.rel (0) target = $region5
    $region4: #{tpu_custom_call.1} parent=1 // pred_region
      %s28 = ssub.s32 256, 256
      %29 = vsyncadd [#allocation3], %s28
      %s30 = sshll.u32 [#allocation2], 4
      %s31 = int_to_ptr.vmem [resolvable:$true] %s30
      %36 = dma.hbm_to_vmem [thread:$0]  %s0, 256, %s31, [#allocation3], 128, 128, 8
    $region5: #{tpu_custom_call.1} parent=1 // pred_fallthru
      _
    // Predicated region
    $region6: #{tpu_custom_call.1} parent=1 // pred_check
      _
    $region7: #{tpu_custom_call.1} parent=1 // pred_check_branch
      %38 = sbr.rel (0) target = $region9
    $region8: #{tpu_custom_call.1} parent=1 // pred_region
      %s40 = ssub.s32 256, 256
      %41 = vsyncadd [#allocation6], %s40
      %s42 = sshll.u32 [#allocation5], 4
      %s43 = int_to_ptr.vmem [resolvable:$true] %s42
      %48 = dma.hbm_to_vmem [thread:$0]  %s1, 256, %s43, [#allocation6], 128, 128, 8
    $region9: #{tpu_custom_call.1} parent=1 // pred_fallthru
      _
    // Predicated region
    $region10: #{tpu_custom_call.1} parent=1 // pred_check
      _
    $region11: #{tpu_custom_call.1} parent=1 // pred_check_branch
      %50 = sbr.rel (0) target = $region13
    $region12: #{tpu_custom_call.1} parent=1 // pred_region
      _
    $region13: #{tpu_custom_call.1} parent=1 // pred_fallthru
      _
    // Predicated region
    $region14: #{tpu_custom_call.1} parent=1 // pred_check
      _
    $region15: #{tpu_custom_call.1} parent=1 // pred_check_branch
      %52 = sbr.rel (0) target = $region17
    $region16: #{tpu_custom_call.1} parent=1 // pred_region
      _
    $region17: #{tpu_custom_call.1} parent=1 // pred_fallthru
      _
    // Predicated region
    $region18: #{tpu_custom_call.1} parent=1 // pred_check
      _
    $region19: #{tpu_custom_call.1} parent=1 // pred_check_branch
      %54 = sbr.rel (0) target = $region21
    $region20: #{tpu_custom_call.1} parent=1 // pred_region
      _
    $region21: #{tpu_custom_call.1} parent=1 // pred_fallthru
      _
    // Predicated region
    $region22: #{tpu_custom_call.1} parent=1 // pred_check
      _
    $region23: #{tpu_custom_call.1} parent=1 // pred_check_branch
      %56 = sbr.rel (0) target = $region25
    $region24: #{tpu_custom_call.1} parent=1 // pred_region
      _
    $region25: #{tpu_custom_call.1} parent=1 // pred_fallthru
      _
    // Predicated region
    $region26: #{tpu_custom_call.1} parent=1 // pred_check
      _
    $region27: #{tpu_custom_call.1} parent=1 // pred_check_branch
      %58 = sbr.rel (0) target = $region29
    $region28: #{tpu_custom_call.1} parent=1 // pred_region
      _
    $region29: #{tpu_custom_call.1} parent=1 // pred_fallthru
      _
    // Predicated region
    $region30: #{tpu_custom_call.1} parent=1 // pred_check
      _
    $region31: #{tpu_custom_call.1} parent=1 // pred_check_branch
      %60 = sbr.rel (0) target = $region33
    $region32: #{tpu_custom_call.1} parent=1 // pred_region
      _
    $region33: #{tpu_custom_call.1} parent=1 // pred_fallthru
      _
    // Predicated region
    $region34: #{tpu_custom_call.1} parent=1 // pred_check
      _
    $region35: #{tpu_custom_call.1} parent=1 // pred_check_branch
      %62 = sbr.rel (0) target = $region37
    $region36: #{tpu_custom_call.1} parent=1 // pred_region
      _
    $region37: #{tpu_custom_call.1} parent=1 // pred_fallthru
      _
    // Predicated region
    $region38: #{tpu_custom_call.1} parent=1 // pred_check
      _
    $region39: #{tpu_custom_call.1} parent=1 // pred_check_branch
      %64 = sbr.rel (0) target = $region41
    $region40: #{tpu_custom_call.1} parent=1 // pred_region
      _
    $region41: #{tpu_custom_call.1} parent=1 // pred_fallthru
      _
    // Predicated region
    $region42: #{tpu_custom_call.1} parent=1 // pred_check
      _
    $region43: #{tpu_custom_call.1} parent=1 // pred_check_branch
      %66 = sbr.rel (0) target = $region45
    $region44: #{tpu_custom_call.1} parent=1 // pred_region
      _
    $region45: #{tpu_custom_call.1} parent=1 // pred_fallthru
      _
    // Predicated region
    $region46: #{tpu_custom_call.1} parent=1 // pred_check
      _
    $region47: #{tpu_custom_call.1} parent=1 // pred_check_branch
      %68 = sbr.rel (0) target = $region49
    $region48: #{tpu_custom_call.1} parent=1 // pred_region
      _
    $region49: #{tpu_custom_call.1} parent=1 // pred_fallthru
      _
    // Predicated region
    $region50: #{tpu_custom_call.1} parent=1 // pred_check
      _
    $region51: #{tpu_custom_call.1} parent=1 // pred_check_branch
      %70 = sbr.rel (0) target = $region53
    $region52: #{tpu_custom_call.1} parent=1 // pred_region
      _
    $region53: #{tpu_custom_call.1} parent=1 // pred_fallthru
      _
    // Predicated region
    $region54: #{tpu_custom_call.1} parent=1 // pred_check
      _
    $region55: #{tpu_custom_call.1} parent=1 // pred_check_branch
      %72 = sbr.rel (0) target = $region57
    $region56: #{tpu_custom_call.1} parent=1 // pred_region
      %s74 = ssub.s32 512, 512
      %75 = vsyncadd [#allocation6], %s74
      %s76 = sshll.u32 [#allocation7], 4
      %s77 = int_to_ptr.vmem [resolvable:$true] %s76
      %82 = dma.hbm_to_vmem [thread:$0]  %s13, 512, %s77, [#allocation6], 128, 128, 8
    $region57: #{tpu_custom_call.1} parent=1 // pred_fallthru
      _
    // Predicated region
    $region58: #{tpu_custom_call.1} parent=1 // pred_check
      _
    $region59: #{tpu_custom_call.1} parent=1 // pred_check_branch
      %84 = sbr.rel (0) target = $region61
    $region60: #{tpu_custom_call.1} parent=1 // pred_region
      _
    $region61: #{tpu_custom_call.1} parent=1 // pred_fallthru
      _
    // Predicated region
    $region62: #{tpu_custom_call.1} parent=1 // pred_check
      _
    $region63: #{tpu_custom_call.1} parent=1 // pred_check_branch
      %86 = sbr.rel (0) target = $region65
    $region64: #{tpu_custom_call.1} parent=1 // pred_region
      _
    $region65: #{tpu_custom_call.1} parent=1 // pred_fallthru
      _
    // Predicated region
    $region66: #{tpu_custom_call.1} parent=1 // pred_check
      _
    $region67: #{tpu_custom_call.1} parent=1 // pred_check_branch
      %88 = sbr.rel (0) target = $region69
    $region68: #{tpu_custom_call.1} parent=1 // pred_region
      _
    $region69: #{tpu_custom_call.1} parent=1 // pred_fallthru
      _
    // Predicated region
    $region70: #{tpu_custom_call.1} parent=1 // pred_check
      _
    $region71: #{tpu_custom_call.1} parent=1 // pred_check_branch
      %90 = sbr.rel (0) target = $region73
    $region72: #{tpu_custom_call.1} parent=1 // pred_region
      %91 = dma.done [#allocation3], 256
    $region73: #{tpu_custom_call.1} parent=1 // pred_fallthru
      _
    // Predicated region
    $region74: #{tpu_custom_call.1} parent=1 // pred_check
      _
    $region75: #{tpu_custom_call.1} parent=1 // pred_check_branch
      %93 = sbr.rel (0) target = $region77
    $region76: #{tpu_custom_call.1} parent=1 // pred_region
      %94 = dma.done [#allocation6], 256
    $region77: #{tpu_custom_call.1} parent=1 // pred_fallthru
      _
    // Predicated region
    $region78: #{tpu_custom_call.1} parent=1 // pred_check
      _
    $region79: #{tpu_custom_call.1} parent=1 // pred_check_branch
      %96 = sbr.rel (0) target = $region81
    $region80: #{tpu_custom_call.1} parent=1 // pred_region
      %97 = dma.done [#allocation6], 512
    $region81: #{tpu_custom_call.1} parent=1 // pred_fallthru
      _
    %v98 = vld [vmem:[#allocation2] sm:$0xff]
    %v99 = vld [vmem:[#allocation2 + $0x8] sm:$0xff]
    %v100 = vld [vmem:[#allocation5] sm:$0xff]
    %v101 = vld [vmem:[#allocation5 + $0x8] sm:$0xff]
    %v102 = vld [vmem:[%s2] sm:$0x1]
    %v103 = vld [vmem:[%s3] sm:$0x1]
    %vm104 = vcmask 261120
    %v105 = vsel %vm104, %v98, 0.0
    %106 = vadd.xlane.f32.xlu0 %v105
    %v107 = vpop.xlane.xlu0 %106
    %v108 = vsel %vm104, %v99, 0.0
    %109 = vadd.xlane.f32.xlu0 %v108
    %v110 = vpop.xlane.xlu0 %109
    %v111 = vrcp.pop 32.0
    %v112 = vmul.f32 %v107, %v111
    %v113 = vmul.f32 %v110, %v111
    %v114 = vsub.f32 %v98, %v112
    %v115 = vsub.f32 %v99, %v113
    %v116 = vmul.f32 %v114, %v114
    %v117 = vmul.f32 %v115, %v115
    %v118 = vsel %vm104, %v116, 0.0
    %119 = vadd.xlane.f32.xlu0 %v118
    %v120 = vpop.xlane.xlu0 %119
    %v121 = vsel %vm104, %v117, 0.0
    %122 = vadd.xlane.f32.xlu0 %v121
    %v123 = vpop.xlane.xlu0 %122
    %v124 = vmul.f32 %v120, %v111
    %v125 = vmul.f32 %v123, %v111
    %v126 = vadd.f32 %v124, 1e-05
    %v127 = vadd.f32 %v125, 1e-05
    %v128 = vrsqrt.pop %v126
    %v129 = vrsqrt.pop %v127
    %v130 = vmul.f32 %v114, %v128
    %v131 = vmul.f32 %v115, %v129
    %v133 = vlaneseq
    %v134 = vshrl.u32 %v133, 7
    %v135 = vsub.s32 0, %v134
    %v136 = vrot.slane %v102, %v135
    %v138 = vmul.f32 %v130, %v136
    %v139 = vmul.f32 %v131, %v136
    %v141 = vlaneseq
    %v142 = vshrl.u32 %v141, 7
    %v143 = vsub.s32 0, %v142
    %v144 = vrot.slane %v103, %v143
    %v146 = vadd.f32 %v138, %v144
    %v147 = vadd.f32 %v139, %v144
    %v148 = vld [vmem:[%s6] sm:$0xff]
    %v149 = vld [vmem:[%s6 + $0x8] sm:$0xff]
    %v150 = vld [vmem:[%s6 + $0x10] sm:$0xff]
    %v151 = vld [vmem:[%s6 + $0x18] sm:$0xff]
    %v153 = vsel %vm104, %v146, 0
    %v156 = vsel %vm104, %v147, 0
    %158 = vmatprep.subr.mxu0 0.0
    %159 = vmatpush1.msra.mxu0 %v148
    %160 = vmatprep.subr.mxu0 0.0
    %161 = vmatpush1.msra.mxu0 %v149
    %162 = vmatprep.subr.mxu0 0.0
    %163 = vmatpush1.msra.mxu0 %v150
    %164 = vmatprep.subr.mxu0 0.0
    %165 = vmatpush1.msra.mxu0 %v151
    %166 = vmatprep.subr.mxu0 0.0
    %167 = vmatpush1.msra.mxu0 0.0
    %168 = vmatprep.subr.mxu0 0.0
    %169 = vmatpush1.msra.mxu0 0.0
    %170 = vmatprep.subr.mxu0 0.0
    %171 = vmatpush1.msra.mxu0 0.0
    %172 = vmatprep.subr.mxu0 0.0
    %173 = vmatpush1.msra.mxu0 0.0
    %174 = vmatprep.subr.mxu0 0.0
    %175 = vmatpush1.msra.mxu0 0.0
    %176 = vmatprep.subr.mxu0 0.0
    %177 = vmatpush1.msra.mxu0 0.0
    %178 = vmatprep.subr.mxu0 0.0
    %179 = vmatpush1.msra.mxu0 0.0
    %180 = vmatprep.subr.mxu0 0.0
    %181 = vmatpush1.msra.mxu0 0.0
    %182 = vmatprep.subr.mxu0 0.0
    %183 = vmatpush1.msra.mxu0 0.0
    %184 = vmatprep.subr.mxu0 0.0
    %185 = vmatpush1.msra.mxu0 0.0
    %186 = vmatprep.subr.mxu0 0.0
    %187 = vmatpush1.msra.mxu0 0.0
    %188 = vmatprep.subr.mxu0 0.0
    %189 = vmatpush1.msra.mxu0 0.0
    %190 = vmatprep.subr.mxu0 0.0
    %191 = vmatpush1.msra.mxu0 0.0
    %192 = vmatprep.subr.mxu0 0.0
    %193 = vmatpush1.msra.mxu0 0.0
    %194 = vmatprep.subr.mxu0 0.0
    %195 = vmatpush1.msra.mxu0 0.0
    %196 = vmatprep.subr.mxu0 0.0
    %197 = vmatpush1.msra.mxu0 0.0
    %198 = vmatprep.subr.mxu0 0.0
    %199 = vmatpush1.msra.mxu0 0.0
    %200 = vmatprep.subr.mxu0 0.0
    %201 = vmatpush1.msra.mxu0 0.0
    %202 = vmatprep.subr.mxu0 0.0
    %203 = vmatpush1.msra.mxu0 0.0
    %204 = vmatprep.subr.mxu0 0.0
    %205 = vmatpush1.msra.mxu0 0.0
    %206 = vmatprep.subr.mxu0 0.0
    %207 = vmatpush1.msra.mxu0 0.0
    %208 = vmatprep.subr.mxu0 0.0
    %209 = vmatpush1.msra.mxu0 0.0
    %210 = vmatprep.subr.mxu0 0.0
    %211 = vmatpush1.msra.mxu0 0.0
    %212 = vmatprep.subr.mxu0 0.0
    %213 = vmatpush1.msra.mxu0 0.0
    %214 = vmatprep.subr.mxu0 0.0
    %215 = vmatpush1.msra.mxu0 0.0
    %216 = vmatprep.subr.mxu0 0.0
    %217 = vmatpush1.msra.mxu0 0.0
    %218 = vmatprep.subr.mxu0 0.0
    %219 = vmatpush1.msra.mxu0 0.0
    %220 = vmatprep.subr.mxu0 0.0
    %221 = vmatpush1.msra.mxu0 0.0
    %222 = vmatprep.mubr.f32.mxu0 0.0
    %223 = vmatmul.mubr.f32.gmra.mrb[0].mxu0 %v153
    %v224 = vpop.f32.mrb[0].mxu0
    %v225 = vadd.f32 0.0, %v224
    %v226 = vpop.f32.mrb[0].mxu0
    %227 = vmatprep.mubr.f32.mxu0 0.0
    %228 = vmatmul.mubr.f32.gmra.mrb[0].mxu0 %v156
    %v229 = vpop.f32.mrb[0].mxu0
    %v230 = vadd.f32 0.0, %v229
    %v231 = vpop.f32.mrb[0].mxu0
    %232 = vdwg.mxu0
    %235 = vrot.lane.b32.xlu0 %v225, 124
    %v236 = vpop.permute.xlu0 %235
    %237 = vrot.lane.b32.xlu0 %v230, 124
    %v238 = vpop.permute.xlu0 %237
    %241 = vrot.lane.b32.xlu0 %v225, 120
    %v242 = vpop.permute.xlu0 %241
    %243 = vrot.lane.b32.xlu0 %v230, 120
    %v244 = vpop.permute.xlu0 %243
    %247 = vrot.lane.b32.xlu0 %v225, 116
    %v248 = vpop.permute.xlu0 %247
    %249 = vrot.lane.b32.xlu0 %v230, 116
    %v250 = vpop.permute.xlu0 %249
    %253 = vrot.lane.b32.xlu0 %v225, 112
    %v254 = vpop.permute.xlu0 %253
    %255 = vrot.lane.b32.xlu0 %v230, 112
    %v256 = vpop.permute.xlu0 %255
    %259 = vrot.lane.b32.xlu0 %v225, 108
    %v260 = vpop.permute.xlu0 %259
    %261 = vrot.lane.b32.xlu0 %v230, 108
    %v262 = vpop.permute.xlu0 %261
    %265 = vrot.lane.b32.xlu0 %v225, 104
    %v266 = vpop.permute.xlu0 %265
    %267 = vrot.lane.b32.xlu0 %v230, 104
    %v268 = vpop.permute.xlu0 %267
    %271 = vrot.lane.b32.xlu0 %v225, 100
    %v272 = vpop.permute.xlu0 %271
    %273 = vrot.lane.b32.xlu0 %v230, 100
    %v274 = vpop.permute.xlu0 %273
    %v277 = vcombine.low %v225, %v242
    %v278 = vcombine.high %v225, %v242
    %v280 = vunpack.c.l.s4 1983009808
    %v281 = vunpack.c.0.s8 %v280
    %v282 = vlaneseq
    %v283 = vshrl.u32 %v282, 7
    %v284 = vsub.s32 %v281, %v283
    %v285 = vrot.slane %v277, %v284
    %v287 = vunpack.c.l.s4 1983009808
    %v288 = vunpack.c.0.s8 %v287
    %v289 = vlaneseq
    %v290 = vshrl.u32 %v289, 7
    %v291 = vsub.s32 %v288, %v290
    %v292 = vrot.slane %v278, %v291
    %v293 = vcombine.low %v236, %v248
    %v294 = vcombine.high %v236, %v248
    %v296 = vunpack.c.l.s4 1983009808
    %v297 = vunpack.c.0.s8 %v296
    %v298 = vlaneseq
    %v299 = vshrl.u32 %v298, 7
    %v300 = vsub.s32 %v297, %v299
    %v301 = vrot.slane %v293, %v300
    %v303 = vunpack.c.l.s4 1983009808
    %v304 = vunpack.c.0.s8 %v303
    %v305 = vlaneseq
    %v306 = vshrl.u32 %v305, 7
    %v307 = vsub.s32 %v304, %v306
    %v308 = vrot.slane %v294, %v307
    %v309 = vcombine.low %v254, %v266
    %v310 = vcombine.high %v254, %v266
    %v312 = vunpack.c.l.s4 1983009808
    %v313 = vunpack.c.0.s8 %v312
    %v314 = vlaneseq
    %v315 = vshrl.u32 %v314, 7
    %v316 = vsub.s32 %v313, %v315
    %v317 = vrot.slane %v309, %v316
    %v319 = vunpack.c.l.s4 1983009808
    %v320 = vunpack.c.0.s8 %v319
    %v321 = vlaneseq
    %v322 = vshrl.u32 %v321, 7
    %v323 = vsub.s32 %v320, %v322
    %v324 = vrot.slane %v310, %v323
    %v325 = vcombine.low %v260, %v272
    %v326 = vcombine.high %v260, %v272
    %v328 = vunpack.c.l.s4 1983009808
    %v329 = vunpack.c.0.s8 %v328
    %v330 = vlaneseq
    %v331 = vshrl.u32 %v330, 7
    %v332 = vsub.s32 %v329, %v331
    %v333 = vrot.slane %v325, %v332
    %v335 = vunpack.c.l.s4 1983009808
    %v336 = vunpack.c.0.s8 %v335
    %v337 = vlaneseq
    %v338 = vshrl.u32 %v337, 7
    %v339 = vsub.s32 %v336, %v338
    %v340 = vrot.slane %v326, %v339
    %v341 = vcombine.low %v285, %v301
    %v342 = vcombine.high %v285, %v301
    %v344 = vunpack.c.l.s4 1934713408
    %v345 = vunpack.c.0.s8 %v344
    %v346 = vlaneseq
    %v347 = vshrl.u32 %v346, 7
    %v348 = vsub.s32 %v345, %v347
    %v349 = vrot.slane %v341, %v348
    %v351 = vunpack.c.l.s4 1934713408
    %v352 = vunpack.c.0.s8 %v351
    %v353 = vlaneseq
    %v354 = vshrl.u32 %v353, 7
    %v355 = vsub.s32 %v352, %v354
    %v356 = vrot.slane %v342, %v355
    %v357 = vcombine.low %v292, %v308
    %v358 = vcombine.high %v292, %v308
    %v360 = vunpack.c.l.s4 1934713408
    %v361 = vunpack.c.0.s8 %v360
    %v362 = vlaneseq
    %v363 = vshrl.u32 %v362, 7
    %v364 = vsub.s32 %v361, %v363
    %v365 = vrot.slane %v357, %v364
    %v367 = vunpack.c.l.s4 1934713408
    %v368 = vunpack.c.0.s8 %v367
    %v369 = vlaneseq
    %v370 = vshrl.u32 %v369, 7
    %v371 = vsub.s32 %v368, %v370
    %v372 = vrot.slane %v358, %v371
    %v373 = vcombine.low %v317, %v333
    %v374 = vcombine.high %v317, %v333
    %v376 = vunpack.c.l.s4 1934713408
    %v377 = vunpack.c.0.s8 %v376
    %v378 = vlaneseq
    %v379 = vshrl.u32 %v378, 7
    %v380 = vsub.s32 %v377, %v379
    %v381 = vrot.slane %v373, %v380
    %v383 = vunpack.c.l.s4 1934713408
    %v384 = vunpack.c.0.s8 %v383
    %v385 = vlaneseq
    %v386 = vshrl.u32 %v385, 7
    %v387 = vsub.s32 %v384, %v386
    %v388 = vrot.slane %v374, %v387
    %v389 = vcombine.low %v324, %v340
    %v390 = vcombine.high %v324, %v340
    %v392 = vunpack.c.l.s4 1934713408
    %v393 = vunpack.c.0.s8 %v392
    %v394 = vlaneseq
    %v395 = vshrl.u32 %v394, 7
    %v396 = vsub.s32 %v393, %v395
    %v397 = vrot.slane %v389, %v396
    %v399 = vunpack.c.l.s4 1934713408
    %v400 = vunpack.c.0.s8 %v399
    %v401 = vlaneseq
    %v402 = vshrl.u32 %v401, 7
    %v403 = vsub.s32 %v400, %v402
    %v404 = vrot.slane %v390, %v403
    %v405 = vcombine.low %v349, %v381
    %v406 = vcombine.high %v349, %v381
    %v407 = vcombine.low %v356, %v388
    %v408 = vcombine.high %v356, %v388
    %v409 = vcombine.low %v365, %v397
    %v410 = vcombine.high %v365, %v397
    %v411 = vcombine.low %v372, %v404
    %v412 = vcombine.high %v372, %v404
    %v413 = vcombine.low %v230, %v244
    %v414 = vcombine.high %v230, %v244
    %v416 = vunpack.c.l.s4 1983009808
    %v417 = vunpack.c.0.s8 %v416
    %v418 = vlaneseq
    %v419 = vshrl.u32 %v418, 7
    %v420 = vsub.s32 %v417, %v419
    %v421 = vrot.slane %v413, %v420
    %v423 = vunpack.c.l.s4 1983009808
    %v424 = vunpack.c.0.s8 %v423
    %v425 = vlaneseq
    %v426 = vshrl.u32 %v425, 7
    %v427 = vsub.s32 %v424, %v426
    %v428 = vrot.slane %v414, %v427
    %v429 = vcombine.low %v238, %v250
    %v430 = vcombine.high %v238, %v250
    %v432 = vunpack.c.l.s4 1983009808
    %v433 = vunpack.c.0.s8 %v432
    %v434 = vlaneseq
    %v435 = vshrl.u32 %v434, 7
    %v436 = vsub.s32 %v433, %v435
    %v437 = vrot.slane %v429, %v436
    %v439 = vunpack.c.l.s4 1983009808
    %v440 = vunpack.c.0.s8 %v439
    %v441 = vlaneseq
    %v442 = vshrl.u32 %v441, 7
    %v443 = vsub.s32 %v440, %v442
    %v444 = vrot.slane %v430, %v443
    %v445 = vcombine.low %v256, %v268
    %v446 = vcombine.high %v256, %v268
    %v448 = vunpack.c.l.s4 1983009808
    %v449 = vunpack.c.0.s8 %v448
    %v450 = vlaneseq
    %v451 = vshrl.u32 %v450, 7
    %v452 = vsub.s32 %v449, %v451
    %v453 = vrot.slane %v445, %v452
    %v455 = vunpack.c.l.s4 1983009808
    %v456 = vunpack.c.0.s8 %v455
    %v457 = vlaneseq
    %v458 = vshrl.u32 %v457, 7
    %v459 = vsub.s32 %v456, %v458
    %v460 = vrot.slane %v446, %v459
    %v461 = vcombine.low %v262, %v274
    %v462 = vcombine.high %v262, %v274
    %v464 = vunpack.c.l.s4 1983009808
    %v465 = vunpack.c.0.s8 %v464
    %v466 = vlaneseq
    %v467 = vshrl.u32 %v466, 7
    %v468 = vsub.s32 %v465, %v467
    %v469 = vrot.slane %v461, %v468
    %v471 = vunpack.c.l.s4 1983009808
    %v472 = vunpack.c.0.s8 %v471
    %v473 = vlaneseq
    %v474 = vshrl.u32 %v473, 7
    %v475 = vsub.s32 %v472, %v474
    %v476 = vrot.slane %v462, %v475
    %v477 = vcombine.low %v421, %v437
    %v478 = vcombine.high %v421, %v437
    %v480 = vunpack.c.l.s4 1934713408
    %v481 = vunpack.c.0.s8 %v480
    %v482 = vlaneseq
    %v483 = vshrl.u32 %v482, 7
    %v484 = vsub.s32 %v481, %v483
    %v485 = vrot.slane %v477, %v484
    %v487 = vunpack.c.l.s4 1934713408
    %v488 = vunpack.c.0.s8 %v487
    %v489 = vlaneseq
    %v490 = vshrl.u32 %v489, 7
    %v491 = vsub.s32 %v488, %v490
    %v492 = vrot.slane %v478, %v491
    %v493 = vcombine.low %v428, %v444
    %v494 = vcombine.high %v428, %v444
    %v496 = vunpack.c.l.s4 1934713408
    %v497 = vunpack.c.0.s8 %v496
    %v498 = vlaneseq
    %v499 = vshrl.u32 %v498, 7
    %v500 = vsub.s32 %v497, %v499
    %v501 = vrot.slane %v493, %v500
    %v503 = vunpack.c.l.s4 1934713408
    %v504 = vunpack.c.0.s8 %v503
    %v505 = vlaneseq
    %v506 = vshrl.u32 %v505, 7
    %v507 = vsub.s32 %v504, %v506
    %v508 = vrot.slane %v494, %v507
    %v509 = vcombine.low %v453, %v469
    %v510 = vcombine.high %v453, %v469
    %v512 = vunpack.c.l.s4 1934713408
    %v513 = vunpack.c.0.s8 %v512
    %v514 = vlaneseq
    %v515 = vshrl.u32 %v514, 7
    %v516 = vsub.s32 %v513, %v515
    %v517 = vrot.slane %v509, %v516
    %v519 = vunpack.c.l.s4 1934713408
    %v520 = vunpack.c.0.s8 %v519
    %v521 = vlaneseq
    %v522 = vshrl.u32 %v521, 7
    %v523 = vsub.s32 %v520, %v522
    %v524 = vrot.slane %v510, %v523
    %v525 = vcombine.low %v460, %v476
    %v526 = vcombine.high %v460, %v476
    %v528 = vunpack.c.l.s4 1934713408
    %v529 = vunpack.c.0.s8 %v528
    %v530 = vlaneseq
    %v531 = vshrl.u32 %v530, 7
    %v532 = vsub.s32 %v529, %v531
    %v533 = vrot.slane %v525, %v532
    %v535 = vunpack.c.l.s4 1934713408
    %v536 = vunpack.c.0.s8 %v535
    %v537 = vlaneseq
    %v538 = vshrl.u32 %v537, 7
    %v539 = vsub.s32 %v536, %v538
    %v540 = vrot.slane %v526, %v539
    %v541 = vcombine.low %v485, %v517
    %v542 = vcombine.high %v485, %v517
    %v543 = vcombine.low %v492, %v524
    %v544 = vcombine.high %v492, %v524
    %v545 = vcombine.low %v501, %v533
    %v546 = vcombine.high %v501, %v533
    %v547 = vcombine.low %v508, %v540
    %v548 = vcombine.high %v508, %v540
    %v549 = vcombine.low %v405, %v407
    %v550 = vcombine.high %v405, %v407
    %v552 = vunpack.c.l.s4 1983009808
    %v553 = vunpack.c.0.s8 %v552
    %v554 = vlaneseq
    %v555 = vshrl.u32 %v554, 7
    %v556 = vsub.s32 %v553, %v555
    %v557 = vrot.slane %v549, %v556
    %v559 = vunpack.c.l.s4 1983009808
    %v560 = vunpack.c.0.s8 %v559
    %v561 = vlaneseq
    %v562 = vshrl.u32 %v561, 7
    %v563 = vsub.s32 %v560, %v562
    %v564 = vrot.slane %v550, %v563
    %v565 = vcombine.low %v406, %v408
    %v566 = vcombine.high %v406, %v408
    %v568 = vunpack.c.l.s4 1983009808
    %v569 = vunpack.c.0.s8 %v568
    %v570 = vlaneseq
    %v571 = vshrl.u32 %v570, 7
    %v572 = vsub.s32 %v569, %v571
    %v573 = vrot.slane %v565, %v572
    %v575 = vunpack.c.l.s4 1983009808
    %v576 = vunpack.c.0.s8 %v575
    %v577 = vlaneseq
    %v578 = vshrl.u32 %v577, 7
    %v579 = vsub.s32 %v576, %v578
    %v580 = vrot.slane %v566, %v579
    %v581 = vcombine.low %v409, %v411
    %v582 = vcombine.high %v409, %v411
    %v584 = vunpack.c.l.s4 1983009808
    %v585 = vunpack.c.0.s8 %v584
    %v586 = vlaneseq
    %v587 = vshrl.u32 %v586, 7
    %v588 = vsub.s32 %v585, %v587
    %v589 = vrot.slane %v581, %v588
    %v591 = vunpack.c.l.s4 1983009808
    %v592 = vunpack.c.0.s8 %v591
    %v593 = vlaneseq
    %v594 = vshrl.u32 %v593, 7
    %v595 = vsub.s32 %v592, %v594
    %v596 = vrot.slane %v582, %v595
    %v597 = vcombine.low %v410, %v412
    %v598 = vcombine.high %v410, %v412
    %v600 = vunpack.c.l.s4 1983009808
    %v601 = vunpack.c.0.s8 %v600
    %v602 = vlaneseq
    %v603 = vshrl.u32 %v602, 7
    %v604 = vsub.s32 %v601, %v603
    %v605 = vrot.slane %v597, %v604
    %v607 = vunpack.c.l.s4 1983009808
    %v608 = vunpack.c.0.s8 %v607
    %v609 = vlaneseq
    %v610 = vshrl.u32 %v609, 7
    %v611 = vsub.s32 %v608, %v610
    %v612 = vrot.slane %v598, %v611
    %v613 = vcombine.low %v557, %v573
    %v614 = vcombine.high %v557, %v573
    %v616 = vunpack.c.l.s4 1934713408
    %v617 = vunpack.c.0.s8 %v616
    %v618 = vlaneseq
    %v619 = vshrl.u32 %v618, 7
    %v620 = vsub.s32 %v617, %v619
    %v621 = vrot.slane %v613, %v620
    %v623 = vunpack.c.l.s4 1934713408
    %v624 = vunpack.c.0.s8 %v623
    %v625 = vlaneseq
    %v626 = vshrl.u32 %v625, 7
    %v627 = vsub.s32 %v624, %v626
    %v628 = vrot.slane %v614, %v627
    %v629 = vcombine.low %v564, %v580
    %v630 = vcombine.high %v564, %v580
    %v632 = vunpack.c.l.s4 1934713408
    %v633 = vunpack.c.0.s8 %v632
    %v634 = vlaneseq
    %v635 = vshrl.u32 %v634, 7
    %v636 = vsub.s32 %v633, %v635
    %v637 = vrot.slane %v629, %v636
    %v639 = vunpack.c.l.s4 1934713408
    %v640 = vunpack.c.0.s8 %v639
    %v641 = vlaneseq
    %v642 = vshrl.u32 %v641, 7
    %v643 = vsub.s32 %v640, %v642
    %v644 = vrot.slane %v630, %v643
    %v645 = vcombine.low %v589, %v605
    %v646 = vcombine.high %v589, %v605
    %v648 = vunpack.c.l.s4 1934713408
    %v649 = vunpack.c.0.s8 %v648
    %v650 = vlaneseq
    %v651 = vshrl.u32 %v650, 7
    %v652 = vsub.s32 %v649, %v651
    %v653 = vrot.slane %v645, %v652
    %v655 = vunpack.c.l.s4 1934713408
    %v656 = vunpack.c.0.s8 %v655
    %v657 = vlaneseq
    %v658 = vshrl.u32 %v657, 7
    %v659 = vsub.s32 %v656, %v658
    %v660 = vrot.slane %v646, %v659
    %v661 = vcombine.low %v596, %v612
    %v662 = vcombine.high %v596, %v612
    %v664 = vunpack.c.l.s4 1934713408
    %v665 = vunpack.c.0.s8 %v664
    %v666 = vlaneseq
    %v667 = vshrl.u32 %v666, 7
    %v668 = vsub.s32 %v665, %v667
    %v669 = vrot.slane %v661, %v668
    %v671 = vunpack.c.l.s4 1934713408
    %v672 = vunpack.c.0.s8 %v671
    %v673 = vlaneseq
    %v674 = vshrl.u32 %v673, 7
    %v675 = vsub.s32 %v672, %v674
    %v676 = vrot.slane %v662, %v675
    %v677 = vcombine.low %v621, %v653
    %v678 = vcombine.high %v621, %v653
    %v679 = vcombine.low %v628, %v660
    %v680 = vcombine.high %v628, %v660
    %v681 = vcombine.low %v637, %v669
    %v682 = vcombine.high %v637, %v669
    %v683 = vcombine.low %v644, %v676
    %v684 = vcombine.high %v644, %v676
    %v685 = vcombine.low %v541, %v543
    %v686 = vcombine.high %v541, %v543
    %v688 = vunpack.c.l.s4 1983009808
    %v689 = vunpack.c.0.s8 %v688
    %v690 = vlaneseq
    %v691 = vshrl.u32 %v690, 7
    %v692 = vsub.s32 %v689, %v691
    %v693 = vrot.slane %v685, %v692
    %v695 = vunpack.c.l.s4 1983009808
    %v696 = vunpack.c.0.s8 %v695
    %v697 = vlaneseq
    %v698 = vshrl.u32 %v697, 7
    %v699 = vsub.s32 %v696, %v698
    %v700 = vrot.slane %v686, %v699
    %v701 = vcombine.low %v542, %v544
    %v702 = vcombine.high %v542, %v544
    %v704 = vunpack.c.l.s4 1983009808
    %v705 = vunpack.c.0.s8 %v704
    %v706 = vlaneseq
    %v707 = vshrl.u32 %v706, 7
    %v708 = vsub.s32 %v705, %v707
    %v709 = vrot.slane %v701, %v708
    %v711 = vunpack.c.l.s4 1983009808
    %v712 = vunpack.c.0.s8 %v711
    %v713 = vlaneseq
    %v714 = vshrl.u32 %v713, 7
    %v715 = vsub.s32 %v712, %v714
    %v716 = vrot.slane %v702, %v715
    %v717 = vcombine.low %v545, %v547
    %v718 = vcombine.high %v545, %v547
    %v720 = vunpack.c.l.s4 1983009808
    %v721 = vunpack.c.0.s8 %v720
    %v722 = vlaneseq
    %v723 = vshrl.u32 %v722, 7
    %v724 = vsub.s32 %v721, %v723
    %v725 = vrot.slane %v717, %v724
    %v727 = vunpack.c.l.s4 1983009808
    %v728 = vunpack.c.0.s8 %v727
    %v729 = vlaneseq
    %v730 = vshrl.u32 %v729, 7
    %v731 = vsub.s32 %v728, %v730
    %v732 = vrot.slane %v718, %v731
    %v733 = vcombine.low %v546, %v548
    %v734 = vcombine.high %v546, %v548
    %v736 = vunpack.c.l.s4 1983009808
    %v737 = vunpack.c.0.s8 %v736
    %v738 = vlaneseq
    %v739 = vshrl.u32 %v738, 7
    %v740 = vsub.s32 %v737, %v739
    %v741 = vrot.slane %v733, %v740
    %v743 = vunpack.c.l.s4 1983009808
    %v744 = vunpack.c.0.s8 %v743
    %v745 = vlaneseq
    %v746 = vshrl.u32 %v745, 7
    %v747 = vsub.s32 %v744, %v746
    %v748 = vrot.slane %v734, %v747
    %v749 = vcombine.low %v693, %v709
    %v750 = vcombine.high %v693, %v709
    %v752 = vunpack.c.l.s4 1934713408
    %v753 = vunpack.c.0.s8 %v752
    %v754 = vlaneseq
    %v755 = vshrl.u32 %v754, 7
    %v756 = vsub.s32 %v753, %v755
    %v757 = vrot.slane %v749, %v756
    %v759 = vunpack.c.l.s4 1934713408
    %v760 = vunpack.c.0.s8 %v759
    %v761 = vlaneseq
    %v762 = vshrl.u32 %v761, 7
    %v763 = vsub.s32 %v760, %v762
    %v764 = vrot.slane %v750, %v763
    %v765 = vcombine.low %v700, %v716
    %v766 = vcombine.high %v700, %v716
    %v768 = vunpack.c.l.s4 1934713408
    %v769 = vunpack.c.0.s8 %v768
    %v770 = vlaneseq
    %v771 = vshrl.u32 %v770, 7
    %v772 = vsub.s32 %v769, %v771
    %v773 = vrot.slane %v765, %v772
    %v775 = vunpack.c.l.s4 1934713408
    %v776 = vunpack.c.0.s8 %v775
    %v777 = vlaneseq
    %v778 = vshrl.u32 %v777, 7
    %v779 = vsub.s32 %v776, %v778
    %v780 = vrot.slane %v766, %v779
    %v781 = vcombine.low %v725, %v741
    %v782 = vcombine.high %v725, %v741
    %v784 = vunpack.c.l.s4 1934713408
    %v785 = vunpack.c.0.s8 %v784
    %v786 = vlaneseq
    %v787 = vshrl.u32 %v786, 7
    %v788 = vsub.s32 %v785, %v787
    %v789 = vrot.slane %v781, %v788
    %v791 = vunpack.c.l.s4 1934713408
    %v792 = vunpack.c.0.s8 %v791
    %v793 = vlaneseq
    %v794 = vshrl.u32 %v793, 7
    %v795 = vsub.s32 %v792, %v794
    %v796 = vrot.slane %v782, %v795
    %v797 = vcombine.low %v732, %v748
    %v798 = vcombine.high %v732, %v748
    %v800 = vunpack.c.l.s4 1934713408
    %v801 = vunpack.c.0.s8 %v800
    %v802 = vlaneseq
    %v803 = vshrl.u32 %v802, 7
    %v804 = vsub.s32 %v801, %v803
    %v805 = vrot.slane %v797, %v804
    %v807 = vunpack.c.l.s4 1934713408
    %v808 = vunpack.c.0.s8 %v807
    %v809 = vlaneseq
    %v810 = vshrl.u32 %v809, 7
    %v811 = vsub.s32 %v808, %v810
    %v812 = vrot.slane %v798, %v811
    %v813 = vcombine.low %v757, %v789
    %v814 = vcombine.high %v757, %v789
    %v815 = vcombine.low %v764, %v796
    %v816 = vcombine.high %v764, %v796
    %v817 = vcombine.low %v773, %v805
    %v818 = vcombine.high %v773, %v805
    %v819 = vcombine.low %v780, %v812
    %v820 = vcombine.high %v780, %v812
    %821 = vrot.lane.b32.xlu0 %v225, 96
    %v822 = vpop.permute.xlu0 %821
    %823 = vrot.lane.b32.xlu0 %v230, 96
    %v824 = vpop.permute.xlu0 %823
    %825 = vrot.lane.b32.xlu0 %v236, 96
    %v826 = vpop.permute.xlu0 %825
    %827 = vrot.lane.b32.xlu0 %v238, 96
    %v828 = vpop.permute.xlu0 %827
    %829 = vrot.lane.b32.xlu0 %v242, 96
    %v830 = vpop.permute.xlu0 %829
    %831 = vrot.lane.b32.xlu0 %v244, 96
    %v832 = vpop.permute.xlu0 %831
    %833 = vrot.lane.b32.xlu0 %v248, 96
    %v834 = vpop.permute.xlu0 %833
    %835 = vrot.lane.b32.xlu0 %v250, 96
    %v836 = vpop.permute.xlu0 %835
    %837 = vrot.lane.b32.xlu0 %v254, 96
    %v838 = vpop.permute.xlu0 %837
    %839 = vrot.lane.b32.xlu0 %v256, 96
    %v840 = vpop.permute.xlu0 %839
    %841 = vrot.lane.b32.xlu0 %v260, 96
    %v842 = vpop.permute.xlu0 %841
    %843 = vrot.lane.b32.xlu0 %v262, 96
    %v844 = vpop.permute.xlu0 %843
    %845 = vrot.lane.b32.xlu0 %v266, 96
    %v846 = vpop.permute.xlu0 %845
    %847 = vrot.lane.b32.xlu0 %v268, 96
    %v848 = vpop.permute.xlu0 %847
    %849 = vrot.lane.b32.xlu0 %v272, 96
    %v850 = vpop.permute.xlu0 %849
    %851 = vrot.lane.b32.xlu0 %v274, 96
    %v852 = vpop.permute.xlu0 %851
    %v869 = vcombine.low %v822, %v830
    %v870 = vcombine.high %v822, %v830
    %v872 = vunpack.c.l.s4 1983009808
    %v873 = vunpack.c.0.s8 %v872
    %v874 = vlaneseq
    %v875 = vshrl.u32 %v874, 7
    %v876 = vsub.s32 %v873, %v875
    %v877 = vrot.slane %v869, %v876
    %v879 = vunpack.c.l.s4 1983009808
    %v880 = vunpack.c.0.s8 %v879
    %v881 = vlaneseq
    %v882 = vshrl.u32 %v881, 7
    %v883 = vsub.s32 %v880, %v882
    %v884 = vrot.slane %v870, %v883
    %v885 = vcombine.low %v826, %v834
    %v886 = vcombine.high %v826, %v834
    %v888 = vunpack.c.l.s4 1983009808
    %v889 = vunpack.c.0.s8 %v888
    %v890 = vlaneseq
    %v891 = vshrl.u32 %v890, 7
    %v892 = vsub.s32 %v889, %v891
    %v893 = vrot.slane %v885, %v892
    %v895 = vunpack.c.l.s4 1983009808
    %v896 = vunpack.c.0.s8 %v895
    %v897 = vlaneseq
    %v898 = vshrl.u32 %v897, 7
    %v899 = vsub.s32 %v896, %v898
    %v900 = vrot.slane %v886, %v899
    %v901 = vcombine.low %v838, %v846
    %v902 = vcombine.high %v838, %v846
    %v904 = vunpack.c.l.s4 1983009808
    %v905 = vunpack.c.0.s8 %v904
    %v906 = vlaneseq
    %v907 = vshrl.u32 %v906, 7
    %v908 = vsub.s32 %v905, %v907
    %v909 = vrot.slane %v901, %v908
    %v911 = vunpack.c.l.s4 1983009808
    %v912 = vunpack.c.0.s8 %v911
    %v913 = vlaneseq
    %v914 = vshrl.u32 %v913, 7
    %v915 = vsub.s32 %v912, %v914
    %v916 = vrot.slane %v902, %v915
    %v917 = vcombine.low %v842, %v850
    %v918 = vcombine.high %v842, %v850
    %v920 = vunpack.c.l.s4 1983009808
    %v921 = vunpack.c.0.s8 %v920
    %v922 = vlaneseq
    %v923 = vshrl.u32 %v922, 7
    %v924 = vsub.s32 %v921, %v923
    %v925 = vrot.slane %v917, %v924
    %v927 = vunpack.c.l.s4 1983009808
    %v928 = vunpack.c.0.s8 %v927
    %v929 = vlaneseq
    %v930 = vshrl.u32 %v929, 7
    %v931 = vsub.s32 %v928, %v930
    %v932 = vrot.slane %v918, %v931
    %v933 = vcombine.low %v877, %v893
    %v934 = vcombine.high %v877, %v893
    %v936 = vunpack.c.l.s4 1934713408
    %v937 = vunpack.c.0.s8 %v936
    %v938 = vlaneseq
    %v939 = vshrl.u32 %v938, 7
    %v940 = vsub.s32 %v937, %v939
    %v941 = vrot.slane %v933, %v940
    %v943 = vunpack.c.l.s4 1934713408
    %v944 = vunpack.c.0.s8 %v943
    %v945 = vlaneseq
    %v946 = vshrl.u32 %v945, 7
    %v947 = vsub.s32 %v944, %v946
    %v948 = vrot.slane %v934, %v947
    %v949 = vcombine.low %v884, %v900
    %v950 = vcombine.high %v884, %v900
    %v952 = vunpack.c.l.s4 1934713408
    %v953 = vunpack.c.0.s8 %v952
    %v954 = vlaneseq
    %v955 = vshrl.u32 %v954, 7
    %v956 = vsub.s32 %v953, %v955
    %v957 = vrot.slane %v949, %v956
    %v959 = vunpack.c.l.s4 1934713408
    %v960 = vunpack.c.0.s8 %v959
    %v961 = vlaneseq
    %v962 = vshrl.u32 %v961, 7
    %v963 = vsub.s32 %v960, %v962
    %v964 = vrot.slane %v950, %v963
    %v965 = vcombine.low %v909, %v925
    %v966 = vcombine.high %v909, %v925
    %v968 = vunpack.c.l.s4 1934713408
    %v969 = vunpack.c.0.s8 %v968
    %v970 = vlaneseq
    %v971 = vshrl.u32 %v970, 7
    %v972 = vsub.s32 %v969, %v971
    %v973 = vrot.slane %v965, %v972
    %v975 = vunpack.c.l.s4 1934713408
    %v976 = vunpack.c.0.s8 %v975
    %v977 = vlaneseq
    %v978 = vshrl.u32 %v977, 7
    %v979 = vsub.s32 %v976, %v978
    %v980 = vrot.slane %v966, %v979
    %v981 = vcombine.low %v916, %v932
    %v982 = vcombine.high %v916, %v932
    %v984 = vunpack.c.l.s4 1934713408
    %v985 = vunpack.c.0.s8 %v984
    %v986 = vlaneseq
    %v987 = vshrl.u32 %v986, 7
    %v988 = vsub.s32 %v985, %v987
    %v989 = vrot.slane %v981, %v988
    %v991 = vunpack.c.l.s4 1934713408
    %v992 = vunpack.c.0.s8 %v991
    %v993 = vlaneseq
    %v994 = vshrl.u32 %v993, 7
    %v995 = vsub.s32 %v992, %v994
    %v996 = vrot.slane %v982, %v995
    %v997 = vcombine.low %v941, %v973
    %v998 = vcombine.high %v941, %v973
    %v999 = vcombine.low %v948, %v980
    %v1000 = vcombine.high %v948, %v980
    %v1001 = vcombine.low %v957, %v989
    %v1002 = vcombine.high %v957, %v989
    %v1003 = vcombine.low %v964, %v996
    %v1004 = vcombine.high %v964, %v996
    %v1005 = vcombine.low %v824, %v832
    %v1006 = vcombine.high %v824, %v832
    %v1008 = vunpack.c.l.s4 1983009808
    %v1009 = vunpack.c.0.s8 %v1008
    %v1010 = vlaneseq
    %v1011 = vshrl.u32 %v1010, 7
    %v1012 = vsub.s32 %v1009, %v1011
    %v1013 = vrot.slane %v1005, %v1012
    %v1015 = vunpack.c.l.s4 1983009808
    %v1016 = vunpack.c.0.s8 %v1015
    %v1017 = vlaneseq
    %v1018 = vshrl.u32 %v1017, 7
    %v1019 = vsub.s32 %v1016, %v1018
    %v1020 = vrot.slane %v1006, %v1019
    %v1021 = vcombine.low %v828, %v836
    %v1022 = vcombine.high %v828, %v836
    %v1024 = vunpack.c.l.s4 1983009808
    %v1025 = vunpack.c.0.s8 %v1024
    %v1026 = vlaneseq
    %v1027 = vshrl.u32 %v1026, 7
    %v1028 = vsub.s32 %v1025, %v1027
    %v1029 = vrot.slane %v1021, %v1028
    %v1031 = vunpack.c.l.s4 1983009808
    %v1032 = vunpack.c.0.s8 %v1031
    %v1033 = vlaneseq
    %v1034 = vshrl.u32 %v1033, 7
    %v1035 = vsub.s32 %v1032, %v1034
    %v1036 = vrot.slane %v1022, %v1035
    %v1037 = vcombine.low %v840, %v848
    %v1038 = vcombine.high %v840, %v848
    %v1040 = vunpack.c.l.s4 1983009808
    %v1041 = vunpack.c.0.s8 %v1040
    %v1042 = vlaneseq
    %v1043 = vshrl.u32 %v1042, 7
    %v1044 = vsub.s32 %v1041, %v1043
    %v1045 = vrot.slane %v1037, %v1044
    %v1047 = vunpack.c.l.s4 1983009808
    %v1048 = vunpack.c.0.s8 %v1047
    %v1049 = vlaneseq
    %v1050 = vshrl.u32 %v1049, 7
    %v1051 = vsub.s32 %v1048, %v1050
    %v1052 = vrot.slane %v1038, %v1051
    %v1053 = vcombine.low %v844, %v852
    %v1054 = vcombine.high %v844, %v852
    %v1056 = vunpack.c.l.s4 1983009808
    %v1057 = vunpack.c.0.s8 %v1056
    %v1058 = vlaneseq
    %v1059 = vshrl.u32 %v1058, 7
    %v1060 = vsub.s32 %v1057, %v1059
    %v1061 = vrot.slane %v1053, %v1060
    %v1063 = vunpack.c.l.s4 1983009808
    %v1064 = vunpack.c.0.s8 %v1063
    %v1065 = vlaneseq
    %v1066 = vshrl.u32 %v1065, 7
    %v1067 = vsub.s32 %v1064, %v1066
    %v1068 = vrot.slane %v1054, %v1067
    %v1069 = vcombine.low %v1013, %v1029
    %v1070 = vcombine.high %v1013, %v1029
    %v1072 = vunpack.c.l.s4 1934713408
    %v1073 = vunpack.c.0.s8 %v1072
    %v1074 = vlaneseq
    %v1075 = vshrl.u32 %v1074, 7
    %v1076 = vsub.s32 %v1073, %v1075
    %v1077 = vrot.slane %v1069, %v1076
    %v1079 = vunpack.c.l.s4 1934713408
    %v1080 = vunpack.c.0.s8 %v1079
    %v1081 = vlaneseq
    %v1082 = vshrl.u32 %v1081, 7
    %v1083 = vsub.s32 %v1080, %v1082
    %v1084 = vrot.slane %v1070, %v1083
    %v1085 = vcombine.low %v1020, %v1036
    %v1086 = vcombine.high %v1020, %v1036
    %v1088 = vunpack.c.l.s4 1934713408
    %v1089 = vunpack.c.0.s8 %v1088
    %v1090 = vlaneseq
    %v1091 = vshrl.u32 %v1090, 7
    %v1092 = vsub.s32 %v1089, %v1091
    %v1093 = vrot.slane %v1085, %v1092
    %v1095 = vunpack.c.l.s4 1934713408
    %v1096 = vunpack.c.0.s8 %v1095
    %v1097 = vlaneseq
    %v1098 = vshrl.u32 %v1097, 7
    %v1099 = vsub.s32 %v1096, %v1098
    %v1100 = vrot.slane %v1086, %v1099
    %v1101 = vcombine.low %v1045, %v1061
    %v1102 = vcombine.high %v1045, %v1061
    %v1104 = vunpack.c.l.s4 1934713408
    %v1105 = vunpack.c.0.s8 %v1104
    %v1106 = vlaneseq
    %v1107 = vshrl.u32 %v1106, 7
    %v1108 = vsub.s32 %v1105, %v1107
    %v1109 = vrot.slane %v1101, %v1108
    %v1111 = vunpack.c.l.s4 1934713408
    %v1112 = vunpack.c.0.s8 %v1111
    %v1113 = vlaneseq
    %v1114 = vshrl.u32 %v1113, 7
    %v1115 = vsub.s32 %v1112, %v1114
    %v1116 = vrot.slane %v1102, %v1115
    %v1117 = vcombine.low %v1052, %v1068
    %v1118 = vcombine.high %v1052, %v1068
    %v1120 = vunpack.c.l.s4 1934713408
    %v1121 = vunpack.c.0.s8 %v1120
    %v1122 = vlaneseq
    %v1123 = vshrl.u32 %v1122, 7
    %v1124 = vsub.s32 %v1121, %v1123
    %v1125 = vrot.slane %v1117, %v1124
    %v1127 = vunpack.c.l.s4 1934713408
    %v1128 = vunpack.c.0.s8 %v1127
    %v1129 = vlaneseq
    %v1130 = vshrl.u32 %v1129, 7
    %v1131 = vsub.s32 %v1128, %v1130
    %v1132 = vrot.slane %v1118, %v1131
    %v1133 = vcombine.low %v1077, %v1109
    %v1134 = vcombine.high %v1077, %v1109
    %v1135 = vcombine.low %v1084, %v1116
    %v1136 = vcombine.high %v1084, %v1116
    %v1137 = vcombine.low %v1093, %v1125
    %v1138 = vcombine.high %v1093, %v1125
    %v1139 = vcombine.low %v1100, %v1132
    %v1140 = vcombine.high %v1100, %v1132
    %v1141 = vcombine.low %v997, %v999
    %v1142 = vcombine.high %v997, %v999
    %v1144 = vunpack.c.l.s4 1983009808
    %v1145 = vunpack.c.0.s8 %v1144
    %v1146 = vlaneseq
    %v1147 = vshrl.u32 %v1146, 7
    %v1148 = vsub.s32 %v1145, %v1147
    %v1149 = vrot.slane %v1141, %v1148
    %v1151 = vunpack.c.l.s4 1983009808
    %v1152 = vunpack.c.0.s8 %v1151
    %v1153 = vlaneseq
    %v1154 = vshrl.u32 %v1153, 7
    %v1155 = vsub.s32 %v1152, %v1154
    %v1156 = vrot.slane %v1142, %v1155
    %v1157 = vcombine.low %v998, %v1000
    %v1158 = vcombine.high %v998, %v1000
    %v1160 = vunpack.c.l.s4 1983009808
    %v1161 = vunpack.c.0.s8 %v1160
    %v1162 = vlaneseq
    %v1163 = vshrl.u32 %v1162, 7
    %v1164 = vsub.s32 %v1161, %v1163
    %v1165 = vrot.slane %v1157, %v1164
    %v1167 = vunpack.c.l.s4 1983009808
    %v1168 = vunpack.c.0.s8 %v1167
    %v1169 = vlaneseq
    %v1170 = vshrl.u32 %v1169, 7
    %v1171 = vsub.s32 %v1168, %v1170
    %v1172 = vrot.slane %v1158, %v1171
    %v1173 = vcombine.low %v1001, %v1003
    %v1174 = vcombine.high %v1001, %v1003
    %v1176 = vunpack.c.l.s4 1983009808
    %v1177 = vunpack.c.0.s8 %v1176
    %v1178 = vlaneseq
    %v1179 = vshrl.u32 %v1178, 7
    %v1180 = vsub.s32 %v1177, %v1179
    %v1181 = vrot.slane %v1173, %v1180
    %v1183 = vunpack.c.l.s4 1983009808
    %v1184 = vunpack.c.0.s8 %v1183
    %v1185 = vlaneseq
    %v1186 = vshrl.u32 %v1185, 7
    %v1187 = vsub.s32 %v1184, %v1186
    %v1188 = vrot.slane %v1174, %v1187
    %v1189 = vcombine.low %v1002, %v1004
    %v1190 = vcombine.high %v1002, %v1004
    %v1192 = vunpack.c.l.s4 1983009808
    %v1193 = vunpack.c.0.s8 %v1192
    %v1194 = vlaneseq
    %v1195 = vshrl.u32 %v1194, 7
    %v1196 = vsub.s32 %v1193, %v1195
    %v1197 = vrot.slane %v1189, %v1196
    %v1199 = vunpack.c.l.s4 1983009808
    %v1200 = vunpack.c.0.s8 %v1199
    %v1201 = vlaneseq
    %v1202 = vshrl.u32 %v1201, 7
    %v1203 = vsub.s32 %v1200, %v1202
    %v1204 = vrot.slane %v1190, %v1203
    %v1205 = vcombine.low %v1149, %v1165
    %v1206 = vcombine.high %v1149, %v1165
    %v1208 = vunpack.c.l.s4 1934713408
    %v1209 = vunpack.c.0.s8 %v1208
    %v1210 = vlaneseq
    %v1211 = vshrl.u32 %v1210, 7
    %v1212 = vsub.s32 %v1209, %v1211
    %v1213 = vrot.slane %v1205, %v1212
    %v1215 = vunpack.c.l.s4 1934713408
    %v1216 = vunpack.c.0.s8 %v1215
    %v1217 = vlaneseq
    %v1218 = vshrl.u32 %v1217, 7
    %v1219 = vsub.s32 %v1216, %v1218
    %v1220 = vrot.slane %v1206, %v1219
    %v1221 = vcombine.low %v1156, %v1172
    %v1222 = vcombine.high %v1156, %v1172
    %v1224 = vunpack.c.l.s4 1934713408
    %v1225 = vunpack.c.0.s8 %v1224
    %v1226 = vlaneseq
    %v1227 = vshrl.u32 %v1226, 7
    %v1228 = vsub.s32 %v1225, %v1227
    %v1229 = vrot.slane %v1221, %v1228
    %v1231 = vunpack.c.l.s4 1934713408
    %v1232 = vunpack.c.0.s8 %v1231
    %v1233 = vlaneseq
    %v1234 = vshrl.u32 %v1233, 7
    %v1235 = vsub.s32 %v1232, %v1234
    %v1236 = vrot.slane %v1222, %v1235
    %v1237 = vcombine.low %v1181, %v1197
    %v1238 = vcombine.high %v1181, %v1197
    %v1240 = vunpack.c.l.s4 1934713408
    %v1241 = vunpack.c.0.s8 %v1240
    %v1242 = vlaneseq
    %v1243 = vshrl.u32 %v1242, 7
    %v1244 = vsub.s32 %v1241, %v1243
    %v1245 = vrot.slane %v1237, %v1244
    %v1247 = vunpack.c.l.s4 1934713408
    %v1248 = vunpack.c.0.s8 %v1247
    %v1249 = vlaneseq
    %v1250 = vshrl.u32 %v1249, 7
    %v1251 = vsub.s32 %v1248, %v1250
    %v1252 = vrot.slane %v1238, %v1251
    %v1253 = vcombine.low %v1188, %v1204
    %v1254 = vcombine.high %v1188, %v1204
    %v1256 = vunpack.c.l.s4 1934713408
    %v1257 = vunpack.c.0.s8 %v1256
    %v1258 = vlaneseq
    %v1259 = vshrl.u32 %v1258, 7
    %v1260 = vsub.s32 %v1257, %v1259
    %v1261 = vrot.slane %v1253, %v1260
    %v1263 = vunpack.c.l.s4 1934713408
    %v1264 = vunpack.c.0.s8 %v1263
    %v1265 = vlaneseq
    %v1266 = vshrl.u32 %v1265, 7
    %v1267 = vsub.s32 %v1264, %v1266
    %v1268 = vrot.slane %v1254, %v1267
    %v1269 = vcombine.low %v1213, %v1245
    %v1270 = vcombine.high %v1213, %v1245
    %v1271 = vcombine.low %v1220, %v1252
    %v1272 = vcombine.high %v1220, %v1252
    %v1273 = vcombine.low %v1229, %v1261
    %v1274 = vcombine.high %v1229, %v1261
    %v1275 = vcombine.low %v1236, %v1268
    %v1276 = vcombine.high %v1236, %v1268
    %v1277 = vcombine.low %v1133, %v1135
    %v1278 = vcombine.high %v1133, %v1135
    %v1280 = vunpack.c.l.s4 1983009808
    %v1281 = vunpack.c.0.s8 %v1280
    %v1282 = vlaneseq
    %v1283 = vshrl.u32 %v1282, 7
    %v1284 = vsub.s32 %v1281, %v1283
    %v1285 = vrot.slane %v1277, %v1284
    %v1287 = vunpack.c.l.s4 1983009808
    %v1288 = vunpack.c.0.s8 %v1287
    %v1289 = vlaneseq
    %v1290 = vshrl.u32 %v1289, 7
    %v1291 = vsub.s32 %v1288, %v1290
    %v1292 = vrot.slane %v1278, %v1291
    %v1293 = vcombine.low %v1134, %v1136
    %v1294 = vcombine.high %v1134, %v1136
    %v1296 = vunpack.c.l.s4 1983009808
    %v1297 = vunpack.c.0.s8 %v1296
    %v1298 = vlaneseq
    %v1299 = vshrl.u32 %v1298, 7
    %v1300 = vsub.s32 %v1297, %v1299
    %v1301 = vrot.slane %v1293, %v1300
    %v1303 = vunpack.c.l.s4 1983009808
    %v1304 = vunpack.c.0.s8 %v1303
    %v1305 = vlaneseq
    %v1306 = vshrl.u32 %v1305, 7
    %v1307 = vsub.s32 %v1304, %v1306
    %v1308 = vrot.slane %v1294, %v1307
    %v1309 = vcombine.low %v1137, %v1139
    %v1310 = vcombine.high %v1137, %v1139
    %v1312 = vunpack.c.l.s4 1983009808
    %v1313 = vunpack.c.0.s8 %v1312
    %v1314 = vlaneseq
    %v1315 = vshrl.u32 %v1314, 7
    %v1316 = vsub.s32 %v1313, %v1315
    %v1317 = vrot.slane %v1309, %v1316
    %v1319 = vunpack.c.l.s4 1983009808
    %v1320 = vunpack.c.0.s8 %v1319
    %v1321 = vlaneseq
    %v1322 = vshrl.u32 %v1321, 7
    %v1323 = vsub.s32 %v1320, %v1322
    %v1324 = vrot.slane %v1310, %v1323
    %v1325 = vcombine.low %v1138, %v1140
    %v1326 = vcombine.high %v1138, %v1140
    %v1328 = vunpack.c.l.s4 1983009808
    %v1329 = vunpack.c.0.s8 %v1328
    %v1330 = vlaneseq
    %v1331 = vshrl.u32 %v1330, 7
    %v1332 = vsub.s32 %v1329, %v1331
    %v1333 = vrot.slane %v1325, %v1332
    %v1335 = vunpack.c.l.s4 1983009808
    %v1336 = vunpack.c.0.s8 %v1335
    %v1337 = vlaneseq
    %v1338 = vshrl.u32 %v1337, 7
    %v1339 = vsub.s32 %v1336, %v1338
    %v1340 = vrot.slane %v1326, %v1339
    %v1341 = vcombine.low %v1285, %v1301
    %v1342 = vcombine.high %v1285, %v1301
    %v1344 = vunpack.c.l.s4 1934713408
    %v1345 = vunpack.c.0.s8 %v1344
    %v1346 = vlaneseq
    %v1347 = vshrl.u32 %v1346, 7
    %v1348 = vsub.s32 %v1345, %v1347
    %v1349 = vrot.slane %v1341, %v1348
    %v1351 = vunpack.c.l.s4 1934713408
    %v1352 = vunpack.c.0.s8 %v1351
    %v1353 = vlaneseq
    %v1354 = vshrl.u32 %v1353, 7
    %v1355 = vsub.s32 %v1352, %v1354
    %v1356 = vrot.slane %v1342, %v1355
    %v1357 = vcombine.low %v1292, %v1308
    %v1358 = vcombine.high %v1292, %v1308
    %v1360 = vunpack.c.l.s4 1934713408
    %v1361 = vunpack.c.0.s8 %v1360
    %v1362 = vlaneseq
    %v1363 = vshrl.u32 %v1362, 7
    %v1364 = vsub.s32 %v1361, %v1363
    %v1365 = vrot.slane %v1357, %v1364
    %v1367 = vunpack.c.l.s4 1934713408
    %v1368 = vunpack.c.0.s8 %v1367
    %v1369 = vlaneseq
    %v1370 = vshrl.u32 %v1369, 7
    %v1371 = vsub.s32 %v1368, %v1370
    %v1372 = vrot.slane %v1358, %v1371
    %v1373 = vcombine.low %v1317, %v1333
    %v1374 = vcombine.high %v1317, %v1333
    %v1376 = vunpack.c.l.s4 1934713408
    %v1377 = vunpack.c.0.s8 %v1376
    %v1378 = vlaneseq
    %v1379 = vshrl.u32 %v1378, 7
    %v1380 = vsub.s32 %v1377, %v1379
    %v1381 = vrot.slane %v1373, %v1380
    %v1383 = vunpack.c.l.s4 1934713408
    %v1384 = vunpack.c.0.s8 %v1383
    %v1385 = vlaneseq
    %v1386 = vshrl.u32 %v1385, 7
    %v1387 = vsub.s32 %v1384, %v1386
    %v1388 = vrot.slane %v1374, %v1387
    %v1389 = vcombine.low %v1324, %v1340
    %v1390 = vcombine.high %v1324, %v1340
    %v1392 = vunpack.c.l.s4 1934713408
    %v1393 = vunpack.c.0.s8 %v1392
    %v1394 = vlaneseq
    %v1395 = vshrl.u32 %v1394, 7
    %v1396 = vsub.s32 %v1393, %v1395
    %v1397 = vrot.slane %v1389, %v1396
    %v1399 = vunpack.c.l.s4 1934713408
    %v1400 = vunpack.c.0.s8 %v1399
    %v1401 = vlaneseq
    %v1402 = vshrl.u32 %v1401, 7
    %v1403 = vsub.s32 %v1400, %v1402
    %v1404 = vrot.slane %v1390, %v1403
    %v1405 = vcombine.low %v1349, %v1381
    %v1406 = vcombine.high %v1349, %v1381
    %v1407 = vcombine.low %v1356, %v1388
    %v1408 = vcombine.high %v1356, %v1388
    %v1409 = vcombine.low %v1365, %v1397
    %v1410 = vcombine.high %v1365, %v1397
    %v1411 = vcombine.low %v1372, %v1404
    %v1412 = vcombine.high %v1372, %v1404
    %1413 = vrot.lane.b32.xlu0 %v225, 64
    %v1414 = vpop.permute.xlu0 %1413
    %1415 = vrot.lane.b32.xlu0 %v230, 64
    %v1416 = vpop.permute.xlu0 %1415
    %1417 = vrot.lane.b32.xlu0 %v236, 64
    %v1418 = vpop.permute.xlu0 %1417
    %1419 = vrot.lane.b32.xlu0 %v238, 64
    %v1420 = vpop.permute.xlu0 %1419
    %1421 = vrot.lane.b32.xlu0 %v242, 64
    %v1422 = vpop.permute.xlu0 %1421
    %1423 = vrot.lane.b32.xlu0 %v244, 64
    %v1424 = vpop.permute.xlu0 %1423
    %1425 = vrot.lane.b32.xlu0 %v248, 64
    %v1426 = vpop.permute.xlu0 %1425
    %1427 = vrot.lane.b32.xlu0 %v250, 64
    %v1428 = vpop.permute.xlu0 %1427
    %1429 = vrot.lane.b32.xlu0 %v254, 64
    %v1430 = vpop.permute.xlu0 %1429
    %1431 = vrot.lane.b32.xlu0 %v256, 64
    %v1432 = vpop.permute.xlu0 %1431
    %1433 = vrot.lane.b32.xlu0 %v260, 64
    %v1434 = vpop.permute.xlu0 %1433
    %1435 = vrot.lane.b32.xlu0 %v262, 64
    %v1436 = vpop.permute.xlu0 %1435
    %1437 = vrot.lane.b32.xlu0 %v266, 64
    %v1438 = vpop.permute.xlu0 %1437
    %1439 = vrot.lane.b32.xlu0 %v268, 64
    %v1440 = vpop.permute.xlu0 %1439
    %1441 = vrot.lane.b32.xlu0 %v272, 64
    %v1442 = vpop.permute.xlu0 %1441
    %1443 = vrot.lane.b32.xlu0 %v274, 64
    %v1444 = vpop.permute.xlu0 %1443
    %v1461 = vcombine.low %v1414, %v1422
    %v1462 = vcombine.high %v1414, %v1422
    %v1464 = vunpack.c.l.s4 1983009808
    %v1465 = vunpack.c.0.s8 %v1464
    %v1466 = vlaneseq
    %v1467 = vshrl.u32 %v1466, 7
    %v1468 = vsub.s32 %v1465, %v1467
    %v1469 = vrot.slane %v1461, %v1468
    %v1471 = vunpack.c.l.s4 1983009808
    %v1472 = vunpack.c.0.s8 %v1471
    %v1473 = vlaneseq
    %v1474 = vshrl.u32 %v1473, 7
    %v1475 = vsub.s32 %v1472, %v1474
    %v1476 = vrot.slane %v1462, %v1475
    %v1477 = vcombine.low %v1418, %v1426
    %v1478 = vcombine.high %v1418, %v1426
    %v1480 = vunpack.c.l.s4 1983009808
    %v1481 = vunpack.c.0.s8 %v1480
    %v1482 = vlaneseq
    %v1483 = vshrl.u32 %v1482, 7
    %v1484 = vsub.s32 %v1481, %v1483
    %v1485 = vrot.slane %v1477, %v1484
    %v1487 = vunpack.c.l.s4 1983009808
    %v1488 = vunpack.c.0.s8 %v1487
    %v1489 = vlaneseq
    %v1490 = vshrl.u32 %v1489, 7
    %v1491 = vsub.s32 %v1488, %v1490
    %v1492 = vrot.slane %v1478, %v1491
    %v1493 = vcombine.low %v1430, %v1438
    %v1494 = vcombine.high %v1430, %v1438
    %v1496 = vunpack.c.l.s4 1983009808
    %v1497 = vunpack.c.0.s8 %v1496
    %v1498 = vlaneseq
    %v1499 = vshrl.u32 %v1498, 7
    %v1500 = vsub.s32 %v1497, %v1499
    %v1501 = vrot.slane %v1493, %v1500
    %v1503 = vunpack.c.l.s4 1983009808
    %v1504 = vunpack.c.0.s8 %v1503
    %v1505 = vlaneseq
    %v1506 = vshrl.u32 %v1505, 7
    %v1507 = vsub.s32 %v1504, %v1506
    %v1508 = vrot.slane %v1494, %v1507
    %v1509 = vcombine.low %v1434, %v1442
    %v1510 = vcombine.high %v1434, %v1442
    %v1512 = vunpack.c.l.s4 1983009808
    %v1513 = vunpack.c.0.s8 %v1512
    %v1514 = vlaneseq
    %v1515 = vshrl.u32 %v1514, 7
    %v1516 = vsub.s32 %v1513, %v1515
    %v1517 = vrot.slane %v1509, %v1516
    %v1519 = vunpack.c.l.s4 1983009808
    %v1520 = vunpack.c.0.s8 %v1519
    %v1521 = vlaneseq
    %v1522 = vshrl.u32 %v1521, 7
    %v1523 = vsub.s32 %v1520, %v1522
    %v1524 = vrot.slane %v1510, %v1523
    %v1525 = vcombine.low %v1469, %v1485
    %v1526 = vcombine.high %v1469, %v1485
    %v1528 = vunpack.c.l.s4 1934713408
    %v1529 = vunpack.c.0.s8 %v1528
    %v1530 = vlaneseq
    %v1531 = vshrl.u32 %v1530, 7
    %v1532 = vsub.s32 %v1529, %v1531
    %v1533 = vrot.slane %v1525, %v1532
    %v1535 = vunpack.c.l.s4 1934713408
    %v1536 = vunpack.c.0.s8 %v1535
    %v1537 = vlaneseq
    %v1538 = vshrl.u32 %v1537, 7
    %v1539 = vsub.s32 %v1536, %v1538
    %v1540 = vrot.slane %v1526, %v1539
    %v1541 = vcombine.low %v1476, %v1492
    %v1542 = vcombine.high %v1476, %v1492
    %v1544 = vunpack.c.l.s4 1934713408
    %v1545 = vunpack.c.0.s8 %v1544
    %v1546 = vlaneseq
    %v1547 = vshrl.u32 %v1546, 7
    %v1548 = vsub.s32 %v1545, %v1547
    %v1549 = vrot.slane %v1541, %v1548
    %v1551 = vunpack.c.l.s4 1934713408
    %v1552 = vunpack.c.0.s8 %v1551
    %v1553 = vlaneseq
    %v1554 = vshrl.u32 %v1553, 7
    %v1555 = vsub.s32 %v1552, %v1554
    %v1556 = vrot.slane %v1542, %v1555
    %v1557 = vcombine.low %v1501, %v1517
    %v1558 = vcombine.high %v1501, %v1517
    %v1560 = vunpack.c.l.s4 1934713408
    %v1561 = vunpack.c.0.s8 %v1560
    %v1562 = vlaneseq
    %v1563 = vshrl.u32 %v1562, 7
    %v1564 = vsub.s32 %v1561, %v1563
    %v1565 = vrot.slane %v1557, %v1564
    %v1567 = vunpack.c.l.s4 1934713408
    %v1568 = vunpack.c.0.s8 %v1567
    %v1569 = vlaneseq
    %v1570 = vshrl.u32 %v1569, 7
    %v1571 = vsub.s32 %v1568, %v1570
    %v1572 = vrot.slane %v1558, %v1571
    %v1573 = vcombine.low %v1508, %v1524
    %v1574 = vcombine.high %v1508, %v1524
    %v1576 = vunpack.c.l.s4 1934713408
    %v1577 = vunpack.c.0.s8 %v1576
    %v1578 = vlaneseq
    %v1579 = vshrl.u32 %v1578, 7
    %v1580 = vsub.s32 %v1577, %v1579
    %v1581 = vrot.slane %v1573, %v1580
    %v1583 = vunpack.c.l.s4 1934713408
    %v1584 = vunpack.c.0.s8 %v1583
    %v1585 = vlaneseq
    %v1586 = vshrl.u32 %v1585, 7
    %v1587 = vsub.s32 %v1584, %v1586
    %v1588 = vrot.slane %v1574, %v1587
    %v1589 = vcombine.low %v1533, %v1565
    %v1590 = vcombine.high %v1533, %v1565
    %v1591 = vcombine.low %v1540, %v1572
    %v1592 = vcombine.high %v1540, %v1572
    %v1593 = vcombine.low %v1549, %v1581
    %v1594 = vcombine.high %v1549, %v1581
    %v1595 = vcombine.low %v1556, %v1588
    %v1596 = vcombine.high %v1556, %v1588
    %v1597 = vcombine.low %v1416, %v1424
    %v1598 = vcombine.high %v1416, %v1424
    %v1600 = vunpack.c.l.s4 1983009808
    %v1601 = vunpack.c.0.s8 %v1600
    %v1602 = vlaneseq
    %v1603 = vshrl.u32 %v1602, 7
    %v1604 = vsub.s32 %v1601, %v1603
    %v1605 = vrot.slane %v1597, %v1604
    %v1607 = vunpack.c.l.s4 1983009808
    %v1608 = vunpack.c.0.s8 %v1607
    %v1609 = vlaneseq
    %v1610 = vshrl.u32 %v1609, 7
    %v1611 = vsub.s32 %v1608, %v1610
    %v1612 = vrot.slane %v1598, %v1611
    %v1613 = vcombine.low %v1420, %v1428
    %v1614 = vcombine.high %v1420, %v1428
    %v1616 = vunpack.c.l.s4 1983009808
    %v1617 = vunpack.c.0.s8 %v1616
    %v1618 = vlaneseq
    %v1619 = vshrl.u32 %v1618, 7
    %v1620 = vsub.s32 %v1617, %v1619
    %v1621 = vrot.slane %v1613, %v1620
    %v1623 = vunpack.c.l.s4 1983009808
    %v1624 = vunpack.c.0.s8 %v1623
    %v1625 = vlaneseq
    %v1626 = vshrl.u32 %v1625, 7
    %v1627 = vsub.s32 %v1624, %v1626
    %v1628 = vrot.slane %v1614, %v1627
    %v1629 = vcombine.low %v1432, %v1440
    %v1630 = vcombine.high %v1432, %v1440
    %v1632 = vunpack.c.l.s4 1983009808
    %v1633 = vunpack.c.0.s8 %v1632
    %v1634 = vlaneseq
    %v1635 = vshrl.u32 %v1634, 7
    %v1636 = vsub.s32 %v1633, %v1635
    %v1637 = vrot.slane %v1629, %v1636
    %v1639 = vunpack.c.l.s4 1983009808
    %v1640 = vunpack.c.0.s8 %v1639
    %v1641 = vlaneseq
    %v1642 = vshrl.u32 %v1641, 7
    %v1643 = vsub.s32 %v1640, %v1642
    %v1644 = vrot.slane %v1630, %v1643
    %v1645 = vcombine.low %v1436, %v1444
    %v1646 = vcombine.high %v1436, %v1444
    %v1648 = vunpack.c.l.s4 1983009808
    %v1649 = vunpack.c.0.s8 %v1648
    %v1650 = vlaneseq
    %v1651 = vshrl.u32 %v1650, 7
    %v1652 = vsub.s32 %v1649, %v1651
    %v1653 = vrot.slane %v1645, %v1652
    %v1655 = vunpack.c.l.s4 1983009808
    %v1656 = vunpack.c.0.s8 %v1655
    %v1657 = vlaneseq
    %v1658 = vshrl.u32 %v1657, 7
    %v1659 = vsub.s32 %v1656, %v1658
    %v1660 = vrot.slane %v1646, %v1659
    %v1661 = vcombine.low %v1605, %v1621
    %v1662 = vcombine.high %v1605, %v1621
    %v1664 = vunpack.c.l.s4 1934713408
    %v1665 = vunpack.c.0.s8 %v1664
    %v1666 = vlaneseq
    %v1667 = vshrl.u32 %v1666, 7
    %v1668 = vsub.s32 %v1665, %v1667
    %v1669 = vrot.slane %v1661, %v1668
    %v1671 = vunpack.c.l.s4 1934713408
    %v1672 = vunpack.c.0.s8 %v1671
    %v1673 = vlaneseq
    %v1674 = vshrl.u32 %v1673, 7
    %v1675 = vsub.s32 %v1672, %v1674
    %v1676 = vrot.slane %v1662, %v1675
    %v1677 = vcombine.low %v1612, %v1628
    %v1678 = vcombine.high %v1612, %v1628
    %v1680 = vunpack.c.l.s4 1934713408
    %v1681 = vunpack.c.0.s8 %v1680
    %v1682 = vlaneseq
    %v1683 = vshrl.u32 %v1682, 7
    %v1684 = vsub.s32 %v1681, %v1683
    %v1685 = vrot.slane %v1677, %v1684
    %v1687 = vunpack.c.l.s4 1934713408
    %v1688 = vunpack.c.0.s8 %v1687
    %v1689 = vlaneseq
    %v1690 = vshrl.u32 %v1689, 7
    %v1691 = vsub.s32 %v1688, %v1690
    %v1692 = vrot.slane %v1678, %v1691
    %v1693 = vcombine.low %v1637, %v1653
    %v1694 = vcombine.high %v1637, %v1653
    %v1696 = vunpack.c.l.s4 1934713408
    %v1697 = vunpack.c.0.s8 %v1696
    %v1698 = vlaneseq
    %v1699 = vshrl.u32 %v1698, 7
    %v1700 = vsub.s32 %v1697, %v1699
    %v1701 = vrot.slane %v1693, %v1700
    %v1703 = vunpack.c.l.s4 1934713408
    %v1704 = vunpack.c.0.s8 %v1703
    %v1705 = vlaneseq
    %v1706 = vshrl.u32 %v1705, 7
    %v1707 = vsub.s32 %v1704, %v1706
    %v1708 = vrot.slane %v1694, %v1707
    %v1709 = vcombine.low %v1644, %v1660
    %v1710 = vcombine.high %v1644, %v1660
    %v1712 = vunpack.c.l.s4 1934713408
    %v1713 = vunpack.c.0.s8 %v1712
    %v1714 = vlaneseq
    %v1715 = vshrl.u32 %v1714, 7
    %v1716 = vsub.s32 %v1713, %v1715
    %v1717 = vrot.slane %v1709, %v1716
    %v1719 = vunpack.c.l.s4 1934713408
    %v1720 = vunpack.c.0.s8 %v1719
    %v1721 = vlaneseq
    %v1722 = vshrl.u32 %v1721, 7
    %v1723 = vsub.s32 %v1720, %v1722
    %v1724 = vrot.slane %v1710, %v1723
    %v1725 = vcombine.low %v1669, %v1701
    %v1726 = vcombine.high %v1669, %v1701
    %v1727 = vcombine.low %v1676, %v1708
    %v1728 = vcombine.high %v1676, %v1708
    %v1729 = vcombine.low %v1685, %v1717
    %v1730 = vcombine.high %v1685, %v1717
    %v1731 = vcombine.low %v1692, %v1724
    %v1732 = vcombine.high %v1692, %v1724
    %v1733 = vcombine.low %v1589, %v1591
    %v1734 = vcombine.high %v1589, %v1591
    %v1736 = vunpack.c.l.s4 1983009808
    %v1737 = vunpack.c.0.s8 %v1736
    %v1738 = vlaneseq
    %v1739 = vshrl.u32 %v1738, 7
    %v1740 = vsub.s32 %v1737, %v1739
    %v1741 = vrot.slane %v1733, %v1740
    %v1743 = vunpack.c.l.s4 1983009808
    %v1744 = vunpack.c.0.s8 %v1743
    %v1745 = vlaneseq
    %v1746 = vshrl.u32 %v1745, 7
    %v1747 = vsub.s32 %v1744, %v1746
    %v1748 = vrot.slane %v1734, %v1747
    %v1749 = vcombine.low %v1590, %v1592
    %v1750 = vcombine.high %v1590, %v1592
    %v1752 = vunpack.c.l.s4 1983009808
    %v1753 = vunpack.c.0.s8 %v1752
    %v1754 = vlaneseq
    %v1755 = vshrl.u32 %v1754, 7
    %v1756 = vsub.s32 %v1753, %v1755
    %v1757 = vrot.slane %v1749, %v1756
    %v1759 = vunpack.c.l.s4 1983009808
    %v1760 = vunpack.c.0.s8 %v1759
    %v1761 = vlaneseq
    %v1762 = vshrl.u32 %v1761, 7
    %v1763 = vsub.s32 %v1760, %v1762
    %v1764 = vrot.slane %v1750, %v1763
    %v1765 = vcombine.low %v1593, %v1595
    %v1766 = vcombine.high %v1593, %v1595
    %v1768 = vunpack.c.l.s4 1983009808
    %v1769 = vunpack.c.0.s8 %v1768
    %v1770 = vlaneseq
    %v1771 = vshrl.u32 %v1770, 7
    %v1772 = vsub.s32 %v1769, %v1771
    %v1773 = vrot.slane %v1765, %v1772
    %v1775 = vunpack.c.l.s4 1983009808
    %v1776 = vunpack.c.0.s8 %v1775
    %v1777 = vlaneseq
    %v1778 = vshrl.u32 %v1777, 7
    %v1779 = vsub.s32 %v1776, %v1778
    %v1780 = vrot.slane %v1766, %v1779
    %v1781 = vcombine.low %v1594, %v1596
    %v1782 = vcombine.high %v1594, %v1596
    %v1784 = vunpack.c.l.s4 1983009808
    %v1785 = vunpack.c.0.s8 %v1784
    %v1786 = vlaneseq
    %v1787 = vshrl.u32 %v1786, 7
    %v1788 = vsub.s32 %v1785, %v1787
    %v1789 = vrot.slane %v1781, %v1788
    %v1791 = vunpack.c.l.s4 1983009808
    %v1792 = vunpack.c.0.s8 %v1791
    %v1793 = vlaneseq
    %v1794 = vshrl.u32 %v1793, 7
    %v1795 = vsub.s32 %v1792, %v1794
    %v1796 = vrot.slane %v1782, %v1795
    %v1797 = vcombine.low %v1741, %v1757
    %v1798 = vcombine.high %v1741, %v1757
    %v1800 = vunpack.c.l.s4 1934713408
    %v1801 = vunpack.c.0.s8 %v1800
    %v1802 = vlaneseq
    %v1803 = vshrl.u32 %v1802, 7
    %v1804 = vsub.s32 %v1801, %v1803
    %v1805 = vrot.slane %v1797, %v1804
    %v1807 = vunpack.c.l.s4 1934713408
    %v1808 = vunpack.c.0.s8 %v1807
    %v1809 = vlaneseq
    %v1810 = vshrl.u32 %v1809, 7
    %v1811 = vsub.s32 %v1808, %v1810
    %v1812 = vrot.slane %v1798, %v1811
    %v1813 = vcombine.low %v1748, %v1764
    %v1814 = vcombine.high %v1748, %v1764
    %v1816 = vunpack.c.l.s4 1934713408
    %v1817 = vunpack.c.0.s8 %v1816
    %v1818 = vlaneseq
    %v1819 = vshrl.u32 %v1818, 7
    %v1820 = vsub.s32 %v1817, %v1819
    %v1821 = vrot.slane %v1813, %v1820
    %v1823 = vunpack.c.l.s4 1934713408
    %v1824 = vunpack.c.0.s8 %v1823
    %v1825 = vlaneseq
    %v1826 = vshrl.u32 %v1825, 7
    %v1827 = vsub.s32 %v1824, %v1826
    %v1828 = vrot.slane %v1814, %v1827
    %v1829 = vcombine.low %v1773, %v1789
    %v1830 = vcombine.high %v1773, %v1789
    %v1832 = vunpack.c.l.s4 1934713408
    %v1833 = vunpack.c.0.s8 %v1832
    %v1834 = vlaneseq
    %v1835 = vshrl.u32 %v1834, 7
    %v1836 = vsub.s32 %v1833, %v1835
    %v1837 = vrot.slane %v1829, %v1836
    %v1839 = vunpack.c.l.s4 1934713408
    %v1840 = vunpack.c.0.s8 %v1839
    %v1841 = vlaneseq
    %v1842 = vshrl.u32 %v1841, 7
    %v1843 = vsub.s32 %v1840, %v1842
    %v1844 = vrot.slane %v1830, %v1843
    %v1845 = vcombine.low %v1780, %v1796
    %v1846 = vcombine.high %v1780, %v1796
    %v1848 = vunpack.c.l.s4 1934713408
    %v1849 = vunpack.c.0.s8 %v1848
    %v1850 = vlaneseq
    %v1851 = vshrl.u32 %v1850, 7
    %v1852 = vsub.s32 %v1849, %v1851
    %v1853 = vrot.slane %v1845, %v1852
    %v1855 = vunpack.c.l.s4 1934713408
    %v1856 = vunpack.c.0.s8 %v1855
    %v1857 = vlaneseq
    %v1858 = vshrl.u32 %v1857, 7
    %v1859 = vsub.s32 %v1856, %v1858
    %v1860 = vrot.slane %v1846, %v1859
    %v1861 = vcombine.low %v1805, %v1837
    %v1862 = vcombine.high %v1805, %v1837
    %v1863 = vcombine.low %v1812, %v1844
    %v1864 = vcombine.high %v1812, %v1844
    %v1865 = vcombine.low %v1821, %v1853
    %v1866 = vcombine.high %v1821, %v1853
    %v1867 = vcombine.low %v1828, %v1860
    %v1868 = vcombine.high %v1828, %v1860
    %v1869 = vcombine.low %v1725, %v1727
    %v1870 = vcombine.high %v1725, %v1727
    %v1872 = vunpack.c.l.s4 1983009808
    %v1873 = vunpack.c.0.s8 %v1872
    %v1874 = vlaneseq
    %v1875 = vshrl.u32 %v1874, 7
    %v1876 = vsub.s32 %v1873, %v1875
    %v1877 = vrot.slane %v1869, %v1876
    %v1879 = vunpack.c.l.s4 1983009808
    %v1880 = vunpack.c.0.s8 %v1879
    %v1881 = vlaneseq
    %v1882 = vshrl.u32 %v1881, 7
    %v1883 = vsub.s32 %v1880, %v1882
    %v1884 = vrot.slane %v1870, %v1883
    %v1885 = vcombine.low %v1726, %v1728
    %v1886 = vcombine.high %v1726, %v1728
    %v1888 = vunpack.c.l.s4 1983009808
    %v1889 = vunpack.c.0.s8 %v1888
    %v1890 = vlaneseq
    %v1891 = vshrl.u32 %v1890, 7
    %v1892 = vsub.s32 %v1889, %v1891
    %v1893 = vrot.slane %v1885, %v1892
    %v1895 = vunpack.c.l.s4 1983009808
    %v1896 = vunpack.c.0.s8 %v1895
    %v1897 = vlaneseq
    %v1898 = vshrl.u32 %v1897, 7
    %v1899 = vsub.s32 %v1896, %v1898
    %v1900 = vrot.slane %v1886, %v1899
    %v1901 = vcombine.low %v1729, %v1731
    %v1902 = vcombine.high %v1729, %v1731
    %v1904 = vunpack.c.l.s4 1983009808
    %v1905 = vunpack.c.0.s8 %v1904
    %v1906 = vlaneseq
    %v1907 = vshrl.u32 %v1906, 7
    %v1908 = vsub.s32 %v1905, %v1907
    %v1909 = vrot.slane %v1901, %v1908
    %v1911 = vunpack.c.l.s4 1983009808
    %v1912 = vunpack.c.0.s8 %v1911
    %v1913 = vlaneseq
    %v1914 = vshrl.u32 %v1913, 7
    %v1915 = vsub.s32 %v1912, %v1914
    %v1916 = vrot.slane %v1902, %v1915
    %v1917 = vcombine.low %v1730, %v1732
    %v1918 = vcombine.high %v1730, %v1732
    %v1920 = vunpack.c.l.s4 1983009808
    %v1921 = vunpack.c.0.s8 %v1920
    %v1922 = vlaneseq
    %v1923 = vshrl.u32 %v1922, 7
    %v1924 = vsub.s32 %v1921, %v1923
    %v1925 = vrot.slane %v1917, %v1924
    %v1927 = vunpack.c.l.s4 1983009808
    %v1928 = vunpack.c.0.s8 %v1927
    %v1929 = vlaneseq
    %v1930 = vshrl.u32 %v1929, 7
    %v1931 = vsub.s32 %v1928, %v1930
    %v1932 = vrot.slane %v1918, %v1931
    %v1933 = vcombine.low %v1877, %v1893
    %v1934 = vcombine.high %v1877, %v1893
    %v1936 = vunpack.c.l.s4 1934713408
    %v1937 = vunpack.c.0.s8 %v1936
    %v1938 = vlaneseq
    %v1939 = vshrl.u32 %v1938, 7
    %v1940 = vsub.s32 %v1937, %v1939
    %v1941 = vrot.slane %v1933, %v1940
    %v1943 = vunpack.c.l.s4 1934713408
    %v1944 = vunpack.c.0.s8 %v1943
    %v1945 = vlaneseq
    %v1946 = vshrl.u32 %v1945, 7
    %v1947 = vsub.s32 %v1944, %v1946
    %v1948 = vrot.slane %v1934, %v1947
    %v1949 = vcombine.low %v1884, %v1900
    %v1950 = vcombine.high %v1884, %v1900
    %v1952 = vunpack.c.l.s4 1934713408
    %v1953 = vunpack.c.0.s8 %v1952
    %v1954 = vlaneseq
    %v1955 = vshrl.u32 %v1954, 7
    %v1956 = vsub.s32 %v1953, %v1955
    %v1957 = vrot.slane %v1949, %v1956
    %v1959 = vunpack.c.l.s4 1934713408
    %v1960 = vunpack.c.0.s8 %v1959
    %v1961 = vlaneseq
    %v1962 = vshrl.u32 %v1961, 7
    %v1963 = vsub.s32 %v1960, %v1962
    %v1964 = vrot.slane %v1950, %v1963
    %v1965 = vcombine.low %v1909, %v1925
    %v1966 = vcombine.high %v1909, %v1925
    %v1968 = vunpack.c.l.s4 1934713408
    %v1969 = vunpack.c.0.s8 %v1968
    %v1970 = vlaneseq
    %v1971 = vshrl.u32 %v1970, 7
    %v1972 = vsub.s32 %v1969, %v1971
    %v1973 = vrot.slane %v1965, %v1972
    %v1975 = vunpack.c.l.s4 1934713408
    %v1976 = vunpack.c.0.s8 %v1975
    %v1977 = vlaneseq
    %v1978 = vshrl.u32 %v1977, 7
    %v1979 = vsub.s32 %v1976, %v1978
    %v1980 = vrot.slane %v1966, %v1979
    %v1981 = vcombine.low %v1916, %v1932
    %v1982 = vcombine.high %v1916, %v1932
    %v1984 = vunpack.c.l.s4 1934713408
    %v1985 = vunpack.c.0.s8 %v1984
    %v1986 = vlaneseq
    %v1987 = vshrl.u32 %v1986, 7
    %v1988 = vsub.s32 %v1985, %v1987
    %v1989 = vrot.slane %v1981, %v1988
    %v1991 = vunpack.c.l.s4 1934713408
    %v1992 = vunpack.c.0.s8 %v1991
    %v1993 = vlaneseq
    %v1994 = vshrl.u32 %v1993, 7
    %v1995 = vsub.s32 %v1992, %v1994
    %v1996 = vrot.slane %v1982, %v1995
    %v1997 = vcombine.low %v1941, %v1973
    %v1998 = vcombine.high %v1941, %v1973
    %v1999 = vcombine.low %v1948, %v1980
    %v2000 = vcombine.high %v1948, %v1980
    %v2001 = vcombine.low %v1957, %v1989
    %v2002 = vcombine.high %v1957, %v1989
    %v2003 = vcombine.low %v1964, %v1996
    %v2004 = vcombine.high %v1964, %v1996
    %vm2005 = vcmask 31744
    %v2007 = vsel %vm2005, %v677, 0
    %v2010 = vsel %vm2005, %v1269, 0
    %2012 = vmatprep.subr.mxu0 0.0
    %2013 = vmatpush1.xpose.msra.mxu0 %v2010
    %2014 = vmatprep.subr.mxu0 0.0
    %2015 = vmatpush1.xpose.msra.mxu0 0.0
    %2016 = vmatprep.subr.mxu0 0.0
    %2017 = vmatpush1.xpose.msra.mxu0 0.0
    %2018 = vmatprep.subr.mxu0 0.0
    %2019 = vmatpush1.xpose.msra.mxu0 0.0
    %2020 = vmatprep.subr.mxu0 0.0
    %2021 = vmatpush1.xpose.msra.mxu0 0.0
    %2022 = vmatprep.subr.mxu0 0.0
    %2023 = vmatpush1.xpose.msra.mxu0 0.0
    %2024 = vmatprep.subr.mxu0 0.0
    %2025 = vmatpush1.xpose.msra.mxu0 0.0
    %2026 = vmatprep.subr.mxu0 0.0
    %2027 = vmatpush1.xpose.msra.mxu0 0.0
    %2028 = vmatprep.subr.mxu0 0.0
    %2029 = vmatpush1.xpose.msra.mxu0 0.0
    %2030 = vmatprep.subr.mxu0 0.0
    %2031 = vmatpush1.xpose.msra.mxu0 0.0
    %2032 = vmatprep.subr.mxu0 0.0
    %2033 = vmatpush1.xpose.msra.mxu0 0.0
    %2034 = vmatprep.subr.mxu0 0.0
    %2035 = vmatpush1.xpose.msra.mxu0 0.0
    %2036 = vmatprep.subr.mxu0 0.0
    %2037 = vmatpush1.xpose.msra.mxu0 0.0
    %2038 = vmatprep.subr.mxu0 0.0
    %2039 = vmatpush1.xpose.msra.mxu0 0.0
    %2040 = vmatprep.subr.mxu0 0.0
    %2041 = vmatpush1.xpose.msra.mxu0 0.0
    %2042 = vmatprep.subr.mxu0 0.0
    %2043 = vmatpush1.xpose.msra.mxu0 0.0
    %2044 = vmatprep.subr.mxu0 0.0
    %2045 = vmatpush1.xpose.msra.mxu0 0.0
    %2046 = vmatprep.subr.mxu0 0.0
    %2047 = vmatpush1.xpose.msra.mxu0 0.0
    %2048 = vmatprep.subr.mxu0 0.0
    %2049 = vmatpush1.xpose.msra.mxu0 0.0
    %2050 = vmatprep.subr.mxu0 0.0
    %2051 = vmatpush1.xpose.msra.mxu0 0.0
    %2052 = vmatprep.subr.mxu0 0.0
    %2053 = vmatpush1.xpose.msra.mxu0 0.0
    %2054 = vmatprep.subr.mxu0 0.0
    %2055 = vmatpush1.xpose.msra.mxu0 0.0
    %2056 = vmatprep.subr.mxu0 0.0
    %2057 = vmatpush1.xpose.msra.mxu0 0.0
    %2058 = vmatprep.subr.mxu0 0.0
    %2059 = vmatpush1.xpose.msra.mxu0 0.0
    %2060 = vmatprep.subr.mxu0 0.0
    %2061 = vmatpush1.xpose.msra.mxu0 0.0
    %2062 = vmatprep.subr.mxu0 0.0
    %2063 = vmatpush1.xpose.msra.mxu0 0.0
    %2064 = vmatprep.subr.mxu0 0.0
    %2065 = vmatpush1.xpose.msra.mxu0 0.0
    %2066 = vmatprep.subr.mxu0 0.0
    %2067 = vmatpush1.xpose.msra.mxu0 0.0
    %2068 = vmatprep.subr.mxu0 0.0
    %2069 = vmatpush1.xpose.msra.mxu0 0.0
    %2070 = vmatprep.subr.mxu0 0.0
    %2071 = vmatpush1.xpose.msra.mxu0 0.0
    %2072 = vmatprep.subr.mxu0 0.0
    %2073 = vmatpush1.xpose.msra.mxu0 0.0
    %2074 = vmatprep.subr.mxu0 0.0
    %2075 = vmatpush1.xpose.msra.mxu0 0.0
    %2076 = vmatprep.mubr.f32.mxu0 0.0
    %2077 = vmatmul.mubr.f32.gmra.mrb[0].mxu0 %v2007
    %v2078 = vpop.f32.mrb[0].mxu0
    %v2079 = vadd.f32 0.0, %v2078
    %v2080 = vpop.f32.mrb[0].mxu0
    %2081 = vdwg.mxu0
    %v2083 = vsel %vm2005, %v678, 0
    %v2086 = vsel %vm2005, %v1270, 0
    %2088 = vmatprep.subr.mxu0 0.0
    %2089 = vmatpush1.xpose.msra.mxu0 %v2086
    %2090 = vmatprep.subr.mxu0 0.0
    %2091 = vmatpush1.xpose.msra.mxu0 0.0
    %2092 = vmatprep.subr.mxu0 0.0
    %2093 = vmatpush1.xpose.msra.mxu0 0.0
    %2094 = vmatprep.subr.mxu0 0.0
    %2095 = vmatpush1.xpose.msra.mxu0 0.0
    %2096 = vmatprep.subr.mxu0 0.0
    %2097 = vmatpush1.xpose.msra.mxu0 0.0
    %2098 = vmatprep.subr.mxu0 0.0
    %2099 = vmatpush1.xpose.msra.mxu0 0.0
    %2100 = vmatprep.subr.mxu0 0.0
    %2101 = vmatpush1.xpose.msra.mxu0 0.0
    %2102 = vmatprep.subr.mxu0 0.0
    %2103 = vmatpush1.xpose.msra.mxu0 0.0
    %2104 = vmatprep.subr.mxu0 0.0
    %2105 = vmatpush1.xpose.msra.mxu0 0.0
    %2106 = vmatprep.subr.mxu0 0.0
    %2107 = vmatpush1.xpose.msra.mxu0 0.0
    %2108 = vmatprep.subr.mxu0 0.0
    %2109 = vmatpush1.xpose.msra.mxu0 0.0
    %2110 = vmatprep.subr.mxu0 0.0
    %2111 = vmatpush1.xpose.msra.mxu0 0.0
    %2112 = vmatprep.subr.mxu0 0.0
    %2113 = vmatpush1.xpose.msra.mxu0 0.0
    %2114 = vmatprep.subr.mxu0 0.0
    %2115 = vmatpush1.xpose.msra.mxu0 0.0
    %2116 = vmatprep.subr.mxu0 0.0
    %2117 = vmatpush1.xpose.msra.mxu0 0.0
    %2118 = vmatprep.subr.mxu0 0.0
    %2119 = vmatpush1.xpose.msra.mxu0 0.0
    %2120 = vmatprep.subr.mxu0 0.0
    %2121 = vmatpush1.xpose.msra.mxu0 0.0
    %2122 = vmatprep.subr.mxu0 0.0
    %2123 = vmatpush1.xpose.msra.mxu0 0.0
    %2124 = vmatprep.subr.mxu0 0.0
    %2125 = vmatpush1.xpose.msra.mxu0 0.0
    %2126 = vmatprep.subr.mxu0 0.0
    %2127 = vmatpush1.xpose.msra.mxu0 0.0
    %2128 = vmatprep.subr.mxu0 0.0
    %2129 = vmatpush1.xpose.msra.mxu0 0.0
    %2130 = vmatprep.subr.mxu0 0.0
    %2131 = vmatpush1.xpose.msra.mxu0 0.0
    %2132 = vmatprep.subr.mxu0 0.0
    %2133 = vmatpush1.xpose.msra.mxu0 0.0
    %2134 = vmatprep.subr.mxu0 0.0
    %2135 = vmatpush1.xpose.msra.mxu0 0.0
    %2136 = vmatprep.subr.mxu0 0.0
    %2137 = vmatpush1.xpose.msra.mxu0 0.0
    %2138 = vmatprep.subr.mxu0 0.0
    %2139 = vmatpush1.xpose.msra.mxu0 0.0
    %2140 = vmatprep.subr.mxu0 0.0
    %2141 = vmatpush1.xpose.msra.mxu0 0.0
    %2142 = vmatprep.subr.mxu0 0.0
    %2143 = vmatpush1.xpose.msra.mxu0 0.0
    %2144 = vmatprep.subr.mxu0 0.0
    %2145 = vmatpush1.xpose.msra.mxu0 0.0
    %2146 = vmatprep.subr.mxu0 0.0
    %2147 = vmatpush1.xpose.msra.mxu0 0.0
    %2148 = vmatprep.subr.mxu0 0.0
    %2149 = vmatpush1.xpose.msra.mxu0 0.0
    %2150 = vmatprep.subr.mxu0 0.0
    %2151 = vmatpush1.xpose.msra.mxu0 0.0
    %2152 = vmatprep.mubr.f32.mxu0 0.0
    %2153 = vmatmul.mubr.f32.gmra.mrb[0].mxu0 %v2083
    %v2154 = vpop.f32.mrb[0].mxu0
    %v2155 = vadd.f32 0.0, %v2154
    %v2156 = vpop.f32.mrb[0].mxu0
    %2157 = vdwg.mxu0
    %v2159 = vsel %vm2005, %v679, 0
    %v2162 = vsel %vm2005, %v1271, 0
    %2164 = vmatprep.subr.mxu0 0.0
    %2165 = vmatpush1.xpose.msra.mxu0 %v2162
    %2166 = vmatprep.subr.mxu0 0.0
    %2167 = vmatpush1.xpose.msra.mxu0 0.0
    %2168 = vmatprep.subr.mxu0 0.0
    %2169 = vmatpush1.xpose.msra.mxu0 0.0
    %2170 = vmatprep.subr.mxu0 0.0
    %2171 = vmatpush1.xpose.msra.mxu0 0.0
    %2172 = vmatprep.subr.mxu0 0.0
    %2173 = vmatpush1.xpose.msra.mxu0 0.0
    %2174 = vmatprep.subr.mxu0 0.0
    %2175 = vmatpush1.xpose.msra.mxu0 0.0
    %2176 = vmatprep.subr.mxu0 0.0
    %2177 = vmatpush1.xpose.msra.mxu0 0.0
    %2178 = vmatprep.subr.mxu0 0.0
    %2179 = vmatpush1.xpose.msra.mxu0 0.0
    %2180 = vmatprep.subr.mxu0 0.0
    %2181 = vmatpush1.xpose.msra.mxu0 0.0
    %2182 = vmatprep.subr.mxu0 0.0
    %2183 = vmatpush1.xpose.msra.mxu0 0.0
    %2184 = vmatprep.subr.mxu0 0.0
    %2185 = vmatpush1.xpose.msra.mxu0 0.0
    %2186 = vmatprep.subr.mxu0 0.0
    %2187 = vmatpush1.xpose.msra.mxu0 0.0
    %2188 = vmatprep.subr.mxu0 0.0
    %2189 = vmatpush1.xpose.msra.mxu0 0.0
    %2190 = vmatprep.subr.mxu0 0.0
    %2191 = vmatpush1.xpose.msra.mxu0 0.0
    %2192 = vmatprep.subr.mxu0 0.0
    %2193 = vmatpush1.xpose.msra.mxu0 0.0
    %2194 = vmatprep.subr.mxu0 0.0
    %2195 = vmatpush1.xpose.msra.mxu0 0.0
    %2196 = vmatprep.subr.mxu0 0.0
    %2197 = vmatpush1.xpose.msra.mxu0 0.0
    %2198 = vmatprep.subr.mxu0 0.0
    %2199 = vmatpush1.xpose.msra.mxu0 0.0
    %2200 = vmatprep.subr.mxu0 0.0
    %2201 = vmatpush1.xpose.msra.mxu0 0.0
    %2202 = vmatprep.subr.mxu0 0.0
    %2203 = vmatpush1.xpose.msra.mxu0 0.0
    %2204 = vmatprep.subr.mxu0 0.0
    %2205 = vmatpush1.xpose.msra.mxu0 0.0
    %2206 = vmatprep.subr.mxu0 0.0
    %2207 = vmatpush1.xpose.msra.mxu0 0.0
    %2208 = vmatprep.subr.mxu0 0.0
    %2209 = vmatpush1.xpose.msra.mxu0 0.0
    %2210 = vmatprep.subr.mxu0 0.0
    %2211 = vmatpush1.xpose.msra.mxu0 0.0
    %2212 = vmatprep.subr.mxu0 0.0
    %2213 = vmatpush1.xpose.msra.mxu0 0.0
    %2214 = vmatprep.subr.mxu0 0.0
    %2215 = vmatpush1.xpose.msra.mxu0 0.0
    %2216 = vmatprep.subr.mxu0 0.0
    %2217 = vmatpush1.xpose.msra.mxu0 0.0
    %2218 = vmatprep.subr.mxu0 0.0
    %2219 = vmatpush1.xpose.msra.mxu0 0.0
    %2220 = vmatprep.subr.mxu0 0.0
    %2221 = vmatpush1.xpose.msra.mxu0 0.0
    %2222 = vmatprep.subr.mxu0 0.0
    %2223 = vmatpush1.xpose.msra.mxu0 0.0
    %2224 = vmatprep.subr.mxu0 0.0
    %2225 = vmatpush1.xpose.msra.mxu0 0.0
    %2226 = vmatprep.subr.mxu0 0.0
    %2227 = vmatpush1.xpose.msra.mxu0 0.0
    %2228 = vmatprep.mubr.f32.mxu0 0.0
    %2229 = vmatmul.mubr.f32.gmra.mrb[0].mxu0 %v2159
    %v2230 = vpop.f32.mrb[0].mxu0
    %v2231 = vadd.f32 0.0, %v2230
    %v2232 = vpop.f32.mrb[0].mxu0
    %2233 = vdwg.mxu0
    %v2235 = vsel %vm2005, %v680, 0
    %v2238 = vsel %vm2005, %v1272, 0
    %2240 = vmatprep.subr.mxu0 0.0
    %2241 = vmatpush1.xpose.msra.mxu0 %v2238
    %2242 = vmatprep.subr.mxu0 0.0
    %2243 = vmatpush1.xpose.msra.mxu0 0.0
    %2244 = vmatprep.subr.mxu0 0.0
    %2245 = vmatpush1.xpose.msra.mxu0 0.0
    %2246 = vmatprep.subr.mxu0 0.0
    %2247 = vmatpush1.xpose.msra.mxu0 0.0
    %2248 = vmatprep.subr.mxu0 0.0
    %2249 = vmatpush1.xpose.msra.mxu0 0.0
    %2250 = vmatprep.subr.mxu0 0.0
    %2251 = vmatpush1.xpose.msra.mxu0 0.0
    %2252 = vmatprep.subr.mxu0 0.0
    %2253 = vmatpush1.xpose.msra.mxu0 0.0
    %2254 = vmatprep.subr.mxu0 0.0
    %2255 = vmatpush1.xpose.msra.mxu0 0.0
    %2256 = vmatprep.subr.mxu0 0.0
    %2257 = vmatpush1.xpose.msra.mxu0 0.0
    %2258 = vmatprep.subr.mxu0 0.0
    %2259 = vmatpush1.xpose.msra.mxu0 0.0
    %2260 = vmatprep.subr.mxu0 0.0
    %2261 = vmatpush1.xpose.msra.mxu0 0.0
    %2262 = vmatprep.subr.mxu0 0.0
    %2263 = vmatpush1.xpose.msra.mxu0 0.0
    %2264 = vmatprep.subr.mxu0 0.0
    %2265 = vmatpush1.xpose.msra.mxu0 0.0
    %2266 = vmatprep.subr.mxu0 0.0
    %2267 = vmatpush1.xpose.msra.mxu0 0.0
    %2268 = vmatprep.subr.mxu0 0.0
    %2269 = vmatpush1.xpose.msra.mxu0 0.0
    %2270 = vmatprep.subr.mxu0 0.0
    %2271 = vmatpush1.xpose.msra.mxu0 0.0
    %2272 = vmatprep.subr.mxu0 0.0
    %2273 = vmatpush1.xpose.msra.mxu0 0.0
    %2274 = vmatprep.subr.mxu0 0.0
    %2275 = vmatpush1.xpose.msra.mxu0 0.0
    %2276 = vmatprep.subr.mxu0 0.0
    %2277 = vmatpush1.xpose.msra.mxu0 0.0
    %2278 = vmatprep.subr.mxu0 0.0
    %2279 = vmatpush1.xpose.msra.mxu0 0.0
    %2280 = vmatprep.subr.mxu0 0.0
    %2281 = vmatpush1.xpose.msra.mxu0 0.0
    %2282 = vmatprep.subr.mxu0 0.0
    %2283 = vmatpush1.xpose.msra.mxu0 0.0
    %2284 = vmatprep.subr.mxu0 0.0
    %2285 = vmatpush1.xpose.msra.mxu0 0.0
    %2286 = vmatprep.subr.mxu0 0.0
    %2287 = vmatpush1.xpose.msra.mxu0 0.0
    %2288 = vmatprep.subr.mxu0 0.0
    %2289 = vmatpush1.xpose.msra.mxu0 0.0
    %2290 = vmatprep.subr.mxu0 0.0
    %2291 = vmatpush1.xpose.msra.mxu0 0.0
    %2292 = vmatprep.subr.mxu0 0.0
    %2293 = vmatpush1.xpose.msra.mxu0 0.0
    %2294 = vmatprep.subr.mxu0 0.0
    %2295 = vmatpush1.xpose.msra.mxu0 0.0
    %2296 = vmatprep.subr.mxu0 0.0
    %2297 = vmatpush1.xpose.msra.mxu0 0.0
    %2298 = vmatprep.subr.mxu0 0.0
    %2299 = vmatpush1.xpose.msra.mxu0 0.0
    %2300 = vmatprep.subr.mxu0 0.0
    %2301 = vmatpush1.xpose.msra.mxu0 0.0
    %2302 = vmatprep.subr.mxu0 0.0
    %2303 = vmatpush1.xpose.msra.mxu0 0.0
    %2304 = vmatprep.mubr.f32.mxu0 0.0
    %2305 = vmatmul.mubr.f32.gmra.mrb[0].mxu0 %v2235
    %v2306 = vpop.f32.mrb[0].mxu0
    %v2307 = vadd.f32 0.0, %v2306
    %v2308 = vpop.f32.mrb[0].mxu0
    %2309 = vdwg.mxu0
    %v2311 = vsel %vm2005, %v681, 0
    %v2314 = vsel %vm2005, %v1273, 0
    %2316 = vmatprep.subr.mxu0 0.0
    %2317 = vmatpush1.xpose.msra.mxu0 %v2314
    %2318 = vmatprep.subr.mxu0 0.0
    %2319 = vmatpush1.xpose.msra.mxu0 0.0
    %2320 = vmatprep.subr.mxu0 0.0
    %2321 = vmatpush1.xpose.msra.mxu0 0.0
    %2322 = vmatprep.subr.mxu0 0.0
    %2323 = vmatpush1.xpose.msra.mxu0 0.0
    %2324 = vmatprep.subr.mxu0 0.0
    %2325 = vmatpush1.xpose.msra.mxu0 0.0
    %2326 = vmatprep.subr.mxu0 0.0
    %2327 = vmatpush1.xpose.msra.mxu0 0.0
    %2328 = vmatprep.subr.mxu0 0.0
    %2329 = vmatpush1.xpose.msra.mxu0 0.0
    %2330 = vmatprep.subr.mxu0 0.0
    %2331 = vmatpush1.xpose.msra.mxu0 0.0
    %2332 = vmatprep.subr.mxu0 0.0
    %2333 = vmatpush1.xpose.msra.mxu0 0.0
    %2334 = vmatprep.subr.mxu0 0.0
    %2335 = vmatpush1.xpose.msra.mxu0 0.0
    %2336 = vmatprep.subr.mxu0 0.0
    %2337 = vmatpush1.xpose.msra.mxu0 0.0
    %2338 = vmatprep.subr.mxu0 0.0
    %2339 = vmatpush1.xpose.msra.mxu0 0.0
    %2340 = vmatprep.subr.mxu0 0.0
    %2341 = vmatpush1.xpose.msra.mxu0 0.0
    %2342 = vmatprep.subr.mxu0 0.0
    %2343 = vmatpush1.xpose.msra.mxu0 0.0
    %2344 = vmatprep.subr.mxu0 0.0
    %2345 = vmatpush1.xpose.msra.mxu0 0.0
    %2346 = vmatprep.subr.mxu0 0.0
    %2347 = vmatpush1.xpose.msra.mxu0 0.0
    %2348 = vmatprep.subr.mxu0 0.0
    %2349 = vmatpush1.xpose.msra.mxu0 0.0
    %2350 = vmatprep.subr.mxu0 0.0
    %2351 = vmatpush1.xpose.msra.mxu0 0.0
    %2352 = vmatprep.subr.mxu0 0.0
    %2353 = vmatpush1.xpose.msra.mxu0 0.0
    %2354 = vmatprep.subr.mxu0 0.0
    %2355 = vmatpush1.xpose.msra.mxu0 0.0
    %2356 = vmatprep.subr.mxu0 0.0
    %2357 = vmatpush1.xpose.msra.mxu0 0.0
    %2358 = vmatprep.subr.mxu0 0.0
    %2359 = vmatpush1.xpose.msra.mxu0 0.0
    %2360 = vmatprep.subr.mxu0 0.0
    %2361 = vmatpush1.xpose.msra.mxu0 0.0
    %2362 = vmatprep.subr.mxu0 0.0
    %2363 = vmatpush1.xpose.msra.mxu0 0.0
    %2364 = vmatprep.subr.mxu0 0.0
    %2365 = vmatpush1.xpose.msra.mxu0 0.0
    %2366 = vmatprep.subr.mxu0 0.0
    %2367 = vmatpush1.xpose.msra.mxu0 0.0
    %2368 = vmatprep.subr.mxu0 0.0
    %2369 = vmatpush1.xpose.msra.mxu0 0.0
    %2370 = vmatprep.subr.mxu0 0.0
    %2371 = vmatpush1.xpose.msra.mxu0 0.0
    %2372 = vmatprep.subr.mxu0 0.0
    %2373 = vmatpush1.xpose.msra.mxu0 0.0
    %2374 = vmatprep.subr.mxu0 0.0
    %2375 = vmatpush1.xpose.msra.mxu0 0.0
    %2376 = vmatprep.subr.mxu0 0.0
    %2377 = vmatpush1.xpose.msra.mxu0 0.0
    %2378 = vmatprep.subr.mxu0 0.0
    %2379 = vmatpush1.xpose.msra.mxu0 0.0
    %2380 = vmatprep.mubr.f32.mxu0 0.0
    %2381 = vmatmul.mubr.f32.gmra.mrb[0].mxu0 %v2311
    %v2382 = vpop.f32.mrb[0].mxu0
    %v2383 = vadd.f32 0.0, %v2382
    %v2384 = vpop.f32.mrb[0].mxu0
    %2385 = vdwg.mxu0
    %v2387 = vsel %vm2005, %v682, 0
    %v2390 = vsel %vm2005, %v1274, 0
    %2392 = vmatprep.subr.mxu0 0.0
    %2393 = vmatpush1.xpose.msra.mxu0 %v2390
    %2394 = vmatprep.subr.mxu0 0.0
    %2395 = vmatpush1.xpose.msra.mxu0 0.0
    %2396 = vmatprep.subr.mxu0 0.0
    %2397 = vmatpush1.xpose.msra.mxu0 0.0
    %2398 = vmatprep.subr.mxu0 0.0
    %2399 = vmatpush1.xpose.msra.mxu0 0.0
    %2400 = vmatprep.subr.mxu0 0.0
    %2401 = vmatpush1.xpose.msra.mxu0 0.0
    %2402 = vmatprep.subr.mxu0 0.0
    %2403 = vmatpush1.xpose.msra.mxu0 0.0
    %2404 = vmatprep.subr.mxu0 0.0
    %2405 = vmatpush1.xpose.msra.mxu0 0.0
    %2406 = vmatprep.subr.mxu0 0.0
    %2407 = vmatpush1.xpose.msra.mxu0 0.0
    %2408 = vmatprep.subr.mxu0 0.0
    %2409 = vmatpush1.xpose.msra.mxu0 0.0
    %2410 = vmatprep.subr.mxu0 0.0
    %2411 = vmatpush1.xpose.msra.mxu0 0.0
    %2412 = vmatprep.subr.mxu0 0.0
    %2413 = vmatpush1.xpose.msra.mxu0 0.0
    %2414 = vmatprep.subr.mxu0 0.0
    %2415 = vmatpush1.xpose.msra.mxu0 0.0
    %2416 = vmatprep.subr.mxu0 0.0
    %2417 = vmatpush1.xpose.msra.mxu0 0.0
    %2418 = vmatprep.subr.mxu0 0.0
    %2419 = vmatpush1.xpose.msra.mxu0 0.0
    %2420 = vmatprep.subr.mxu0 0.0
    %2421 = vmatpush1.xpose.msra.mxu0 0.0
    %2422 = vmatprep.subr.mxu0 0.0
    %2423 = vmatpush1.xpose.msra.mxu0 0.0
    %2424 = vmatprep.subr.mxu0 0.0
    %2425 = vmatpush1.xpose.msra.mxu0 0.0
    %2426 = vmatprep.subr.mxu0 0.0
    %2427 = vmatpush1.xpose.msra.mxu0 0.0
    %2428 = vmatprep.subr.mxu0 0.0
    %2429 = vmatpush1.xpose.msra.mxu0 0.0
    %2430 = vmatprep.subr.mxu0 0.0
    %2431 = vmatpush1.xpose.msra.mxu0 0.0
    %2432 = vmatprep.subr.mxu0 0.0
    %2433 = vmatpush1.xpose.msra.mxu0 0.0
    %2434 = vmatprep.subr.mxu0 0.0
    %2435 = vmatpush1.xpose.msra.mxu0 0.0
    %2436 = vmatprep.subr.mxu0 0.0
    %2437 = vmatpush1.xpose.msra.mxu0 0.0
    %2438 = vmatprep.subr.mxu0 0.0
    %2439 = vmatpush1.xpose.msra.mxu0 0.0
    %2440 = vmatprep.subr.mxu0 0.0
    %2441 = vmatpush1.xpose.msra.mxu0 0.0
    %2442 = vmatprep.subr.mxu0 0.0
    %2443 = vmatpush1.xpose.msra.mxu0 0.0
    %2444 = vmatprep.subr.mxu0 0.0
    %2445 = vmatpush1.xpose.msra.mxu0 0.0
    %2446 = vmatprep.subr.mxu0 0.0
    %2447 = vmatpush1.xpose.msra.mxu0 0.0
    %2448 = vmatprep.subr.mxu0 0.0
    %2449 = vmatpush1.xpose.msra.mxu0 0.0
    %2450 = vmatprep.subr.mxu0 0.0
    %2451 = vmatpush1.xpose.msra.mxu0 0.0
    %2452 = vmatprep.subr.mxu0 0.0
    %2453 = vmatpush1.xpose.msra.mxu0 0.0
    %2454 = vmatprep.subr.mxu0 0.0
    %2455 = vmatpush1.xpose.msra.mxu0 0.0
    %2456 = vmatprep.mubr.f32.mxu0 0.0
    %2457 = vmatmul.mubr.f32.gmra.mrb[0].mxu0 %v2387
    %v2458 = vpop.f32.mrb[0].mxu0
    %v2459 = vadd.f32 0.0, %v2458
    %v2460 = vpop.f32.mrb[0].mxu0
    %2461 = vdwg.mxu0
    %v2463 = vsel %vm2005, %v683, 0
    %v2466 = vsel %vm2005, %v1275, 0
    %2468 = vmatprep.subr.mxu0 0.0
    %2469 = vmatpush1.xpose.msra.mxu0 %v2466
    %2470 = vmatprep.subr.mxu0 0.0
    %2471 = vmatpush1.xpose.msra.mxu0 0.0
    %2472 = vmatprep.subr.mxu0 0.0
    %2473 = vmatpush1.xpose.msra.mxu0 0.0
    %2474 = vmatprep.subr.mxu0 0.0
    %2475 = vmatpush1.xpose.msra.mxu0 0.0
    %2476 = vmatprep.subr.mxu0 0.0
    %2477 = vmatpush1.xpose.msra.mxu0 0.0
    %2478 = vmatprep.subr.mxu0 0.0
    %2479 = vmatpush1.xpose.msra.mxu0 0.0
    %2480 = vmatprep.subr.mxu0 0.0
    %2481 = vmatpush1.xpose.msra.mxu0 0.0
    %2482 = vmatprep.subr.mxu0 0.0
    %2483 = vmatpush1.xpose.msra.mxu0 0.0
    %2484 = vmatprep.subr.mxu0 0.0
    %2485 = vmatpush1.xpose.msra.mxu0 0.0
    %2486 = vmatprep.subr.mxu0 0.0
    %2487 = vmatpush1.xpose.msra.mxu0 0.0
    %2488 = vmatprep.subr.mxu0 0.0
    %2489 = vmatpush1.xpose.msra.mxu0 0.0
    %2490 = vmatprep.subr.mxu0 0.0
    %2491 = vmatpush1.xpose.msra.mxu0 0.0
    %2492 = vmatprep.subr.mxu0 0.0
    %2493 = vmatpush1.xpose.msra.mxu0 0.0
    %2494 = vmatprep.subr.mxu0 0.0
    %2495 = vmatpush1.xpose.msra.mxu0 0.0
    %2496 = vmatprep.subr.mxu0 0.0
    %2497 = vmatpush1.xpose.msra.mxu0 0.0
    %2498 = vmatprep.subr.mxu0 0.0
    %2499 = vmatpush1.xpose.msra.mxu0 0.0
    %2500 = vmatprep.subr.mxu0 0.0
    %2501 = vmatpush1.xpose.msra.mxu0 0.0
    %2502 = vmatprep.subr.mxu0 0.0
    %2503 = vmatpush1.xpose.msra.mxu0 0.0
    %2504 = vmatprep.subr.mxu0 0.0
    %2505 = vmatpush1.xpose.msra.mxu0 0.0
    %2506 = vmatprep.subr.mxu0 0.0
    %2507 = vmatpush1.xpose.msra.mxu0 0.0
    %2508 = vmatprep.subr.mxu0 0.0
    %2509 = vmatpush1.xpose.msra.mxu0 0.0
    %2510 = vmatprep.subr.mxu0 0.0
    %2511 = vmatpush1.xpose.msra.mxu0 0.0
    %2512 = vmatprep.subr.mxu0 0.0
    %2513 = vmatpush1.xpose.msra.mxu0 0.0
    %2514 = vmatprep.subr.mxu0 0.0
    %2515 = vmatpush1.xpose.msra.mxu0 0.0
    %2516 = vmatprep.subr.mxu0 0.0
    %2517 = vmatpush1.xpose.msra.mxu0 0.0
    %2518 = vmatprep.subr.mxu0 0.0
    %2519 = vmatpush1.xpose.msra.mxu0 0.0
    %2520 = vmatprep.subr.mxu0 0.0
    %2521 = vmatpush1.xpose.msra.mxu0 0.0
    %2522 = vmatprep.subr.mxu0 0.0
    %2523 = vmatpush1.xpose.msra.mxu0 0.0
    %2524 = vmatprep.subr.mxu0 0.0
    %2525 = vmatpush1.xpose.msra.mxu0 0.0
    %2526 = vmatprep.subr.mxu0 0.0
    %2527 = vmatpush1.xpose.msra.mxu0 0.0
    %2528 = vmatprep.subr.mxu0 0.0
    %2529 = vmatpush1.xpose.msra.mxu0 0.0
    %2530 = vmatprep.subr.mxu0 0.0
    %2531 = vmatpush1.xpose.msra.mxu0 0.0
    %2532 = vmatprep.mubr.f32.mxu0 0.0
    %2533 = vmatmul.mubr.f32.gmra.mrb[0].mxu0 %v2463
    %v2534 = vpop.f32.mrb[0].mxu0
    %v2535 = vadd.f32 0.0, %v2534
    %v2536 = vpop.f32.mrb[0].mxu0
    %2537 = vdwg.mxu0
    %v2539 = vsel %vm2005, %v684, 0
    %v2542 = vsel %vm2005, %v1276, 0
    %2544 = vmatprep.subr.mxu0 0.0
    %2545 = vmatpush1.xpose.msra.mxu0 %v2542
    %2546 = vmatprep.subr.mxu0 0.0
    %2547 = vmatpush1.xpose.msra.mxu0 0.0
    %2548 = vmatprep.subr.mxu0 0.0
    %2549 = vmatpush1.xpose.msra.mxu0 0.0
    %2550 = vmatprep.subr.mxu0 0.0
    %2551 = vmatpush1.xpose.msra.mxu0 0.0
    %2552 = vmatprep.subr.mxu0 0.0
    %2553 = vmatpush1.xpose.msra.mxu0 0.0
    %2554 = vmatprep.subr.mxu0 0.0
    %2555 = vmatpush1.xpose.msra.mxu0 0.0
    %2556 = vmatprep.subr.mxu0 0.0
    %2557 = vmatpush1.xpose.msra.mxu0 0.0
    %2558 = vmatprep.subr.mxu0 0.0
    %2559 = vmatpush1.xpose.msra.mxu0 0.0
    %2560 = vmatprep.subr.mxu0 0.0
    %2561 = vmatpush1.xpose.msra.mxu0 0.0
    %2562 = vmatprep.subr.mxu0 0.0
    %2563 = vmatpush1.xpose.msra.mxu0 0.0
    %2564 = vmatprep.subr.mxu0 0.0
    %2565 = vmatpush1.xpose.msra.mxu0 0.0
    %2566 = vmatprep.subr.mxu0 0.0
    %2567 = vmatpush1.xpose.msra.mxu0 0.0
    %2568 = vmatprep.subr.mxu0 0.0
    %2569 = vmatpush1.xpose.msra.mxu0 0.0
    %2570 = vmatprep.subr.mxu0 0.0
    %2571 = vmatpush1.xpose.msra.mxu0 0.0
    %2572 = vmatprep.subr.mxu0 0.0
    %2573 = vmatpush1.xpose.msra.mxu0 0.0
    %2574 = vmatprep.subr.mxu0 0.0
    %2575 = vmatpush1.xpose.msra.mxu0 0.0
    %2576 = vmatprep.subr.mxu0 0.0
    %2577 = vmatpush1.xpose.msra.mxu0 0.0
    %2578 = vmatprep.subr.mxu0 0.0
    %2579 = vmatpush1.xpose.msra.mxu0 0.0
    %2580 = vmatprep.subr.mxu0 0.0
    %2581 = vmatpush1.xpose.msra.mxu0 0.0
    %2582 = vmatprep.subr.mxu0 0.0
    %2583 = vmatpush1.xpose.msra.mxu0 0.0
    %2584 = vmatprep.subr.mxu0 0.0
    %2585 = vmatpush1.xpose.msra.mxu0 0.0
    %2586 = vmatprep.subr.mxu0 0.0
    %2587 = vmatpush1.xpose.msra.mxu0 0.0
    %2588 = vmatprep.subr.mxu0 0.0
    %2589 = vmatpush1.xpose.msra.mxu0 0.0
    %2590 = vmatprep.subr.mxu0 0.0
    %2591 = vmatpush1.xpose.msra.mxu0 0.0
    %2592 = vmatprep.subr.mxu0 0.0
    %2593 = vmatpush1.xpose.msra.mxu0 0.0
    %2594 = vmatprep.subr.mxu0 0.0
    %2595 = vmatpush1.xpose.msra.mxu0 0.0
    %2596 = vmatprep.subr.mxu0 0.0
    %2597 = vmatpush1.xpose.msra.mxu0 0.0
    %2598 = vmatprep.subr.mxu0 0.0
    %2599 = vmatpush1.xpose.msra.mxu0 0.0
    %2600 = vmatprep.subr.mxu0 0.0
    %2601 = vmatpush1.xpose.msra.mxu0 0.0
    %2602 = vmatprep.subr.mxu0 0.0
    %2603 = vmatpush1.xpose.msra.mxu0 0.0
    %2604 = vmatprep.subr.mxu0 0.0
    %2605 = vmatpush1.xpose.msra.mxu0 0.0
    %2606 = vmatprep.subr.mxu0 0.0
    %2607 = vmatpush1.xpose.msra.mxu0 0.0
    %2608 = vmatprep.mubr.f32.mxu0 0.0
    %2609 = vmatmul.mubr.f32.gmra.mrb[0].mxu0 %v2539
    %v2610 = vpop.f32.mrb[0].mxu0
    %v2611 = vadd.f32 0.0, %v2610
    %v2612 = vpop.f32.mrb[0].mxu0
    %2613 = vdwg.mxu0
    %v2615 = vsel %vm2005, %v813, 0
    %v2618 = vsel %vm2005, %v1405, 0
    %2620 = vmatprep.subr.mxu0 0.0
    %2621 = vmatpush1.xpose.msra.mxu0 %v2618
    %2622 = vmatprep.subr.mxu0 0.0
    %2623 = vmatpush1.xpose.msra.mxu0 0.0
    %2624 = vmatprep.subr.mxu0 0.0
    %2625 = vmatpush1.xpose.msra.mxu0 0.0
    %2626 = vmatprep.subr.mxu0 0.0
    %2627 = vmatpush1.xpose.msra.mxu0 0.0
    %2628 = vmatprep.subr.mxu0 0.0
    %2629 = vmatpush1.xpose.msra.mxu0 0.0
    %2630 = vmatprep.subr.mxu0 0.0
    %2631 = vmatpush1.xpose.msra.mxu0 0.0
    %2632 = vmatprep.subr.mxu0 0.0
    %2633 = vmatpush1.xpose.msra.mxu0 0.0
    %2634 = vmatprep.subr.mxu0 0.0
    %2635 = vmatpush1.xpose.msra.mxu0 0.0
    %2636 = vmatprep.subr.mxu0 0.0
    %2637 = vmatpush1.xpose.msra.mxu0 0.0
    %2638 = vmatprep.subr.mxu0 0.0
    %2639 = vmatpush1.xpose.msra.mxu0 0.0
    %2640 = vmatprep.subr.mxu0 0.0
    %2641 = vmatpush1.xpose.msra.mxu0 0.0
    %2642 = vmatprep.subr.mxu0 0.0
    %2643 = vmatpush1.xpose.msra.mxu0 0.0
    %2644 = vmatprep.subr.mxu0 0.0
    %2645 = vmatpush1.xpose.msra.mxu0 0.0
    %2646 = vmatprep.subr.mxu0 0.0
    %2647 = vmatpush1.xpose.msra.mxu0 0.0
    %2648 = vmatprep.subr.mxu0 0.0
    %2649 = vmatpush1.xpose.msra.mxu0 0.0
    %2650 = vmatprep.subr.mxu0 0.0
    %2651 = vmatpush1.xpose.msra.mxu0 0.0
    %2652 = vmatprep.subr.mxu0 0.0
    %2653 = vmatpush1.xpose.msra.mxu0 0.0
    %2654 = vmatprep.subr.mxu0 0.0
    %2655 = vmatpush1.xpose.msra.mxu0 0.0
    %2656 = vmatprep.subr.mxu0 0.0
    %2657 = vmatpush1.xpose.msra.mxu0 0.0
    %2658 = vmatprep.subr.mxu0 0.0
    %2659 = vmatpush1.xpose.msra.mxu0 0.0
    %2660 = vmatprep.subr.mxu0 0.0
    %2661 = vmatpush1.xpose.msra.mxu0 0.0
    %2662 = vmatprep.subr.mxu0 0.0
    %2663 = vmatpush1.xpose.msra.mxu0 0.0
    %2664 = vmatprep.subr.mxu0 0.0
    %2665 = vmatpush1.xpose.msra.mxu0 0.0
    %2666 = vmatprep.subr.mxu0 0.0
    %2667 = vmatpush1.xpose.msra.mxu0 0.0
    %2668 = vmatprep.subr.mxu0 0.0
    %2669 = vmatpush1.xpose.msra.mxu0 0.0
    %2670 = vmatprep.subr.mxu0 0.0
    %2671 = vmatpush1.xpose.msra.mxu0 0.0
    %2672 = vmatprep.subr.mxu0 0.0
    %2673 = vmatpush1.xpose.msra.mxu0 0.0
    %2674 = vmatprep.subr.mxu0 0.0
    %2675 = vmatpush1.xpose.msra.mxu0 0.0
    %2676 = vmatprep.subr.mxu0 0.0
    %2677 = vmatpush1.xpose.msra.mxu0 0.0
    %2678 = vmatprep.subr.mxu0 0.0
    %2679 = vmatpush1.xpose.msra.mxu0 0.0
    %2680 = vmatprep.subr.mxu0 0.0
    %2681 = vmatpush1.xpose.msra.mxu0 0.0
    %2682 = vmatprep.subr.mxu0 0.0
    %2683 = vmatpush1.xpose.msra.mxu0 0.0
    %2684 = vmatprep.mubr.f32.mxu0 0.0
    %2685 = vmatmul.mubr.f32.gmra.mrb[0].mxu0 %v2615
    %v2686 = vpop.f32.mrb[0].mxu0
    %v2687 = vadd.f32 0.0, %v2686
    %v2688 = vpop.f32.mrb[0].mxu0
    %2689 = vdwg.mxu0
    %v2691 = vsel %vm2005, %v814, 0
    %v2694 = vsel %vm2005, %v1406, 0
    %2696 = vmatprep.subr.mxu0 0.0
    %2697 = vmatpush1.xpose.msra.mxu0 %v2694
    %2698 = vmatprep.subr.mxu0 0.0
    %2699 = vmatpush1.xpose.msra.mxu0 0.0
    %2700 = vmatprep.subr.mxu0 0.0
    %2701 = vmatpush1.xpose.msra.mxu0 0.0
    %2702 = vmatprep.subr.mxu0 0.0
    %2703 = vmatpush1.xpose.msra.mxu0 0.0
    %2704 = vmatprep.subr.mxu0 0.0
    %2705 = vmatpush1.xpose.msra.mxu0 0.0
    %2706 = vmatprep.subr.mxu0 0.0
    %2707 = vmatpush1.xpose.msra.mxu0 0.0
    %2708 = vmatprep.subr.mxu0 0.0
    %2709 = vmatpush1.xpose.msra.mxu0 0.0
    %2710 = vmatprep.subr.mxu0 0.0
    %2711 = vmatpush1.xpose.msra.mxu0 0.0
    %2712 = vmatprep.subr.mxu0 0.0
    %2713 = vmatpush1.xpose.msra.mxu0 0.0
    %2714 = vmatprep.subr.mxu0 0.0
    %2715 = vmatpush1.xpose.msra.mxu0 0.0
    %2716 = vmatprep.subr.mxu0 0.0
    %2717 = vmatpush1.xpose.msra.mxu0 0.0
    %2718 = vmatprep.subr.mxu0 0.0
    %2719 = vmatpush1.xpose.msra.mxu0 0.0
    %2720 = vmatprep.subr.mxu0 0.0
    %2721 = vmatpush1.xpose.msra.mxu0 0.0
    %2722 = vmatprep.subr.mxu0 0.0
    %2723 = vmatpush1.xpose.msra.mxu0 0.0
    %2724 = vmatprep.subr.mxu0 0.0
    %2725 = vmatpush1.xpose.msra.mxu0 0.0
    %2726 = vmatprep.subr.mxu0 0.0
    %2727 = vmatpush1.xpose.msra.mxu0 0.0
    %2728 = vmatprep.subr.mxu0 0.0
    %2729 = vmatpush1.xpose.msra.mxu0 0.0
    %2730 = vmatprep.subr.mxu0 0.0
    %2731 = vmatpush1.xpose.msra.mxu0 0.0
    %2732 = vmatprep.subr.mxu0 0.0
    %2733 = vmatpush1.xpose.msra.mxu0 0.0
    %2734 = vmatprep.subr.mxu0 0.0
    %2735 = vmatpush1.xpose.msra.mxu0 0.0
    %2736 = vmatprep.subr.mxu0 0.0
    %2737 = vmatpush1.xpose.msra.mxu0 0.0
    %2738 = vmatprep.subr.mxu0 0.0
    %2739 = vmatpush1.xpose.msra.mxu0 0.0
    %2740 = vmatprep.subr.mxu0 0.0
    %2741 = vmatpush1.xpose.msra.mxu0 0.0
    %2742 = vmatprep.subr.mxu0 0.0
    %2743 = vmatpush1.xpose.msra.mxu0 0.0
    %2744 = vmatprep.subr.mxu0 0.0
    %2745 = vmatpush1.xpose.msra.mxu0 0.0
    %2746 = vmatprep.subr.mxu0 0.0
    %2747 = vmatpush1.xpose.msra.mxu0 0.0
    %2748 = vmatprep.subr.mxu0 0.0
    %2749 = vmatpush1.xpose.msra.mxu0 0.0
    %2750 = vmatprep.subr.mxu0 0.0
    %2751 = vmatpush1.xpose.msra.mxu0 0.0
    %2752 = vmatprep.subr.mxu0 0.0
    %2753 = vmatpush1.xpose.msra.mxu0 0.0
    %2754 = vmatprep.subr.mxu0 0.0
    %2755 = vmatpush1.xpose.msra.mxu0 0.0
    %2756 = vmatprep.subr.mxu0 0.0
    %2757 = vmatpush1.xpose.msra.mxu0 0.0
    %2758 = vmatprep.subr.mxu0 0.0
    %2759 = vmatpush1.xpose.msra.mxu0 0.0
    %2760 = vmatprep.mubr.f32.mxu0 0.0
    %2761 = vmatmul.mubr.f32.gmra.mrb[0].mxu0 %v2691
    %v2762 = vpop.f32.mrb[0].mxu0
    %v2763 = vadd.f32 0.0, %v2762
    %v2764 = vpop.f32.mrb[0].mxu0
    %2765 = vdwg.mxu0
    %v2767 = vsel %vm2005, %v815, 0
    %v2770 = vsel %vm2005, %v1407, 0
    %2772 = vmatprep.subr.mxu0 0.0
    %2773 = vmatpush1.xpose.msra.mxu0 %v2770
    %2774 = vmatprep.subr.mxu0 0.0
    %2775 = vmatpush1.xpose.msra.mxu0 0.0
    %2776 = vmatprep.subr.mxu0 0.0
    %2777 = vmatpush1.xpose.msra.mxu0 0.0
    %2778 = vmatprep.subr.mxu0 0.0
    %2779 = vmatpush1.xpose.msra.mxu0 0.0
    %2780 = vmatprep.subr.mxu0 0.0
    %2781 = vmatpush1.xpose.msra.mxu0 0.0
    %2782 = vmatprep.subr.mxu0 0.0
    %2783 = vmatpush1.xpose.msra.mxu0 0.0
    %2784 = vmatprep.subr.mxu0 0.0
    %2785 = vmatpush1.xpose.msra.mxu0 0.0
    %2786 = vmatprep.subr.mxu0 0.0
    %2787 = vmatpush1.xpose.msra.mxu0 0.0
    %2788 = vmatprep.subr.mxu0 0.0
    %2789 = vmatpush1.xpose.msra.mxu0 0.0
    %2790 = vmatprep.subr.mxu0 0.0
    %2791 = vmatpush1.xpose.msra.mxu0 0.0
    %2792 = vmatprep.subr.mxu0 0.0
    %2793 = vmatpush1.xpose.msra.mxu0 0.0
    %2794 = vmatprep.subr.mxu0 0.0
    %2795 = vmatpush1.xpose.msra.mxu0 0.0
    %2796 = vmatprep.subr.mxu0 0.0
    %2797 = vmatpush1.xpose.msra.mxu0 0.0
    %2798 = vmatprep.subr.mxu0 0.0
    %2799 = vmatpush1.xpose.msra.mxu0 0.0
    %2800 = vmatprep.subr.mxu0 0.0
    %2801 = vmatpush1.xpose.msra.mxu0 0.0
    %2802 = vmatprep.subr.mxu0 0.0
    %2803 = vmatpush1.xpose.msra.mxu0 0.0
    %2804 = vmatprep.subr.mxu0 0.0
    %2805 = vmatpush1.xpose.msra.mxu0 0.0
    %2806 = vmatprep.subr.mxu0 0.0
    %2807 = vmatpush1.xpose.msra.mxu0 0.0
    %2808 = vmatprep.subr.mxu0 0.0
    %2809 = vmatpush1.xpose.msra.mxu0 0.0
    %2810 = vmatprep.subr.mxu0 0.0
    %2811 = vmatpush1.xpose.msra.mxu0 0.0
    %2812 = vmatprep.subr.mxu0 0.0
    %2813 = vmatpush1.xpose.msra.mxu0 0.0
    %2814 = vmatprep.subr.mxu0 0.0
    %2815 = vmatpush1.xpose.msra.mxu0 0.0
    %2816 = vmatprep.subr.mxu0 0.0
    %2817 = vmatpush1.xpose.msra.mxu0 0.0
    %2818 = vmatprep.subr.mxu0 0.0
    %2819 = vmatpush1.xpose.msra.mxu0 0.0
    %2820 = vmatprep.subr.mxu0 0.0
    %2821 = vmatpush1.xpose.msra.mxu0 0.0
    %2822 = vmatprep.subr.mxu0 0.0
    %2823 = vmatpush1.xpose.msra.mxu0 0.0
    %2824 = vmatprep.subr.mxu0 0.0
    %2825 = vmatpush1.xpose.msra.mxu0 0.0
    %2826 = vmatprep.subr.mxu0 0.0
    %2827 = vmatpush1.xpose.msra.mxu0 0.0
    %2828 = vmatprep.subr.mxu0 0.0
    %2829 = vmatpush1.xpose.msra.mxu0 0.0
    %2830 = vmatprep.subr.mxu0 0.0
    %2831 = vmatpush1.xpose.msra.mxu0 0.0
    %2832 = vmatprep.subr.mxu0 0.0
    %2833 = vmatpush1.xpose.msra.mxu0 0.0
    %2834 = vmatprep.subr.mxu0 0.0
    %2835 = vmatpush1.xpose.msra.mxu0 0.0
    %2836 = vmatprep.mubr.f32.mxu0 0.0
    %2837 = vmatmul.mubr.f32.gmra.mrb[0].mxu0 %v2767
    %v2838 = vpop.f32.mrb[0].mxu0
    %v2839 = vadd.f32 0.0, %v2838
    %v2840 = vpop.f32.mrb[0].mxu0
    %2841 = vdwg.mxu0
    %v2843 = vsel %vm2005, %v816, 0
    %v2846 = vsel %vm2005, %v1408, 0
    %2848 = vmatprep.subr.mxu0 0.0
    %2849 = vmatpush1.xpose.msra.mxu0 %v2846
    %2850 = vmatprep.subr.mxu0 0.0
    %2851 = vmatpush1.xpose.msra.mxu0 0.0
    %2852 = vmatprep.subr.mxu0 0.0
    %2853 = vmatpush1.xpose.msra.mxu0 0.0
    %2854 = vmatprep.subr.mxu0 0.0
    %2855 = vmatpush1.xpose.msra.mxu0 0.0
    %2856 = vmatprep.subr.mxu0 0.0
    %2857 = vmatpush1.xpose.msra.mxu0 0.0
    %2858 = vmatprep.subr.mxu0 0.0
    %2859 = vmatpush1.xpose.msra.mxu0 0.0
    %2860 = vmatprep.subr.mxu0 0.0
    %2861 = vmatpush1.xpose.msra.mxu0 0.0
    %2862 = vmatprep.subr.mxu0 0.0
    %2863 = vmatpush1.xpose.msra.mxu0 0.0
    %2864 = vmatprep.subr.mxu0 0.0
    %2865 = vmatpush1.xpose.msra.mxu0 0.0
    %2866 = vmatprep.subr.mxu0 0.0
    %2867 = vmatpush1.xpose.msra.mxu0 0.0
    %2868 = vmatprep.subr.mxu0 0.0
    %2869 = vmatpush1.xpose.msra.mxu0 0.0
    %2870 = vmatprep.subr.mxu0 0.0
    %2871 = vmatpush1.xpose.msra.mxu0 0.0
    %2872 = vmatprep.subr.mxu0 0.0
    %2873 = vmatpush1.xpose.msra.mxu0 0.0
    %2874 = vmatprep.subr.mxu0 0.0
    %2875 = vmatpush1.xpose.msra.mxu0 0.0
    %2876 = vmatprep.subr.mxu0 0.0
    %2877 = vmatpush1.xpose.msra.mxu0 0.0
    %2878 = vmatprep.subr.mxu0 0.0
    %2879 = vmatpush1.xpose.msra.mxu0 0.0
    %2880 = vmatprep.subr.mxu0 0.0
    %2881 = vmatpush1.xpose.msra.mxu0 0.0
    %2882 = vmatprep.subr.mxu0 0.0
    %2883 = vmatpush1.xpose.msra.mxu0 0.0
    %2884 = vmatprep.subr.mxu0 0.0
    %2885 = vmatpush1.xpose.msra.mxu0 0.0
    %2886 = vmatprep.subr.mxu0 0.0
    %2887 = vmatpush1.xpose.msra.mxu0 0.0
    %2888 = vmatprep.subr.mxu0 0.0
    %2889 = vmatpush1.xpose.msra.mxu0 0.0
    %2890 = vmatprep.subr.mxu0 0.0
    %2891 = vmatpush1.xpose.msra.mxu0 0.0
    %2892 = vmatprep.subr.mxu0 0.0
    %2893 = vmatpush1.xpose.msra.mxu0 0.0
    %2894 = vmatprep.subr.mxu0 0.0
    %2895 = vmatpush1.xpose.msra.mxu0 0.0
    %2896 = vmatprep.subr.mxu0 0.0
    %2897 = vmatpush1.xpose.msra.mxu0 0.0
    %2898 = vmatprep.subr.mxu0 0.0
    %2899 = vmatpush1.xpose.msra.mxu0 0.0
    %2900 = vmatprep.subr.mxu0 0.0
    %2901 = vmatpush1.xpose.msra.mxu0 0.0
    %2902 = vmatprep.subr.mxu0 0.0
    %2903 = vmatpush1.xpose.msra.mxu0 0.0
    %2904 = vmatprep.subr.mxu0 0.0
    %2905 = vmatpush1.xpose.msra.mxu0 0.0
    %2906 = vmatprep.subr.mxu0 0.0
    %2907 = vmatpush1.xpose.msra.mxu0 0.0
    %2908 = vmatprep.subr.mxu0 0.0
    %2909 = vmatpush1.xpose.msra.mxu0 0.0
    %2910 = vmatprep.subr.mxu0 0.0
    %2911 = vmatpush1.xpose.msra.mxu0 0.0
    %2912 = vmatprep.mubr.f32.mxu0 0.0
    %2913 = vmatmul.mubr.f32.gmra.mrb[0].mxu0 %v2843
    %v2914 = vpop.f32.mrb[0].mxu0
    %v2915 = vadd.f32 0.0, %v2914
    %v2916 = vpop.f32.mrb[0].mxu0
    %2917 = vdwg.mxu0
    %v2919 = vsel %vm2005, %v817, 0
    %v2922 = vsel %vm2005, %v1409, 0
    %2924 = vmatprep.subr.mxu0 0.0
    %2925 = vmatpush1.xpose.msra.mxu0 %v2922
    %2926 = vmatprep.subr.mxu0 0.0
    %2927 = vmatpush1.xpose.msra.mxu0 0.0
    %2928 = vmatprep.subr.mxu0 0.0
    %2929 = vmatpush1.xpose.msra.mxu0 0.0
    %2930 = vmatprep.subr.mxu0 0.0
    %2931 = vmatpush1.xpose.msra.mxu0 0.0
    %2932 = vmatprep.subr.mxu0 0.0
    %2933 = vmatpush1.xpose.msra.mxu0 0.0
    %2934 = vmatprep.subr.mxu0 0.0
    %2935 = vmatpush1.xpose.msra.mxu0 0.0
    %2936 = vmatprep.subr.mxu0 0.0
    %2937 = vmatpush1.xpose.msra.mxu0 0.0
    %2938 = vmatprep.subr.mxu0 0.0
    %2939 = vmatpush1.xpose.msra.mxu0 0.0
    %2940 = vmatprep.subr.mxu0 0.0
    %2941 = vmatpush1.xpose.msra.mxu0 0.0
    %2942 = vmatprep.subr.mxu0 0.0
    %2943 = vmatpush1.xpose.msra.mxu0 0.0
    %2944 = vmatprep.subr.mxu0 0.0
    %2945 = vmatpush1.xpose.msra.mxu0 0.0
    %2946 = vmatprep.subr.mxu0 0.0
    %2947 = vmatpush1.xpose.msra.mxu0 0.0
    %2948 = vmatprep.subr.mxu0 0.0
    %2949 = vmatpush1.xpose.msra.mxu0 0.0
    %2950 = vmatprep.subr.mxu0 0.0
    %2951 = vmatpush1.xpose.msra.mxu0 0.0
    %2952 = vmatprep.subr.mxu0 0.0
    %2953 = vmatpush1.xpose.msra.mxu0 0.0
    %2954 = vmatprep.subr.mxu0 0.0
    %2955 = vmatpush1.xpose.msra.mxu0 0.0
    %2956 = vmatprep.subr.mxu0 0.0
    %2957 = vmatpush1.xpose.msra.mxu0 0.0
    %2958 = vmatprep.subr.mxu0 0.0
    %2959 = vmatpush1.xpose.msra.mxu0 0.0
    %2960 = vmatprep.subr.mxu0 0.0
    %2961 = vmatpush1.xpose.msra.mxu0 0.0
    %2962 = vmatprep.subr.mxu0 0.0
    %2963 = vmatpush1.xpose.msra.mxu0 0.0
    %2964 = vmatprep.subr.mxu0 0.0
    %2965 = vmatpush1.xpose.msra.mxu0 0.0
    %2966 = vmatprep.subr.mxu0 0.0
    %2967 = vmatpush1.xpose.msra.mxu0 0.0
    %2968 = vmatprep.subr.mxu0 0.0
    %2969 = vmatpush1.xpose.msra.mxu0 0.0
    %2970 = vmatprep.subr.mxu0 0.0
    %2971 = vmatpush1.xpose.msra.mxu0 0.0
    %2972 = vmatprep.subr.mxu0 0.0
    %2973 = vmatpush1.xpose.msra.mxu0 0.0
    %2974 = vmatprep.subr.mxu0 0.0
    %2975 = vmatpush1.xpose.msra.mxu0 0.0
    %2976 = vmatprep.subr.mxu0 0.0
    %2977 = vmatpush1.xpose.msra.mxu0 0.0
    %2978 = vmatprep.subr.mxu0 0.0
    %2979 = vmatpush1.xpose.msra.mxu0 0.0
    %2980 = vmatprep.subr.mxu0 0.0
    %2981 = vmatpush1.xpose.msra.mxu0 0.0
    %2982 = vmatprep.subr.mxu0 0.0
    %2983 = vmatpush1.xpose.msra.mxu0 0.0
    %2984 = vmatprep.subr.mxu0 0.0
    %2985 = vmatpush1.xpose.msra.mxu0 0.0
    %2986 = vmatprep.subr.mxu0 0.0
    %2987 = vmatpush1.xpose.msra.mxu0 0.0
    %2988 = vmatprep.mubr.f32.mxu0 0.0
    %2989 = vmatmul.mubr.f32.gmra.mrb[0].mxu0 %v2919
    %v2990 = vpop.f32.mrb[0].mxu0
    %v2991 = vadd.f32 0.0, %v2990
    %v2992 = vpop.f32.mrb[0].mxu0
    %2993 = vdwg.mxu0
    %v2995 = vsel %vm2005, %v818, 0
    %v2998 = vsel %vm2005, %v1410, 0
    %3000 = vmatprep.subr.mxu0 0.0
    %3001 = vmatpush1.xpose.msra.mxu0 %v2998
    %3002 = vmatprep.subr.mxu0 0.0
    %3003 = vmatpush1.xpose.msra.mxu0 0.0
    %3004 = vmatprep.subr.mxu0 0.0
    %3005 = vmatpush1.xpose.msra.mxu0 0.0
    %3006 = vmatprep.subr.mxu0 0.0
    %3007 = vmatpush1.xpose.msra.mxu0 0.0
    %3008 = vmatprep.subr.mxu0 0.0
    %3009 = vmatpush1.xpose.msra.mxu0 0.0
    %3010 = vmatprep.subr.mxu0 0.0
    %3011 = vmatpush1.xpose.msra.mxu0 0.0
    %3012 = vmatprep.subr.mxu0 0.0
    %3013 = vmatpush1.xpose.msra.mxu0 0.0
    %3014 = vmatprep.subr.mxu0 0.0
    %3015 = vmatpush1.xpose.msra.mxu0 0.0
    %3016 = vmatprep.subr.mxu0 0.0
    %3017 = vmatpush1.xpose.msra.mxu0 0.0
    %3018 = vmatprep.subr.mxu0 0.0
    %3019 = vmatpush1.xpose.msra.mxu0 0.0
    %3020 = vmatprep.subr.mxu0 0.0
    %3021 = vmatpush1.xpose.msra.mxu0 0.0
    %3022 = vmatprep.subr.mxu0 0.0
    %3023 = vmatpush1.xpose.msra.mxu0 0.0
    %3024 = vmatprep.subr.mxu0 0.0
    %3025 = vmatpush1.xpose.msra.mxu0 0.0
    %3026 = vmatprep.subr.mxu0 0.0
    %3027 = vmatpush1.xpose.msra.mxu0 0.0
    %3028 = vmatprep.subr.mxu0 0.0
    %3029 = vmatpush1.xpose.msra.mxu0 0.0
    %3030 = vmatprep.subr.mxu0 0.0
    %3031 = vmatpush1.xpose.msra.mxu0 0.0
    %3032 = vmatprep.subr.mxu0 0.0
    %3033 = vmatpush1.xpose.msra.mxu0 0.0
    %3034 = vmatprep.subr.mxu0 0.0
    %3035 = vmatpush1.xpose.msra.mxu0 0.0
    %3036 = vmatprep.subr.mxu0 0.0
    %3037 = vmatpush1.xpose.msra.mxu0 0.0
    %3038 = vmatprep.subr.mxu0 0.0
    %3039 = vmatpush1.xpose.msra.mxu0 0.0
    %3040 = vmatprep.subr.mxu0 0.0
    %3041 = vmatpush1.xpose.msra.mxu0 0.0
    %3042 = vmatprep.subr.mxu0 0.0
    %3043 = vmatpush1.xpose.msra.mxu0 0.0
    %3044 = vmatprep.subr.mxu0 0.0
    %3045 = vmatpush1.xpose.msra.mxu0 0.0
    %3046 = vmatprep.subr.mxu0 0.0
    %3047 = vmatpush1.xpose.msra.mxu0 0.0
    %3048 = vmatprep.subr.mxu0 0.0
    %3049 = vmatpush1.xpose.msra.mxu0 0.0
    %3050 = vmatprep.subr.mxu0 0.0
    %3051 = vmatpush1.xpose.msra.mxu0 0.0
    %3052 = vmatprep.subr.mxu0 0.0
    %3053 = vmatpush1.xpose.msra.mxu0 0.0
    %3054 = vmatprep.subr.mxu0 0.0
    %3055 = vmatpush1.xpose.msra.mxu0 0.0
    %3056 = vmatprep.subr.mxu0 0.0
    %3057 = vmatpush1.xpose.msra.mxu0 0.0
    %3058 = vmatprep.subr.mxu0 0.0
    %3059 = vmatpush1.xpose.msra.mxu0 0.0
    %3060 = vmatprep.subr.mxu0 0.0
    %3061 = vmatpush1.xpose.msra.mxu0 0.0
    %3062 = vmatprep.subr.mxu0 0.0
    %3063 = vmatpush1.xpose.msra.mxu0 0.0
    %3064 = vmatprep.mubr.f32.mxu0 0.0
    %3065 = vmatmul.mubr.f32.gmra.mrb[0].mxu0 %v2995
    %v3066 = vpop.f32.mrb[0].mxu0
    %v3067 = vadd.f32 0.0, %v3066
    %v3068 = vpop.f32.mrb[0].mxu0
    %3069 = vdwg.mxu0
    %v3071 = vsel %vm2005, %v819, 0
    %v3074 = vsel %vm2005, %v1411, 0
    %3076 = vmatprep.subr.mxu0 0.0
    %3077 = vmatpush1.xpose.msra.mxu0 %v3074
    %3078 = vmatprep.subr.mxu0 0.0
    %3079 = vmatpush1.xpose.msra.mxu0 0.0
    %3080 = vmatprep.subr.mxu0 0.0
    %3081 = vmatpush1.xpose.msra.mxu0 0.0
    %3082 = vmatprep.subr.mxu0 0.0
    %3083 = vmatpush1.xpose.msra.mxu0 0.0
    %3084 = vmatprep.subr.mxu0 0.0
    %3085 = vmatpush1.xpose.msra.mxu0 0.0
    %3086 = vmatprep.subr.mxu0 0.0
    %3087 = vmatpush1.xpose.msra.mxu0 0.0
    %3088 = vmatprep.subr.mxu0 0.0
    %3089 = vmatpush1.xpose.msra.mxu0 0.0
    %3090 = vmatprep.subr.mxu0 0.0
    %3091 = vmatpush1.xpose.msra.mxu0 0.0
    %3092 = vmatprep.subr.mxu0 0.0
    %3093 = vmatpush1.xpose.msra.mxu0 0.0
    %3094 = vmatprep.subr.mxu0 0.0
    %3095 = vmatpush1.xpose.msra.mxu0 0.0
    %3096 = vmatprep.subr.mxu0 0.0
    %3097 = vmatpush1.xpose.msra.mxu0 0.0
    %3098 = vmatprep.subr.mxu0 0.0
    %3099 = vmatpush1.xpose.msra.mxu0 0.0
    %3100 = vmatprep.subr.mxu0 0.0
    %3101 = vmatpush1.xpose.msra.mxu0 0.0
    %3102 = vmatprep.subr.mxu0 0.0
    %3103 = vmatpush1.xpose.msra.mxu0 0.0
    %3104 = vmatprep.subr.mxu0 0.0
    %3105 = vmatpush1.xpose.msra.mxu0 0.0
    %3106 = vmatprep.subr.mxu0 0.0
    %3107 = vmatpush1.xpose.msra.mxu0 0.0
    %3108 = vmatprep.subr.mxu0 0.0
    %3109 = vmatpush1.xpose.msra.mxu0 0.0
    %3110 = vmatprep.subr.mxu0 0.0
    %3111 = vmatpush1.xpose.msra.mxu0 0.0
    %3112 = vmatprep.subr.mxu0 0.0
    %3113 = vmatpush1.xpose.msra.mxu0 0.0
    %3114 = vmatprep.subr.mxu0 0.0
    %3115 = vmatpush1.xpose.msra.mxu0 0.0
    %3116 = vmatprep.subr.mxu0 0.0
    %3117 = vmatpush1.xpose.msra.mxu0 0.0
    %3118 = vmatprep.subr.mxu0 0.0
    %3119 = vmatpush1.xpose.msra.mxu0 0.0
    %3120 = vmatprep.subr.mxu0 0.0
    %3121 = vmatpush1.xpose.msra.mxu0 0.0
    %3122 = vmatprep.subr.mxu0 0.0
    %3123 = vmatpush1.xpose.msra.mxu0 0.0
    %3124 = vmatprep.subr.mxu0 0.0
    %3125 = vmatpush1.xpose.msra.mxu0 0.0
    %3126 = vmatprep.subr.mxu0 0.0
    %3127 = vmatpush1.xpose.msra.mxu0 0.0
    %3128 = vmatprep.subr.mxu0 0.0
    %3129 = vmatpush1.xpose.msra.mxu0 0.0
    %3130 = vmatprep.subr.mxu0 0.0
    %3131 = vmatpush1.xpose.msra.mxu0 0.0
    %3132 = vmatprep.subr.mxu0 0.0
    %3133 = vmatpush1.xpose.msra.mxu0 0.0
    %3134 = vmatprep.subr.mxu0 0.0
    %3135 = vmatpush1.xpose.msra.mxu0 0.0
    %3136 = vmatprep.subr.mxu0 0.0
    %3137 = vmatpush1.xpose.msra.mxu0 0.0
    %3138 = vmatprep.subr.mxu0 0.0
    %3139 = vmatpush1.xpose.msra.mxu0 0.0
    %3140 = vmatprep.mubr.f32.mxu0 0.0
    %3141 = vmatmul.mubr.f32.gmra.mrb[0].mxu0 %v3071
    %v3142 = vpop.f32.mrb[0].mxu0
    %v3143 = vadd.f32 0.0, %v3142
    %v3144 = vpop.f32.mrb[0].mxu0
    %3145 = vdwg.mxu0
    %v3147 = vsel %vm2005, %v820, 0
    %v3150 = vsel %vm2005, %v1412, 0
    %3152 = vmatprep.subr.mxu0 0.0
    %3153 = vmatpush1.xpose.msra.mxu0 %v3150
    %3154 = vmatprep.subr.mxu0 0.0
    %3155 = vmatpush1.xpose.msra.mxu0 0.0
    %3156 = vmatprep.subr.mxu0 0.0
    %3157 = vmatpush1.xpose.msra.mxu0 0.0
    %3158 = vmatprep.subr.mxu0 0.0
    %3159 = vmatpush1.xpose.msra.mxu0 0.0
    %3160 = vmatprep.subr.mxu0 0.0
    %3161 = vmatpush1.xpose.msra.mxu0 0.0
    %3162 = vmatprep.subr.mxu0 0.0
    %3163 = vmatpush1.xpose.msra.mxu0 0.0
    %3164 = vmatprep.subr.mxu0 0.0
    %3165 = vmatpush1.xpose.msra.mxu0 0.0
    %3166 = vmatprep.subr.mxu0 0.0
    %3167 = vmatpush1.xpose.msra.mxu0 0.0
    %3168 = vmatprep.subr.mxu0 0.0
    %3169 = vmatpush1.xpose.msra.mxu0 0.0
    %3170 = vmatprep.subr.mxu0 0.0
    %3171 = vmatpush1.xpose.msra.mxu0 0.0
    %3172 = vmatprep.subr.mxu0 0.0
    %3173 = vmatpush1.xpose.msra.mxu0 0.0
    %3174 = vmatprep.subr.mxu0 0.0
    %3175 = vmatpush1.xpose.msra.mxu0 0.0
    %3176 = vmatprep.subr.mxu0 0.0
    %3177 = vmatpush1.xpose.msra.mxu0 0.0
    %3178 = vmatprep.subr.mxu0 0.0
    %3179 = vmatpush1.xpose.msra.mxu0 0.0
    %3180 = vmatprep.subr.mxu0 0.0
    %3181 = vmatpush1.xpose.msra.mxu0 0.0
    %3182 = vmatprep.subr.mxu0 0.0
    %3183 = vmatpush1.xpose.msra.mxu0 0.0
    %3184 = vmatprep.subr.mxu0 0.0
    %3185 = vmatpush1.xpose.msra.mxu0 0.0
    %3186 = vmatprep.subr.mxu0 0.0
    %3187 = vmatpush1.xpose.msra.mxu0 0.0
    %3188 = vmatprep.subr.mxu0 0.0
    %3189 = vmatpush1.xpose.msra.mxu0 0.0
    %3190 = vmatprep.subr.mxu0 0.0
    %3191 = vmatpush1.xpose.msra.mxu0 0.0
    %3192 = vmatprep.subr.mxu0 0.0
    %3193 = vmatpush1.xpose.msra.mxu0 0.0
    %3194 = vmatprep.subr.mxu0 0.0
    %3195 = vmatpush1.xpose.msra.mxu0 0.0
    %3196 = vmatprep.subr.mxu0 0.0
    %3197 = vmatpush1.xpose.msra.mxu0 0.0
    %3198 = vmatprep.subr.mxu0 0.0
    %3199 = vmatpush1.xpose.msra.mxu0 0.0
    %3200 = vmatprep.subr.mxu0 0.0
    %3201 = vmatpush1.xpose.msra.mxu0 0.0
    %3202 = vmatprep.subr.mxu0 0.0
    %3203 = vmatpush1.xpose.msra.mxu0 0.0
    %3204 = vmatprep.subr.mxu0 0.0
    %3205 = vmatpush1.xpose.msra.mxu0 0.0
    %3206 = vmatprep.subr.mxu0 0.0
    %3207 = vmatpush1.xpose.msra.mxu0 0.0
    %3208 = vmatprep.subr.mxu0 0.0
    %3209 = vmatpush1.xpose.msra.mxu0 0.0
    %3210 = vmatprep.subr.mxu0 0.0
    %3211 = vmatpush1.xpose.msra.mxu0 0.0
    %3212 = vmatprep.subr.mxu0 0.0
    %3213 = vmatpush1.xpose.msra.mxu0 0.0
    %3214 = vmatprep.subr.mxu0 0.0
    %3215 = vmatpush1.xpose.msra.mxu0 0.0
    %3216 = vmatprep.mubr.f32.mxu0 0.0
    %3217 = vmatmul.mubr.f32.gmra.mrb[0].mxu0 %v3147
    %v3218 = vpop.f32.mrb[0].mxu0
    %v3219 = vadd.f32 0.0, %v3218
    %v3220 = vpop.f32.mrb[0].mxu0
    %3221 = vdwg.mxu0
    %vm3222 = vcmask 64512
    %v3223 = vsel %vm3222, %v2079, -inf
    %3224 = vmax.xlane.f32.xlu0 %v3223
    %v3225 = vpop.xlane.xlu0 %3224
    %v3226 = vsel %vm3222, %v2155, -inf
    %3227 = vmax.xlane.f32.xlu0 %v3226
    %v3228 = vpop.xlane.xlu0 %3227
    %v3229 = vsel %vm3222, %v2231, -inf
    %3230 = vmax.xlane.f32.xlu0 %v3229
    %v3231 = vpop.xlane.xlu0 %3230
    %v3232 = vsel %vm3222, %v2307, -inf
    %3233 = vmax.xlane.f32.xlu0 %v3232
    %v3234 = vpop.xlane.xlu0 %3233
    %v3235 = vsel %vm3222, %v2383, -inf
    %3236 = vmax.xlane.f32.xlu0 %v3235
    %v3237 = vpop.xlane.xlu0 %3236
    %v3238 = vsel %vm3222, %v2459, -inf
    %3239 = vmax.xlane.f32.xlu0 %v3238
    %v3240 = vpop.xlane.xlu0 %3239
    %v3241 = vsel %vm3222, %v2535, -inf
    %3242 = vmax.xlane.f32.xlu0 %v3241
    %v3243 = vpop.xlane.xlu0 %3242
    %v3244 = vsel %vm3222, %v2611, -inf
    %3245 = vmax.xlane.f32.xlu0 %v3244
    %v3246 = vpop.xlane.xlu0 %3245
    %v3247 = vsel %vm3222, %v2687, -inf
    %3248 = vmax.xlane.f32.xlu0 %v3247
    %v3249 = vpop.xlane.xlu0 %3248
    %v3250 = vsel %vm3222, %v2763, -inf
    %3251 = vmax.xlane.f32.xlu0 %v3250
    %v3252 = vpop.xlane.xlu0 %3251
    %v3253 = vsel %vm3222, %v2839, -inf
    %3254 = vmax.xlane.f32.xlu0 %v3253
    %v3255 = vpop.xlane.xlu0 %3254
    %v3256 = vsel %vm3222, %v2915, -inf
    %3257 = vmax.xlane.f32.xlu0 %v3256
    %v3258 = vpop.xlane.xlu0 %3257
    %v3259 = vsel %vm3222, %v2991, -inf
    %3260 = vmax.xlane.f32.xlu0 %v3259
    %v3261 = vpop.xlane.xlu0 %3260
    %v3262 = vsel %vm3222, %v3067, -inf
    %3263 = vmax.xlane.f32.xlu0 %v3262
    %v3264 = vpop.xlane.xlu0 %3263
    %v3265 = vsel %vm3222, %v3143, -inf
    %3266 = vmax.xlane.f32.xlu0 %v3265
    %v3267 = vpop.xlane.xlu0 %3266
    %v3268 = vsel %vm3222, %v3219, -inf
    %3269 = vmax.xlane.f32.xlu0 %v3268
    %v3270 = vpop.xlane.xlu0 %3269
    %v3271 = vsub.f32 %v2079, %v3225
    %v3272 = vsub.f32 %v2155, %v3228
    %v3273 = vsub.f32 %v2231, %v3231
    %v3274 = vsub.f32 %v2307, %v3234
    %v3275 = vsub.f32 %v2383, %v3237
    %v3276 = vsub.f32 %v2459, %v3240
    %v3277 = vsub.f32 %v2535, %v3243
    %v3278 = vsub.f32 %v2611, %v3246
    %v3279 = vsub.f32 %v2687, %v3249
    %v3280 = vsub.f32 %v2763, %v3252
    %v3281 = vsub.f32 %v2839, %v3255
    %v3282 = vsub.f32 %v2915, %v3258
    %v3283 = vsub.f32 %v2991, %v3261
    %v3284 = vsub.f32 %v3067, %v3264
    %v3285 = vsub.f32 %v3143, %v3267
    %v3286 = vsub.f32 %v3219, %v3270
    %v3287 = vmul.f32 %v3271, 1.442695
    %v3288 = vpow.pop %v3287
    %v3289 = vmul.f32 %v3272, 1.442695
    %v3290 = vpow.pop %v3289
    %v3291 = vmul.f32 %v3273, 1.442695
    %v3292 = vpow.pop %v3291
    %v3293 = vmul.f32 %v3274, 1.442695
    %v3294 = vpow.pop %v3293
    %v3295 = vmul.f32 %v3275, 1.442695
    %v3296 = vpow.pop %v3295
    %v3297 = vmul.f32 %v3276, 1.442695
    %v3298 = vpow.pop %v3297
    %v3299 = vmul.f32 %v3277, 1.442695
    %v3300 = vpow.pop %v3299
    %v3301 = vmul.f32 %v3278, 1.442695
    %v3302 = vpow.pop %v3301
    %v3303 = vmul.f32 %v3279, 1.442695
    %v3304 = vpow.pop %v3303
    %v3305 = vmul.f32 %v3280, 1.442695
    %v3306 = vpow.pop %v3305
    %v3307 = vmul.f32 %v3281, 1.442695
    %v3308 = vpow.pop %v3307
    %v3309 = vmul.f32 %v3282, 1.442695
    %v3310 = vpow.pop %v3309
    %v3311 = vmul.f32 %v3283, 1.442695
    %v3312 = vpow.pop %v3311
    %v3313 = vmul.f32 %v3284, 1.442695
    %v3314 = vpow.pop %v3313
    %v3315 = vmul.f32 %v3285, 1.442695
    %v3316 = vpow.pop %v3315
    %v3317 = vmul.f32 %v3286, 1.442695
    %v3318 = vpow.pop %v3317
    %v3319 = vsel %vm3222, %v3288, 0.0
    %3320 = vadd.xlane.f32.xlu0 %v3319
    %v3321 = vpop.xlane.xlu0 %3320
    %v3322 = vsel %vm3222, %v3290, 0.0
    %3323 = vadd.xlane.f32.xlu0 %v3322
    %v3324 = vpop.xlane.xlu0 %3323
    %v3325 = vsel %vm3222, %v3292, 0.0
    %3326 = vadd.xlane.f32.xlu0 %v3325
    %v3327 = vpop.xlane.xlu0 %3326
    %v3328 = vsel %vm3222, %v3294, 0.0
    %3329 = vadd.xlane.f32.xlu0 %v3328
    %v3330 = vpop.xlane.xlu0 %3329
    %v3331 = vsel %vm3222, %v3296, 0.0
    %3332 = vadd.xlane.f32.xlu0 %v3331
    %v3333 = vpop.xlane.xlu0 %3332
    %v3334 = vsel %vm3222, %v3298, 0.0
    %3335 = vadd.xlane.f32.xlu0 %v3334
    %v3336 = vpop.xlane.xlu0 %3335
    %v3337 = vsel %vm3222, %v3300, 0.0
    %3338 = vadd.xlane.f32.xlu0 %v3337
    %v3339 = vpop.xlane.xlu0 %3338
    %v3340 = vsel %vm3222, %v3302, 0.0
    %3341 = vadd.xlane.f32.xlu0 %v3340
    %v3342 = vpop.xlane.xlu0 %3341
    %v3343 = vsel %vm3222, %v3304, 0.0
    %3344 = vadd.xlane.f32.xlu0 %v3343
    %v3345 = vpop.xlane.xlu0 %3344
    %v3346 = vsel %vm3222, %v3306, 0.0
    %3347 = vadd.xlane.f32.xlu0 %v3346
    %v3348 = vpop.xlane.xlu0 %3347
    %v3349 = vsel %vm3222, %v3308, 0.0
    %3350 = vadd.xlane.f32.xlu0 %v3349
    %v3351 = vpop.xlane.xlu0 %3350
    %v3352 = vsel %vm3222, %v3310, 0.0
    %3353 = vadd.xlane.f32.xlu0 %v3352
    %v3354 = vpop.xlane.xlu0 %3353
    %v3355 = vsel %vm3222, %v3312, 0.0
    %3356 = vadd.xlane.f32.xlu0 %v3355
    %v3357 = vpop.xlane.xlu0 %3356
    %v3358 = vsel %vm3222, %v3314, 0.0
    %3359 = vadd.xlane.f32.xlu0 %v3358
    %v3360 = vpop.xlane.xlu0 %3359
    %v3361 = vsel %vm3222, %v3316, 0.0
    %3362 = vadd.xlane.f32.xlu0 %v3361
    %v3363 = vpop.xlane.xlu0 %3362
    %v3364 = vsel %vm3222, %v3318, 0.0
    %3365 = vadd.xlane.f32.xlu0 %v3364
    %v3366 = vpop.xlane.xlu0 %3365
    %v3367 = vrcp.pop %v3321
    %v3368 = vrcp.pop %v3324
    %v3369 = vrcp.pop %v3327
    %v3370 = vrcp.pop %v3330
    %v3371 = vrcp.pop %v3333
    %v3372 = vrcp.pop %v3336
    %v3373 = vrcp.pop %v3339
    %v3374 = vrcp.pop %v3342
    %v3375 = vrcp.pop %v3345
    %v3376 = vrcp.pop %v3348
    %v3377 = vrcp.pop %v3351
    %v3378 = vrcp.pop %v3354
    %v3379 = vrcp.pop %v3357
    %v3380 = vrcp.pop %v3360
    %v3381 = vrcp.pop %v3363
    %v3382 = vrcp.pop %v3366
    %v3383 = vmul.f32 %v3288, %v3367
    %v3384 = vmul.f32 %v3290, %v3368
    %v3385 = vmul.f32 %v3292, %v3369
    %v3386 = vmul.f32 %v3294, %v3370
    %v3387 = vmul.f32 %v3296, %v3371
    %v3388 = vmul.f32 %v3298, %v3372
    %v3389 = vmul.f32 %v3300, %v3373
    %v3390 = vmul.f32 %v3302, %v3374
    %v3391 = vmul.f32 %v3304, %v3375
    %v3392 = vmul.f32 %v3306, %v3376
    %v3393 = vmul.f32 %v3308, %v3377
    %v3394 = vmul.f32 %v3310, %v3378
    %v3395 = vmul.f32 %v3312, %v3379
    %v3396 = vmul.f32 %v3314, %v3380
    %v3397 = vmul.f32 %v3316, %v3381
    %v3398 = vmul.f32 %v3318, %v3382
    %v3400 = vsel %vm3222, %v3383, 0
    %3402 = vmatprep.subr.mxu0 0.0
    %3403 = vmatpush1.msra.mxu0 %v1861
    %3404 = vmatprep.subr.mxu0 0.0
    %3405 = vmatpush1.msra.mxu0 0.0
    %3406 = vmatprep.subr.mxu0 0.0
    %3407 = vmatpush1.msra.mxu0 0.0
    %3408 = vmatprep.subr.mxu0 0.0
    %3409 = vmatpush1.msra.mxu0 0.0
    %3410 = vmatprep.subr.mxu0 0.0
    %3411 = vmatpush1.msra.mxu0 0.0
    %3412 = vmatprep.subr.mxu0 0.0
    %3413 = vmatpush1.msra.mxu0 0.0
    %3414 = vmatprep.subr.mxu0 0.0
    %3415 = vmatpush1.msra.mxu0 0.0
    %3416 = vmatprep.subr.mxu0 0.0
    %3417 = vmatpush1.msra.mxu0 0.0
    %3418 = vmatprep.subr.mxu0 0.0
    %3419 = vmatpush1.msra.mxu0 0.0
    %3420 = vmatprep.subr.mxu0 0.0
    %3421 = vmatpush1.msra.mxu0 0.0
    %3422 = vmatprep.subr.mxu0 0.0
    %3423 = vmatpush1.msra.mxu0 0.0
    %3424 = vmatprep.subr.mxu0 0.0
    %3425 = vmatpush1.msra.mxu0 0.0
    %3426 = vmatprep.subr.mxu0 0.0
    %3427 = vmatpush1.msra.mxu0 0.0
    %3428 = vmatprep.subr.mxu0 0.0
    %3429 = vmatpush1.msra.mxu0 0.0
    %3430 = vmatprep.subr.mxu0 0.0
    %3431 = vmatpush1.msra.mxu0 0.0
    %3432 = vmatprep.subr.mxu0 0.0
    %3433 = vmatpush1.msra.mxu0 0.0
    %3434 = vmatprep.subr.mxu0 0.0
    %3435 = vmatpush1.msra.mxu0 0.0
    %3436 = vmatprep.subr.mxu0 0.0
    %3437 = vmatpush1.msra.mxu0 0.0
    %3438 = vmatprep.subr.mxu0 0.0
    %3439 = vmatpush1.msra.mxu0 0.0
    %3440 = vmatprep.subr.mxu0 0.0
    %3441 = vmatpush1.msra.mxu0 0.0
    %3442 = vmatprep.subr.mxu0 0.0
    %3443 = vmatpush1.msra.mxu0 0.0
    %3444 = vmatprep.subr.mxu0 0.0
    %3445 = vmatpush1.msra.mxu0 0.0
    %3446 = vmatprep.subr.mxu0 0.0
    %3447 = vmatpush1.msra.mxu0 0.0
    %3448 = vmatprep.subr.mxu0 0.0
    %3449 = vmatpush1.msra.mxu0 0.0
    %3450 = vmatprep.subr.mxu0 0.0
    %3451 = vmatpush1.msra.mxu0 0.0
    %3452 = vmatprep.subr.mxu0 0.0
    %3453 = vmatpush1.msra.mxu0 0.0
    %3454 = vmatprep.subr.mxu0 0.0
    %3455 = vmatpush1.msra.mxu0 0.0
    %3456 = vmatprep.subr.mxu0 0.0
    %3457 = vmatpush1.msra.mxu0 0.0
    %3458 = vmatprep.subr.mxu0 0.0
    %3459 = vmatpush1.msra.mxu0 0.0
    %3460 = vmatprep.subr.mxu0 0.0
    %3461 = vmatpush1.msra.mxu0 0.0
    %3462 = vmatprep.subr.mxu0 0.0
    %3463 = vmatpush1.msra.mxu0 0.0
    %3464 = vmatprep.subr.mxu0 0.0
    %3465 = vmatpush1.msra.mxu0 0.0
    %3466 = vmatprep.mubr.f32.mxu0 0.0
    %3467 = vmatmul.mubr.f32.gmra.mrb[0].mxu0 %v3400
    %v3468 = vpop.f32.mrb[0].mxu0
    %v3469 = vadd.f32 0.0, %v3468
    %v3470 = vpop.f32.mrb[0].mxu0
    %3471 = vdwg.mxu0
    %v3473 = vsel %vm3222, %v3384, 0
    %3475 = vmatprep.subr.mxu0 0.0
    %3476 = vmatpush1.msra.mxu0 %v1862
    %3477 = vmatprep.subr.mxu0 0.0
    %3478 = vmatpush1.msra.mxu0 0.0
    %3479 = vmatprep.subr.mxu0 0.0
    %3480 = vmatpush1.msra.mxu0 0.0
    %3481 = vmatprep.subr.mxu0 0.0
    %3482 = vmatpush1.msra.mxu0 0.0
    %3483 = vmatprep.subr.mxu0 0.0
    %3484 = vmatpush1.msra.mxu0 0.0
    %3485 = vmatprep.subr.mxu0 0.0
    %3486 = vmatpush1.msra.mxu0 0.0
    %3487 = vmatprep.subr.mxu0 0.0
    %3488 = vmatpush1.msra.mxu0 0.0
    %3489 = vmatprep.subr.mxu0 0.0
    %3490 = vmatpush1.msra.mxu0 0.0
    %3491 = vmatprep.subr.mxu0 0.0
    %3492 = vmatpush1.msra.mxu0 0.0
    %3493 = vmatprep.subr.mxu0 0.0
    %3494 = vmatpush1.msra.mxu0 0.0
    %3495 = vmatprep.subr.mxu0 0.0
    %3496 = vmatpush1.msra.mxu0 0.0
    %3497 = vmatprep.subr.mxu0 0.0
    %3498 = vmatpush1.msra.mxu0 0.0
    %3499 = vmatprep.subr.mxu0 0.0
    %3500 = vmatpush1.msra.mxu0 0.0
    %3501 = vmatprep.subr.mxu0 0.0
    %3502 = vmatpush1.msra.mxu0 0.0
    %3503 = vmatprep.subr.mxu0 0.0
    %3504 = vmatpush1.msra.mxu0 0.0
    %3505 = vmatprep.subr.mxu0 0.0
    %3506 = vmatpush1.msra.mxu0 0.0
    %3507 = vmatprep.subr.mxu0 0.0
    %3508 = vmatpush1.msra.mxu0 0.0
    %3509 = vmatprep.subr.mxu0 0.0
    %3510 = vmatpush1.msra.mxu0 0.0
    %3511 = vmatprep.subr.mxu0 0.0
    %3512 = vmatpush1.msra.mxu0 0.0
    %3513 = vmatprep.subr.mxu0 0.0
    %3514 = vmatpush1.msra.mxu0 0.0
    %3515 = vmatprep.subr.mxu0 0.0
    %3516 = vmatpush1.msra.mxu0 0.0
    %3517 = vmatprep.subr.mxu0 0.0
    %3518 = vmatpush1.msra.mxu0 0.0
    %3519 = vmatprep.subr.mxu0 0.0
    %3520 = vmatpush1.msra.mxu0 0.0
    %3521 = vmatprep.subr.mxu0 0.0
    %3522 = vmatpush1.msra.mxu0 0.0
    %3523 = vmatprep.subr.mxu0 0.0
    %3524 = vmatpush1.msra.mxu0 0.0
    %3525 = vmatprep.subr.mxu0 0.0
    %3526 = vmatpush1.msra.mxu0 0.0
    %3527 = vmatprep.subr.mxu0 0.0
    %3528 = vmatpush1.msra.mxu0 0.0
    %3529 = vmatprep.subr.mxu0 0.0
    %3530 = vmatpush1.msra.mxu0 0.0
    %3531 = vmatprep.subr.mxu0 0.0
    %3532 = vmatpush1.msra.mxu0 0.0
    %3533 = vmatprep.subr.mxu0 0.0
    %3534 = vmatpush1.msra.mxu0 0.0
    %3535 = vmatprep.subr.mxu0 0.0
    %3536 = vmatpush1.msra.mxu0 0.0
    %3537 = vmatprep.subr.mxu0 0.0
    %3538 = vmatpush1.msra.mxu0 0.0
    %3539 = vmatprep.mubr.f32.mxu0 0.0
    %3540 = vmatmul.mubr.f32.gmra.mrb[0].mxu0 %v3473
    %v3541 = vpop.f32.mrb[0].mxu0
    %v3542 = vadd.f32 0.0, %v3541
    %v3543 = vpop.f32.mrb[0].mxu0
    %3544 = vdwg.mxu0
    %v3546 = vsel %vm3222, %v3385, 0
    %3548 = vmatprep.subr.mxu0 0.0
    %3549 = vmatpush1.msra.mxu0 %v1863
    %3550 = vmatprep.subr.mxu0 0.0
    %3551 = vmatpush1.msra.mxu0 0.0
    %3552 = vmatprep.subr.mxu0 0.0
    %3553 = vmatpush1.msra.mxu0 0.0
    %3554 = vmatprep.subr.mxu0 0.0
    %3555 = vmatpush1.msra.mxu0 0.0
    %3556 = vmatprep.subr.mxu0 0.0
    %3557 = vmatpush1.msra.mxu0 0.0
    %3558 = vmatprep.subr.mxu0 0.0
    %3559 = vmatpush1.msra.mxu0 0.0
    %3560 = vmatprep.subr.mxu0 0.0
    %3561 = vmatpush1.msra.mxu0 0.0
    %3562 = vmatprep.subr.mxu0 0.0
    %3563 = vmatpush1.msra.mxu0 0.0
    %3564 = vmatprep.subr.mxu0 0.0
    %3565 = vmatpush1.msra.mxu0 0.0
    %3566 = vmatprep.subr.mxu0 0.0
    %3567 = vmatpush1.msra.mxu0 0.0
    %3568 = vmatprep.subr.mxu0 0.0
    %3569 = vmatpush1.msra.mxu0 0.0
    %3570 = vmatprep.subr.mxu0 0.0
    %3571 = vmatpush1.msra.mxu0 0.0
    %3572 = vmatprep.subr.mxu0 0.0
    %3573 = vmatpush1.msra.mxu0 0.0
    %3574 = vmatprep.subr.mxu0 0.0
    %3575 = vmatpush1.msra.mxu0 0.0
    %3576 = vmatprep.subr.mxu0 0.0
    %3577 = vmatpush1.msra.mxu0 0.0
    %3578 = vmatprep.subr.mxu0 0.0
    %3579 = vmatpush1.msra.mxu0 0.0
    %3580 = vmatprep.subr.mxu0 0.0
    %3581 = vmatpush1.msra.mxu0 0.0
    %3582 = vmatprep.subr.mxu0 0.0
    %3583 = vmatpush1.msra.mxu0 0.0
    %3584 = vmatprep.subr.mxu0 0.0
    %3585 = vmatpush1.msra.mxu0 0.0
    %3586 = vmatprep.subr.mxu0 0.0
    %3587 = vmatpush1.msra.mxu0 0.0
    %3588 = vmatprep.subr.mxu0 0.0
    %3589 = vmatpush1.msra.mxu0 0.0
    %3590 = vmatprep.subr.mxu0 0.0
    %3591 = vmatpush1.msra.mxu0 0.0
    %3592 = vmatprep.subr.mxu0 0.0
    %3593 = vmatpush1.msra.mxu0 0.0
    %3594 = vmatprep.subr.mxu0 0.0
    %3595 = vmatpush1.msra.mxu0 0.0
    %3596 = vmatprep.subr.mxu0 0.0
    %3597 = vmatpush1.msra.mxu0 0.0
    %3598 = vmatprep.subr.mxu0 0.0
    %3599 = vmatpush1.msra.mxu0 0.0
    %3600 = vmatprep.subr.mxu0 0.0
    %3601 = vmatpush1.msra.mxu0 0.0
    %3602 = vmatprep.subr.mxu0 0.0
    %3603 = vmatpush1.msra.mxu0 0.0
    %3604 = vmatprep.subr.mxu0 0.0
    %3605 = vmatpush1.msra.mxu0 0.0
    %3606 = vmatprep.subr.mxu0 0.0
    %3607 = vmatpush1.msra.mxu0 0.0
    %3608 = vmatprep.subr.mxu0 0.0
    %3609 = vmatpush1.msra.mxu0 0.0
    %3610 = vmatprep.subr.mxu0 0.0
    %3611 = vmatpush1.msra.mxu0 0.0
    %3612 = vmatprep.mubr.f32.mxu0 0.0
    %3613 = vmatmul.mubr.f32.gmra.mrb[0].mxu0 %v3546
    %v3614 = vpop.f32.mrb[0].mxu0
    %v3615 = vadd.f32 0.0, %v3614
    %v3616 = vpop.f32.mrb[0].mxu0
    %3617 = vdwg.mxu0
    %v3619 = vsel %vm3222, %v3386, 0
    %3621 = vmatprep.subr.mxu0 0.0
    %3622 = vmatpush1.msra.mxu0 %v1864
    %3623 = vmatprep.subr.mxu0 0.0
    %3624 = vmatpush1.msra.mxu0 0.0
    %3625 = vmatprep.subr.mxu0 0.0
    %3626 = vmatpush1.msra.mxu0 0.0
    %3627 = vmatprep.subr.mxu0 0.0
    %3628 = vmatpush1.msra.mxu0 0.0
    %3629 = vmatprep.subr.mxu0 0.0
    %3630 = vmatpush1.msra.mxu0 0.0
    %3631 = vmatprep.subr.mxu0 0.0
    %3632 = vmatpush1.msra.mxu0 0.0
    %3633 = vmatprep.subr.mxu0 0.0
    %3634 = vmatpush1.msra.mxu0 0.0
    %3635 = vmatprep.subr.mxu0 0.0
    %3636 = vmatpush1.msra.mxu0 0.0
    %3637 = vmatprep.subr.mxu0 0.0
    %3638 = vmatpush1.msra.mxu0 0.0
    %3639 = vmatprep.subr.mxu0 0.0
    %3640 = vmatpush1.msra.mxu0 0.0
    %3641 = vmatprep.subr.mxu0 0.0
    %3642 = vmatpush1.msra.mxu0 0.0
    %3643 = vmatprep.subr.mxu0 0.0
    %3644 = vmatpush1.msra.mxu0 0.0
    %3645 = vmatprep.subr.mxu0 0.0
    %3646 = vmatpush1.msra.mxu0 0.0
    %3647 = vmatprep.subr.mxu0 0.0
    %3648 = vmatpush1.msra.mxu0 0.0
    %3649 = vmatprep.subr.mxu0 0.0
    %3650 = vmatpush1.msra.mxu0 0.0
    %3651 = vmatprep.subr.mxu0 0.0
    %3652 = vmatpush1.msra.mxu0 0.0
    %3653 = vmatprep.subr.mxu0 0.0
    %3654 = vmatpush1.msra.mxu0 0.0
    %3655 = vmatprep.subr.mxu0 0.0
    %3656 = vmatpush1.msra.mxu0 0.0
    %3657 = vmatprep.subr.mxu0 0.0
    %3658 = vmatpush1.msra.mxu0 0.0
    %3659 = vmatprep.subr.mxu0 0.0
    %3660 = vmatpush1.msra.mxu0 0.0
    %3661 = vmatprep.subr.mxu0 0.0
    %3662 = vmatpush1.msra.mxu0 0.0
    %3663 = vmatprep.subr.mxu0 0.0
    %3664 = vmatpush1.msra.mxu0 0.0
    %3665 = vmatprep.subr.mxu0 0.0
    %3666 = vmatpush1.msra.mxu0 0.0
    %3667 = vmatprep.subr.mxu0 0.0
    %3668 = vmatpush1.msra.mxu0 0.0
    %3669 = vmatprep.subr.mxu0 0.0
    %3670 = vmatpush1.msra.mxu0 0.0
    %3671 = vmatprep.subr.mxu0 0.0
    %3672 = vmatpush1.msra.mxu0 0.0
    %3673 = vmatprep.subr.mxu0 0.0
    %3674 = vmatpush1.msra.mxu0 0.0
    %3675 = vmatprep.subr.mxu0 0.0
    %3676 = vmatpush1.msra.mxu0 0.0
    %3677 = vmatprep.subr.mxu0 0.0
    %3678 = vmatpush1.msra.mxu0 0.0
    %3679 = vmatprep.subr.mxu0 0.0
    %3680 = vmatpush1.msra.mxu0 0.0
    %3681 = vmatprep.subr.mxu0 0.0
    %3682 = vmatpush1.msra.mxu0 0.0
    %3683 = vmatprep.subr.mxu0 0.0
    %3684 = vmatpush1.msra.mxu0 0.0
    %3685 = vmatprep.mubr.f32.mxu0 0.0
    %3686 = vmatmul.mubr.f32.gmra.mrb[0].mxu0 %v3619
    %v3687 = vpop.f32.mrb[0].mxu0
    %v3688 = vadd.f32 0.0, %v3687
    %v3689 = vpop.f32.mrb[0].mxu0
    %3690 = vdwg.mxu0
    %v3692 = vsel %vm3222, %v3387, 0
    %3694 = vmatprep.subr.mxu0 0.0
    %3695 = vmatpush1.msra.mxu0 %v1865
    %3696 = vmatprep.subr.mxu0 0.0
    %3697 = vmatpush1.msra.mxu0 0.0
    %3698 = vmatprep.subr.mxu0 0.0
    %3699 = vmatpush1.msra.mxu0 0.0
    %3700 = vmatprep.subr.mxu0 0.0
    %3701 = vmatpush1.msra.mxu0 0.0
    %3702 = vmatprep.subr.mxu0 0.0
    %3703 = vmatpush1.msra.mxu0 0.0
    %3704 = vmatprep.subr.mxu0 0.0
    %3705 = vmatpush1.msra.mxu0 0.0
    %3706 = vmatprep.subr.mxu0 0.0
    %3707 = vmatpush1.msra.mxu0 0.0
    %3708 = vmatprep.subr.mxu0 0.0
    %3709 = vmatpush1.msra.mxu0 0.0
    %3710 = vmatprep.subr.mxu0 0.0
    %3711 = vmatpush1.msra.mxu0 0.0
    %3712 = vmatprep.subr.mxu0 0.0
    %3713 = vmatpush1.msra.mxu0 0.0
    %3714 = vmatprep.subr.mxu0 0.0
    %3715 = vmatpush1.msra.mxu0 0.0
    %3716 = vmatprep.subr.mxu0 0.0
    %3717 = vmatpush1.msra.mxu0 0.0
    %3718 = vmatprep.subr.mxu0 0.0
    %3719 = vmatpush1.msra.mxu0 0.0
    %3720 = vmatprep.subr.mxu0 0.0
    %3721 = vmatpush1.msra.mxu0 0.0
    %3722 = vmatprep.subr.mxu0 0.0
    %3723 = vmatpush1.msra.mxu0 0.0
    %3724 = vmatprep.subr.mxu0 0.0
    %3725 = vmatpush1.msra.mxu0 0.0
    %3726 = vmatprep.subr.mxu0 0.0
    %3727 = vmatpush1.msra.mxu0 0.0
    %3728 = vmatprep.subr.mxu0 0.0
    %3729 = vmatpush1.msra.mxu0 0.0
    %3730 = vmatprep.subr.mxu0 0.0
    %3731 = vmatpush1.msra.mxu0 0.0
    %3732 = vmatprep.subr.mxu0 0.0
    %3733 = vmatpush1.msra.mxu0 0.0
    %3734 = vmatprep.subr.mxu0 0.0
    %3735 = vmatpush1.msra.mxu0 0.0
    %3736 = vmatprep.subr.mxu0 0.0
    %3737 = vmatpush1.msra.mxu0 0.0
    %3738 = vmatprep.subr.mxu0 0.0
    %3739 = vmatpush1.msra.mxu0 0.0
    %3740 = vmatprep.subr.mxu0 0.0
    %3741 = vmatpush1.msra.mxu0 0.0
    %3742 = vmatprep.subr.mxu0 0.0
    %3743 = vmatpush1.msra.mxu0 0.0
    %3744 = vmatprep.subr.mxu0 0.0
    %3745 = vmatpush1.msra.mxu0 0.0
    %3746 = vmatprep.subr.mxu0 0.0
    %3747 = vmatpush1.msra.mxu0 0.0
    %3748 = vmatprep.subr.mxu0 0.0
    %3749 = vmatpush1.msra.mxu0 0.0
    %3750 = vmatprep.subr.mxu0 0.0
    %3751 = vmatpush1.msra.mxu0 0.0
    %3752 = vmatprep.subr.mxu0 0.0
    %3753 = vmatpush1.msra.mxu0 0.0
    %3754 = vmatprep.subr.mxu0 0.0
    %3755 = vmatpush1.msra.mxu0 0.0
    %3756 = vmatprep.subr.mxu0 0.0
    %3757 = vmatpush1.msra.mxu0 0.0
    %3758 = vmatprep.mubr.f32.mxu0 0.0
    %3759 = vmatmul.mubr.f32.gmra.mrb[0].mxu0 %v3692
    %v3760 = vpop.f32.mrb[0].mxu0
    %v3761 = vadd.f32 0.0, %v3760
    %v3762 = vpop.f32.mrb[0].mxu0
    %3763 = vdwg.mxu0
    %v3765 = vsel %vm3222, %v3388, 0
    %3767 = vmatprep.subr.mxu0 0.0
    %3768 = vmatpush1.msra.mxu0 %v1866
    %3769 = vmatprep.subr.mxu0 0.0
    %3770 = vmatpush1.msra.mxu0 0.0
    %3771 = vmatprep.subr.mxu0 0.0
    %3772 = vmatpush1.msra.mxu0 0.0
    %3773 = vmatprep.subr.mxu0 0.0
    %3774 = vmatpush1.msra.mxu0 0.0
    %3775 = vmatprep.subr.mxu0 0.0
    %3776 = vmatpush1.msra.mxu0 0.0
    %3777 = vmatprep.subr.mxu0 0.0
    %3778 = vmatpush1.msra.mxu0 0.0
    %3779 = vmatprep.subr.mxu0 0.0
    %3780 = vmatpush1.msra.mxu0 0.0
    %3781 = vmatprep.subr.mxu0 0.0
    %3782 = vmatpush1.msra.mxu0 0.0
    %3783 = vmatprep.subr.mxu0 0.0
    %3784 = vmatpush1.msra.mxu0 0.0
    %3785 = vmatprep.subr.mxu0 0.0
    %3786 = vmatpush1.msra.mxu0 0.0
    %3787 = vmatprep.subr.mxu0 0.0
    %3788 = vmatpush1.msra.mxu0 0.0
    %3789 = vmatprep.subr.mxu0 0.0
    %3790 = vmatpush1.msra.mxu0 0.0
    %3791 = vmatprep.subr.mxu0 0.0
    %3792 = vmatpush1.msra.mxu0 0.0
    %3793 = vmatprep.subr.mxu0 0.0
    %3794 = vmatpush1.msra.mxu0 0.0
    %3795 = vmatprep.subr.mxu0 0.0
    %3796 = vmatpush1.msra.mxu0 0.0
    %3797 = vmatprep.subr.mxu0 0.0
    %3798 = vmatpush1.msra.mxu0 0.0
    %3799 = vmatprep.subr.mxu0 0.0
    %3800 = vmatpush1.msra.mxu0 0.0
    %3801 = vmatprep.subr.mxu0 0.0
    %3802 = vmatpush1.msra.mxu0 0.0
    %3803 = vmatprep.subr.mxu0 0.0
    %3804 = vmatpush1.msra.mxu0 0.0
    %3805 = vmatprep.subr.mxu0 0.0
    %3806 = vmatpush1.msra.mxu0 0.0
    %3807 = vmatprep.subr.mxu0 0.0
    %3808 = vmatpush1.msra.mxu0 0.0
    %3809 = vmatprep.subr.mxu0 0.0
    %3810 = vmatpush1.msra.mxu0 0.0
    %3811 = vmatprep.subr.mxu0 0.0
    %3812 = vmatpush1.msra.mxu0 0.0
    %3813 = vmatprep.subr.mxu0 0.0
    %3814 = vmatpush1.msra.mxu0 0.0
    %3815 = vmatprep.subr.mxu0 0.0
    %3816 = vmatpush1.msra.mxu0 0.0
    %3817 = vmatprep.subr.mxu0 0.0
    %3818 = vmatpush1.msra.mxu0 0.0
    %3819 = vmatprep.subr.mxu0 0.0
    %3820 = vmatpush1.msra.mxu0 0.0
    %3821 = vmatprep.subr.mxu0 0.0
    %3822 = vmatpush1.msra.mxu0 0.0
    %3823 = vmatprep.subr.mxu0 0.0
    %3824 = vmatpush1.msra.mxu0 0.0
    %3825 = vmatprep.subr.mxu0 0.0
    %3826 = vmatpush1.msra.mxu0 0.0
    %3827 = vmatprep.subr.mxu0 0.0
    %3828 = vmatpush1.msra.mxu0 0.0
    %3829 = vmatprep.subr.mxu0 0.0
    %3830 = vmatpush1.msra.mxu0 0.0
    %3831 = vmatprep.mubr.f32.mxu0 0.0
    %3832 = vmatmul.mubr.f32.gmra.mrb[0].mxu0 %v3765
    %v3833 = vpop.f32.mrb[0].mxu0
    %v3834 = vadd.f32 0.0, %v3833
    %v3835 = vpop.f32.mrb[0].mxu0
    %3836 = vdwg.mxu0
    %v3838 = vsel %vm3222, %v3389, 0
    %3840 = vmatprep.subr.mxu0 0.0
    %3841 = vmatpush1.msra.mxu0 %v1867
    %3842 = vmatprep.subr.mxu0 0.0
    %3843 = vmatpush1.msra.mxu0 0.0
    %3844 = vmatprep.subr.mxu0 0.0
    %3845 = vmatpush1.msra.mxu0 0.0
    %3846 = vmatprep.subr.mxu0 0.0
    %3847 = vmatpush1.msra.mxu0 0.0
    %3848 = vmatprep.subr.mxu0 0.0
    %3849 = vmatpush1.msra.mxu0 0.0
    %3850 = vmatprep.subr.mxu0 0.0
    %3851 = vmatpush1.msra.mxu0 0.0
    %3852 = vmatprep.subr.mxu0 0.0
    %3853 = vmatpush1.msra.mxu0 0.0
    %3854 = vmatprep.subr.mxu0 0.0
    %3855 = vmatpush1.msra.mxu0 0.0
    %3856 = vmatprep.subr.mxu0 0.0
    %3857 = vmatpush1.msra.mxu0 0.0
    %3858 = vmatprep.subr.mxu0 0.0
    %3859 = vmatpush1.msra.mxu0 0.0
    %3860 = vmatprep.subr.mxu0 0.0
    %3861 = vmatpush1.msra.mxu0 0.0
    %3862 = vmatprep.subr.mxu0 0.0
    %3863 = vmatpush1.msra.mxu0 0.0
    %3864 = vmatprep.subr.mxu0 0.0
    %3865 = vmatpush1.msra.mxu0 0.0
    %3866 = vmatprep.subr.mxu0 0.0
    %3867 = vmatpush1.msra.mxu0 0.0
    %3868 = vmatprep.subr.mxu0 0.0
    %3869 = vmatpush1.msra.mxu0 0.0
    %3870 = vmatprep.subr.mxu0 0.0
    %3871 = vmatpush1.msra.mxu0 0.0
    %3872 = vmatprep.subr.mxu0 0.0
    %3873 = vmatpush1.msra.mxu0 0.0
    %3874 = vmatprep.subr.mxu0 0.0
    %3875 = vmatpush1.msra.mxu0 0.0
    %3876 = vmatprep.subr.mxu0 0.0
    %3877 = vmatpush1.msra.mxu0 0.0
    %3878 = vmatprep.subr.mxu0 0.0
    %3879 = vmatpush1.msra.mxu0 0.0
    %3880 = vmatprep.subr.mxu0 0.0
    %3881 = vmatpush1.msra.mxu0 0.0
    %3882 = vmatprep.subr.mxu0 0.0
    %3883 = vmatpush1.msra.mxu0 0.0
    %3884 = vmatprep.subr.mxu0 0.0
    %3885 = vmatpush1.msra.mxu0 0.0
    %3886 = vmatprep.subr.mxu0 0.0
    %3887 = vmatpush1.msra.mxu0 0.0
    %3888 = vmatprep.subr.mxu0 0.0
    %3889 = vmatpush1.msra.mxu0 0.0
    %3890 = vmatprep.subr.mxu0 0.0
    %3891 = vmatpush1.msra.mxu0 0.0
    %3892 = vmatprep.subr.mxu0 0.0
    %3893 = vmatpush1.msra.mxu0 0.0
    %3894 = vmatprep.subr.mxu0 0.0
    %3895 = vmatpush1.msra.mxu0 0.0
    %3896 = vmatprep.subr.mxu0 0.0
    %3897 = vmatpush1.msra.mxu0 0.0
    %3898 = vmatprep.subr.mxu0 0.0
    %3899 = vmatpush1.msra.mxu0 0.0
    %3900 = vmatprep.subr.mxu0 0.0
    %3901 = vmatpush1.msra.mxu0 0.0
    %3902 = vmatprep.subr.mxu0 0.0
    %3903 = vmatpush1.msra.mxu0 0.0
    %3904 = vmatprep.mubr.f32.mxu0 0.0
    %3905 = vmatmul.mubr.f32.gmra.mrb[0].mxu0 %v3838
    %v3906 = vpop.f32.mrb[0].mxu0
    %v3907 = vadd.f32 0.0, %v3906
    %v3908 = vpop.f32.mrb[0].mxu0
    %3909 = vdwg.mxu0
    %v3911 = vsel %vm3222, %v3390, 0
    %3913 = vmatprep.subr.mxu0 0.0
    %3914 = vmatpush1.msra.mxu0 %v1868
    %3915 = vmatprep.subr.mxu0 0.0
    %3916 = vmatpush1.msra.mxu0 0.0
    %3917 = vmatprep.subr.mxu0 0.0
    %3918 = vmatpush1.msra.mxu0 0.0
    %3919 = vmatprep.subr.mxu0 0.0
    %3920 = vmatpush1.msra.mxu0 0.0
    %3921 = vmatprep.subr.mxu0 0.0
    %3922 = vmatpush1.msra.mxu0 0.0
    %3923 = vmatprep.subr.mxu0 0.0
    %3924 = vmatpush1.msra.mxu0 0.0
    %3925 = vmatprep.subr.mxu0 0.0
    %3926 = vmatpush1.msra.mxu0 0.0
    %3927 = vmatprep.subr.mxu0 0.0
    %3928 = vmatpush1.msra.mxu0 0.0
    %3929 = vmatprep.subr.mxu0 0.0
    %3930 = vmatpush1.msra.mxu0 0.0
    %3931 = vmatprep.subr.mxu0 0.0
    %3932 = vmatpush1.msra.mxu0 0.0
    %3933 = vmatprep.subr.mxu0 0.0
    %3934 = vmatpush1.msra.mxu0 0.0
    %3935 = vmatprep.subr.mxu0 0.0
    %3936 = vmatpush1.msra.mxu0 0.0
    %3937 = vmatprep.subr.mxu0 0.0
    %3938 = vmatpush1.msra.mxu0 0.0
    %3939 = vmatprep.subr.mxu0 0.0
    %3940 = vmatpush1.msra.mxu0 0.0
    %3941 = vmatprep.subr.mxu0 0.0
    %3942 = vmatpush1.msra.mxu0 0.0
    %3943 = vmatprep.subr.mxu0 0.0
    %3944 = vmatpush1.msra.mxu0 0.0
    %3945 = vmatprep.subr.mxu0 0.0
    %3946 = vmatpush1.msra.mxu0 0.0
    %3947 = vmatprep.subr.mxu0 0.0
    %3948 = vmatpush1.msra.mxu0 0.0
    %3949 = vmatprep.subr.mxu0 0.0
    %3950 = vmatpush1.msra.mxu0 0.0
    %3951 = vmatprep.subr.mxu0 0.0
    %3952 = vmatpush1.msra.mxu0 0.0
    %3953 = vmatprep.subr.mxu0 0.0
    %3954 = vmatpush1.msra.mxu0 0.0
    %3955 = vmatprep.subr.mxu0 0.0
    %3956 = vmatpush1.msra.mxu0 0.0
    %3957 = vmatprep.subr.mxu0 0.0
    %3958 = vmatpush1.msra.mxu0 0.0
    %3959 = vmatprep.subr.mxu0 0.0
    %3960 = vmatpush1.msra.mxu0 0.0
    %3961 = vmatprep.subr.mxu0 0.0
    %3962 = vmatpush1.msra.mxu0 0.0
    %3963 = vmatprep.subr.mxu0 0.0
    %3964 = vmatpush1.msra.mxu0 0.0
    %3965 = vmatprep.subr.mxu0 0.0
    %3966 = vmatpush1.msra.mxu0 0.0
    %3967 = vmatprep.subr.mxu0 0.0
    %3968 = vmatpush1.msra.mxu0 0.0
    %3969 = vmatprep.subr.mxu0 0.0
    %3970 = vmatpush1.msra.mxu0 0.0
    %3971 = vmatprep.subr.mxu0 0.0
    %3972 = vmatpush1.msra.mxu0 0.0
    %3973 = vmatprep.subr.mxu0 0.0
    %3974 = vmatpush1.msra.mxu0 0.0
    %3975 = vmatprep.subr.mxu0 0.0
    %3976 = vmatpush1.msra.mxu0 0.0
    %3977 = vmatprep.mubr.f32.mxu0 0.0
    %3978 = vmatmul.mubr.f32.gmra.mrb[0].mxu0 %v3911
    %v3979 = vpop.f32.mrb[0].mxu0
    %v3980 = vadd.f32 0.0, %v3979
    %v3981 = vpop.f32.mrb[0].mxu0
    %3982 = vdwg.mxu0
    %v3984 = vsel %vm3222, %v3391, 0
    %3986 = vmatprep.subr.mxu0 0.0
    %3987 = vmatpush1.msra.mxu0 %v1997
    %3988 = vmatprep.subr.mxu0 0.0
    %3989 = vmatpush1.msra.mxu0 0.0
    %3990 = vmatprep.subr.mxu0 0.0
    %3991 = vmatpush1.msra.mxu0 0.0
    %3992 = vmatprep.subr.mxu0 0.0
    %3993 = vmatpush1.msra.mxu0 0.0
    %3994 = vmatprep.subr.mxu0 0.0
    %3995 = vmatpush1.msra.mxu0 0.0
    %3996 = vmatprep.subr.mxu0 0.0
    %3997 = vmatpush1.msra.mxu0 0.0
    %3998 = vmatprep.subr.mxu0 0.0
    %3999 = vmatpush1.msra.mxu0 0.0
    %4000 = vmatprep.subr.mxu0 0.0
    %4001 = vmatpush1.msra.mxu0 0.0
    %4002 = vmatprep.subr.mxu0 0.0
    %4003 = vmatpush1.msra.mxu0 0.0
    %4004 = vmatprep.subr.mxu0 0.0
    %4005 = vmatpush1.msra.mxu0 0.0
    %4006 = vmatprep.subr.mxu0 0.0
    %4007 = vmatpush1.msra.mxu0 0.0
    %4008 = vmatprep.subr.mxu0 0.0
    %4009 = vmatpush1.msra.mxu0 0.0
    %4010 = vmatprep.subr.mxu0 0.0
    %4011 = vmatpush1.msra.mxu0 0.0
    %4012 = vmatprep.subr.mxu0 0.0
    %4013 = vmatpush1.msra.mxu0 0.0
    %4014 = vmatprep.subr.mxu0 0.0
    %4015 = vmatpush1.msra.mxu0 0.0
    %4016 = vmatprep.subr.mxu0 0.0
    %4017 = vmatpush1.msra.mxu0 0.0
    %4018 = vmatprep.subr.mxu0 0.0
    %4019 = vmatpush1.msra.mxu0 0.0
    %4020 = vmatprep.subr.mxu0 0.0
    %4021 = vmatpush1.msra.mxu0 0.0
    %4022 = vmatprep.subr.mxu0 0.0
    %4023 = vmatpush1.msra.mxu0 0.0
    %4024 = vmatprep.subr.mxu0 0.0
    %4025 = vmatpush1.msra.mxu0 0.0
    %4026 = vmatprep.subr.mxu0 0.0
    %4027 = vmatpush1.msra.mxu0 0.0
    %4028 = vmatprep.subr.mxu0 0.0
    %4029 = vmatpush1.msra.mxu0 0.0
    %4030 = vmatprep.subr.mxu0 0.0
    %4031 = vmatpush1.msra.mxu0 0.0
    %4032 = vmatprep.subr.mxu0 0.0
    %4033 = vmatpush1.msra.mxu0 0.0
    %4034 = vmatprep.subr.mxu0 0.0
    %4035 = vmatpush1.msra.mxu0 0.0
    %4036 = vmatprep.subr.mxu0 0.0
    %4037 = vmatpush1.msra.mxu0 0.0
    %4038 = vmatprep.subr.mxu0 0.0
    %4039 = vmatpush1.msra.mxu0 0.0
    %4040 = vmatprep.subr.mxu0 0.0
    %4041 = vmatpush1.msra.mxu0 0.0
    %4042 = vmatprep.subr.mxu0 0.0
    %4043 = vmatpush1.msra.mxu0 0.0
    %4044 = vmatprep.subr.mxu0 0.0
    %4045 = vmatpush1.msra.mxu0 0.0
    %4046 = vmatprep.subr.mxu0 0.0
    %4047 = vmatpush1.msra.mxu0 0.0
    %4048 = vmatprep.subr.mxu0 0.0
    %4049 = vmatpush1.msra.mxu0 0.0
    %4050 = vmatprep.mubr.f32.mxu0 0.0
    %4051 = vmatmul.mubr.f32.gmra.mrb[0].mxu0 %v3984
    %v4052 = vpop.f32.mrb[0].mxu0
    %v4053 = vadd.f32 0.0, %v4052
    %v4054 = vpop.f32.mrb[0].mxu0
    %4055 = vdwg.mxu0
    %v4057 = vsel %vm3222, %v3392, 0
    %4059 = vmatprep.subr.mxu0 0.0
    %4060 = vmatpush1.msra.mxu0 %v1998
    %4061 = vmatprep.subr.mxu0 0.0
    %4062 = vmatpush1.msra.mxu0 0.0
    %4063 = vmatprep.subr.mxu0 0.0
    %4064 = vmatpush1.msra.mxu0 0.0
    %4065 = vmatprep.subr.mxu0 0.0
    %4066 = vmatpush1.msra.mxu0 0.0
    %4067 = vmatprep.subr.mxu0 0.0
    %4068 = vmatpush1.msra.mxu0 0.0
    %4069 = vmatprep.subr.mxu0 0.0
    %4070 = vmatpush1.msra.mxu0 0.0
    %4071 = vmatprep.subr.mxu0 0.0
    %4072 = vmatpush1.msra.mxu0 0.0
    %4073 = vmatprep.subr.mxu0 0.0
    %4074 = vmatpush1.msra.mxu0 0.0
    %4075 = vmatprep.subr.mxu0 0.0
    %4076 = vmatpush1.msra.mxu0 0.0
    %4077 = vmatprep.subr.mxu0 0.0
    %4078 = vmatpush1.msra.mxu0 0.0
    %4079 = vmatprep.subr.mxu0 0.0
    %4080 = vmatpush1.msra.mxu0 0.0
    %4081 = vmatprep.subr.mxu0 0.0
    %4082 = vmatpush1.msra.mxu0 0.0
    %4083 = vmatprep.subr.mxu0 0.0
    %4084 = vmatpush1.msra.mxu0 0.0
    %4085 = vmatprep.subr.mxu0 0.0
    %4086 = vmatpush1.msra.mxu0 0.0
    %4087 = vmatprep.subr.mxu0 0.0
    %4088 = vmatpush1.msra.mxu0 0.0
    %4089 = vmatprep.subr.mxu0 0.0
    %4090 = vmatpush1.msra.mxu0 0.0
    %4091 = vmatprep.subr.mxu0 0.0
    %4092 = vmatpush1.msra.mxu0 0.0
    %4093 = vmatprep.subr.mxu0 0.0
    %4094 = vmatpush1.msra.mxu0 0.0
    %4095 = vmatprep.subr.mxu0 0.0
    %4096 = vmatpush1.msra.mxu0 0.0
    %4097 = vmatprep.subr.mxu0 0.0
    %4098 = vmatpush1.msra.mxu0 0.0
    %4099 = vmatprep.subr.mxu0 0.0
    %4100 = vmatpush1.msra.mxu0 0.0
    %4101 = vmatprep.subr.mxu0 0.0
    %4102 = vmatpush1.msra.mxu0 0.0
    %4103 = vmatprep.subr.mxu0 0.0
    %4104 = vmatpush1.msra.mxu0 0.0
    %4105 = vmatprep.subr.mxu0 0.0
    %4106 = vmatpush1.msra.mxu0 0.0
    %4107 = vmatprep.subr.mxu0 0.0
    %4108 = vmatpush1.msra.mxu0 0.0
    %4109 = vmatprep.subr.mxu0 0.0
    %4110 = vmatpush1.msra.mxu0 0.0
    %4111 = vmatprep.subr.mxu0 0.0
    %4112 = vmatpush1.msra.mxu0 0.0
    %4113 = vmatprep.subr.mxu0 0.0
    %4114 = vmatpush1.msra.mxu0 0.0
    %4115 = vmatprep.subr.mxu0 0.0
    %4116 = vmatpush1.msra.mxu0 0.0
    %4117 = vmatprep.subr.mxu0 0.0
    %4118 = vmatpush1.msra.mxu0 0.0
    %4119 = vmatprep.subr.mxu0 0.0
    %4120 = vmatpush1.msra.mxu0 0.0
    %4121 = vmatprep.subr.mxu0 0.0
    %4122 = vmatpush1.msra.mxu0 0.0
    %4123 = vmatprep.mubr.f32.mxu0 0.0
    %4124 = vmatmul.mubr.f32.gmra.mrb[0].mxu0 %v4057
    %v4125 = vpop.f32.mrb[0].mxu0
    %v4126 = vadd.f32 0.0, %v4125
    %v4127 = vpop.f32.mrb[0].mxu0
    %4128 = vdwg.mxu0
    %v4130 = vsel %vm3222, %v3393, 0
    %4132 = vmatprep.subr.mxu0 0.0
    %4133 = vmatpush1.msra.mxu0 %v1999
    %4134 = vmatprep.subr.mxu0 0.0
    %4135 = vmatpush1.msra.mxu0 0.0
    %4136 = vmatprep.subr.mxu0 0.0
    %4137 = vmatpush1.msra.mxu0 0.0
    %4138 = vmatprep.subr.mxu0 0.0
    %4139 = vmatpush1.msra.mxu0 0.0
    %4140 = vmatprep.subr.mxu0 0.0
    %4141 = vmatpush1.msra.mxu0 0.0
    %4142 = vmatprep.subr.mxu0 0.0
    %4143 = vmatpush1.msra.mxu0 0.0
    %4144 = vmatprep.subr.mxu0 0.0
    %4145 = vmatpush1.msra.mxu0 0.0
    %4146 = vmatprep.subr.mxu0 0.0
    %4147 = vmatpush1.msra.mxu0 0.0
    %4148 = vmatprep.subr.mxu0 0.0
    %4149 = vmatpush1.msra.mxu0 0.0
    %4150 = vmatprep.subr.mxu0 0.0
    %4151 = vmatpush1.msra.mxu0 0.0
    %4152 = vmatprep.subr.mxu0 0.0
    %4153 = vmatpush1.msra.mxu0 0.0
    %4154 = vmatprep.subr.mxu0 0.0
    %4155 = vmatpush1.msra.mxu0 0.0
    %4156 = vmatprep.subr.mxu0 0.0
    %4157 = vmatpush1.msra.mxu0 0.0
    %4158 = vmatprep.subr.mxu0 0.0
    %4159 = vmatpush1.msra.mxu0 0.0
    %4160 = vmatprep.subr.mxu0 0.0
    %4161 = vmatpush1.msra.mxu0 0.0
    %4162 = vmatprep.subr.mxu0 0.0
    %4163 = vmatpush1.msra.mxu0 0.0
    %4164 = vmatprep.subr.mxu0 0.0
    %4165 = vmatpush1.msra.mxu0 0.0
    %4166 = vmatprep.subr.mxu0 0.0
    %4167 = vmatpush1.msra.mxu0 0.0
    %4168 = vmatprep.subr.mxu0 0.0
    %4169 = vmatpush1.msra.mxu0 0.0
    %4170 = vmatprep.subr.mxu0 0.0
    %4171 = vmatpush1.msra.mxu0 0.0
    %4172 = vmatprep.subr.mxu0 0.0
    %4173 = vmatpush1.msra.mxu0 0.0
    %4174 = vmatprep.subr.mxu0 0.0
    %4175 = vmatpush1.msra.mxu0 0.0
    %4176 = vmatprep.subr.mxu0 0.0
    %4177 = vmatpush1.msra.mxu0 0.0
    %4178 = vmatprep.subr.mxu0 0.0
    %4179 = vmatpush1.msra.mxu0 0.0
    %4180 = vmatprep.subr.mxu0 0.0
    %4181 = vmatpush1.msra.mxu0 0.0
    %4182 = vmatprep.subr.mxu0 0.0
    %4183 = vmatpush1.msra.mxu0 0.0
    %4184 = vmatprep.subr.mxu0 0.0
    %4185 = vmatpush1.msra.mxu0 0.0
    %4186 = vmatprep.subr.mxu0 0.0
    %4187 = vmatpush1.msra.mxu0 0.0
    %4188 = vmatprep.subr.mxu0 0.0
    %4189 = vmatpush1.msra.mxu0 0.0
    %4190 = vmatprep.subr.mxu0 0.0
    %4191 = vmatpush1.msra.mxu0 0.0
    %4192 = vmatprep.subr.mxu0 0.0
    %4193 = vmatpush1.msra.mxu0 0.0
    %4194 = vmatprep.subr.mxu0 0.0
    %4195 = vmatpush1.msra.mxu0 0.0
    %4196 = vmatprep.mubr.f32.mxu0 0.0
    %4197 = vmatmul.mubr.f32.gmra.mrb[0].mxu0 %v4130
    %v4198 = vpop.f32.mrb[0].mxu0
    %v4199 = vadd.f32 0.0, %v4198
    %v4200 = vpop.f32.mrb[0].mxu0
    %4201 = vdwg.mxu0
    %v4203 = vsel %vm3222, %v3394, 0
    %4205 = vmatprep.subr.mxu0 0.0
    %4206 = vmatpush1.msra.mxu0 %v2000
    %4207 = vmatprep.subr.mxu0 0.0
    %4208 = vmatpush1.msra.mxu0 0.0
    %4209 = vmatprep.subr.mxu0 0.0
    %4210 = vmatpush1.msra.mxu0 0.0
    %4211 = vmatprep.subr.mxu0 0.0
    %4212 = vmatpush1.msra.mxu0 0.0
    %4213 = vmatprep.subr.mxu0 0.0
    %4214 = vmatpush1.msra.mxu0 0.0
    %4215 = vmatprep.subr.mxu0 0.0
    %4216 = vmatpush1.msra.mxu0 0.0
    %4217 = vmatprep.subr.mxu0 0.0
    %4218 = vmatpush1.msra.mxu0 0.0
    %4219 = vmatprep.subr.mxu0 0.0
    %4220 = vmatpush1.msra.mxu0 0.0
    %4221 = vmatprep.subr.mxu0 0.0
    %4222 = vmatpush1.msra.mxu0 0.0
    %4223 = vmatprep.subr.mxu0 0.0
    %4224 = vmatpush1.msra.mxu0 0.0
    %4225 = vmatprep.subr.mxu0 0.0
    %4226 = vmatpush1.msra.mxu0 0.0
    %4227 = vmatprep.subr.mxu0 0.0
    %4228 = vmatpush1.msra.mxu0 0.0
    %4229 = vmatprep.subr.mxu0 0.0
    %4230 = vmatpush1.msra.mxu0 0.0
    %4231 = vmatprep.subr.mxu0 0.0
    %4232 = vmatpush1.msra.mxu0 0.0
    %4233 = vmatprep.subr.mxu0 0.0
    %4234 = vmatpush1.msra.mxu0 0.0
    %4235 = vmatprep.subr.mxu0 0.0
    %4236 = vmatpush1.msra.mxu0 0.0
    %4237 = vmatprep.subr.mxu0 0.0
    %4238 = vmatpush1.msra.mxu0 0.0
    %4239 = vmatprep.subr.mxu0 0.0
    %4240 = vmatpush1.msra.mxu0 0.0
    %4241 = vmatprep.subr.mxu0 0.0
    %4242 = vmatpush1.msra.mxu0 0.0
    %4243 = vmatprep.subr.mxu0 0.0
    %4244 = vmatpush1.msra.mxu0 0.0
    %4245 = vmatprep.subr.mxu0 0.0
    %4246 = vmatpush1.msra.mxu0 0.0
    %4247 = vmatprep.subr.mxu0 0.0
    %4248 = vmatpush1.msra.mxu0 0.0
    %4249 = vmatprep.subr.mxu0 0.0
    %4250 = vmatpush1.msra.mxu0 0.0
    %4251 = vmatprep.subr.mxu0 0.0
    %4252 = vmatpush1.msra.mxu0 0.0
    %4253 = vmatprep.subr.mxu0 0.0
    %4254 = vmatpush1.msra.mxu0 0.0
    %4255 = vmatprep.subr.mxu0 0.0
    %4256 = vmatpush1.msra.mxu0 0.0
    %4257 = vmatprep.subr.mxu0 0.0
    %4258 = vmatpush1.msra.mxu0 0.0
    %4259 = vmatprep.subr.mxu0 0.0
    %4260 = vmatpush1.msra.mxu0 0.0
    %4261 = vmatprep.subr.mxu0 0.0
    %4262 = vmatpush1.msra.mxu0 0.0
    %4263 = vmatprep.subr.mxu0 0.0
    %4264 = vmatpush1.msra.mxu0 0.0
    %4265 = vmatprep.subr.mxu0 0.0
    %4266 = vmatpush1.msra.mxu0 0.0
    %4267 = vmatprep.subr.mxu0 0.0
    %4268 = vmatpush1.msra.mxu0 0.0
    %4269 = vmatprep.mubr.f32.mxu0 0.0
    %4270 = vmatmul.mubr.f32.gmra.mrb[0].mxu0 %v4203
    %v4271 = vpop.f32.mrb[0].mxu0
    %v4272 = vadd.f32 0.0, %v4271
    %v4273 = vpop.f32.mrb[0].mxu0
    %4274 = vdwg.mxu0
    %v4276 = vsel %vm3222, %v3395, 0
    %4278 = vmatprep.subr.mxu0 0.0
    %4279 = vmatpush1.msra.mxu0 %v2001
    %4280 = vmatprep.subr.mxu0 0.0
    %4281 = vmatpush1.msra.mxu0 0.0
    %4282 = vmatprep.subr.mxu0 0.0
    %4283 = vmatpush1.msra.mxu0 0.0
    %4284 = vmatprep.subr.mxu0 0.0
    %4285 = vmatpush1.msra.mxu0 0.0
    %4286 = vmatprep.subr.mxu0 0.0
    %4287 = vmatpush1.msra.mxu0 0.0
    %4288 = vmatprep.subr.mxu0 0.0
    %4289 = vmatpush1.msra.mxu0 0.0
    %4290 = vmatprep.subr.mxu0 0.0
    %4291 = vmatpush1.msra.mxu0 0.0
    %4292 = vmatprep.subr.mxu0 0.0
    %4293 = vmatpush1.msra.mxu0 0.0
    %4294 = vmatprep.subr.mxu0 0.0
    %4295 = vmatpush1.msra.mxu0 0.0
    %4296 = vmatprep.subr.mxu0 0.0
    %4297 = vmatpush1.msra.mxu0 0.0
    %4298 = vmatprep.subr.mxu0 0.0
    %4299 = vmatpush1.msra.mxu0 0.0
    %4300 = vmatprep.subr.mxu0 0.0
    %4301 = vmatpush1.msra.mxu0 0.0
    %4302 = vmatprep.subr.mxu0 0.0
    %4303 = vmatpush1.msra.mxu0 0.0
    %4304 = vmatprep.subr.mxu0 0.0
    %4305 = vmatpush1.msra.mxu0 0.0
    %4306 = vmatprep.subr.mxu0 0.0
    %4307 = vmatpush1.msra.mxu0 0.0
    %4308 = vmatprep.subr.mxu0 0.0
    %4309 = vmatpush1.msra.mxu0 0.0
    %4310 = vmatprep.subr.mxu0 0.0
    %4311 = vmatpush1.msra.mxu0 0.0
    %4312 = vmatprep.subr.mxu0 0.0
    %4313 = vmatpush1.msra.mxu0 0.0
    %4314 = vmatprep.subr.mxu0 0.0
    %4315 = vmatpush1.msra.mxu0 0.0
    %4316 = vmatprep.subr.mxu0 0.0
    %4317 = vmatpush1.msra.mxu0 0.0
    %4318 = vmatprep.subr.mxu0 0.0
    %4319 = vmatpush1.msra.mxu0 0.0
    %4320 = vmatprep.subr.mxu0 0.0
    %4321 = vmatpush1.msra.mxu0 0.0
    %4322 = vmatprep.subr.mxu0 0.0
    %4323 = vmatpush1.msra.mxu0 0.0
    %4324 = vmatprep.subr.mxu0 0.0
    %4325 = vmatpush1.msra.mxu0 0.0
    %4326 = vmatprep.subr.mxu0 0.0
    %4327 = vmatpush1.msra.mxu0 0.0
    %4328 = vmatprep.subr.mxu0 0.0
    %4329 = vmatpush1.msra.mxu0 0.0
    %4330 = vmatprep.subr.mxu0 0.0
    %4331 = vmatpush1.msra.mxu0 0.0
    %4332 = vmatprep.subr.mxu0 0.0
    %4333 = vmatpush1.msra.mxu0 0.0
    %4334 = vmatprep.subr.mxu0 0.0
    %4335 = vmatpush1.msra.mxu0 0.0
    %4336 = vmatprep.subr.mxu0 0.0
    %4337 = vmatpush1.msra.mxu0 0.0
    %4338 = vmatprep.subr.mxu0 0.0
    %4339 = vmatpush1.msra.mxu0 0.0
    %4340 = vmatprep.subr.mxu0 0.0
    %4341 = vmatpush1.msra.mxu0 0.0
    %4342 = vmatprep.mubr.f32.mxu0 0.0
    %4343 = vmatmul.mubr.f32.gmra.mrb[0].mxu0 %v4276
    %v4344 = vpop.f32.mrb[0].mxu0
    %v4345 = vadd.f32 0.0, %v4344
    %v4346 = vpop.f32.mrb[0].mxu0
    %4347 = vdwg.mxu0
    %v4349 = vsel %vm3222, %v3396, 0
    %4351 = vmatprep.subr.mxu0 0.0
    %4352 = vmatpush1.msra.mxu0 %v2002
    %4353 = vmatprep.subr.mxu0 0.0
    %4354 = vmatpush1.msra.mxu0 0.0
    %4355 = vmatprep.subr.mxu0 0.0
    %4356 = vmatpush1.msra.mxu0 0.0
    %4357 = vmatprep.subr.mxu0 0.0
    %4358 = vmatpush1.msra.mxu0 0.0
    %4359 = vmatprep.subr.mxu0 0.0
    %4360 = vmatpush1.msra.mxu0 0.0
    %4361 = vmatprep.subr.mxu0 0.0
    %4362 = vmatpush1.msra.mxu0 0.0
    %4363 = vmatprep.subr.mxu0 0.0
    %4364 = vmatpush1.msra.mxu0 0.0
    %4365 = vmatprep.subr.mxu0 0.0
    %4366 = vmatpush1.msra.mxu0 0.0
    %4367 = vmatprep.subr.mxu0 0.0
    %4368 = vmatpush1.msra.mxu0 0.0
    %4369 = vmatprep.subr.mxu0 0.0
    %4370 = vmatpush1.msra.mxu0 0.0
    %4371 = vmatprep.subr.mxu0 0.0
    %4372 = vmatpush1.msra.mxu0 0.0
    %4373 = vmatprep.subr.mxu0 0.0
    %4374 = vmatpush1.msra.mxu0 0.0
    %4375 = vmatprep.subr.mxu0 0.0
    %4376 = vmatpush1.msra.mxu0 0.0
    %4377 = vmatprep.subr.mxu0 0.0
    %4378 = vmatpush1.msra.mxu0 0.0
    %4379 = vmatprep.subr.mxu0 0.0
    %4380 = vmatpush1.msra.mxu0 0.0
    %4381 = vmatprep.subr.mxu0 0.0
    %4382 = vmatpush1.msra.mxu0 0.0
    %4383 = vmatprep.subr.mxu0 0.0
    %4384 = vmatpush1.msra.mxu0 0.0
    %4385 = vmatprep.subr.mxu0 0.0
    %4386 = vmatpush1.msra.mxu0 0.0
    %4387 = vmatprep.subr.mxu0 0.0
    %4388 = vmatpush1.msra.mxu0 0.0
    %4389 = vmatprep.subr.mxu0 0.0
    %4390 = vmatpush1.msra.mxu0 0.0
    %4391 = vmatprep.subr.mxu0 0.0
    %4392 = vmatpush1.msra.mxu0 0.0
    %4393 = vmatprep.subr.mxu0 0.0
    %4394 = vmatpush1.msra.mxu0 0.0
    %4395 = vmatprep.subr.mxu0 0.0
    %4396 = vmatpush1.msra.mxu0 0.0
    %4397 = vmatprep.subr.mxu0 0.0
    %4398 = vmatpush1.msra.mxu0 0.0
    %4399 = vmatprep.subr.mxu0 0.0
    %4400 = vmatpush1.msra.mxu0 0.0
    %4401 = vmatprep.subr.mxu0 0.0
    %4402 = vmatpush1.msra.mxu0 0.0
    %4403 = vmatprep.subr.mxu0 0.0
    %4404 = vmatpush1.msra.mxu0 0.0
    %4405 = vmatprep.subr.mxu0 0.0
    %4406 = vmatpush1.msra.mxu0 0.0
    %4407 = vmatprep.subr.mxu0 0.0
    %4408 = vmatpush1.msra.mxu0 0.0
    %4409 = vmatprep.subr.mxu0 0.0
    %4410 = vmatpush1.msra.mxu0 0.0
    %4411 = vmatprep.subr.mxu0 0.0
    %4412 = vmatpush1.msra.mxu0 0.0
    %4413 = vmatprep.subr.mxu0 0.0
    %4414 = vmatpush1.msra.mxu0 0.0
    %4415 = vmatprep.mubr.f32.mxu0 0.0
    %4416 = vmatmul.mubr.f32.gmra.mrb[0].mxu0 %v4349
    %v4417 = vpop.f32.mrb[0].mxu0
    %v4418 = vadd.f32 0.0, %v4417
    %v4419 = vpop.f32.mrb[0].mxu0
    %4420 = vdwg.mxu0
    %v4422 = vsel %vm3222, %v3397, 0
    %4424 = vmatprep.subr.mxu0 0.0
    %4425 = vmatpush1.msra.mxu0 %v2003
    %4426 = vmatprep.subr.mxu0 0.0
    %4427 = vmatpush1.msra.mxu0 0.0
    %4428 = vmatprep.subr.mxu0 0.0
    %4429 = vmatpush1.msra.mxu0 0.0
    %4430 = vmatprep.subr.mxu0 0.0
    %4431 = vmatpush1.msra.mxu0 0.0
    %4432 = vmatprep.subr.mxu0 0.0
    %4433 = vmatpush1.msra.mxu0 0.0
    %4434 = vmatprep.subr.mxu0 0.0
    %4435 = vmatpush1.msra.mxu0 0.0
    %4436 = vmatprep.subr.mxu0 0.0
    %4437 = vmatpush1.msra.mxu0 0.0
    %4438 = vmatprep.subr.mxu0 0.0
    %4439 = vmatpush1.msra.mxu0 0.0
    %4440 = vmatprep.subr.mxu0 0.0
    %4441 = vmatpush1.msra.mxu0 0.0
    %4442 = vmatprep.subr.mxu0 0.0
    %4443 = vmatpush1.msra.mxu0 0.0
    %4444 = vmatprep.subr.mxu0 0.0
    %4445 = vmatpush1.msra.mxu0 0.0
    %4446 = vmatprep.subr.mxu0 0.0
    %4447 = vmatpush1.msra.mxu0 0.0
    %4448 = vmatprep.subr.mxu0 0.0
    %4449 = vmatpush1.msra.mxu0 0.0
    %4450 = vmatprep.subr.mxu0 0.0
    %4451 = vmatpush1.msra.mxu0 0.0
    %4452 = vmatprep.subr.mxu0 0.0
    %4453 = vmatpush1.msra.mxu0 0.0
    %4454 = vmatprep.subr.mxu0 0.0
    %4455 = vmatpush1.msra.mxu0 0.0
    %4456 = vmatprep.subr.mxu0 0.0
    %4457 = vmatpush1.msra.mxu0 0.0
    %4458 = vmatprep.subr.mxu0 0.0
    %4459 = vmatpush1.msra.mxu0 0.0
    %4460 = vmatprep.subr.mxu0 0.0
    %4461 = vmatpush1.msra.mxu0 0.0
    %4462 = vmatprep.subr.mxu0 0.0
    %4463 = vmatpush1.msra.mxu0 0.0
    %4464 = vmatprep.subr.mxu0 0.0
    %4465 = vmatpush1.msra.mxu0 0.0
    %4466 = vmatprep.subr.mxu0 0.0
    %4467 = vmatpush1.msra.mxu0 0.0
    %4468 = vmatprep.subr.mxu0 0.0
    %4469 = vmatpush1.msra.mxu0 0.0
    %4470 = vmatprep.subr.mxu0 0.0
    %4471 = vmatpush1.msra.mxu0 0.0
    %4472 = vmatprep.subr.mxu0 0.0
    %4473 = vmatpush1.msra.mxu0 0.0
    %4474 = vmatprep.subr.mxu0 0.0
    %4475 = vmatpush1.msra.mxu0 0.0
    %4476 = vmatprep.subr.mxu0 0.0
    %4477 = vmatpush1.msra.mxu0 0.0
    %4478 = vmatprep.subr.mxu0 0.0
    %4479 = vmatpush1.msra.mxu0 0.0
    %4480 = vmatprep.subr.mxu0 0.0
    %4481 = vmatpush1.msra.mxu0 0.0
    %4482 = vmatprep.subr.mxu0 0.0
    %4483 = vmatpush1.msra.mxu0 0.0
    %4484 = vmatprep.subr.mxu0 0.0
    %4485 = vmatpush1.msra.mxu0 0.0
    %4486 = vmatprep.subr.mxu0 0.0
    %4487 = vmatpush1.msra.mxu0 0.0
    %4488 = vmatprep.mubr.f32.mxu0 0.0
    %4489 = vmatmul.mubr.f32.gmra.mrb[0].mxu0 %v4422
    %v4490 = vpop.f32.mrb[0].mxu0
    %v4491 = vadd.f32 0.0, %v4490
    %v4492 = vpop.f32.mrb[0].mxu0
    %4493 = vdwg.mxu0
    %v4495 = vsel %vm3222, %v3398, 0
    %4497 = vmatprep.subr.mxu0 0.0
    %4498 = vmatpush1.msra.mxu0 %v2004
    %4499 = vmatprep.subr.mxu0 0.0
    %4500 = vmatpush1.msra.mxu0 0.0
    %4501 = vmatprep.subr.mxu0 0.0
    %4502 = vmatpush1.msra.mxu0 0.0
    %4503 = vmatprep.subr.mxu0 0.0
    %4504 = vmatpush1.msra.mxu0 0.0
    %4505 = vmatprep.subr.mxu0 0.0
    %4506 = vmatpush1.msra.mxu0 0.0
    %4507 = vmatprep.subr.mxu0 0.0
    %4508 = vmatpush1.msra.mxu0 0.0
    %4509 = vmatprep.subr.mxu0 0.0
    %4510 = vmatpush1.msra.mxu0 0.0
    %4511 = vmatprep.subr.mxu0 0.0
    %4512 = vmatpush1.msra.mxu0 0.0
    %4513 = vmatprep.subr.mxu0 0.0
    %4514 = vmatpush1.msra.mxu0 0.0
    %4515 = vmatprep.subr.mxu0 0.0
    %4516 = vmatpush1.msra.mxu0 0.0
    %4517 = vmatprep.subr.mxu0 0.0
    %4518 = vmatpush1.msra.mxu0 0.0
    %4519 = vmatprep.subr.mxu0 0.0
    %4520 = vmatpush1.msra.mxu0 0.0
    %4521 = vmatprep.subr.mxu0 0.0
    %4522 = vmatpush1.msra.mxu0 0.0
    %4523 = vmatprep.subr.mxu0 0.0
    %4524 = vmatpush1.msra.mxu0 0.0
    %4525 = vmatprep.subr.mxu0 0.0
    %4526 = vmatpush1.msra.mxu0 0.0
    %4527 = vmatprep.subr.mxu0 0.0
    %4528 = vmatpush1.msra.mxu0 0.0
    %4529 = vmatprep.subr.mxu0 0.0
    %4530 = vmatpush1.msra.mxu0 0.0
    %4531 = vmatprep.subr.mxu0 0.0
    %4532 = vmatpush1.msra.mxu0 0.0
    %4533 = vmatprep.subr.mxu0 0.0
    %4534 = vmatpush1.msra.mxu0 0.0
    %4535 = vmatprep.subr.mxu0 0.0
    %4536 = vmatpush1.msra.mxu0 0.0
    %4537 = vmatprep.subr.mxu0 0.0
    %4538 = vmatpush1.msra.mxu0 0.0
    %4539 = vmatprep.subr.mxu0 0.0
    %4540 = vmatpush1.msra.mxu0 0.0
    %4541 = vmatprep.subr.mxu0 0.0
    %4542 = vmatpush1.msra.mxu0 0.0
    %4543 = vmatprep.subr.mxu0 0.0
    %4544 = vmatpush1.msra.mxu0 0.0
    %4545 = vmatprep.subr.mxu0 0.0
    %4546 = vmatpush1.msra.mxu0 0.0
    %4547 = vmatprep.subr.mxu0 0.0
    %4548 = vmatpush1.msra.mxu0 0.0
    %4549 = vmatprep.subr.mxu0 0.0
    %4550 = vmatpush1.msra.mxu0 0.0
    %4551 = vmatprep.subr.mxu0 0.0
    %4552 = vmatpush1.msra.mxu0 0.0
    %4553 = vmatprep.subr.mxu0 0.0
    %4554 = vmatpush1.msra.mxu0 0.0
    %4555 = vmatprep.subr.mxu0 0.0
    %4556 = vmatpush1.msra.mxu0 0.0
    %4557 = vmatprep.subr.mxu0 0.0
    %4558 = vmatpush1.msra.mxu0 0.0
    %4559 = vmatprep.subr.mxu0 0.0
    %4560 = vmatpush1.msra.mxu0 0.0
    %4561 = vmatprep.mubr.f32.mxu0 0.0
    %4562 = vmatmul.mubr.f32.gmra.mrb[0].mxu0 %v4495
    %v4563 = vpop.f32.mrb[0].mxu0
    %v4564 = vadd.f32 0.0, %v4563
    %v4565 = vpop.f32.mrb[0].mxu0
    %4566 = vdwg.mxu0
    %v4567 = vcombine.low %v3469, %v3615
    %v4568 = vcombine.high %v3469, %v3615
    %v4570 = vunpack.c.l.s4 1983009808
    %v4571 = vunpack.c.0.s8 %v4570
    %v4572 = vlaneseq
    %v4573 = vshrl.u32 %v4572, 7
    %v4574 = vsub.s32 %v4571, %v4573
    %v4575 = vrot.slane %v4567, %v4574
    %v4577 = vunpack.c.l.s4 1983009808
    %v4578 = vunpack.c.0.s8 %v4577
    %v4579 = vlaneseq
    %v4580 = vshrl.u32 %v4579, 7
    %v4581 = vsub.s32 %v4578, %v4580
    %v4582 = vrot.slane %v4568, %v4581
    %v4583 = vcombine.low %v3542, %v3688
    %v4584 = vcombine.high %v3542, %v3688
    %v4586 = vunpack.c.l.s4 1983009808
    %v4587 = vunpack.c.0.s8 %v4586
    %v4588 = vlaneseq
    %v4589 = vshrl.u32 %v4588, 7
    %v4590 = vsub.s32 %v4587, %v4589
    %v4591 = vrot.slane %v4583, %v4590
    %v4593 = vunpack.c.l.s4 1983009808
    %v4594 = vunpack.c.0.s8 %v4593
    %v4595 = vlaneseq
    %v4596 = vshrl.u32 %v4595, 7
    %v4597 = vsub.s32 %v4594, %v4596
    %v4598 = vrot.slane %v4584, %v4597
    %v4599 = vcombine.low %v3761, %v3907
    %v4600 = vcombine.high %v3761, %v3907
    %v4602 = vunpack.c.l.s4 1983009808
    %v4603 = vunpack.c.0.s8 %v4602
    %v4604 = vlaneseq
    %v4605 = vshrl.u32 %v4604, 7
    %v4606 = vsub.s32 %v4603, %v4605
    %v4607 = vrot.slane %v4599, %v4606
    %v4609 = vunpack.c.l.s4 1983009808
    %v4610 = vunpack.c.0.s8 %v4609
    %v4611 = vlaneseq
    %v4612 = vshrl.u32 %v4611, 7
    %v4613 = vsub.s32 %v4610, %v4612
    %v4614 = vrot.slane %v4600, %v4613
    %v4615 = vcombine.low %v3834, %v3980
    %v4616 = vcombine.high %v3834, %v3980
    %v4618 = vunpack.c.l.s4 1983009808
    %v4619 = vunpack.c.0.s8 %v4618
    %v4620 = vlaneseq
    %v4621 = vshrl.u32 %v4620, 7
    %v4622 = vsub.s32 %v4619, %v4621
    %v4623 = vrot.slane %v4615, %v4622
    %v4625 = vunpack.c.l.s4 1983009808
    %v4626 = vunpack.c.0.s8 %v4625
    %v4627 = vlaneseq
    %v4628 = vshrl.u32 %v4627, 7
    %v4629 = vsub.s32 %v4626, %v4628
    %v4630 = vrot.slane %v4616, %v4629
    %v4631 = vcombine.low %v4575, %v4591
    %v4632 = vcombine.high %v4575, %v4591
    %v4634 = vunpack.c.l.s4 1934713408
    %v4635 = vunpack.c.0.s8 %v4634
    %v4636 = vlaneseq
    %v4637 = vshrl.u32 %v4636, 7
    %v4638 = vsub.s32 %v4635, %v4637
    %v4639 = vrot.slane %v4631, %v4638
    %v4641 = vunpack.c.l.s4 1934713408
    %v4642 = vunpack.c.0.s8 %v4641
    %v4643 = vlaneseq
    %v4644 = vshrl.u32 %v4643, 7
    %v4645 = vsub.s32 %v4642, %v4644
    %v4646 = vrot.slane %v4632, %v4645
    %v4647 = vcombine.low %v4582, %v4598
    %v4648 = vcombine.high %v4582, %v4598
    %v4650 = vunpack.c.l.s4 1934713408
    %v4651 = vunpack.c.0.s8 %v4650
    %v4652 = vlaneseq
    %v4653 = vshrl.u32 %v4652, 7
    %v4654 = vsub.s32 %v4651, %v4653
    %v4655 = vrot.slane %v4647, %v4654
    %v4657 = vunpack.c.l.s4 1934713408
    %v4658 = vunpack.c.0.s8 %v4657
    %v4659 = vlaneseq
    %v4660 = vshrl.u32 %v4659, 7
    %v4661 = vsub.s32 %v4658, %v4660
    %v4662 = vrot.slane %v4648, %v4661
    %v4663 = vcombine.low %v4607, %v4623
    %v4664 = vcombine.high %v4607, %v4623
    %v4666 = vunpack.c.l.s4 1934713408
    %v4667 = vunpack.c.0.s8 %v4666
    %v4668 = vlaneseq
    %v4669 = vshrl.u32 %v4668, 7
    %v4670 = vsub.s32 %v4667, %v4669
    %v4671 = vrot.slane %v4663, %v4670
    %v4673 = vunpack.c.l.s4 1934713408
    %v4674 = vunpack.c.0.s8 %v4673
    %v4675 = vlaneseq
    %v4676 = vshrl.u32 %v4675, 7
    %v4677 = vsub.s32 %v4674, %v4676
    %v4678 = vrot.slane %v4664, %v4677
    %v4679 = vcombine.low %v4614, %v4630
    %v4680 = vcombine.high %v4614, %v4630
    %v4682 = vunpack.c.l.s4 1934713408
    %v4683 = vunpack.c.0.s8 %v4682
    %v4684 = vlaneseq
    %v4685 = vshrl.u32 %v4684, 7
    %v4686 = vsub.s32 %v4683, %v4685
    %v4687 = vrot.slane %v4679, %v4686
    %v4689 = vunpack.c.l.s4 1934713408
    %v4690 = vunpack.c.0.s8 %v4689
    %v4691 = vlaneseq
    %v4692 = vshrl.u32 %v4691, 7
    %v4693 = vsub.s32 %v4690, %v4692
    %v4694 = vrot.slane %v4680, %v4693
    %v4695 = vcombine.low %v4639, %v4671
    %v4696 = vcombine.high %v4639, %v4671
    %v4697 = vcombine.low %v4646, %v4678
    %v4698 = vcombine.high %v4646, %v4678
    %v4699 = vcombine.low %v4655, %v4687
    %v4700 = vcombine.high %v4655, %v4687
    %v4701 = vcombine.low %v4662, %v4694
    %v4702 = vcombine.high %v4662, %v4694
    %v4703 = vcombine.low %v4053, %v4199
    %v4704 = vcombine.high %v4053, %v4199
    %v4706 = vunpack.c.l.s4 1983009808
    %v4707 = vunpack.c.0.s8 %v4706
    %v4708 = vlaneseq
    %v4709 = vshrl.u32 %v4708, 7
    %v4710 = vsub.s32 %v4707, %v4709
    %v4711 = vrot.slane %v4703, %v4710
    %v4713 = vunpack.c.l.s4 1983009808
    %v4714 = vunpack.c.0.s8 %v4713
    %v4715 = vlaneseq
    %v4716 = vshrl.u32 %v4715, 7
    %v4717 = vsub.s32 %v4714, %v4716
    %v4718 = vrot.slane %v4704, %v4717
    %v4719 = vcombine.low %v4126, %v4272
    %v4720 = vcombine.high %v4126, %v4272
    %v4722 = vunpack.c.l.s4 1983009808
    %v4723 = vunpack.c.0.s8 %v4722
    %v4724 = vlaneseq
    %v4725 = vshrl.u32 %v4724, 7
    %v4726 = vsub.s32 %v4723, %v4725
    %v4727 = vrot.slane %v4719, %v4726
    %v4729 = vunpack.c.l.s4 1983009808
    %v4730 = vunpack.c.0.s8 %v4729
    %v4731 = vlaneseq
    %v4732 = vshrl.u32 %v4731, 7
    %v4733 = vsub.s32 %v4730, %v4732
    %v4734 = vrot.slane %v4720, %v4733
    %v4735 = vcombine.low %v4345, %v4491
    %v4736 = vcombine.high %v4345, %v4491
    %v4738 = vunpack.c.l.s4 1983009808
    %v4739 = vunpack.c.0.s8 %v4738
    %v4740 = vlaneseq
    %v4741 = vshrl.u32 %v4740, 7
    %v4742 = vsub.s32 %v4739, %v4741
    %v4743 = vrot.slane %v4735, %v4742
    %v4745 = vunpack.c.l.s4 1983009808
    %v4746 = vunpack.c.0.s8 %v4745
    %v4747 = vlaneseq
    %v4748 = vshrl.u32 %v4747, 7
    %v4749 = vsub.s32 %v4746, %v4748
    %v4750 = vrot.slane %v4736, %v4749
    %v4751 = vcombine.low %v4418, %v4564
    %v4752 = vcombine.high %v4418, %v4564
    %v4754 = vunpack.c.l.s4 1983009808
    %v4755 = vunpack.c.0.s8 %v4754
    %v4756 = vlaneseq
    %v4757 = vshrl.u32 %v4756, 7
    %v4758 = vsub.s32 %v4755, %v4757
    %v4759 = vrot.slane %v4751, %v4758
    %v4761 = vunpack.c.l.s4 1983009808
    %v4762 = vunpack.c.0.s8 %v4761
    %v4763 = vlaneseq
    %v4764 = vshrl.u32 %v4763, 7
    %v4765 = vsub.s32 %v4762, %v4764
    %v4766 = vrot.slane %v4752, %v4765
    %v4767 = vcombine.low %v4711, %v4727
    %v4768 = vcombine.high %v4711, %v4727
    %v4770 = vunpack.c.l.s4 1934713408
    %v4771 = vunpack.c.0.s8 %v4770
    %v4772 = vlaneseq
    %v4773 = vshrl.u32 %v4772, 7
    %v4774 = vsub.s32 %v4771, %v4773
    %v4775 = vrot.slane %v4767, %v4774
    %v4777 = vunpack.c.l.s4 1934713408
    %v4778 = vunpack.c.0.s8 %v4777
    %v4779 = vlaneseq
    %v4780 = vshrl.u32 %v4779, 7
    %v4781 = vsub.s32 %v4778, %v4780
    %v4782 = vrot.slane %v4768, %v4781
    %v4783 = vcombine.low %v4718, %v4734
    %v4784 = vcombine.high %v4718, %v4734
    %v4786 = vunpack.c.l.s4 1934713408
    %v4787 = vunpack.c.0.s8 %v4786
    %v4788 = vlaneseq
    %v4789 = vshrl.u32 %v4788, 7
    %v4790 = vsub.s32 %v4787, %v4789
    %v4791 = vrot.slane %v4783, %v4790
    %v4793 = vunpack.c.l.s4 1934713408
    %v4794 = vunpack.c.0.s8 %v4793
    %v4795 = vlaneseq
    %v4796 = vshrl.u32 %v4795, 7
    %v4797 = vsub.s32 %v4794, %v4796
    %v4798 = vrot.slane %v4784, %v4797
    %v4799 = vcombine.low %v4743, %v4759
    %v4800 = vcombine.high %v4743, %v4759
    %v4802 = vunpack.c.l.s4 1934713408
    %v4803 = vunpack.c.0.s8 %v4802
    %v4804 = vlaneseq
    %v4805 = vshrl.u32 %v4804, 7
    %v4806 = vsub.s32 %v4803, %v4805
    %v4807 = vrot.slane %v4799, %v4806
    %v4809 = vunpack.c.l.s4 1934713408
    %v4810 = vunpack.c.0.s8 %v4809
    %v4811 = vlaneseq
    %v4812 = vshrl.u32 %v4811, 7
    %v4813 = vsub.s32 %v4810, %v4812
    %v4814 = vrot.slane %v4800, %v4813
    %v4815 = vcombine.low %v4750, %v4766
    %v4816 = vcombine.high %v4750, %v4766
    %v4818 = vunpack.c.l.s4 1934713408
    %v4819 = vunpack.c.0.s8 %v4818
    %v4820 = vlaneseq
    %v4821 = vshrl.u32 %v4820, 7
    %v4822 = vsub.s32 %v4819, %v4821
    %v4823 = vrot.slane %v4815, %v4822
    %v4825 = vunpack.c.l.s4 1934713408
    %v4826 = vunpack.c.0.s8 %v4825
    %v4827 = vlaneseq
    %v4828 = vshrl.u32 %v4827, 7
    %v4829 = vsub.s32 %v4826, %v4828
    %v4830 = vrot.slane %v4816, %v4829
    %v4831 = vcombine.low %v4775, %v4807
    %v4832 = vcombine.high %v4775, %v4807
    %v4833 = vcombine.low %v4782, %v4814
    %v4834 = vcombine.high %v4782, %v4814
    %v4835 = vcombine.low %v4791, %v4823
    %v4836 = vcombine.high %v4791, %v4823
    %v4837 = vcombine.low %v4798, %v4830
    %v4838 = vcombine.high %v4798, %v4830
    %v4839 = vcombine.low %v4695, %v4697
    %v4840 = vcombine.high %v4695, %v4697
    %v4842 = vunpack.c.l.s4 1983009808
    %v4843 = vunpack.c.0.s8 %v4842
    %v4844 = vlaneseq
    %v4845 = vshrl.u32 %v4844, 7
    %v4846 = vsub.s32 %v4843, %v4845
    %v4847 = vrot.slane %v4839, %v4846
    %v4849 = vunpack.c.l.s4 1983009808
    %v4850 = vunpack.c.0.s8 %v4849
    %v4851 = vlaneseq
    %v4852 = vshrl.u32 %v4851, 7
    %v4853 = vsub.s32 %v4850, %v4852
    %v4854 = vrot.slane %v4840, %v4853
    %v4855 = vcombine.low %v4696, %v4698
    %v4856 = vcombine.high %v4696, %v4698
    %v4858 = vunpack.c.l.s4 1983009808
    %v4859 = vunpack.c.0.s8 %v4858
    %v4860 = vlaneseq
    %v4861 = vshrl.u32 %v4860, 7
    %v4862 = vsub.s32 %v4859, %v4861
    %v4863 = vrot.slane %v4855, %v4862
    %v4865 = vunpack.c.l.s4 1983009808
    %v4866 = vunpack.c.0.s8 %v4865
    %v4867 = vlaneseq
    %v4868 = vshrl.u32 %v4867, 7
    %v4869 = vsub.s32 %v4866, %v4868
    %v4870 = vrot.slane %v4856, %v4869
    %v4871 = vcombine.low %v4699, %v4701
    %v4872 = vcombine.high %v4699, %v4701
    %v4874 = vunpack.c.l.s4 1983009808
    %v4875 = vunpack.c.0.s8 %v4874
    %v4876 = vlaneseq
    %v4877 = vshrl.u32 %v4876, 7
    %v4878 = vsub.s32 %v4875, %v4877
    %v4879 = vrot.slane %v4871, %v4878
    %v4881 = vunpack.c.l.s4 1983009808
    %v4882 = vunpack.c.0.s8 %v4881
    %v4883 = vlaneseq
    %v4884 = vshrl.u32 %v4883, 7
    %v4885 = vsub.s32 %v4882, %v4884
    %v4886 = vrot.slane %v4872, %v4885
    %v4887 = vcombine.low %v4700, %v4702
    %v4888 = vcombine.high %v4700, %v4702
    %v4890 = vunpack.c.l.s4 1983009808
    %v4891 = vunpack.c.0.s8 %v4890
    %v4892 = vlaneseq
    %v4893 = vshrl.u32 %v4892, 7
    %v4894 = vsub.s32 %v4891, %v4893
    %v4895 = vrot.slane %v4887, %v4894
    %v4897 = vunpack.c.l.s4 1983009808
    %v4898 = vunpack.c.0.s8 %v4897
    %v4899 = vlaneseq
    %v4900 = vshrl.u32 %v4899, 7
    %v4901 = vsub.s32 %v4898, %v4900
    %v4902 = vrot.slane %v4888, %v4901
    %v4903 = vcombine.low %v4847, %v4863
    %v4904 = vcombine.high %v4847, %v4863
    %v4906 = vunpack.c.l.s4 1934713408
    %v4907 = vunpack.c.0.s8 %v4906
    %v4908 = vlaneseq
    %v4909 = vshrl.u32 %v4908, 7
    %v4910 = vsub.s32 %v4907, %v4909
    %v4911 = vrot.slane %v4903, %v4910
    %v4913 = vunpack.c.l.s4 1934713408
    %v4914 = vunpack.c.0.s8 %v4913
    %v4915 = vlaneseq
    %v4916 = vshrl.u32 %v4915, 7
    %v4917 = vsub.s32 %v4914, %v4916
    %v4918 = vrot.slane %v4904, %v4917
    %v4919 = vcombine.low %v4854, %v4870
    %v4920 = vcombine.high %v4854, %v4870
    %v4922 = vunpack.c.l.s4 1934713408
    %v4923 = vunpack.c.0.s8 %v4922
    %v4924 = vlaneseq
    %v4925 = vshrl.u32 %v4924, 7
    %v4926 = vsub.s32 %v4923, %v4925
    %v4927 = vrot.slane %v4919, %v4926
    %v4929 = vunpack.c.l.s4 1934713408
    %v4930 = vunpack.c.0.s8 %v4929
    %v4931 = vlaneseq
    %v4932 = vshrl.u32 %v4931, 7
    %v4933 = vsub.s32 %v4930, %v4932
    %v4934 = vrot.slane %v4920, %v4933
    %v4935 = vcombine.low %v4879, %v4895
    %v4936 = vcombine.high %v4879, %v4895
    %v4938 = vunpack.c.l.s4 1934713408
    %v4939 = vunpack.c.0.s8 %v4938
    %v4940 = vlaneseq
    %v4941 = vshrl.u32 %v4940, 7
    %v4942 = vsub.s32 %v4939, %v4941
    %v4943 = vrot.slane %v4935, %v4942
    %v4945 = vunpack.c.l.s4 1934713408
    %v4946 = vunpack.c.0.s8 %v4945
    %v4947 = vlaneseq
    %v4948 = vshrl.u32 %v4947, 7
    %v4949 = vsub.s32 %v4946, %v4948
    %v4950 = vrot.slane %v4936, %v4949
    %v4951 = vcombine.low %v4886, %v4902
    %v4952 = vcombine.high %v4886, %v4902
    %v4954 = vunpack.c.l.s4 1934713408
    %v4955 = vunpack.c.0.s8 %v4954
    %v4956 = vlaneseq
    %v4957 = vshrl.u32 %v4956, 7
    %v4958 = vsub.s32 %v4955, %v4957
    %v4959 = vrot.slane %v4951, %v4958
    %v4961 = vunpack.c.l.s4 1934713408
    %v4962 = vunpack.c.0.s8 %v4961
    %v4963 = vlaneseq
    %v4964 = vshrl.u32 %v4963, 7
    %v4965 = vsub.s32 %v4962, %v4964
    %v4966 = vrot.slane %v4952, %v4965
    %v4967 = vcombine.low %v4911, %v4943
    %v4968 = vcombine.high %v4911, %v4943
    %v4969 = vcombine.low %v4918, %v4950
    %v4970 = vcombine.high %v4918, %v4950
    %v4971 = vcombine.low %v4927, %v4959
    %v4972 = vcombine.high %v4927, %v4959
    %v4973 = vcombine.low %v4934, %v4966
    %v4974 = vcombine.high %v4934, %v4966
    %v4975 = vcombine.low %v4831, %v4833
    %v4976 = vcombine.high %v4831, %v4833
    %v4978 = vunpack.c.l.s4 1983009808
    %v4979 = vunpack.c.0.s8 %v4978
    %v4980 = vlaneseq
    %v4981 = vshrl.u32 %v4980, 7
    %v4982 = vsub.s32 %v4979, %v4981
    %v4983 = vrot.slane %v4975, %v4982
    %v4985 = vunpack.c.l.s4 1983009808
    %v4986 = vunpack.c.0.s8 %v4985
    %v4987 = vlaneseq
    %v4988 = vshrl.u32 %v4987, 7
    %v4989 = vsub.s32 %v4986, %v4988
    %v4990 = vrot.slane %v4976, %v4989
    %v4991 = vcombine.low %v4832, %v4834
    %v4992 = vcombine.high %v4832, %v4834
    %v4994 = vunpack.c.l.s4 1983009808
    %v4995 = vunpack.c.0.s8 %v4994
    %v4996 = vlaneseq
    %v4997 = vshrl.u32 %v4996, 7
    %v4998 = vsub.s32 %v4995, %v4997
    %v4999 = vrot.slane %v4991, %v4998
    %v5001 = vunpack.c.l.s4 1983009808
    %v5002 = vunpack.c.0.s8 %v5001
    %v5003 = vlaneseq
    %v5004 = vshrl.u32 %v5003, 7
    %v5005 = vsub.s32 %v5002, %v5004
    %v5006 = vrot.slane %v4992, %v5005
    %v5007 = vcombine.low %v4835, %v4837
    %v5008 = vcombine.high %v4835, %v4837
    %v5010 = vunpack.c.l.s4 1983009808
    %v5011 = vunpack.c.0.s8 %v5010
    %v5012 = vlaneseq
    %v5013 = vshrl.u32 %v5012, 7
    %v5014 = vsub.s32 %v5011, %v5013
    %v5015 = vrot.slane %v5007, %v5014
    %v5017 = vunpack.c.l.s4 1983009808
    %v5018 = vunpack.c.0.s8 %v5017
    %v5019 = vlaneseq
    %v5020 = vshrl.u32 %v5019, 7
    %v5021 = vsub.s32 %v5018, %v5020
    %v5022 = vrot.slane %v5008, %v5021
    %v5023 = vcombine.low %v4836, %v4838
    %v5024 = vcombine.high %v4836, %v4838
    %v5026 = vunpack.c.l.s4 1983009808
    %v5027 = vunpack.c.0.s8 %v5026
    %v5028 = vlaneseq
    %v5029 = vshrl.u32 %v5028, 7
    %v5030 = vsub.s32 %v5027, %v5029
    %v5031 = vrot.slane %v5023, %v5030
    %v5033 = vunpack.c.l.s4 1983009808
    %v5034 = vunpack.c.0.s8 %v5033
    %v5035 = vlaneseq
    %v5036 = vshrl.u32 %v5035, 7
    %v5037 = vsub.s32 %v5034, %v5036
    %v5038 = vrot.slane %v5024, %v5037
    %v5039 = vcombine.low %v4983, %v4999
    %v5040 = vcombine.high %v4983, %v4999
    %v5042 = vunpack.c.l.s4 1934713408
    %v5043 = vunpack.c.0.s8 %v5042
    %v5044 = vlaneseq
    %v5045 = vshrl.u32 %v5044, 7
    %v5046 = vsub.s32 %v5043, %v5045
    %v5047 = vrot.slane %v5039, %v5046
    %v5049 = vunpack.c.l.s4 1934713408
    %v5050 = vunpack.c.0.s8 %v5049
    %v5051 = vlaneseq
    %v5052 = vshrl.u32 %v5051, 7
    %v5053 = vsub.s32 %v5050, %v5052
    %v5054 = vrot.slane %v5040, %v5053
    %v5055 = vcombine.low %v4990, %v5006
    %v5056 = vcombine.high %v4990, %v5006
    %v5058 = vunpack.c.l.s4 1934713408
    %v5059 = vunpack.c.0.s8 %v5058
    %v5060 = vlaneseq
    %v5061 = vshrl.u32 %v5060, 7
    %v5062 = vsub.s32 %v5059, %v5061
    %v5063 = vrot.slane %v5055, %v5062
    %v5065 = vunpack.c.l.s4 1934713408
    %v5066 = vunpack.c.0.s8 %v5065
    %v5067 = vlaneseq
    %v5068 = vshrl.u32 %v5067, 7
    %v5069 = vsub.s32 %v5066, %v5068
    %v5070 = vrot.slane %v5056, %v5069
    %v5071 = vcombine.low %v5015, %v5031
    %v5072 = vcombine.high %v5015, %v5031
    %v5074 = vunpack.c.l.s4 1934713408
    %v5075 = vunpack.c.0.s8 %v5074
    %v5076 = vlaneseq
    %v5077 = vshrl.u32 %v5076, 7
    %v5078 = vsub.s32 %v5075, %v5077
    %v5079 = vrot.slane %v5071, %v5078
    %v5081 = vunpack.c.l.s4 1934713408
    %v5082 = vunpack.c.0.s8 %v5081
    %v5083 = vlaneseq
    %v5084 = vshrl.u32 %v5083, 7
    %v5085 = vsub.s32 %v5082, %v5084
    %v5086 = vrot.slane %v5072, %v5085
    %v5087 = vcombine.low %v5022, %v5038
    %v5088 = vcombine.high %v5022, %v5038
    %v5090 = vunpack.c.l.s4 1934713408
    %v5091 = vunpack.c.0.s8 %v5090
    %v5092 = vlaneseq
    %v5093 = vshrl.u32 %v5092, 7
    %v5094 = vsub.s32 %v5091, %v5093
    %v5095 = vrot.slane %v5087, %v5094
    %v5097 = vunpack.c.l.s4 1934713408
    %v5098 = vunpack.c.0.s8 %v5097
    %v5099 = vlaneseq
    %v5100 = vshrl.u32 %v5099, 7
    %v5101 = vsub.s32 %v5098, %v5100
    %v5102 = vrot.slane %v5088, %v5101
    %v5103 = vcombine.low %v5047, %v5079
    %v5104 = vcombine.high %v5047, %v5079
    %v5105 = vcombine.low %v5054, %v5086
    %v5106 = vcombine.high %v5054, %v5086
    %v5107 = vcombine.low %v5063, %v5095
    %v5108 = vcombine.high %v5063, %v5095
    %v5109 = vcombine.low %v5070, %v5102
    %v5110 = vcombine.high %v5070, %v5102
    %5113 = vrot.lane.b32.xlu0 %v4968, 4
    %v5114 = vpop.permute.xlu0 %5113
    %5115 = vrot.lane.b32.xlu0 %v5104, 4
    %v5116 = vpop.permute.xlu0 %5115
    %5121 = vrot.lane.b32.xlu0 %v4969, 8
    %v5122 = vpop.permute.xlu0 %5121
    %5123 = vrot.lane.b32.xlu0 %v5105, 8
    %v5124 = vpop.permute.xlu0 %5123
    %5129 = vrot.lane.b32.xlu0 %v4970, 12
    %v5130 = vpop.permute.xlu0 %5129
    %5131 = vrot.lane.b32.xlu0 %v5106, 12
    %v5132 = vpop.permute.xlu0 %5131
    %5137 = vrot.lane.b32.xlu0 %v4971, 16
    %v5138 = vpop.permute.xlu0 %5137
    %5139 = vrot.lane.b32.xlu0 %v5107, 16
    %v5140 = vpop.permute.xlu0 %5139
    %5145 = vrot.lane.b32.xlu0 %v4972, 20
    %v5146 = vpop.permute.xlu0 %5145
    %5147 = vrot.lane.b32.xlu0 %v5108, 20
    %v5148 = vpop.permute.xlu0 %5147
    %5153 = vrot.lane.b32.xlu0 %v4973, 24
    %v5154 = vpop.permute.xlu0 %5153
    %5155 = vrot.lane.b32.xlu0 %v5109, 24
    %v5156 = vpop.permute.xlu0 %5155
    %5161 = vrot.lane.b32.xlu0 %v4974, 28
    %v5162 = vpop.permute.xlu0 %5161
    %5163 = vrot.lane.b32.xlu0 %v5110, 28
    %v5164 = vpop.permute.xlu0 %5163
    %v5167 = vsel %vm2005, %v4967, %v5114
    %v5168 = vsel %vm2005, %v5103, %v5116
    %v5169 = vsel %vm3222, %v5167, %v5122
    %v5170 = vsel %vm3222, %v5168, %v5124
    %vm5171 = vcmask 97280
    %v5172 = vsel %vm5171, %v5169, %v5130
    %v5173 = vsel %vm5171, %v5170, %v5132
    %vm5174 = vcmask 130048
    %v5175 = vsel %vm5174, %v5172, %v5138
    %v5176 = vsel %vm5174, %v5173, %v5140
    %vm5177 = vcmask 162816
    %v5178 = vsel %vm5177, %v5175, %v5146
    %v5179 = vsel %vm5177, %v5176, %v5148
    %vm5180 = vcmask 195584
    %v5181 = vsel %vm5180, %v5178, %v5154
    %v5182 = vsel %vm5180, %v5179, %v5156
    %vm5183 = vcmask 228352
    %v5184 = vsel %vm5183, %v5181, %v5162
    %v5185 = vsel %vm5183, %v5182, %v5164
    %v5186 = vld [vmem:[%s7] sm:$0xff]
    %v5187 = vld [vmem:[%s7 + $0x8] sm:$0xff]
    %v5188 = vld [vmem:[%s7 + $0x10] sm:$0xff]
    %v5189 = vld [vmem:[%s7 + $0x18] sm:$0xff]
    %v5190 = vld [vmem:[%s8] sm:$0x1]
    %v5192 = vlaneseq
    %v5193 = vshrl.u32 %v5192, 7
    %v5194 = vsub.s32 0, %v5193
    %v5195 = vrot.slane %v5190, %v5194
    %v5198 = vsel %vm104, %v5184, 0
    %v5201 = vsel %vm104, %v5185, 0
    %5203 = vmatprep.subr.mxu0 0.0
    %5204 = vmatpush1.msra.mxu0 %v5186
    %5205 = vmatprep.subr.mxu0 0.0
    %5206 = vmatpush1.msra.mxu0 %v5187
    %5207 = vmatprep.subr.mxu0 0.0
    %5208 = vmatpush1.msra.mxu0 %v5188
    %5209 = vmatprep.subr.mxu0 0.0
    %5210 = vmatpush1.msra.mxu0 %v5189
    %5211 = vmatprep.subr.mxu0 0.0
    %5212 = vmatpush1.msra.mxu0 0.0
    %5213 = vmatprep.subr.mxu0 0.0
    %5214 = vmatpush1.msra.mxu0 0.0
    %5215 = vmatprep.subr.mxu0 0.0
    %5216 = vmatpush1.msra.mxu0 0.0
    %5217 = vmatprep.subr.mxu0 0.0
    %5218 = vmatpush1.msra.mxu0 0.0
    %5219 = vmatprep.subr.mxu0 0.0
    %5220 = vmatpush1.msra.mxu0 0.0
    %5221 = vmatprep.subr.mxu0 0.0
    %5222 = vmatpush1.msra.mxu0 0.0
    %5223 = vmatprep.subr.mxu0 0.0
    %5224 = vmatpush1.msra.mxu0 0.0
    %5225 = vmatprep.subr.mxu0 0.0
    %5226 = vmatpush1.msra.mxu0 0.0
    %5227 = vmatprep.subr.mxu0 0.0
    %5228 = vmatpush1.msra.mxu0 0.0
    %5229 = vmatprep.subr.mxu0 0.0
    %5230 = vmatpush1.msra.mxu0 0.0
    %5231 = vmatprep.subr.mxu0 0.0
    %5232 = vmatpush1.msra.mxu0 0.0
    %5233 = vmatprep.subr.mxu0 0.0
    %5234 = vmatpush1.msra.mxu0 0.0
    %5235 = vmatprep.subr.mxu0 0.0
    %5236 = vmatpush1.msra.mxu0 0.0
    %5237 = vmatprep.subr.mxu0 0.0
    %5238 = vmatpush1.msra.mxu0 0.0
    %5239 = vmatprep.subr.mxu0 0.0
    %5240 = vmatpush1.msra.mxu0 0.0
    %5241 = vmatprep.subr.mxu0 0.0
    %5242 = vmatpush1.msra.mxu0 0.0
    %5243 = vmatprep.subr.mxu0 0.0
    %5244 = vmatpush1.msra.mxu0 0.0
    %5245 = vmatprep.subr.mxu0 0.0
    %5246 = vmatpush1.msra.mxu0 0.0
    %5247 = vmatprep.subr.mxu0 0.0
    %5248 = vmatpush1.msra.mxu0 0.0
    %5249 = vmatprep.subr.mxu0 0.0
    %5250 = vmatpush1.msra.mxu0 0.0
    %5251 = vmatprep.subr.mxu0 0.0
    %5252 = vmatpush1.msra.mxu0 0.0
    %5253 = vmatprep.subr.mxu0 0.0
    %5254 = vmatpush1.msra.mxu0 0.0
    %5255 = vmatprep.subr.mxu0 0.0
    %5256 = vmatpush1.msra.mxu0 0.0
    %5257 = vmatprep.subr.mxu0 0.0
    %5258 = vmatpush1.msra.mxu0 0.0
    %5259 = vmatprep.subr.mxu0 0.0
    %5260 = vmatpush1.msra.mxu0 0.0
    %5261 = vmatprep.subr.mxu0 0.0
    %5262 = vmatpush1.msra.mxu0 0.0
    %5263 = vmatprep.subr.mxu0 0.0
    %5264 = vmatpush1.msra.mxu0 0.0
    %5265 = vmatprep.subr.mxu0 0.0
    %5266 = vmatpush1.msra.mxu0 0.0
    %5267 = vmatprep.mubr.f32.mxu0 0.0
    %5268 = vmatmul.mubr.f32.gmra.mrb[0].mxu0 %v5198
    %v5269 = vpop.f32.mrb[0].mxu0
    %v5270 = vadd.f32 %v5195, %v5269
    %v5271 = vpop.f32.mrb[0].mxu0
    %5272 = vmatprep.mubr.f32.mxu0 0.0
    %5273 = vmatmul.mubr.f32.gmra.mrb[0].mxu0 %v5201
    %v5274 = vpop.f32.mrb[0].mxu0
    %v5275 = vadd.f32 %v5195, %v5274
    %v5276 = vpop.f32.mrb[0].mxu0
    %5277 = vdwg.mxu0
    %v5278 = vadd.f32 %v98, %v5270
    %v5279 = vadd.f32 %v99, %v5275
    %v5280 = vld [vmem:[%s4] sm:$0x1]
    %v5281 = vld [vmem:[%s5] sm:$0x1]
    %v5282 = vsel %vm104, %v5278, 0.0
    %5283 = vadd.xlane.f32.xlu0 %v5282
    %v5284 = vpop.xlane.xlu0 %5283
    %v5285 = vsel %vm104, %v5279, 0.0
    %5286 = vadd.xlane.f32.xlu0 %v5285
    %v5287 = vpop.xlane.xlu0 %5286
    %v5288 = vmul.f32 %v5284, %v111
    %v5289 = vmul.f32 %v5287, %v111
    %v5290 = vsub.f32 %v5278, %v5288
    %v5291 = vsub.f32 %v5279, %v5289
    %v5292 = vmul.f32 %v5290, %v5290
    %v5293 = vmul.f32 %v5291, %v5291
    %v5294 = vsel %vm104, %v5292, 0.0
    %5295 = vadd.xlane.f32.xlu0 %v5294
    %v5296 = vpop.xlane.xlu0 %5295
    %v5297 = vsel %vm104, %v5293, 0.0
    %5298 = vadd.xlane.f32.xlu0 %v5297
    %v5299 = vpop.xlane.xlu0 %5298
    %v5300 = vmul.f32 %v5296, %v111
    %v5301 = vmul.f32 %v5299, %v111
    %v5302 = vadd.f32 %v5300, 1e-05
    %v5303 = vadd.f32 %v5301, 1e-05
    %v5304 = vrsqrt.pop %v5302
    %v5305 = vrsqrt.pop %v5303
    %v5306 = vmul.f32 %v5290, %v5304
    %v5307 = vmul.f32 %v5291, %v5305
    %v5309 = vlaneseq
    %v5310 = vshrl.u32 %v5309, 7
    %v5311 = vsub.s32 0, %v5310
    %v5312 = vrot.slane %v5280, %v5311
    %v5314 = vmul.f32 %v5306, %v5312
    %v5315 = vmul.f32 %v5307, %v5312
    %v5317 = vlaneseq
    %v5318 = vshrl.u32 %v5317, 7
    %v5319 = vsub.s32 0, %v5318
    %v5320 = vrot.slane %v5281, %v5319
    %v5322 = vadd.f32 %v5314, %v5320
    %v5323 = vadd.f32 %v5315, %v5320
    %v5324 = vld [vmem:[%s9] sm:$0xff]
    %v5325 = vld [vmem:[%s9 + $0x8] sm:$0xff]
    %v5326 = vld [vmem:[%s9 + $0x10] sm:$0xff]
    %v5327 = vld [vmem:[%s9 + $0x18] sm:$0xff]
    %v5329 = vsel %vm104, %v5322, 0
    %v5332 = vsel %vm104, %v5323, 0
    %5334 = vmatprep.subr.mxu0 0.0
    %5335 = vmatpush1.msra.mxu0 %v5324
    %5336 = vmatprep.subr.mxu0 0.0
    %5337 = vmatpush1.msra.mxu0 %v5325
    %5338 = vmatprep.subr.mxu0 0.0
    %5339 = vmatpush1.msra.mxu0 %v5326
    %5340 = vmatprep.subr.mxu0 0.0
    %5341 = vmatpush1.msra.mxu0 %v5327
    %5342 = vmatprep.subr.mxu0 0.0
    %5343 = vmatpush1.msra.mxu0 0.0
    %5344 = vmatprep.subr.mxu0 0.0
    %5345 = vmatpush1.msra.mxu0 0.0
    %5346 = vmatprep.subr.mxu0 0.0
    %5347 = vmatpush1.msra.mxu0 0.0
    %5348 = vmatprep.subr.mxu0 0.0
    %5349 = vmatpush1.msra.mxu0 0.0
    %5350 = vmatprep.subr.mxu0 0.0
    %5351 = vmatpush1.msra.mxu0 0.0
    %5352 = vmatprep.subr.mxu0 0.0
    %5353 = vmatpush1.msra.mxu0 0.0
    %5354 = vmatprep.subr.mxu0 0.0
    %5355 = vmatpush1.msra.mxu0 0.0
    %5356 = vmatprep.subr.mxu0 0.0
    %5357 = vmatpush1.msra.mxu0 0.0
    %5358 = vmatprep.subr.mxu0 0.0
    %5359 = vmatpush1.msra.mxu0 0.0
    %5360 = vmatprep.subr.mxu0 0.0
    %5361 = vmatpush1.msra.mxu0 0.0
    %5362 = vmatprep.subr.mxu0 0.0
    %5363 = vmatpush1.msra.mxu0 0.0
    %5364 = vmatprep.subr.mxu0 0.0
    %5365 = vmatpush1.msra.mxu0 0.0
    %5366 = vmatprep.subr.mxu0 0.0
    %5367 = vmatpush1.msra.mxu0 0.0
    %5368 = vmatprep.subr.mxu0 0.0
    %5369 = vmatpush1.msra.mxu0 0.0
    %5370 = vmatprep.subr.mxu0 0.0
    %5371 = vmatpush1.msra.mxu0 0.0
    %5372 = vmatprep.subr.mxu0 0.0
    %5373 = vmatpush1.msra.mxu0 0.0
    %5374 = vmatprep.subr.mxu0 0.0
    %5375 = vmatpush1.msra.mxu0 0.0
    %5376 = vmatprep.subr.mxu0 0.0
    %5377 = vmatpush1.msra.mxu0 0.0
    %5378 = vmatprep.subr.mxu0 0.0
    %5379 = vmatpush1.msra.mxu0 0.0
    %5380 = vmatprep.subr.mxu0 0.0
    %5381 = vmatpush1.msra.mxu0 0.0
    %5382 = vmatprep.subr.mxu0 0.0
    %5383 = vmatpush1.msra.mxu0 0.0
    %5384 = vmatprep.subr.mxu0 0.0
    %5385 = vmatpush1.msra.mxu0 0.0
    %5386 = vmatprep.subr.mxu0 0.0
    %5387 = vmatpush1.msra.mxu0 0.0
    %5388 = vmatprep.subr.mxu0 0.0
    %5389 = vmatpush1.msra.mxu0 0.0
    %5390 = vmatprep.subr.mxu0 0.0
    %5391 = vmatpush1.msra.mxu0 0.0
    %5392 = vmatprep.subr.mxu0 0.0
    %5393 = vmatpush1.msra.mxu0 0.0
    %5394 = vmatprep.subr.mxu0 0.0
    %5395 = vmatpush1.msra.mxu0 0.0
    %5396 = vmatprep.subr.mxu0 0.0
    %5397 = vmatpush1.msra.mxu0 0.0
    %5398 = vmatprep.mubr.f32.mxu0 0.0
    %5399 = vmatmul.mubr.f32.gmra.mrb[0].mxu0 %v5329
    %v5400 = vpop.f32.mrb[0].mxu0
    %v5401 = vadd.f32 0.0, %v5400
    %v5402 = vpop.f32.mrb[0].mxu0
    %5403 = vmatprep.mubr.f32.mxu0 0.0
    %5404 = vmatmul.mubr.f32.gmra.mrb[0].mxu0 %v5332
    %v5405 = vpop.f32.mrb[0].mxu0
    %v5406 = vadd.f32 0.0, %v5405
    %v5407 = vpop.f32.mrb[0].mxu0
    %5408 = vdwg.mxu0
    %v5409 = vld [vmem:[%s10] sm:$0xff]
    %v5410 = vld [vmem:[%s10 + $0x8] sm:$0xff]
    %v5411 = vld [vmem:[%s10 + $0x10] sm:$0xff]
    %v5412 = vld [vmem:[%s10 + $0x18] sm:$0xff]
    %v5414 = vsel %vm104, %v100, 0
    %v5417 = vsel %vm104, %v101, 0
    %5419 = vmatprep.subr.mxu0 0.0
    %5420 = vmatpush1.msra.mxu0 %v5409
    %5421 = vmatprep.subr.mxu0 0.0
    %5422 = vmatpush1.msra.mxu0 %v5410
    %5423 = vmatprep.subr.mxu0 0.0
    %5424 = vmatpush1.msra.mxu0 %v5411
    %5425 = vmatprep.subr.mxu0 0.0
    %5426 = vmatpush1.msra.mxu0 %v5412
    %5427 = vmatprep.subr.mxu0 0.0
    %5428 = vmatpush1.msra.mxu0 0.0
    %5429 = vmatprep.subr.mxu0 0.0
    %5430 = vmatpush1.msra.mxu0 0.0
    %5431 = vmatprep.subr.mxu0 0.0
    %5432 = vmatpush1.msra.mxu0 0.0
    %5433 = vmatprep.subr.mxu0 0.0
    %5434 = vmatpush1.msra.mxu0 0.0
    %5435 = vmatprep.subr.mxu0 0.0
    %5436 = vmatpush1.msra.mxu0 0.0
    %5437 = vmatprep.subr.mxu0 0.0
    %5438 = vmatpush1.msra.mxu0 0.0
    %5439 = vmatprep.subr.mxu0 0.0
    %5440 = vmatpush1.msra.mxu0 0.0
    %5441 = vmatprep.subr.mxu0 0.0
    %5442 = vmatpush1.msra.mxu0 0.0
    %5443 = vmatprep.subr.mxu0 0.0
    %5444 = vmatpush1.msra.mxu0 0.0
    %5445 = vmatprep.subr.mxu0 0.0
    %5446 = vmatpush1.msra.mxu0 0.0
    %5447 = vmatprep.subr.mxu0 0.0
    %5448 = vmatpush1.msra.mxu0 0.0
    %5449 = vmatprep.subr.mxu0 0.0
    %5450 = vmatpush1.msra.mxu0 0.0
    %5451 = vmatprep.subr.mxu0 0.0
    %5452 = vmatpush1.msra.mxu0 0.0
    %5453 = vmatprep.subr.mxu0 0.0
    %5454 = vmatpush1.msra.mxu0 0.0
    %5455 = vmatprep.subr.mxu0 0.0
    %5456 = vmatpush1.msra.mxu0 0.0
    %5457 = vmatprep.subr.mxu0 0.0
    %5458 = vmatpush1.msra.mxu0 0.0
    %5459 = vmatprep.subr.mxu0 0.0
    %5460 = vmatpush1.msra.mxu0 0.0
    %5461 = vmatprep.subr.mxu0 0.0
    %5462 = vmatpush1.msra.mxu0 0.0
    %5463 = vmatprep.subr.mxu0 0.0
    %5464 = vmatpush1.msra.mxu0 0.0
    %5465 = vmatprep.subr.mxu0 0.0
    %5466 = vmatpush1.msra.mxu0 0.0
    %5467 = vmatprep.subr.mxu0 0.0
    %5468 = vmatpush1.msra.mxu0 0.0
    %5469 = vmatprep.subr.mxu0 0.0
    %5470 = vmatpush1.msra.mxu0 0.0
    %5471 = vmatprep.subr.mxu0 0.0
    %5472 = vmatpush1.msra.mxu0 0.0
    %5473 = vmatprep.subr.mxu0 0.0
    %5474 = vmatpush1.msra.mxu0 0.0
    %5475 = vmatprep.subr.mxu0 0.0
    %5476 = vmatpush1.msra.mxu0 0.0
    %5477 = vmatprep.subr.mxu0 0.0
    %5478 = vmatpush1.msra.mxu0 0.0
    %5479 = vmatprep.subr.mxu0 0.0
    %5480 = vmatpush1.msra.mxu0 0.0
    %5481 = vmatprep.subr.mxu0 0.0
    %5482 = vmatpush1.msra.mxu0 0.0
    %5483 = vmatprep.mubr.f32.mxu0 0.0
    %5484 = vmatmul.mubr.f32.gmra.mrb[0].mxu0 %v5414
    %v5485 = vpop.f32.mrb[0].mxu0
    %v5486 = vadd.f32 0.0, %v5485
    %v5487 = vpop.f32.mrb[0].mxu0
    %5488 = vmatprep.mubr.f32.mxu0 0.0
    %5489 = vmatmul.mubr.f32.gmra.mrb[0].mxu0 %v5417
    %v5490 = vpop.f32.mrb[0].mxu0
    %v5491 = vadd.f32 0.0, %v5490
    %v5492 = vpop.f32.mrb[0].mxu0
    %5493 = vdwg.mxu0
    %5496 = vrot.lane.b32.xlu0 %v5401, 124
    %v5497 = vpop.permute.xlu0 %5496
    %5498 = vrot.lane.b32.xlu0 %v5406, 124
    %v5499 = vpop.permute.xlu0 %5498
    %5502 = vrot.lane.b32.xlu0 %v5401, 120
    %v5503 = vpop.permute.xlu0 %5502
    %5504 = vrot.lane.b32.xlu0 %v5406, 120
    %v5505 = vpop.permute.xlu0 %5504
    %5508 = vrot.lane.b32.xlu0 %v5401, 116
    %v5509 = vpop.permute.xlu0 %5508
    %5510 = vrot.lane.b32.xlu0 %v5406, 116
    %v5511 = vpop.permute.xlu0 %5510
    %5514 = vrot.lane.b32.xlu0 %v5401, 112
    %v5515 = vpop.permute.xlu0 %5514
    %5516 = vrot.lane.b32.xlu0 %v5406, 112
    %v5517 = vpop.permute.xlu0 %5516
    %5520 = vrot.lane.b32.xlu0 %v5401, 108
    %v5521 = vpop.permute.xlu0 %5520
    %5522 = vrot.lane.b32.xlu0 %v5406, 108
    %v5523 = vpop.permute.xlu0 %5522
    %5526 = vrot.lane.b32.xlu0 %v5401, 104
    %v5527 = vpop.permute.xlu0 %5526
    %5528 = vrot.lane.b32.xlu0 %v5406, 104
    %v5529 = vpop.permute.xlu0 %5528
    %5532 = vrot.lane.b32.xlu0 %v5401, 100
    %v5533 = vpop.permute.xlu0 %5532
    %5534 = vrot.lane.b32.xlu0 %v5406, 100
    %v5535 = vpop.permute.xlu0 %5534
    %v5538 = vcombine.low %v5401, %v5503
    %v5539 = vcombine.high %v5401, %v5503
    %v5541 = vunpack.c.l.s4 1983009808
    %v5542 = vunpack.c.0.s8 %v5541
    %v5543 = vlaneseq
    %v5544 = vshrl.u32 %v5543, 7
    %v5545 = vsub.s32 %v5542, %v5544
    %v5546 = vrot.slane %v5538, %v5545
    %v5548 = vunpack.c.l.s4 1983009808
    %v5549 = vunpack.c.0.s8 %v5548
    %v5550 = vlaneseq
    %v5551 = vshrl.u32 %v5550, 7
    %v5552 = vsub.s32 %v5549, %v5551
    %v5553 = vrot.slane %v5539, %v5552
    %v5554 = vcombine.low %v5497, %v5509
    %v5555 = vcombine.high %v5497, %v5509
    %v5557 = vunpack.c.l.s4 1983009808
    %v5558 = vunpack.c.0.s8 %v5557
    %v5559 = vlaneseq
    %v5560 = vshrl.u32 %v5559, 7
    %v5561 = vsub.s32 %v5558, %v5560
    %v5562 = vrot.slane %v5554, %v5561
    %v5564 = vunpack.c.l.s4 1983009808
    %v5565 = vunpack.c.0.s8 %v5564
    %v5566 = vlaneseq
    %v5567 = vshrl.u32 %v5566, 7
    %v5568 = vsub.s32 %v5565, %v5567
    %v5569 = vrot.slane %v5555, %v5568
    %v5570 = vcombine.low %v5515, %v5527
    %v5571 = vcombine.high %v5515, %v5527
    %v5573 = vunpack.c.l.s4 1983009808
    %v5574 = vunpack.c.0.s8 %v5573
    %v5575 = vlaneseq
    %v5576 = vshrl.u32 %v5575, 7
    %v5577 = vsub.s32 %v5574, %v5576
    %v5578 = vrot.slane %v5570, %v5577
    %v5580 = vunpack.c.l.s4 1983009808
    %v5581 = vunpack.c.0.s8 %v5580
    %v5582 = vlaneseq
    %v5583 = vshrl.u32 %v5582, 7
    %v5584 = vsub.s32 %v5581, %v5583
    %v5585 = vrot.slane %v5571, %v5584
    %v5586 = vcombine.low %v5521, %v5533
    %v5587 = vcombine.high %v5521, %v5533
    %v5589 = vunpack.c.l.s4 1983009808
    %v5590 = vunpack.c.0.s8 %v5589
    %v5591 = vlaneseq
    %v5592 = vshrl.u32 %v5591, 7
    %v5593 = vsub.s32 %v5590, %v5592
    %v5594 = vrot.slane %v5586, %v5593
    %v5596 = vunpack.c.l.s4 1983009808
    %v5597 = vunpack.c.0.s8 %v5596
    %v5598 = vlaneseq
    %v5599 = vshrl.u32 %v5598, 7
    %v5600 = vsub.s32 %v5597, %v5599
    %v5601 = vrot.slane %v5587, %v5600
    %v5602 = vcombine.low %v5546, %v5562
    %v5603 = vcombine.high %v5546, %v5562
    %v5605 = vunpack.c.l.s4 1934713408
    %v5606 = vunpack.c.0.s8 %v5605
    %v5607 = vlaneseq
    %v5608 = vshrl.u32 %v5607, 7
    %v5609 = vsub.s32 %v5606, %v5608
    %v5610 = vrot.slane %v5602, %v5609
    %v5612 = vunpack.c.l.s4 1934713408
    %v5613 = vunpack.c.0.s8 %v5612
    %v5614 = vlaneseq
    %v5615 = vshrl.u32 %v5614, 7
    %v5616 = vsub.s32 %v5613, %v5615
    %v5617 = vrot.slane %v5603, %v5616
    %v5618 = vcombine.low %v5553, %v5569
    %v5619 = vcombine.high %v5553, %v5569
    %v5621 = vunpack.c.l.s4 1934713408
    %v5622 = vunpack.c.0.s8 %v5621
    %v5623 = vlaneseq
    %v5624 = vshrl.u32 %v5623, 7
    %v5625 = vsub.s32 %v5622, %v5624
    %v5626 = vrot.slane %v5618, %v5625
    %v5628 = vunpack.c.l.s4 1934713408
    %v5629 = vunpack.c.0.s8 %v5628
    %v5630 = vlaneseq
    %v5631 = vshrl.u32 %v5630, 7
    %v5632 = vsub.s32 %v5629, %v5631
    %v5633 = vrot.slane %v5619, %v5632
    %v5634 = vcombine.low %v5578, %v5594
    %v5635 = vcombine.high %v5578, %v5594
    %v5637 = vunpack.c.l.s4 1934713408
    %v5638 = vunpack.c.0.s8 %v5637
    %v5639 = vlaneseq
    %v5640 = vshrl.u32 %v5639, 7
    %v5641 = vsub.s32 %v5638, %v5640
    %v5642 = vrot.slane %v5634, %v5641
    %v5644 = vunpack.c.l.s4 1934713408
    %v5645 = vunpack.c.0.s8 %v5644
    %v5646 = vlaneseq
    %v5647 = vshrl.u32 %v5646, 7
    %v5648 = vsub.s32 %v5645, %v5647
    %v5649 = vrot.slane %v5635, %v5648
    %v5650 = vcombine.low %v5585, %v5601
    %v5651 = vcombine.high %v5585, %v5601
    %v5653 = vunpack.c.l.s4 1934713408
    %v5654 = vunpack.c.0.s8 %v5653
    %v5655 = vlaneseq
    %v5656 = vshrl.u32 %v5655, 7
    %v5657 = vsub.s32 %v5654, %v5656
    %v5658 = vrot.slane %v5650, %v5657
    %v5660 = vunpack.c.l.s4 1934713408
    %v5661 = vunpack.c.0.s8 %v5660
    %v5662 = vlaneseq
    %v5663 = vshrl.u32 %v5662, 7
    %v5664 = vsub.s32 %v5661, %v5663
    %v5665 = vrot.slane %v5651, %v5664
    %v5666 = vcombine.low %v5610, %v5642
    %v5667 = vcombine.high %v5610, %v5642
    %v5668 = vcombine.low %v5617, %v5649
    %v5669 = vcombine.high %v5617, %v5649
    %v5670 = vcombine.low %v5626, %v5658
    %v5671 = vcombine.high %v5626, %v5658
    %v5672 = vcombine.low %v5633, %v5665
    %v5673 = vcombine.high %v5633, %v5665
    %v5674 = vcombine.low %v5406, %v5505
    %v5675 = vcombine.high %v5406, %v5505
    %v5677 = vunpack.c.l.s4 1983009808
    %v5678 = vunpack.c.0.s8 %v5677
    %v5679 = vlaneseq
    %v5680 = vshrl.u32 %v5679, 7
    %v5681 = vsub.s32 %v5678, %v5680
    %v5682 = vrot.slane %v5674, %v5681
    %v5684 = vunpack.c.l.s4 1983009808
    %v5685 = vunpack.c.0.s8 %v5684
    %v5686 = vlaneseq
    %v5687 = vshrl.u32 %v5686, 7
    %v5688 = vsub.s32 %v5685, %v5687
    %v5689 = vrot.slane %v5675, %v5688
    %v5690 = vcombine.low %v5499, %v5511
    %v5691 = vcombine.high %v5499, %v5511
    %v5693 = vunpack.c.l.s4 1983009808
    %v5694 = vunpack.c.0.s8 %v5693
    %v5695 = vlaneseq
    %v5696 = vshrl.u32 %v5695, 7
    %v5697 = vsub.s32 %v5694, %v5696
    %v5698 = vrot.slane %v5690, %v5697
    %v5700 = vunpack.c.l.s4 1983009808
    %v5701 = vunpack.c.0.s8 %v5700
    %v5702 = vlaneseq
    %v5703 = vshrl.u32 %v5702, 7
    %v5704 = vsub.s32 %v5701, %v5703
    %v5705 = vrot.slane %v5691, %v5704
    %v5706 = vcombine.low %v5517, %v5529
    %v5707 = vcombine.high %v5517, %v5529
    %v5709 = vunpack.c.l.s4 1983009808
    %v5710 = vunpack.c.0.s8 %v5709
    %v5711 = vlaneseq
    %v5712 = vshrl.u32 %v5711, 7
    %v5713 = vsub.s32 %v5710, %v5712
    %v5714 = vrot.slane %v5706, %v5713
    %v5716 = vunpack.c.l.s4 1983009808
    %v5717 = vunpack.c.0.s8 %v5716
    %v5718 = vlaneseq
    %v5719 = vshrl.u32 %v5718, 7
    %v5720 = vsub.s32 %v5717, %v5719
    %v5721 = vrot.slane %v5707, %v5720
    %v5722 = vcombine.low %v5523, %v5535
    %v5723 = vcombine.high %v5523, %v5535
    %v5725 = vunpack.c.l.s4 1983009808
    %v5726 = vunpack.c.0.s8 %v5725
    %v5727 = vlaneseq
    %v5728 = vshrl.u32 %v5727, 7
    %v5729 = vsub.s32 %v5726, %v5728
    %v5730 = vrot.slane %v5722, %v5729
    %v5732 = vunpack.c.l.s4 1983009808
    %v5733 = vunpack.c.0.s8 %v5732
    %v5734 = vlaneseq
    %v5735 = vshrl.u32 %v5734, 7
    %v5736 = vsub.s32 %v5733, %v5735
    %v5737 = vrot.slane %v5723, %v5736
    %v5738 = vcombine.low %v5682, %v5698
    %v5739 = vcombine.high %v5682, %v5698
    %v5741 = vunpack.c.l.s4 1934713408
    %v5742 = vunpack.c.0.s8 %v5741
    %v5743 = vlaneseq
    %v5744 = vshrl.u32 %v5743, 7
    %v5745 = vsub.s32 %v5742, %v5744
    %v5746 = vrot.slane %v5738, %v5745
    %v5748 = vunpack.c.l.s4 1934713408
    %v5749 = vunpack.c.0.s8 %v5748
    %v5750 = vlaneseq
    %v5751 = vshrl.u32 %v5750, 7
    %v5752 = vsub.s32 %v5749, %v5751
    %v5753 = vrot.slane %v5739, %v5752
    %v5754 = vcombine.low %v5689, %v5705
    %v5755 = vcombine.high %v5689, %v5705
    %v5757 = vunpack.c.l.s4 1934713408
    %v5758 = vunpack.c.0.s8 %v5757
    %v5759 = vlaneseq
    %v5760 = vshrl.u32 %v5759, 7
    %v5761 = vsub.s32 %v5758, %v5760
    %v5762 = vrot.slane %v5754, %v5761
    %v5764 = vunpack.c.l.s4 1934713408
    %v5765 = vunpack.c.0.s8 %v5764
    %v5766 = vlaneseq
    %v5767 = vshrl.u32 %v5766, 7
    %v5768 = vsub.s32 %v5765, %v5767
    %v5769 = vrot.slane %v5755, %v5768
    %v5770 = vcombine.low %v5714, %v5730
    %v5771 = vcombine.high %v5714, %v5730
    %v5773 = vunpack.c.l.s4 1934713408
    %v5774 = vunpack.c.0.s8 %v5773
    %v5775 = vlaneseq
    %v5776 = vshrl.u32 %v5775, 7
    %v5777 = vsub.s32 %v5774, %v5776
    %v5778 = vrot.slane %v5770, %v5777
    %v5780 = vunpack.c.l.s4 1934713408
    %v5781 = vunpack.c.0.s8 %v5780
    %v5782 = vlaneseq
    %v5783 = vshrl.u32 %v5782, 7
    %v5784 = vsub.s32 %v5781, %v5783
    %v5785 = vrot.slane %v5771, %v5784
    %v5786 = vcombine.low %v5721, %v5737
    %v5787 = vcombine.high %v5721, %v5737
    %v5789 = vunpack.c.l.s4 1934713408
    %v5790 = vunpack.c.0.s8 %v5789
    %v5791 = vlaneseq
    %v5792 = vshrl.u32 %v5791, 7
    %v5793 = vsub.s32 %v5790, %v5792
    %v5794 = vrot.slane %v5786, %v5793
    %v5796 = vunpack.c.l.s4 1934713408
    %v5797 = vunpack.c.0.s8 %v5796
    %v5798 = vlaneseq
    %v5799 = vshrl.u32 %v5798, 7
    %v5800 = vsub.s32 %v5797, %v5799
    %v5801 = vrot.slane %v5787, %v5800
    %v5802 = vcombine.low %v5746, %v5778
    %v5803 = vcombine.high %v5746, %v5778
    %v5804 = vcombine.low %v5753, %v5785
    %v5805 = vcombine.high %v5753, %v5785
    %v5806 = vcombine.low %v5762, %v5794
    %v5807 = vcombine.high %v5762, %v5794
    %v5808 = vcombine.low %v5769, %v5801
    %v5809 = vcombine.high %v5769, %v5801
    %v5810 = vcombine.low %v5666, %v5668
    %v5811 = vcombine.high %v5666, %v5668
    %v5813 = vunpack.c.l.s4 1983009808
    %v5814 = vunpack.c.0.s8 %v5813
    %v5815 = vlaneseq
    %v5816 = vshrl.u32 %v5815, 7
    %v5817 = vsub.s32 %v5814, %v5816
    %v5818 = vrot.slane %v5810, %v5817
    %v5820 = vunpack.c.l.s4 1983009808
    %v5821 = vunpack.c.0.s8 %v5820
    %v5822 = vlaneseq
    %v5823 = vshrl.u32 %v5822, 7
    %v5824 = vsub.s32 %v5821, %v5823
    %v5825 = vrot.slane %v5811, %v5824
    %v5826 = vcombine.low %v5667, %v5669
    %v5827 = vcombine.high %v5667, %v5669
    %v5829 = vunpack.c.l.s4 1983009808
    %v5830 = vunpack.c.0.s8 %v5829
    %v5831 = vlaneseq
    %v5832 = vshrl.u32 %v5831, 7
    %v5833 = vsub.s32 %v5830, %v5832
    %v5834 = vrot.slane %v5826, %v5833
    %v5836 = vunpack.c.l.s4 1983009808
    %v5837 = vunpack.c.0.s8 %v5836
    %v5838 = vlaneseq
    %v5839 = vshrl.u32 %v5838, 7
    %v5840 = vsub.s32 %v5837, %v5839
    %v5841 = vrot.slane %v5827, %v5840
    %v5842 = vcombine.low %v5670, %v5672
    %v5843 = vcombine.high %v5670, %v5672
    %v5845 = vunpack.c.l.s4 1983009808
    %v5846 = vunpack.c.0.s8 %v5845
    %v5847 = vlaneseq
    %v5848 = vshrl.u32 %v5847, 7
    %v5849 = vsub.s32 %v5846, %v5848
    %v5850 = vrot.slane %v5842, %v5849
    %v5852 = vunpack.c.l.s4 1983009808
    %v5853 = vunpack.c.0.s8 %v5852
    %v5854 = vlaneseq
    %v5855 = vshrl.u32 %v5854, 7
    %v5856 = vsub.s32 %v5853, %v5855
    %v5857 = vrot.slane %v5843, %v5856
    %v5858 = vcombine.low %v5671, %v5673
    %v5859 = vcombine.high %v5671, %v5673
    %v5861 = vunpack.c.l.s4 1983009808
    %v5862 = vunpack.c.0.s8 %v5861
    %v5863 = vlaneseq
    %v5864 = vshrl.u32 %v5863, 7
    %v5865 = vsub.s32 %v5862, %v5864
    %v5866 = vrot.slane %v5858, %v5865
    %v5868 = vunpack.c.l.s4 1983009808
    %v5869 = vunpack.c.0.s8 %v5868
    %v5870 = vlaneseq
    %v5871 = vshrl.u32 %v5870, 7
    %v5872 = vsub.s32 %v5869, %v5871
    %v5873 = vrot.slane %v5859, %v5872
    %v5874 = vcombine.low %v5818, %v5834
    %v5875 = vcombine.high %v5818, %v5834
    %v5877 = vunpack.c.l.s4 1934713408
    %v5878 = vunpack.c.0.s8 %v5877
    %v5879 = vlaneseq
    %v5880 = vshrl.u32 %v5879, 7
    %v5881 = vsub.s32 %v5878, %v5880
    %v5882 = vrot.slane %v5874, %v5881
    %v5884 = vunpack.c.l.s4 1934713408
    %v5885 = vunpack.c.0.s8 %v5884
    %v5886 = vlaneseq
    %v5887 = vshrl.u32 %v5886, 7
    %v5888 = vsub.s32 %v5885, %v5887
    %v5889 = vrot.slane %v5875, %v5888
    %v5890 = vcombine.low %v5825, %v5841
    %v5891 = vcombine.high %v5825, %v5841
    %v5893 = vunpack.c.l.s4 1934713408
    %v5894 = vunpack.c.0.s8 %v5893
    %v5895 = vlaneseq
    %v5896 = vshrl.u32 %v5895, 7
    %v5897 = vsub.s32 %v5894, %v5896
    %v5898 = vrot.slane %v5890, %v5897
    %v5900 = vunpack.c.l.s4 1934713408
    %v5901 = vunpack.c.0.s8 %v5900
    %v5902 = vlaneseq
    %v5903 = vshrl.u32 %v5902, 7
    %v5904 = vsub.s32 %v5901, %v5903
    %v5905 = vrot.slane %v5891, %v5904
    %v5906 = vcombine.low %v5850, %v5866
    %v5907 = vcombine.high %v5850, %v5866
    %v5909 = vunpack.c.l.s4 1934713408
    %v5910 = vunpack.c.0.s8 %v5909
    %v5911 = vlaneseq
    %v5912 = vshrl.u32 %v5911, 7
    %v5913 = vsub.s32 %v5910, %v5912
    %v5914 = vrot.slane %v5906, %v5913
    %v5916 = vunpack.c.l.s4 1934713408
    %v5917 = vunpack.c.0.s8 %v5916
    %v5918 = vlaneseq
    %v5919 = vshrl.u32 %v5918, 7
    %v5920 = vsub.s32 %v5917, %v5919
    %v5921 = vrot.slane %v5907, %v5920
    %v5922 = vcombine.low %v5857, %v5873
    %v5923 = vcombine.high %v5857, %v5873
    %v5925 = vunpack.c.l.s4 1934713408
    %v5926 = vunpack.c.0.s8 %v5925
    %v5927 = vlaneseq
    %v5928 = vshrl.u32 %v5927, 7
    %v5929 = vsub.s32 %v5926, %v5928
    %v5930 = vrot.slane %v5922, %v5929
    %v5932 = vunpack.c.l.s4 1934713408
    %v5933 = vunpack.c.0.s8 %v5932
    %v5934 = vlaneseq
    %v5935 = vshrl.u32 %v5934, 7
    %v5936 = vsub.s32 %v5933, %v5935
    %v5937 = vrot.slane %v5923, %v5936
    %v5938 = vcombine.low %v5882, %v5914
    %v5939 = vcombine.high %v5882, %v5914
    %v5940 = vcombine.low %v5889, %v5921
    %v5941 = vcombine.high %v5889, %v5921
    %v5942 = vcombine.low %v5898, %v5930
    %v5943 = vcombine.high %v5898, %v5930
    %v5944 = vcombine.low %v5905, %v5937
    %v5945 = vcombine.high %v5905, %v5937
    %v5946 = vcombine.low %v5802, %v5804
    %v5947 = vcombine.high %v5802, %v5804
    %v5949 = vunpack.c.l.s4 1983009808
    %v5950 = vunpack.c.0.s8 %v5949
    %v5951 = vlaneseq
    %v5952 = vshrl.u32 %v5951, 7
    %v5953 = vsub.s32 %v5950, %v5952
    %v5954 = vrot.slane %v5946, %v5953
    %v5956 = vunpack.c.l.s4 1983009808
    %v5957 = vunpack.c.0.s8 %v5956
    %v5958 = vlaneseq
    %v5959 = vshrl.u32 %v5958, 7
    %v5960 = vsub.s32 %v5957, %v5959
    %v5961 = vrot.slane %v5947, %v5960
    %v5962 = vcombine.low %v5803, %v5805
    %v5963 = vcombine.high %v5803, %v5805
    %v5965 = vunpack.c.l.s4 1983009808
    %v5966 = vunpack.c.0.s8 %v5965
    %v5967 = vlaneseq
    %v5968 = vshrl.u32 %v5967, 7
    %v5969 = vsub.s32 %v5966, %v5968
    %v5970 = vrot.slane %v5962, %v5969
    %v5972 = vunpack.c.l.s4 1983009808
    %v5973 = vunpack.c.0.s8 %v5972
    %v5974 = vlaneseq
    %v5975 = vshrl.u32 %v5974, 7
    %v5976 = vsub.s32 %v5973, %v5975
    %v5977 = vrot.slane %v5963, %v5976
    %v5978 = vcombine.low %v5806, %v5808
    %v5979 = vcombine.high %v5806, %v5808
    %v5981 = vunpack.c.l.s4 1983009808
    %v5982 = vunpack.c.0.s8 %v5981
    %v5983 = vlaneseq
    %v5984 = vshrl.u32 %v5983, 7
    %v5985 = vsub.s32 %v5982, %v5984
    %v5986 = vrot.slane %v5978, %v5985
    %v5988 = vunpack.c.l.s4 1983009808
    %v5989 = vunpack.c.0.s8 %v5988
    %v5990 = vlaneseq
    %v5991 = vshrl.u32 %v5990, 7
    %v5992 = vsub.s32 %v5989, %v5991
    %v5993 = vrot.slane %v5979, %v5992
    %v5994 = vcombine.low %v5807, %v5809
    %v5995 = vcombine.high %v5807, %v5809
    %v5997 = vunpack.c.l.s4 1983009808
    %v5998 = vunpack.c.0.s8 %v5997
    %v5999 = vlaneseq
    %v6000 = vshrl.u32 %v5999, 7
    %v6001 = vsub.s32 %v5998, %v6000
    %v6002 = vrot.slane %v5994, %v6001
    %v6004 = vunpack.c.l.s4 1983009808
    %v6005 = vunpack.c.0.s8 %v6004
    %v6006 = vlaneseq
    %v6007 = vshrl.u32 %v6006, 7
    %v6008 = vsub.s32 %v6005, %v6007
    %v6009 = vrot.slane %v5995, %v6008
    %v6010 = vcombine.low %v5954, %v5970
    %v6011 = vcombine.high %v5954, %v5970
    %v6013 = vunpack.c.l.s4 1934713408
    %v6014 = vunpack.c.0.s8 %v6013
    %v6015 = vlaneseq
    %v6016 = vshrl.u32 %v6015, 7
    %v6017 = vsub.s32 %v6014, %v6016
    %v6018 = vrot.slane %v6010, %v6017
    %v6020 = vunpack.c.l.s4 1934713408
    %v6021 = vunpack.c.0.s8 %v6020
    %v6022 = vlaneseq
    %v6023 = vshrl.u32 %v6022, 7
    %v6024 = vsub.s32 %v6021, %v6023
    %v6025 = vrot.slane %v6011, %v6024
    %v6026 = vcombine.low %v5961, %v5977
    %v6027 = vcombine.high %v5961, %v5977
    %v6029 = vunpack.c.l.s4 1934713408
    %v6030 = vunpack.c.0.s8 %v6029
    %v6031 = vlaneseq
    %v6032 = vshrl.u32 %v6031, 7
    %v6033 = vsub.s32 %v6030, %v6032
    %v6034 = vrot.slane %v6026, %v6033
    %v6036 = vunpack.c.l.s4 1934713408
    %v6037 = vunpack.c.0.s8 %v6036
    %v6038 = vlaneseq
    %v6039 = vshrl.u32 %v6038, 7
    %v6040 = vsub.s32 %v6037, %v6039
    %v6041 = vrot.slane %v6027, %v6040
    %v6042 = vcombine.low %v5986, %v6002
    %v6043 = vcombine.high %v5986, %v6002
    %v6045 = vunpack.c.l.s4 1934713408
    %v6046 = vunpack.c.0.s8 %v6045
    %v6047 = vlaneseq
    %v6048 = vshrl.u32 %v6047, 7
    %v6049 = vsub.s32 %v6046, %v6048
    %v6050 = vrot.slane %v6042, %v6049
    %v6052 = vunpack.c.l.s4 1934713408
    %v6053 = vunpack.c.0.s8 %v6052
    %v6054 = vlaneseq
    %v6055 = vshrl.u32 %v6054, 7
    %v6056 = vsub.s32 %v6053, %v6055
    %v6057 = vrot.slane %v6043, %v6056
    %v6058 = vcombine.low %v5993, %v6009
    %v6059 = vcombine.high %v5993, %v6009
    %v6061 = vunpack.c.l.s4 1934713408
    %v6062 = vunpack.c.0.s8 %v6061
    %v6063 = vlaneseq
    %v6064 = vshrl.u32 %v6063, 7
    %v6065 = vsub.s32 %v6062, %v6064
    %v6066 = vrot.slane %v6058, %v6065
    %v6068 = vunpack.c.l.s4 1934713408
    %v6069 = vunpack.c.0.s8 %v6068
    %v6070 = vlaneseq
    %v6071 = vshrl.u32 %v6070, 7
    %v6072 = vsub.s32 %v6069, %v6071
    %v6073 = vrot.slane %v6059, %v6072
    %v6074 = vcombine.low %v6018, %v6050
    %v6075 = vcombine.high %v6018, %v6050
    %v6076 = vcombine.low %v6025, %v6057
    %v6077 = vcombine.high %v6025, %v6057
    %v6078 = vcombine.low %v6034, %v6066
    %v6079 = vcombine.high %v6034, %v6066
    %v6080 = vcombine.low %v6041, %v6073
    %v6081 = vcombine.high %v6041, %v6073
    %6084 = vrot.lane.b32.xlu0 %v5486, 124
    %v6085 = vpop.permute.xlu0 %6084
    %6086 = vrot.lane.b32.xlu0 %v5491, 124
    %v6087 = vpop.permute.xlu0 %6086
    %6090 = vrot.lane.b32.xlu0 %v5486, 120
    %v6091 = vpop.permute.xlu0 %6090
    %6092 = vrot.lane.b32.xlu0 %v5491, 120
    %v6093 = vpop.permute.xlu0 %6092
    %6096 = vrot.lane.b32.xlu0 %v5486, 116
    %v6097 = vpop.permute.xlu0 %6096
    %6098 = vrot.lane.b32.xlu0 %v5491, 116
    %v6099 = vpop.permute.xlu0 %6098
    %6102 = vrot.lane.b32.xlu0 %v5486, 112
    %v6103 = vpop.permute.xlu0 %6102
    %6104 = vrot.lane.b32.xlu0 %v5491, 112
    %v6105 = vpop.permute.xlu0 %6104
    %6108 = vrot.lane.b32.xlu0 %v5486, 108
    %v6109 = vpop.permute.xlu0 %6108
    %6110 = vrot.lane.b32.xlu0 %v5491, 108
    %v6111 = vpop.permute.xlu0 %6110
    %6114 = vrot.lane.b32.xlu0 %v5486, 104
    %v6115 = vpop.permute.xlu0 %6114
    %6116 = vrot.lane.b32.xlu0 %v5491, 104
    %v6117 = vpop.permute.xlu0 %6116
    %6120 = vrot.lane.b32.xlu0 %v5486, 100
    %v6121 = vpop.permute.xlu0 %6120
    %6122 = vrot.lane.b32.xlu0 %v5491, 100
    %v6123 = vpop.permute.xlu0 %6122
    %v6126 = vcombine.low %v5486, %v6091
    %v6127 = vcombine.high %v5486, %v6091
    %v6129 = vunpack.c.l.s4 1983009808
    %v6130 = vunpack.c.0.s8 %v6129
    %v6131 = vlaneseq
    %v6132 = vshrl.u32 %v6131, 7
    %v6133 = vsub.s32 %v6130, %v6132
    %v6134 = vrot.slane %v6126, %v6133
    %v6136 = vunpack.c.l.s4 1983009808
    %v6137 = vunpack.c.0.s8 %v6136
    %v6138 = vlaneseq
    %v6139 = vshrl.u32 %v6138, 7
    %v6140 = vsub.s32 %v6137, %v6139
    %v6141 = vrot.slane %v6127, %v6140
    %v6142 = vcombine.low %v6085, %v6097
    %v6143 = vcombine.high %v6085, %v6097
    %v6145 = vunpack.c.l.s4 1983009808
    %v6146 = vunpack.c.0.s8 %v6145
    %v6147 = vlaneseq
    %v6148 = vshrl.u32 %v6147, 7
    %v6149 = vsub.s32 %v6146, %v6148
    %v6150 = vrot.slane %v6142, %v6149
    %v6152 = vunpack.c.l.s4 1983009808
    %v6153 = vunpack.c.0.s8 %v6152
    %v6154 = vlaneseq
    %v6155 = vshrl.u32 %v6154, 7
    %v6156 = vsub.s32 %v6153, %v6155
    %v6157 = vrot.slane %v6143, %v6156
    %v6158 = vcombine.low %v6103, %v6115
    %v6159 = vcombine.high %v6103, %v6115
    %v6161 = vunpack.c.l.s4 1983009808
    %v6162 = vunpack.c.0.s8 %v6161
    %v6163 = vlaneseq
    %v6164 = vshrl.u32 %v6163, 7
    %v6165 = vsub.s32 %v6162, %v6164
    %v6166 = vrot.slane %v6158, %v6165
    %v6168 = vunpack.c.l.s4 1983009808
    %v6169 = vunpack.c.0.s8 %v6168
    %v6170 = vlaneseq
    %v6171 = vshrl.u32 %v6170, 7
    %v6172 = vsub.s32 %v6169, %v6171
    %v6173 = vrot.slane %v6159, %v6172
    %v6174 = vcombine.low %v6109, %v6121
    %v6175 = vcombine.high %v6109, %v6121
    %v6177 = vunpack.c.l.s4 1983009808
    %v6178 = vunpack.c.0.s8 %v6177
    %v6179 = vlaneseq
    %v6180 = vshrl.u32 %v6179, 7
    %v6181 = vsub.s32 %v6178, %v6180
    %v6182 = vrot.slane %v6174, %v6181
    %v6184 = vunpack.c.l.s4 1983009808
    %v6185 = vunpack.c.0.s8 %v6184
    %v6186 = vlaneseq
    %v6187 = vshrl.u32 %v6186, 7
    %v6188 = vsub.s32 %v6185, %v6187
    %v6189 = vrot.slane %v6175, %v6188
    %v6190 = vcombine.low %v6134, %v6150
    %v6191 = vcombine.high %v6134, %v6150
    %v6193 = vunpack.c.l.s4 1934713408
    %v6194 = vunpack.c.0.s8 %v6193
    %v6195 = vlaneseq
    %v6196 = vshrl.u32 %v6195, 7
    %v6197 = vsub.s32 %v6194, %v6196
    %v6198 = vrot.slane %v6190, %v6197
    %v6200 = vunpack.c.l.s4 1934713408
    %v6201 = vunpack.c.0.s8 %v6200
    %v6202 = vlaneseq
    %v6203 = vshrl.u32 %v6202, 7
    %v6204 = vsub.s32 %v6201, %v6203
    %v6205 = vrot.slane %v6191, %v6204
    %v6206 = vcombine.low %v6141, %v6157
    %v6207 = vcombine.high %v6141, %v6157
    %v6209 = vunpack.c.l.s4 1934713408
    %v6210 = vunpack.c.0.s8 %v6209
    %v6211 = vlaneseq
    %v6212 = vshrl.u32 %v6211, 7
    %v6213 = vsub.s32 %v6210, %v6212
    %v6214 = vrot.slane %v6206, %v6213
    %v6216 = vunpack.c.l.s4 1934713408
    %v6217 = vunpack.c.0.s8 %v6216
    %v6218 = vlaneseq
    %v6219 = vshrl.u32 %v6218, 7
    %v6220 = vsub.s32 %v6217, %v6219
    %v6221 = vrot.slane %v6207, %v6220
    %v6222 = vcombine.low %v6166, %v6182
    %v6223 = vcombine.high %v6166, %v6182
    %v6225 = vunpack.c.l.s4 1934713408
    %v6226 = vunpack.c.0.s8 %v6225
    %v6227 = vlaneseq
    %v6228 = vshrl.u32 %v6227, 7
    %v6229 = vsub.s32 %v6226, %v6228
    %v6230 = vrot.slane %v6222, %v6229
    %v6232 = vunpack.c.l.s4 1934713408
    %v6233 = vunpack.c.0.s8 %v6232
    %v6234 = vlaneseq
    %v6235 = vshrl.u32 %v6234, 7
    %v6236 = vsub.s32 %v6233, %v6235
    %v6237 = vrot.slane %v6223, %v6236
    %v6238 = vcombine.low %v6173, %v6189
    %v6239 = vcombine.high %v6173, %v6189
    %v6241 = vunpack.c.l.s4 1934713408
    %v6242 = vunpack.c.0.s8 %v6241
    %v6243 = vlaneseq
    %v6244 = vshrl.u32 %v6243, 7
    %v6245 = vsub.s32 %v6242, %v6244
    %v6246 = vrot.slane %v6238, %v6245
    %v6248 = vunpack.c.l.s4 1934713408
    %v6249 = vunpack.c.0.s8 %v6248
    %v6250 = vlaneseq
    %v6251 = vshrl.u32 %v6250, 7
    %v6252 = vsub.s32 %v6249, %v6251
    %v6253 = vrot.slane %v6239, %v6252
    %v6254 = vcombine.low %v6198, %v6230
    %v6255 = vcombine.high %v6198, %v6230
    %v6256 = vcombine.low %v6205, %v6237
    %v6257 = vcombine.high %v6205, %v6237
    %v6258 = vcombine.low %v6214, %v6246
    %v6259 = vcombine.high %v6214, %v6246
    %v6260 = vcombine.low %v6221, %v6253
    %v6261 = vcombine.high %v6221, %v6253
    %v6262 = vcombine.low %v5491, %v6093
    %v6263 = vcombine.high %v5491, %v6093
    %v6265 = vunpack.c.l.s4 1983009808
    %v6266 = vunpack.c.0.s8 %v6265
    %v6267 = vlaneseq
    %v6268 = vshrl.u32 %v6267, 7
    %v6269 = vsub.s32 %v6266, %v6268
    %v6270 = vrot.slane %v6262, %v6269
    %v6272 = vunpack.c.l.s4 1983009808
    %v6273 = vunpack.c.0.s8 %v6272
    %v6274 = vlaneseq
    %v6275 = vshrl.u32 %v6274, 7
    %v6276 = vsub.s32 %v6273, %v6275
    %v6277 = vrot.slane %v6263, %v6276
    %v6278 = vcombine.low %v6087, %v6099
    %v6279 = vcombine.high %v6087, %v6099
    %v6281 = vunpack.c.l.s4 1983009808
    %v6282 = vunpack.c.0.s8 %v6281
    %v6283 = vlaneseq
    %v6284 = vshrl.u32 %v6283, 7
    %v6285 = vsub.s32 %v6282, %v6284
    %v6286 = vrot.slane %v6278, %v6285
    %v6288 = vunpack.c.l.s4 1983009808
    %v6289 = vunpack.c.0.s8 %v6288
    %v6290 = vlaneseq
    %v6291 = vshrl.u32 %v6290, 7
    %v6292 = vsub.s32 %v6289, %v6291
    %v6293 = vrot.slane %v6279, %v6292
    %v6294 = vcombine.low %v6105, %v6117
    %v6295 = vcombine.high %v6105, %v6117
    %v6297 = vunpack.c.l.s4 1983009808
    %v6298 = vunpack.c.0.s8 %v6297
    %v6299 = vlaneseq
    %v6300 = vshrl.u32 %v6299, 7
    %v6301 = vsub.s32 %v6298, %v6300
    %v6302 = vrot.slane %v6294, %v6301
    %v6304 = vunpack.c.l.s4 1983009808
    %v6305 = vunpack.c.0.s8 %v6304
    %v6306 = vlaneseq
    %v6307 = vshrl.u32 %v6306, 7
    %v6308 = vsub.s32 %v6305, %v6307
    %v6309 = vrot.slane %v6295, %v6308
    %v6310 = vcombine.low %v6111, %v6123
    %v6311 = vcombine.high %v6111, %v6123
    %v6313 = vunpack.c.l.s4 1983009808
    %v6314 = vunpack.c.0.s8 %v6313
    %v6315 = vlaneseq
    %v6316 = vshrl.u32 %v6315, 7
    %v6317 = vsub.s32 %v6314, %v6316
    %v6318 = vrot.slane %v6310, %v6317
    %v6320 = vunpack.c.l.s4 1983009808
    %v6321 = vunpack.c.0.s8 %v6320
    %v6322 = vlaneseq
    %v6323 = vshrl.u32 %v6322, 7
    %v6324 = vsub.s32 %v6321, %v6323
    %v6325 = vrot.slane %v6311, %v6324
    %v6326 = vcombine.low %v6270, %v6286
    %v6327 = vcombine.high %v6270, %v6286
    %v6329 = vunpack.c.l.s4 1934713408
    %v6330 = vunpack.c.0.s8 %v6329
    %v6331 = vlaneseq
    %v6332 = vshrl.u32 %v6331, 7
    %v6333 = vsub.s32 %v6330, %v6332
    %v6334 = vrot.slane %v6326, %v6333
    %v6336 = vunpack.c.l.s4 1934713408
    %v6337 = vunpack.c.0.s8 %v6336
    %v6338 = vlaneseq
    %v6339 = vshrl.u32 %v6338, 7
    %v6340 = vsub.s32 %v6337, %v6339
    %v6341 = vrot.slane %v6327, %v6340
    %v6342 = vcombine.low %v6277, %v6293
    %v6343 = vcombine.high %v6277, %v6293
    %v6345 = vunpack.c.l.s4 1934713408
    %v6346 = vunpack.c.0.s8 %v6345
    %v6347 = vlaneseq
    %v6348 = vshrl.u32 %v6347, 7
    %v6349 = vsub.s32 %v6346, %v6348
    %v6350 = vrot.slane %v6342, %v6349
    %v6352 = vunpack.c.l.s4 1934713408
    %v6353 = vunpack.c.0.s8 %v6352
    %v6354 = vlaneseq
    %v6355 = vshrl.u32 %v6354, 7
    %v6356 = vsub.s32 %v6353, %v6355
    %v6357 = vrot.slane %v6343, %v6356
    %v6358 = vcombine.low %v6302, %v6318
    %v6359 = vcombine.high %v6302, %v6318
    %v6361 = vunpack.c.l.s4 1934713408
    %v6362 = vunpack.c.0.s8 %v6361
    %v6363 = vlaneseq
    %v6364 = vshrl.u32 %v6363, 7
    %v6365 = vsub.s32 %v6362, %v6364
    %v6366 = vrot.slane %v6358, %v6365
    %v6368 = vunpack.c.l.s4 1934713408
    %v6369 = vunpack.c.0.s8 %v6368
    %v6370 = vlaneseq
    %v6371 = vshrl.u32 %v6370, 7
    %v6372 = vsub.s32 %v6369, %v6371
    %v6373 = vrot.slane %v6359, %v6372
    %v6374 = vcombine.low %v6309, %v6325
    %v6375 = vcombine.high %v6309, %v6325
    %v6377 = vunpack.c.l.s4 1934713408
    %v6378 = vunpack.c.0.s8 %v6377
    %v6379 = vlaneseq
    %v6380 = vshrl.u32 %v6379, 7
    %v6381 = vsub.s32 %v6378, %v6380
    %v6382 = vrot.slane %v6374, %v6381
    %v6384 = vunpack.c.l.s4 1934713408
    %v6385 = vunpack.c.0.s8 %v6384
    %v6386 = vlaneseq
    %v6387 = vshrl.u32 %v6386, 7
    %v6388 = vsub.s32 %v6385, %v6387
    %v6389 = vrot.slane %v6375, %v6388
    %v6390 = vcombine.low %v6334, %v6366
    %v6391 = vcombine.high %v6334, %v6366
    %v6392 = vcombine.low %v6341, %v6373
    %v6393 = vcombine.high %v6341, %v6373
    %v6394 = vcombine.low %v6350, %v6382
    %v6395 = vcombine.high %v6350, %v6382
    %v6396 = vcombine.low %v6357, %v6389
    %v6397 = vcombine.high %v6357, %v6389
    %v6398 = vcombine.low %v6254, %v6256
    %v6399 = vcombine.high %v6254, %v6256
    %v6401 = vunpack.c.l.s4 1983009808
    %v6402 = vunpack.c.0.s8 %v6401
    %v6403 = vlaneseq
    %v6404 = vshrl.u32 %v6403, 7
    %v6405 = vsub.s32 %v6402, %v6404
    %v6406 = vrot.slane %v6398, %v6405
    %v6408 = vunpack.c.l.s4 1983009808
    %v6409 = vunpack.c.0.s8 %v6408
    %v6410 = vlaneseq
    %v6411 = vshrl.u32 %v6410, 7
    %v6412 = vsub.s32 %v6409, %v6411
    %v6413 = vrot.slane %v6399, %v6412
    %v6414 = vcombine.low %v6255, %v6257
    %v6415 = vcombine.high %v6255, %v6257
    %v6417 = vunpack.c.l.s4 1983009808
    %v6418 = vunpack.c.0.s8 %v6417
    %v6419 = vlaneseq
    %v6420 = vshrl.u32 %v6419, 7
    %v6421 = vsub.s32 %v6418, %v6420
    %v6422 = vrot.slane %v6414, %v6421
    %v6424 = vunpack.c.l.s4 1983009808
    %v6425 = vunpack.c.0.s8 %v6424
    %v6426 = vlaneseq
    %v6427 = vshrl.u32 %v6426, 7
    %v6428 = vsub.s32 %v6425, %v6427
    %v6429 = vrot.slane %v6415, %v6428
    %v6430 = vcombine.low %v6258, %v6260
    %v6431 = vcombine.high %v6258, %v6260
    %v6433 = vunpack.c.l.s4 1983009808
    %v6434 = vunpack.c.0.s8 %v6433
    %v6435 = vlaneseq
    %v6436 = vshrl.u32 %v6435, 7
    %v6437 = vsub.s32 %v6434, %v6436
    %v6438 = vrot.slane %v6430, %v6437
    %v6440 = vunpack.c.l.s4 1983009808
    %v6441 = vunpack.c.0.s8 %v6440
    %v6442 = vlaneseq
    %v6443 = vshrl.u32 %v6442, 7
    %v6444 = vsub.s32 %v6441, %v6443
    %v6445 = vrot.slane %v6431, %v6444
    %v6446 = vcombine.low %v6259, %v6261
    %v6447 = vcombine.high %v6259, %v6261
    %v6449 = vunpack.c.l.s4 1983009808
    %v6450 = vunpack.c.0.s8 %v6449
    %v6451 = vlaneseq
    %v6452 = vshrl.u32 %v6451, 7
    %v6453 = vsub.s32 %v6450, %v6452
    %v6454 = vrot.slane %v6446, %v6453
    %v6456 = vunpack.c.l.s4 1983009808
    %v6457 = vunpack.c.0.s8 %v6456
    %v6458 = vlaneseq
    %v6459 = vshrl.u32 %v6458, 7
    %v6460 = vsub.s32 %v6457, %v6459
    %v6461 = vrot.slane %v6447, %v6460
    %v6462 = vcombine.low %v6406, %v6422
    %v6463 = vcombine.high %v6406, %v6422
    %v6465 = vunpack.c.l.s4 1934713408
    %v6466 = vunpack.c.0.s8 %v6465
    %v6467 = vlaneseq
    %v6468 = vshrl.u32 %v6467, 7
    %v6469 = vsub.s32 %v6466, %v6468
    %v6470 = vrot.slane %v6462, %v6469
    %v6472 = vunpack.c.l.s4 1934713408
    %v6473 = vunpack.c.0.s8 %v6472
    %v6474 = vlaneseq
    %v6475 = vshrl.u32 %v6474, 7
    %v6476 = vsub.s32 %v6473, %v6475
    %v6477 = vrot.slane %v6463, %v6476
    %v6478 = vcombine.low %v6413, %v6429
    %v6479 = vcombine.high %v6413, %v6429
    %v6481 = vunpack.c.l.s4 1934713408
    %v6482 = vunpack.c.0.s8 %v6481
    %v6483 = vlaneseq
    %v6484 = vshrl.u32 %v6483, 7
    %v6485 = vsub.s32 %v6482, %v6484
    %v6486 = vrot.slane %v6478, %v6485
    %v6488 = vunpack.c.l.s4 1934713408
    %v6489 = vunpack.c.0.s8 %v6488
    %v6490 = vlaneseq
    %v6491 = vshrl.u32 %v6490, 7
    %v6492 = vsub.s32 %v6489, %v6491
    %v6493 = vrot.slane %v6479, %v6492
    %v6494 = vcombine.low %v6438, %v6454
    %v6495 = vcombine.high %v6438, %v6454
    %v6497 = vunpack.c.l.s4 1934713408
    %v6498 = vunpack.c.0.s8 %v6497
    %v6499 = vlaneseq
    %v6500 = vshrl.u32 %v6499, 7
    %v6501 = vsub.s32 %v6498, %v6500
    %v6502 = vrot.slane %v6494, %v6501
    %v6504 = vunpack.c.l.s4 1934713408
    %v6505 = vunpack.c.0.s8 %v6504
    %v6506 = vlaneseq
    %v6507 = vshrl.u32 %v6506, 7
    %v6508 = vsub.s32 %v6505, %v6507
    %v6509 = vrot.slane %v6495, %v6508
    %v6510 = vcombine.low %v6445, %v6461
    %v6511 = vcombine.high %v6445, %v6461
    %v6513 = vunpack.c.l.s4 1934713408
    %v6514 = vunpack.c.0.s8 %v6513
    %v6515 = vlaneseq
    %v6516 = vshrl.u32 %v6515, 7
    %v6517 = vsub.s32 %v6514, %v6516
    %v6518 = vrot.slane %v6510, %v6517
    %v6520 = vunpack.c.l.s4 1934713408
    %v6521 = vunpack.c.0.s8 %v6520
    %v6522 = vlaneseq
    %v6523 = vshrl.u32 %v6522, 7
    %v6524 = vsub.s32 %v6521, %v6523
    %v6525 = vrot.slane %v6511, %v6524
    %v6526 = vcombine.low %v6470, %v6502
    %v6527 = vcombine.high %v6470, %v6502
    %v6528 = vcombine.low %v6477, %v6509
    %v6529 = vcombine.high %v6477, %v6509
    %v6530 = vcombine.low %v6486, %v6518
    %v6531 = vcombine.high %v6486, %v6518
    %v6532 = vcombine.low %v6493, %v6525
    %v6533 = vcombine.high %v6493, %v6525
    %v6534 = vcombine.low %v6390, %v6392
    %v6535 = vcombine.high %v6390, %v6392
    %v6537 = vunpack.c.l.s4 1983009808
    %v6538 = vunpack.c.0.s8 %v6537
    %v6539 = vlaneseq
    %v6540 = vshrl.u32 %v6539, 7
    %v6541 = vsub.s32 %v6538, %v6540
    %v6542 = vrot.slane %v6534, %v6541
    %v6544 = vunpack.c.l.s4 1983009808
    %v6545 = vunpack.c.0.s8 %v6544
    %v6546 = vlaneseq
    %v6547 = vshrl.u32 %v6546, 7
    %v6548 = vsub.s32 %v6545, %v6547
    %v6549 = vrot.slane %v6535, %v6548
    %v6550 = vcombine.low %v6391, %v6393
    %v6551 = vcombine.high %v6391, %v6393
    %v6553 = vunpack.c.l.s4 1983009808
    %v6554 = vunpack.c.0.s8 %v6553
    %v6555 = vlaneseq
    %v6556 = vshrl.u32 %v6555, 7
    %v6557 = vsub.s32 %v6554, %v6556
    %v6558 = vrot.slane %v6550, %v6557
    %v6560 = vunpack.c.l.s4 1983009808
    %v6561 = vunpack.c.0.s8 %v6560
    %v6562 = vlaneseq
    %v6563 = vshrl.u32 %v6562, 7
    %v6564 = vsub.s32 %v6561, %v6563
    %v6565 = vrot.slane %v6551, %v6564
    %v6566 = vcombine.low %v6394, %v6396
    %v6567 = vcombine.high %v6394, %v6396
    %v6569 = vunpack.c.l.s4 1983009808
    %v6570 = vunpack.c.0.s8 %v6569
    %v6571 = vlaneseq
    %v6572 = vshrl.u32 %v6571, 7
    %v6573 = vsub.s32 %v6570, %v6572
    %v6574 = vrot.slane %v6566, %v6573
    %v6576 = vunpack.c.l.s4 1983009808
    %v6577 = vunpack.c.0.s8 %v6576
    %v6578 = vlaneseq
    %v6579 = vshrl.u32 %v6578, 7
    %v6580 = vsub.s32 %v6577, %v6579
    %v6581 = vrot.slane %v6567, %v6580
    %v6582 = vcombine.low %v6395, %v6397
    %v6583 = vcombine.high %v6395, %v6397
    %v6585 = vunpack.c.l.s4 1983009808
    %v6586 = vunpack.c.0.s8 %v6585
    %v6587 = vlaneseq
    %v6588 = vshrl.u32 %v6587, 7
    %v6589 = vsub.s32 %v6586, %v6588
    %v6590 = vrot.slane %v6582, %v6589
    %v6592 = vunpack.c.l.s4 1983009808
    %v6593 = vunpack.c.0.s8 %v6592
    %v6594 = vlaneseq
    %v6595 = vshrl.u32 %v6594, 7
    %v6596 = vsub.s32 %v6593, %v6595
    %v6597 = vrot.slane %v6583, %v6596
    %v6598 = vcombine.low %v6542, %v6558
    %v6599 = vcombine.high %v6542, %v6558
    %v6601 = vunpack.c.l.s4 1934713408
    %v6602 = vunpack.c.0.s8 %v6601
    %v6603 = vlaneseq
    %v6604 = vshrl.u32 %v6603, 7
    %v6605 = vsub.s32 %v6602, %v6604
    %v6606 = vrot.slane %v6598, %v6605
    %v6608 = vunpack.c.l.s4 1934713408
    %v6609 = vunpack.c.0.s8 %v6608
    %v6610 = vlaneseq
    %v6611 = vshrl.u32 %v6610, 7
    %v6612 = vsub.s32 %v6609, %v6611
    %v6613 = vrot.slane %v6599, %v6612
    %v6614 = vcombine.low %v6549, %v6565
    %v6615 = vcombine.high %v6549, %v6565
    %v6617 = vunpack.c.l.s4 1934713408
    %v6618 = vunpack.c.0.s8 %v6617
    %v6619 = vlaneseq
    %v6620 = vshrl.u32 %v6619, 7
    %v6621 = vsub.s32 %v6618, %v6620
    %v6622 = vrot.slane %v6614, %v6621
    %v6624 = vunpack.c.l.s4 1934713408
    %v6625 = vunpack.c.0.s8 %v6624
    %v6626 = vlaneseq
    %v6627 = vshrl.u32 %v6626, 7
    %v6628 = vsub.s32 %v6625, %v6627
    %v6629 = vrot.slane %v6615, %v6628
    %v6630 = vcombine.low %v6574, %v6590
    %v6631 = vcombine.high %v6574, %v6590
    %v6633 = vunpack.c.l.s4 1934713408
    %v6634 = vunpack.c.0.s8 %v6633
    %v6635 = vlaneseq
    %v6636 = vshrl.u32 %v6635, 7
    %v6637 = vsub.s32 %v6634, %v6636
    %v6638 = vrot.slane %v6630, %v6637
    %v6640 = vunpack.c.l.s4 1934713408
    %v6641 = vunpack.c.0.s8 %v6640
    %v6642 = vlaneseq
    %v6643 = vshrl.u32 %v6642, 7
    %v6644 = vsub.s32 %v6641, %v6643
    %v6645 = vrot.slane %v6631, %v6644
    %v6646 = vcombine.low %v6581, %v6597
    %v6647 = vcombine.high %v6581, %v6597
    %v6649 = vunpack.c.l.s4 1934713408
    %v6650 = vunpack.c.0.s8 %v6649
    %v6651 = vlaneseq
    %v6652 = vshrl.u32 %v6651, 7
    %v6653 = vsub.s32 %v6650, %v6652
    %v6654 = vrot.slane %v6646, %v6653
    %v6656 = vunpack.c.l.s4 1934713408
    %v6657 = vunpack.c.0.s8 %v6656
    %v6658 = vlaneseq
    %v6659 = vshrl.u32 %v6658, 7
    %v6660 = vsub.s32 %v6657, %v6659
    %v6661 = vrot.slane %v6647, %v6660
    %v6662 = vcombine.low %v6606, %v6638
    %v6663 = vcombine.high %v6606, %v6638
    %v6664 = vcombine.low %v6613, %v6645
    %v6665 = vcombine.high %v6613, %v6645
    %v6666 = vcombine.low %v6622, %v6654
    %v6667 = vcombine.high %v6622, %v6654
    %v6668 = vcombine.low %v6629, %v6661
    %v6669 = vcombine.high %v6629, %v6661
    %6670 = vrot.lane.b32.xlu0 %v5486, 96
    %v6671 = vpop.permute.xlu0 %6670
    %6672 = vrot.lane.b32.xlu0 %v5491, 96
    %v6673 = vpop.permute.xlu0 %6672
    %6674 = vrot.lane.b32.xlu0 %v6085, 96
    %v6675 = vpop.permute.xlu0 %6674
    %6676 = vrot.lane.b32.xlu0 %v6087, 96
    %v6677 = vpop.permute.xlu0 %6676
    %6678 = vrot.lane.b32.xlu0 %v6091, 96
    %v6679 = vpop.permute.xlu0 %6678
    %6680 = vrot.lane.b32.xlu0 %v6093, 96
    %v6681 = vpop.permute.xlu0 %6680
    %6682 = vrot.lane.b32.xlu0 %v6097, 96
    %v6683 = vpop.permute.xlu0 %6682
    %6684 = vrot.lane.b32.xlu0 %v6099, 96
    %v6685 = vpop.permute.xlu0 %6684
    %6686 = vrot.lane.b32.xlu0 %v6103, 96
    %v6687 = vpop.permute.xlu0 %6686
    %6688 = vrot.lane.b32.xlu0 %v6105, 96
    %v6689 = vpop.permute.xlu0 %6688
    %6690 = vrot.lane.b32.xlu0 %v6109, 96
    %v6691 = vpop.permute.xlu0 %6690
    %6692 = vrot.lane.b32.xlu0 %v6111, 96
    %v6693 = vpop.permute.xlu0 %6692
    %6694 = vrot.lane.b32.xlu0 %v6115, 96
    %v6695 = vpop.permute.xlu0 %6694
    %6696 = vrot.lane.b32.xlu0 %v6117, 96
    %v6697 = vpop.permute.xlu0 %6696
    %6698 = vrot.lane.b32.xlu0 %v6121, 96
    %v6699 = vpop.permute.xlu0 %6698
    %6700 = vrot.lane.b32.xlu0 %v6123, 96
    %v6701 = vpop.permute.xlu0 %6700
    %v6718 = vcombine.low %v6671, %v6679
    %v6719 = vcombine.high %v6671, %v6679
    %v6721 = vunpack.c.l.s4 1983009808
    %v6722 = vunpack.c.0.s8 %v6721
    %v6723 = vlaneseq
    %v6724 = vshrl.u32 %v6723, 7
    %v6725 = vsub.s32 %v6722, %v6724
    %v6726 = vrot.slane %v6718, %v6725
    %v6728 = vunpack.c.l.s4 1983009808
    %v6729 = vunpack.c.0.s8 %v6728
    %v6730 = vlaneseq
    %v6731 = vshrl.u32 %v6730, 7
    %v6732 = vsub.s32 %v6729, %v6731
    %v6733 = vrot.slane %v6719, %v6732
    %v6734 = vcombine.low %v6675, %v6683
    %v6735 = vcombine.high %v6675, %v6683
    %v6737 = vunpack.c.l.s4 1983009808
    %v6738 = vunpack.c.0.s8 %v6737
    %v6739 = vlaneseq
    %v6740 = vshrl.u32 %v6739, 7
    %v6741 = vsub.s32 %v6738, %v6740
    %v6742 = vrot.slane %v6734, %v6741
    %v6744 = vunpack.c.l.s4 1983009808
    %v6745 = vunpack.c.0.s8 %v6744
    %v6746 = vlaneseq
    %v6747 = vshrl.u32 %v6746, 7
    %v6748 = vsub.s32 %v6745, %v6747
    %v6749 = vrot.slane %v6735, %v6748
    %v6750 = vcombine.low %v6687, %v6695
    %v6751 = vcombine.high %v6687, %v6695
    %v6753 = vunpack.c.l.s4 1983009808
    %v6754 = vunpack.c.0.s8 %v6753
    %v6755 = vlaneseq
    %v6756 = vshrl.u32 %v6755, 7
    %v6757 = vsub.s32 %v6754, %v6756
    %v6758 = vrot.slane %v6750, %v6757
    %v6760 = vunpack.c.l.s4 1983009808
    %v6761 = vunpack.c.0.s8 %v6760
    %v6762 = vlaneseq
    %v6763 = vshrl.u32 %v6762, 7
    %v6764 = vsub.s32 %v6761, %v6763
    %v6765 = vrot.slane %v6751, %v6764
    %v6766 = vcombine.low %v6691, %v6699
    %v6767 = vcombine.high %v6691, %v6699
    %v6769 = vunpack.c.l.s4 1983009808
    %v6770 = vunpack.c.0.s8 %v6769
    %v6771 = vlaneseq
    %v6772 = vshrl.u32 %v6771, 7
    %v6773 = vsub.s32 %v6770, %v6772
    %v6774 = vrot.slane %v6766, %v6773
    %v6776 = vunpack.c.l.s4 1983009808
    %v6777 = vunpack.c.0.s8 %v6776
    %v6778 = vlaneseq
    %v6779 = vshrl.u32 %v6778, 7
    %v6780 = vsub.s32 %v6777, %v6779
    %v6781 = vrot.slane %v6767, %v6780
    %v6782 = vcombine.low %v6726, %v6742
    %v6783 = vcombine.high %v6726, %v6742
    %v6785 = vunpack.c.l.s4 1934713408
    %v6786 = vunpack.c.0.s8 %v6785
    %v6787 = vlaneseq
    %v6788 = vshrl.u32 %v6787, 7
    %v6789 = vsub.s32 %v6786, %v6788
    %v6790 = vrot.slane %v6782, %v6789
    %v6792 = vunpack.c.l.s4 1934713408
    %v6793 = vunpack.c.0.s8 %v6792
    %v6794 = vlaneseq
    %v6795 = vshrl.u32 %v6794, 7
    %v6796 = vsub.s32 %v6793, %v6795
    %v6797 = vrot.slane %v6783, %v6796
    %v6798 = vcombine.low %v6733, %v6749
    %v6799 = vcombine.high %v6733, %v6749
    %v6801 = vunpack.c.l.s4 1934713408
    %v6802 = vunpack.c.0.s8 %v6801
    %v6803 = vlaneseq
    %v6804 = vshrl.u32 %v6803, 7
    %v6805 = vsub.s32 %v6802, %v6804
    %v6806 = vrot.slane %v6798, %v6805
    %v6808 = vunpack.c.l.s4 1934713408
    %v6809 = vunpack.c.0.s8 %v6808
    %v6810 = vlaneseq
    %v6811 = vshrl.u32 %v6810, 7
    %v6812 = vsub.s32 %v6809, %v6811
    %v6813 = vrot.slane %v6799, %v6812
    %v6814 = vcombine.low %v6758, %v6774
    %v6815 = vcombine.high %v6758, %v6774
    %v6817 = vunpack.c.l.s4 1934713408
    %v6818 = vunpack.c.0.s8 %v6817
    %v6819 = vlaneseq
    %v6820 = vshrl.u32 %v6819, 7
    %v6821 = vsub.s32 %v6818, %v6820
    %v6822 = vrot.slane %v6814, %v6821
    %v6824 = vunpack.c.l.s4 1934713408
    %v6825 = vunpack.c.0.s8 %v6824
    %v6826 = vlaneseq
    %v6827 = vshrl.u32 %v6826, 7
    %v6828 = vsub.s32 %v6825, %v6827
    %v6829 = vrot.slane %v6815, %v6828
    %v6830 = vcombine.low %v6765, %v6781
    %v6831 = vcombine.high %v6765, %v6781
    %v6833 = vunpack.c.l.s4 1934713408
    %v6834 = vunpack.c.0.s8 %v6833
    %v6835 = vlaneseq
    %v6836 = vshrl.u32 %v6835, 7
    %v6837 = vsub.s32 %v6834, %v6836
    %v6838 = vrot.slane %v6830, %v6837
    %v6840 = vunpack.c.l.s4 1934713408
    %v6841 = vunpack.c.0.s8 %v6840
    %v6842 = vlaneseq
    %v6843 = vshrl.u32 %v6842, 7
    %v6844 = vsub.s32 %v6841, %v6843
    %v6845 = vrot.slane %v6831, %v6844
    %v6846 = vcombine.low %v6790, %v6822
    %v6847 = vcombine.high %v6790, %v6822
    %v6848 = vcombine.low %v6797, %v6829
    %v6849 = vcombine.high %v6797, %v6829
    %v6850 = vcombine.low %v6806, %v6838
    %v6851 = vcombine.high %v6806, %v6838
    %v6852 = vcombine.low %v6813, %v6845
    %v6853 = vcombine.high %v6813, %v6845
    %v6854 = vcombine.low %v6673, %v6681
    %v6855 = vcombine.high %v6673, %v6681
    %v6857 = vunpack.c.l.s4 1983009808
    %v6858 = vunpack.c.0.s8 %v6857
    %v6859 = vlaneseq
    %v6860 = vshrl.u32 %v6859, 7
    %v6861 = vsub.s32 %v6858, %v6860
    %v6862 = vrot.slane %v6854, %v6861
    %v6864 = vunpack.c.l.s4 1983009808
    %v6865 = vunpack.c.0.s8 %v6864
    %v6866 = vlaneseq
    %v6867 = vshrl.u32 %v6866, 7
    %v6868 = vsub.s32 %v6865, %v6867
    %v6869 = vrot.slane %v6855, %v6868
    %v6870 = vcombine.low %v6677, %v6685
    %v6871 = vcombine.high %v6677, %v6685
    %v6873 = vunpack.c.l.s4 1983009808
    %v6874 = vunpack.c.0.s8 %v6873
    %v6875 = vlaneseq
    %v6876 = vshrl.u32 %v6875, 7
    %v6877 = vsub.s32 %v6874, %v6876
    %v6878 = vrot.slane %v6870, %v6877
    %v6880 = vunpack.c.l.s4 1983009808
    %v6881 = vunpack.c.0.s8 %v6880
    %v6882 = vlaneseq
    %v6883 = vshrl.u32 %v6882, 7
    %v6884 = vsub.s32 %v6881, %v6883
    %v6885 = vrot.slane %v6871, %v6884
    %v6886 = vcombine.low %v6689, %v6697
    %v6887 = vcombine.high %v6689, %v6697
    %v6889 = vunpack.c.l.s4 1983009808
    %v6890 = vunpack.c.0.s8 %v6889
    %v6891 = vlaneseq
    %v6892 = vshrl.u32 %v6891, 7
    %v6893 = vsub.s32 %v6890, %v6892
    %v6894 = vrot.slane %v6886, %v6893
    %v6896 = vunpack.c.l.s4 1983009808
    %v6897 = vunpack.c.0.s8 %v6896
    %v6898 = vlaneseq
    %v6899 = vshrl.u32 %v6898, 7
    %v6900 = vsub.s32 %v6897, %v6899
    %v6901 = vrot.slane %v6887, %v6900
    %v6902 = vcombine.low %v6693, %v6701
    %v6903 = vcombine.high %v6693, %v6701
    %v6905 = vunpack.c.l.s4 1983009808
    %v6906 = vunpack.c.0.s8 %v6905
    %v6907 = vlaneseq
    %v6908 = vshrl.u32 %v6907, 7
    %v6909 = vsub.s32 %v6906, %v6908
    %v6910 = vrot.slane %v6902, %v6909
    %v6912 = vunpack.c.l.s4 1983009808
    %v6913 = vunpack.c.0.s8 %v6912
    %v6914 = vlaneseq
    %v6915 = vshrl.u32 %v6914, 7
    %v6916 = vsub.s32 %v6913, %v6915
    %v6917 = vrot.slane %v6903, %v6916
    %v6918 = vcombine.low %v6862, %v6878
    %v6919 = vcombine.high %v6862, %v6878
    %v6921 = vunpack.c.l.s4 1934713408
    %v6922 = vunpack.c.0.s8 %v6921
    %v6923 = vlaneseq
    %v6924 = vshrl.u32 %v6923, 7
    %v6925 = vsub.s32 %v6922, %v6924
    %v6926 = vrot.slane %v6918, %v6925
    %v6928 = vunpack.c.l.s4 1934713408
    %v6929 = vunpack.c.0.s8 %v6928
    %v6930 = vlaneseq
    %v6931 = vshrl.u32 %v6930, 7
    %v6932 = vsub.s32 %v6929, %v6931
    %v6933 = vrot.slane %v6919, %v6932
    %v6934 = vcombine.low %v6869, %v6885
    %v6935 = vcombine.high %v6869, %v6885
    %v6937 = vunpack.c.l.s4 1934713408
    %v6938 = vunpack.c.0.s8 %v6937
    %v6939 = vlaneseq
    %v6940 = vshrl.u32 %v6939, 7
    %v6941 = vsub.s32 %v6938, %v6940
    %v6942 = vrot.slane %v6934, %v6941
    %v6944 = vunpack.c.l.s4 1934713408
    %v6945 = vunpack.c.0.s8 %v6944
    %v6946 = vlaneseq
    %v6947 = vshrl.u32 %v6946, 7
    %v6948 = vsub.s32 %v6945, %v6947
    %v6949 = vrot.slane %v6935, %v6948
    %v6950 = vcombine.low %v6894, %v6910
    %v6951 = vcombine.high %v6894, %v6910
    %v6953 = vunpack.c.l.s4 1934713408
    %v6954 = vunpack.c.0.s8 %v6953
    %v6955 = vlaneseq
    %v6956 = vshrl.u32 %v6955, 7
    %v6957 = vsub.s32 %v6954, %v6956
    %v6958 = vrot.slane %v6950, %v6957
    %v6960 = vunpack.c.l.s4 1934713408
    %v6961 = vunpack.c.0.s8 %v6960
    %v6962 = vlaneseq
    %v6963 = vshrl.u32 %v6962, 7
    %v6964 = vsub.s32 %v6961, %v6963
    %v6965 = vrot.slane %v6951, %v6964
    %v6966 = vcombine.low %v6901, %v6917
    %v6967 = vcombine.high %v6901, %v6917
    %v6969 = vunpack.c.l.s4 1934713408
    %v6970 = vunpack.c.0.s8 %v6969
    %v6971 = vlaneseq
    %v6972 = vshrl.u32 %v6971, 7
    %v6973 = vsub.s32 %v6970, %v6972
    %v6974 = vrot.slane %v6966, %v6973
    %v6976 = vunpack.c.l.s4 1934713408
    %v6977 = vunpack.c.0.s8 %v6976
    %v6978 = vlaneseq
    %v6979 = vshrl.u32 %v6978, 7
    %v6980 = vsub.s32 %v6977, %v6979
    %v6981 = vrot.slane %v6967, %v6980
    %v6982 = vcombine.low %v6926, %v6958
    %v6983 = vcombine.high %v6926, %v6958
    %v6984 = vcombine.low %v6933, %v6965
    %v6985 = vcombine.high %v6933, %v6965
    %v6986 = vcombine.low %v6942, %v6974
    %v6987 = vcombine.high %v6942, %v6974
    %v6988 = vcombine.low %v6949, %v6981
    %v6989 = vcombine.high %v6949, %v6981
    %v6990 = vcombine.low %v6846, %v6848
    %v6991 = vcombine.high %v6846, %v6848
    %v6993 = vunpack.c.l.s4 1983009808
    %v6994 = vunpack.c.0.s8 %v6993
    %v6995 = vlaneseq
    %v6996 = vshrl.u32 %v6995, 7
    %v6997 = vsub.s32 %v6994, %v6996
    %v6998 = vrot.slane %v6990, %v6997
    %v7000 = vunpack.c.l.s4 1983009808
    %v7001 = vunpack.c.0.s8 %v7000
    %v7002 = vlaneseq
    %v7003 = vshrl.u32 %v7002, 7
    %v7004 = vsub.s32 %v7001, %v7003
    %v7005 = vrot.slane %v6991, %v7004
    %v7006 = vcombine.low %v6847, %v6849
    %v7007 = vcombine.high %v6847, %v6849
    %v7009 = vunpack.c.l.s4 1983009808
    %v7010 = vunpack.c.0.s8 %v7009
    %v7011 = vlaneseq
    %v7012 = vshrl.u32 %v7011, 7
    %v7013 = vsub.s32 %v7010, %v7012
    %v7014 = vrot.slane %v7006, %v7013
    %v7016 = vunpack.c.l.s4 1983009808
    %v7017 = vunpack.c.0.s8 %v7016
    %v7018 = vlaneseq
    %v7019 = vshrl.u32 %v7018, 7
    %v7020 = vsub.s32 %v7017, %v7019
    %v7021 = vrot.slane %v7007, %v7020
    %v7022 = vcombine.low %v6850, %v6852
    %v7023 = vcombine.high %v6850, %v6852
    %v7025 = vunpack.c.l.s4 1983009808
    %v7026 = vunpack.c.0.s8 %v7025
    %v7027 = vlaneseq
    %v7028 = vshrl.u32 %v7027, 7
    %v7029 = vsub.s32 %v7026, %v7028
    %v7030 = vrot.slane %v7022, %v7029
    %v7032 = vunpack.c.l.s4 1983009808
    %v7033 = vunpack.c.0.s8 %v7032
    %v7034 = vlaneseq
    %v7035 = vshrl.u32 %v7034, 7
    %v7036 = vsub.s32 %v7033, %v7035
    %v7037 = vrot.slane %v7023, %v7036
    %v7038 = vcombine.low %v6851, %v6853
    %v7039 = vcombine.high %v6851, %v6853
    %v7041 = vunpack.c.l.s4 1983009808
    %v7042 = vunpack.c.0.s8 %v7041
    %v7043 = vlaneseq
    %v7044 = vshrl.u32 %v7043, 7
    %v7045 = vsub.s32 %v7042, %v7044
    %v7046 = vrot.slane %v7038, %v7045
    %v7048 = vunpack.c.l.s4 1983009808
    %v7049 = vunpack.c.0.s8 %v7048
    %v7050 = vlaneseq
    %v7051 = vshrl.u32 %v7050, 7
    %v7052 = vsub.s32 %v7049, %v7051
    %v7053 = vrot.slane %v7039, %v7052
    %v7054 = vcombine.low %v6998, %v7014
    %v7055 = vcombine.high %v6998, %v7014
    %v7057 = vunpack.c.l.s4 1934713408
    %v7058 = vunpack.c.0.s8 %v7057
    %v7059 = vlaneseq
    %v7060 = vshrl.u32 %v7059, 7
    %v7061 = vsub.s32 %v7058, %v7060
    %v7062 = vrot.slane %v7054, %v7061
    %v7064 = vunpack.c.l.s4 1934713408
    %v7065 = vunpack.c.0.s8 %v7064
    %v7066 = vlaneseq
    %v7067 = vshrl.u32 %v7066, 7
    %v7068 = vsub.s32 %v7065, %v7067
    %v7069 = vrot.slane %v7055, %v7068
    %v7070 = vcombine.low %v7005, %v7021
    %v7071 = vcombine.high %v7005, %v7021
    %v7073 = vunpack.c.l.s4 1934713408
    %v7074 = vunpack.c.0.s8 %v7073
    %v7075 = vlaneseq
    %v7076 = vshrl.u32 %v7075, 7
    %v7077 = vsub.s32 %v7074, %v7076
    %v7078 = vrot.slane %v7070, %v7077
    %v7080 = vunpack.c.l.s4 1934713408
    %v7081 = vunpack.c.0.s8 %v7080
    %v7082 = vlaneseq
    %v7083 = vshrl.u32 %v7082, 7
    %v7084 = vsub.s32 %v7081, %v7083
    %v7085 = vrot.slane %v7071, %v7084
    %v7086 = vcombine.low %v7030, %v7046
    %v7087 = vcombine.high %v7030, %v7046
    %v7089 = vunpack.c.l.s4 1934713408
    %v7090 = vunpack.c.0.s8 %v7089
    %v7091 = vlaneseq
    %v7092 = vshrl.u32 %v7091, 7
    %v7093 = vsub.s32 %v7090, %v7092
    %v7094 = vrot.slane %v7086, %v7093
    %v7096 = vunpack.c.l.s4 1934713408
    %v7097 = vunpack.c.0.s8 %v7096
    %v7098 = vlaneseq
    %v7099 = vshrl.u32 %v7098, 7
    %v7100 = vsub.s32 %v7097, %v7099
    %v7101 = vrot.slane %v7087, %v7100
    %v7102 = vcombine.low %v7037, %v7053
    %v7103 = vcombine.high %v7037, %v7053
    %v7105 = vunpack.c.l.s4 1934713408
    %v7106 = vunpack.c.0.s8 %v7105
    %v7107 = vlaneseq
    %v7108 = vshrl.u32 %v7107, 7
    %v7109 = vsub.s32 %v7106, %v7108
    %v7110 = vrot.slane %v7102, %v7109
    %v7112 = vunpack.c.l.s4 1934713408
    %v7113 = vunpack.c.0.s8 %v7112
    %v7114 = vlaneseq
    %v7115 = vshrl.u32 %v7114, 7
    %v7116 = vsub.s32 %v7113, %v7115
    %v7117 = vrot.slane %v7103, %v7116
    %v7118 = vcombine.low %v7062, %v7094
    %v7119 = vcombine.high %v7062, %v7094
    %v7120 = vcombine.low %v7069, %v7101
    %v7121 = vcombine.high %v7069, %v7101
    %v7122 = vcombine.low %v7078, %v7110
    %v7123 = vcombine.high %v7078, %v7110
    %v7124 = vcombine.low %v7085, %v7117
    %v7125 = vcombine.high %v7085, %v7117
    %v7126 = vcombine.low %v6982, %v6984
    %v7127 = vcombine.high %v6982, %v6984
    %v7129 = vunpack.c.l.s4 1983009808
    %v7130 = vunpack.c.0.s8 %v7129
    %v7131 = vlaneseq
    %v7132 = vshrl.u32 %v7131, 7
    %v7133 = vsub.s32 %v7130, %v7132
    %v7134 = vrot.slane %v7126, %v7133
    %v7136 = vunpack.c.l.s4 1983009808
    %v7137 = vunpack.c.0.s8 %v7136
    %v7138 = vlaneseq
    %v7139 = vshrl.u32 %v7138, 7
    %v7140 = vsub.s32 %v7137, %v7139
    %v7141 = vrot.slane %v7127, %v7140
    %v7142 = vcombine.low %v6983, %v6985
    %v7143 = vcombine.high %v6983, %v6985
    %v7145 = vunpack.c.l.s4 1983009808
    %v7146 = vunpack.c.0.s8 %v7145
    %v7147 = vlaneseq
    %v7148 = vshrl.u32 %v7147, 7
    %v7149 = vsub.s32 %v7146, %v7148
    %v7150 = vrot.slane %v7142, %v7149
    %v7152 = vunpack.c.l.s4 1983009808
    %v7153 = vunpack.c.0.s8 %v7152
    %v7154 = vlaneseq
    %v7155 = vshrl.u32 %v7154, 7
    %v7156 = vsub.s32 %v7153, %v7155
    %v7157 = vrot.slane %v7143, %v7156
    %v7158 = vcombine.low %v6986, %v6988
    %v7159 = vcombine.high %v6986, %v6988
    %v7161 = vunpack.c.l.s4 1983009808
    %v7162 = vunpack.c.0.s8 %v7161
    %v7163 = vlaneseq
    %v7164 = vshrl.u32 %v7163, 7
    %v7165 = vsub.s32 %v7162, %v7164
    %v7166 = vrot.slane %v7158, %v7165
    %v7168 = vunpack.c.l.s4 1983009808
    %v7169 = vunpack.c.0.s8 %v7168
    %v7170 = vlaneseq
    %v7171 = vshrl.u32 %v7170, 7
    %v7172 = vsub.s32 %v7169, %v7171
    %v7173 = vrot.slane %v7159, %v7172
    %v7174 = vcombine.low %v6987, %v6989
    %v7175 = vcombine.high %v6987, %v6989
    %v7177 = vunpack.c.l.s4 1983009808
    %v7178 = vunpack.c.0.s8 %v7177
    %v7179 = vlaneseq
    %v7180 = vshrl.u32 %v7179, 7
    %v7181 = vsub.s32 %v7178, %v7180
    %v7182 = vrot.slane %v7174, %v7181
    %v7184 = vunpack.c.l.s4 1983009808
    %v7185 = vunpack.c.0.s8 %v7184
    %v7186 = vlaneseq
    %v7187 = vshrl.u32 %v7186, 7
    %v7188 = vsub.s32 %v7185, %v7187
    %v7189 = vrot.slane %v7175, %v7188
    %v7190 = vcombine.low %v7134, %v7150
    %v7191 = vcombine.high %v7134, %v7150
    %v7193 = vunpack.c.l.s4 1934713408
    %v7194 = vunpack.c.0.s8 %v7193
    %v7195 = vlaneseq
    %v7196 = vshrl.u32 %v7195, 7
    %v7197 = vsub.s32 %v7194, %v7196
    %v7198 = vrot.slane %v7190, %v7197
    %v7200 = vunpack.c.l.s4 1934713408
    %v7201 = vunpack.c.0.s8 %v7200
    %v7202 = vlaneseq
    %v7203 = vshrl.u32 %v7202, 7
    %v7204 = vsub.s32 %v7201, %v7203
    %v7205 = vrot.slane %v7191, %v7204
    %v7206 = vcombine.low %v7141, %v7157
    %v7207 = vcombine.high %v7141, %v7157
    %v7209 = vunpack.c.l.s4 1934713408
    %v7210 = vunpack.c.0.s8 %v7209
    %v7211 = vlaneseq
    %v7212 = vshrl.u32 %v7211, 7
    %v7213 = vsub.s32 %v7210, %v7212
    %v7214 = vrot.slane %v7206, %v7213
    %v7216 = vunpack.c.l.s4 1934713408
    %v7217 = vunpack.c.0.s8 %v7216
    %v7218 = vlaneseq
    %v7219 = vshrl.u32 %v7218, 7
    %v7220 = vsub.s32 %v7217, %v7219
    %v7221 = vrot.slane %v7207, %v7220
    %v7222 = vcombine.low %v7166, %v7182
    %v7223 = vcombine.high %v7166, %v7182
    %v7225 = vunpack.c.l.s4 1934713408
    %v7226 = vunpack.c.0.s8 %v7225
    %v7227 = vlaneseq
    %v7228 = vshrl.u32 %v7227, 7
    %v7229 = vsub.s32 %v7226, %v7228
    %v7230 = vrot.slane %v7222, %v7229
    %v7232 = vunpack.c.l.s4 1934713408
    %v7233 = vunpack.c.0.s8 %v7232
    %v7234 = vlaneseq
    %v7235 = vshrl.u32 %v7234, 7
    %v7236 = vsub.s32 %v7233, %v7235
    %v7237 = vrot.slane %v7223, %v7236
    %v7238 = vcombine.low %v7173, %v7189
    %v7239 = vcombine.high %v7173, %v7189
    %v7241 = vunpack.c.l.s4 1934713408
    %v7242 = vunpack.c.0.s8 %v7241
    %v7243 = vlaneseq
    %v7244 = vshrl.u32 %v7243, 7
    %v7245 = vsub.s32 %v7242, %v7244
    %v7246 = vrot.slane %v7238, %v7245
    %v7248 = vunpack.c.l.s4 1934713408
    %v7249 = vunpack.c.0.s8 %v7248
    %v7250 = vlaneseq
    %v7251 = vshrl.u32 %v7250, 7
    %v7252 = vsub.s32 %v7249, %v7251
    %v7253 = vrot.slane %v7239, %v7252
    %v7254 = vcombine.low %v7198, %v7230
    %v7255 = vcombine.high %v7198, %v7230
    %v7256 = vcombine.low %v7205, %v7237
    %v7257 = vcombine.high %v7205, %v7237
    %v7258 = vcombine.low %v7214, %v7246
    %v7259 = vcombine.high %v7214, %v7246
    %v7260 = vcombine.low %v7221, %v7253
    %v7261 = vcombine.high %v7221, %v7253
    %v7263 = vsel %vm2005, %v5938, 0
    %v7266 = vsel %vm2005, %v6526, 0
    %7268 = vmatprep.subr.mxu0 0.0
    %7269 = vmatpush1.xpose.msra.mxu0 %v7266
    %7270 = vmatprep.subr.mxu0 0.0
    %7271 = vmatpush1.xpose.msra.mxu0 0.0
    %7272 = vmatprep.subr.mxu0 0.0
    %7273 = vmatpush1.xpose.msra.mxu0 0.0
    %7274 = vmatprep.subr.mxu0 0.0
    %7275 = vmatpush1.xpose.msra.mxu0 0.0
    %7276 = vmatprep.subr.mxu0 0.0
    %7277 = vmatpush1.xpose.msra.mxu0 0.0
    %7278 = vmatprep.subr.mxu0 0.0
    %7279 = vmatpush1.xpose.msra.mxu0 0.0
    %7280 = vmatprep.subr.mxu0 0.0
    %7281 = vmatpush1.xpose.msra.mxu0 0.0
    %7282 = vmatprep.subr.mxu0 0.0
    %7283 = vmatpush1.xpose.msra.mxu0 0.0
    %7284 = vmatprep.subr.mxu0 0.0
    %7285 = vmatpush1.xpose.msra.mxu0 0.0
    %7286 = vmatprep.subr.mxu0 0.0
    %7287 = vmatpush1.xpose.msra.mxu0 0.0
    %7288 = vmatprep.subr.mxu0 0.0
    %7289 = vmatpush1.xpose.msra.mxu0 0.0
    %7290 = vmatprep.subr.mxu0 0.0
    %7291 = vmatpush1.xpose.msra.mxu0 0.0
    %7292 = vmatprep.subr.mxu0 0.0
    %7293 = vmatpush1.xpose.msra.mxu0 0.0
    %7294 = vmatprep.subr.mxu0 0.0
    %7295 = vmatpush1.xpose.msra.mxu0 0.0
    %7296 = vmatprep.subr.mxu0 0.0
    %7297 = vmatpush1.xpose.msra.mxu0 0.0
    %7298 = vmatprep.subr.mxu0 0.0
    %7299 = vmatpush1.xpose.msra.mxu0 0.0
    %7300 = vmatprep.subr.mxu0 0.0
    %7301 = vmatpush1.xpose.msra.mxu0 0.0
    %7302 = vmatprep.subr.mxu0 0.0
    %7303 = vmatpush1.xpose.msra.mxu0 0.0
    %7304 = vmatprep.subr.mxu0 0.0
    %7305 = vmatpush1.xpose.msra.mxu0 0.0
    %7306 = vmatprep.subr.mxu0 0.0
    %7307 = vmatpush1.xpose.msra.mxu0 0.0
    %7308 = vmatprep.subr.mxu0 0.0
    %7309 = vmatpush1.xpose.msra.mxu0 0.0
    %7310 = vmatprep.subr.mxu0 0.0
    %7311 = vmatpush1.xpose.msra.mxu0 0.0
    %7312 = vmatprep.subr.mxu0 0.0
    %7313 = vmatpush1.xpose.msra.mxu0 0.0
    %7314 = vmatprep.subr.mxu0 0.0
    %7315 = vmatpush1.xpose.msra.mxu0 0.0
    %7316 = vmatprep.subr.mxu0 0.0
    %7317 = vmatpush1.xpose.msra.mxu0 0.0
    %7318 = vmatprep.subr.mxu0 0.0
    %7319 = vmatpush1.xpose.msra.mxu0 0.0
    %7320 = vmatprep.subr.mxu0 0.0
    %7321 = vmatpush1.xpose.msra.mxu0 0.0
    %7322 = vmatprep.subr.mxu0 0.0
    %7323 = vmatpush1.xpose.msra.mxu0 0.0
    %7324 = vmatprep.subr.mxu0 0.0
    %7325 = vmatpush1.xpose.msra.mxu0 0.0
    %7326 = vmatprep.subr.mxu0 0.0
    %7327 = vmatpush1.xpose.msra.mxu0 0.0
    %7328 = vmatprep.subr.mxu0 0.0
    %7329 = vmatpush1.xpose.msra.mxu0 0.0
    %7330 = vmatprep.subr.mxu0 0.0
    %7331 = vmatpush1.xpose.msra.mxu0 0.0
    %7332 = vmatprep.mubr.f32.mxu0 0.0
    %7333 = vmatmul.mubr.f32.gmra.mrb[0].mxu0 %v7263
    %v7334 = vpop.f32.mrb[0].mxu0
    %v7335 = vadd.f32 0.0, %v7334
    %v7336 = vpop.f32.mrb[0].mxu0
    %7337 = vdwg.mxu0
    %v7339 = vsel %vm2005, %v5939, 0
    %v7342 = vsel %vm2005, %v6527, 0
    %7344 = vmatprep.subr.mxu0 0.0
    %7345 = vmatpush1.xpose.msra.mxu0 %v7342
    %7346 = vmatprep.subr.mxu0 0.0
    %7347 = vmatpush1.xpose.msra.mxu0 0.0
    %7348 = vmatprep.subr.mxu0 0.0
    %7349 = vmatpush1.xpose.msra.mxu0 0.0
    %7350 = vmatprep.subr.mxu0 0.0
    %7351 = vmatpush1.xpose.msra.mxu0 0.0
    %7352 = vmatprep.subr.mxu0 0.0
    %7353 = vmatpush1.xpose.msra.mxu0 0.0
    %7354 = vmatprep.subr.mxu0 0.0
    %7355 = vmatpush1.xpose.msra.mxu0 0.0
    %7356 = vmatprep.subr.mxu0 0.0
    %7357 = vmatpush1.xpose.msra.mxu0 0.0
    %7358 = vmatprep.subr.mxu0 0.0
    %7359 = vmatpush1.xpose.msra.mxu0 0.0
    %7360 = vmatprep.subr.mxu0 0.0
    %7361 = vmatpush1.xpose.msra.mxu0 0.0
    %7362 = vmatprep.subr.mxu0 0.0
    %7363 = vmatpush1.xpose.msra.mxu0 0.0
    %7364 = vmatprep.subr.mxu0 0.0
    %7365 = vmatpush1.xpose.msra.mxu0 0.0
    %7366 = vmatprep.subr.mxu0 0.0
    %7367 = vmatpush1.xpose.msra.mxu0 0.0
    %7368 = vmatprep.subr.mxu0 0.0
    %7369 = vmatpush1.xpose.msra.mxu0 0.0
    %7370 = vmatprep.subr.mxu0 0.0
    %7371 = vmatpush1.xpose.msra.mxu0 0.0
    %7372 = vmatprep.subr.mxu0 0.0
    %7373 = vmatpush1.xpose.msra.mxu0 0.0
    %7374 = vmatprep.subr.mxu0 0.0
    %7375 = vmatpush1.xpose.msra.mxu0 0.0
    %7376 = vmatprep.subr.mxu0 0.0
    %7377 = vmatpush1.xpose.msra.mxu0 0.0
    %7378 = vmatprep.subr.mxu0 0.0
    %7379 = vmatpush1.xpose.msra.mxu0 0.0
    %7380 = vmatprep.subr.mxu0 0.0
    %7381 = vmatpush1.xpose.msra.mxu0 0.0
    %7382 = vmatprep.subr.mxu0 0.0
    %7383 = vmatpush1.xpose.msra.mxu0 0.0
    %7384 = vmatprep.subr.mxu0 0.0
    %7385 = vmatpush1.xpose.msra.mxu0 0.0
    %7386 = vmatprep.subr.mxu0 0.0
    %7387 = vmatpush1.xpose.msra.mxu0 0.0
    %7388 = vmatprep.subr.mxu0 0.0
    %7389 = vmatpush1.xpose.msra.mxu0 0.0
    %7390 = vmatprep.subr.mxu0 0.0
    %7391 = vmatpush1.xpose.msra.mxu0 0.0
    %7392 = vmatprep.subr.mxu0 0.0
    %7393 = vmatpush1.xpose.msra.mxu0 0.0
    %7394 = vmatprep.subr.mxu0 0.0
    %7395 = vmatpush1.xpose.msra.mxu0 0.0
    %7396 = vmatprep.subr.mxu0 0.0
    %7397 = vmatpush1.xpose.msra.mxu0 0.0
    %7398 = vmatprep.subr.mxu0 0.0
    %7399 = vmatpush1.xpose.msra.mxu0 0.0
    %7400 = vmatprep.subr.mxu0 0.0
    %7401 = vmatpush1.xpose.msra.mxu0 0.0
    %7402 = vmatprep.subr.mxu0 0.0
    %7403 = vmatpush1.xpose.msra.mxu0 0.0
    %7404 = vmatprep.subr.mxu0 0.0
    %7405 = vmatpush1.xpose.msra.mxu0 0.0
    %7406 = vmatprep.subr.mxu0 0.0
    %7407 = vmatpush1.xpose.msra.mxu0 0.0
    %7408 = vmatprep.mubr.f32.mxu0 0.0
    %7409 = vmatmul.mubr.f32.gmra.mrb[0].mxu0 %v7339
    %v7410 = vpop.f32.mrb[0].mxu0
    %v7411 = vadd.f32 0.0, %v7410
    %v7412 = vpop.f32.mrb[0].mxu0
    %7413 = vdwg.mxu0
    %v7415 = vsel %vm2005, %v5940, 0
    %v7418 = vsel %vm2005, %v6528, 0
    %7420 = vmatprep.subr.mxu0 0.0
    %7421 = vmatpush1.xpose.msra.mxu0 %v7418
    %7422 = vmatprep.subr.mxu0 0.0
    %7423 = vmatpush1.xpose.msra.mxu0 0.0
    %7424 = vmatprep.subr.mxu0 0.0
    %7425 = vmatpush1.xpose.msra.mxu0 0.0
    %7426 = vmatprep.subr.mxu0 0.0
    %7427 = vmatpush1.xpose.msra.mxu0 0.0
    %7428 = vmatprep.subr.mxu0 0.0
    %7429 = vmatpush1.xpose.msra.mxu0 0.0
    %7430 = vmatprep.subr.mxu0 0.0
    %7431 = vmatpush1.xpose.msra.mxu0 0.0
    %7432 = vmatprep.subr.mxu0 0.0
    %7433 = vmatpush1.xpose.msra.mxu0 0.0
    %7434 = vmatprep.subr.mxu0 0.0
    %7435 = vmatpush1.xpose.msra.mxu0 0.0
    %7436 = vmatprep.subr.mxu0 0.0
    %7437 = vmatpush1.xpose.msra.mxu0 0.0
    %7438 = vmatprep.subr.mxu0 0.0
    %7439 = vmatpush1.xpose.msra.mxu0 0.0
    %7440 = vmatprep.subr.mxu0 0.0
    %7441 = vmatpush1.xpose.msra.mxu0 0.0
    %7442 = vmatprep.subr.mxu0 0.0
    %7443 = vmatpush1.xpose.msra.mxu0 0.0
    %7444 = vmatprep.subr.mxu0 0.0
    %7445 = vmatpush1.xpose.msra.mxu0 0.0
    %7446 = vmatprep.subr.mxu0 0.0
    %7447 = vmatpush1.xpose.msra.mxu0 0.0
    %7448 = vmatprep.subr.mxu0 0.0
    %7449 = vmatpush1.xpose.msra.mxu0 0.0
    %7450 = vmatprep.subr.mxu0 0.0
    %7451 = vmatpush1.xpose.msra.mxu0 0.0
    %7452 = vmatprep.subr.mxu0 0.0
    %7453 = vmatpush1.xpose.msra.mxu0 0.0
    %7454 = vmatprep.subr.mxu0 0.0
    %7455 = vmatpush1.xpose.msra.mxu0 0.0
    %7456 = vmatprep.subr.mxu0 0.0
    %7457 = vmatpush1.xpose.msra.mxu0 0.0
    %7458 = vmatprep.subr.mxu0 0.0
    %7459 = vmatpush1.xpose.msra.mxu0 0.0
    %7460 = vmatprep.subr.mxu0 0.0
    %7461 = vmatpush1.xpose.msra.mxu0 0.0
    %7462 = vmatprep.subr.mxu0 0.0
    %7463 = vmatpush1.xpose.msra.mxu0 0.0
    %7464 = vmatprep.subr.mxu0 0.0
    %7465 = vmatpush1.xpose.msra.mxu0 0.0
    %7466 = vmatprep.subr.mxu0 0.0
    %7467 = vmatpush1.xpose.msra.mxu0 0.0
    %7468 = vmatprep.subr.mxu0 0.0
    %7469 = vmatpush1.xpose.msra.mxu0 0.0
    %7470 = vmatprep.subr.mxu0 0.0
    %7471 = vmatpush1.xpose.msra.mxu0 0.0
    %7472 = vmatprep.subr.mxu0 0.0
    %7473 = vmatpush1.xpose.msra.mxu0 0.0
    %7474 = vmatprep.subr.mxu0 0.0
    %7475 = vmatpush1.xpose.msra.mxu0 0.0
    %7476 = vmatprep.subr.mxu0 0.0
    %7477 = vmatpush1.xpose.msra.mxu0 0.0
    %7478 = vmatprep.subr.mxu0 0.0
    %7479 = vmatpush1.xpose.msra.mxu0 0.0
    %7480 = vmatprep.subr.mxu0 0.0
    %7481 = vmatpush1.xpose.msra.mxu0 0.0
    %7482 = vmatprep.subr.mxu0 0.0
    %7483 = vmatpush1.xpose.msra.mxu0 0.0
    %7484 = vmatprep.mubr.f32.mxu0 0.0
    %7485 = vmatmul.mubr.f32.gmra.mrb[0].mxu0 %v7415
    %v7486 = vpop.f32.mrb[0].mxu0
    %v7487 = vadd.f32 0.0, %v7486
    %v7488 = vpop.f32.mrb[0].mxu0
    %7489 = vdwg.mxu0
    %v7491 = vsel %vm2005, %v5941, 0
    %v7494 = vsel %vm2005, %v6529, 0
    %7496 = vmatprep.subr.mxu0 0.0
    %7497 = vmatpush1.xpose.msra.mxu0 %v7494
    %7498 = vmatprep.subr.mxu0 0.0
    %7499 = vmatpush1.xpose.msra.mxu0 0.0
    %7500 = vmatprep.subr.mxu0 0.0
    %7501 = vmatpush1.xpose.msra.mxu0 0.0
    %7502 = vmatprep.subr.mxu0 0.0
    %7503 = vmatpush1.xpose.msra.mxu0 0.0
    %7504 = vmatprep.subr.mxu0 0.0
    %7505 = vmatpush1.xpose.msra.mxu0 0.0
    %7506 = vmatprep.subr.mxu0 0.0
    %7507 = vmatpush1.xpose.msra.mxu0 0.0
    %7508 = vmatprep.subr.mxu0 0.0
    %7509 = vmatpush1.xpose.msra.mxu0 0.0
    %7510 = vmatprep.subr.mxu0 0.0
    %7511 = vmatpush1.xpose.msra.mxu0 0.0
    %7512 = vmatprep.subr.mxu0 0.0
    %7513 = vmatpush1.xpose.msra.mxu0 0.0
    %7514 = vmatprep.subr.mxu0 0.0
    %7515 = vmatpush1.xpose.msra.mxu0 0.0
    %7516 = vmatprep.subr.mxu0 0.0
    %7517 = vmatpush1.xpose.msra.mxu0 0.0
    %7518 = vmatprep.subr.mxu0 0.0
    %7519 = vmatpush1.xpose.msra.mxu0 0.0
    %7520 = vmatprep.subr.mxu0 0.0
    %7521 = vmatpush1.xpose.msra.mxu0 0.0
    %7522 = vmatprep.subr.mxu0 0.0
    %7523 = vmatpush1.xpose.msra.mxu0 0.0
    %7524 = vmatprep.subr.mxu0 0.0
    %7525 = vmatpush1.xpose.msra.mxu0 0.0
    %7526 = vmatprep.subr.mxu0 0.0
    %7527 = vmatpush1.xpose.msra.mxu0 0.0
    %7528 = vmatprep.subr.mxu0 0.0
    %7529 = vmatpush1.xpose.msra.mxu0 0.0
    %7530 = vmatprep.subr.mxu0 0.0
    %7531 = vmatpush1.xpose.msra.mxu0 0.0
    %7532 = vmatprep.subr.mxu0 0.0
    %7533 = vmatpush1.xpose.msra.mxu0 0.0
    %7534 = vmatprep.subr.mxu0 0.0
    %7535 = vmatpush1.xpose.msra.mxu0 0.0
    %7536 = vmatprep.subr.mxu0 0.0
    %7537 = vmatpush1.xpose.msra.mxu0 0.0
    %7538 = vmatprep.subr.mxu0 0.0
    %7539 = vmatpush1.xpose.msra.mxu0 0.0
    %7540 = vmatprep.subr.mxu0 0.0
    %7541 = vmatpush1.xpose.msra.mxu0 0.0
    %7542 = vmatprep.subr.mxu0 0.0
    %7543 = vmatpush1.xpose.msra.mxu0 0.0
    %7544 = vmatprep.subr.mxu0 0.0
    %7545 = vmatpush1.xpose.msra.mxu0 0.0
    %7546 = vmatprep.subr.mxu0 0.0
    %7547 = vmatpush1.xpose.msra.mxu0 0.0
    %7548 = vmatprep.subr.mxu0 0.0
    %7549 = vmatpush1.xpose.msra.mxu0 0.0
    %7550 = vmatprep.subr.mxu0 0.0
    %7551 = vmatpush1.xpose.msra.mxu0 0.0
    %7552 = vmatprep.subr.mxu0 0.0
    %7553 = vmatpush1.xpose.msra.mxu0 0.0
    %7554 = vmatprep.subr.mxu0 0.0
    %7555 = vmatpush1.xpose.msra.mxu0 0.0
    %7556 = vmatprep.subr.mxu0 0.0
    %7557 = vmatpush1.xpose.msra.mxu0 0.0
    %7558 = vmatprep.subr.mxu0 0.0
    %7559 = vmatpush1.xpose.msra.mxu0 0.0
    %7560 = vmatprep.mubr.f32.mxu0 0.0
    %7561 = vmatmul.mubr.f32.gmra.mrb[0].mxu0 %v7491
    %v7562 = vpop.f32.mrb[0].mxu0
    %v7563 = vadd.f32 0.0, %v7562
    %v7564 = vpop.f32.mrb[0].mxu0
    %7565 = vdwg.mxu0
    %v7567 = vsel %vm2005, %v5942, 0
    %v7570 = vsel %vm2005, %v6530, 0
    %7572 = vmatprep.subr.mxu0 0.0
    %7573 = vmatpush1.xpose.msra.mxu0 %v7570
    %7574 = vmatprep.subr.mxu0 0.0
    %7575 = vmatpush1.xpose.msra.mxu0 0.0
    %7576 = vmatprep.subr.mxu0 0.0
    %7577 = vmatpush1.xpose.msra.mxu0 0.0
    %7578 = vmatprep.subr.mxu0 0.0
    %7579 = vmatpush1.xpose.msra.mxu0 0.0
    %7580 = vmatprep.subr.mxu0 0.0
    %7581 = vmatpush1.xpose.msra.mxu0 0.0
    %7582 = vmatprep.subr.mxu0 0.0
    %7583 = vmatpush1.xpose.msra.mxu0 0.0
    %7584 = vmatprep.subr.mxu0 0.0
    %7585 = vmatpush1.xpose.msra.mxu0 0.0
    %7586 = vmatprep.subr.mxu0 0.0
    %7587 = vmatpush1.xpose.msra.mxu0 0.0
    %7588 = vmatprep.subr.mxu0 0.0
    %7589 = vmatpush1.xpose.msra.mxu0 0.0
    %7590 = vmatprep.subr.mxu0 0.0
    %7591 = vmatpush1.xpose.msra.mxu0 0.0
    %7592 = vmatprep.subr.mxu0 0.0
    %7593 = vmatpush1.xpose.msra.mxu0 0.0
    %7594 = vmatprep.subr.mxu0 0.0
    %7595 = vmatpush1.xpose.msra.mxu0 0.0
    %7596 = vmatprep.subr.mxu0 0.0
    %7597 = vmatpush1.xpose.msra.mxu0 0.0
    %7598 = vmatprep.subr.mxu0 0.0
    %7599 = vmatpush1.xpose.msra.mxu0 0.0
    %7600 = vmatprep.subr.mxu0 0.0
    %7601 = vmatpush1.xpose.msra.mxu0 0.0
    %7602 = vmatprep.subr.mxu0 0.0
    %7603 = vmatpush1.xpose.msra.mxu0 0.0
    %7604 = vmatprep.subr.mxu0 0.0
    %7605 = vmatpush1.xpose.msra.mxu0 0.0
    %7606 = vmatprep.subr.mxu0 0.0
    %7607 = vmatpush1.xpose.msra.mxu0 0.0
    %7608 = vmatprep.subr.mxu0 0.0
    %7609 = vmatpush1.xpose.msra.mxu0 0.0
    %7610 = vmatprep.subr.mxu0 0.0
    %7611 = vmatpush1.xpose.msra.mxu0 0.0
    %7612 = vmatprep.subr.mxu0 0.0
    %7613 = vmatpush1.xpose.msra.mxu0 0.0
    %7614 = vmatprep.subr.mxu0 0.0
    %7615 = vmatpush1.xpose.msra.mxu0 0.0
    %7616 = vmatprep.subr.mxu0 0.0
    %7617 = vmatpush1.xpose.msra.mxu0 0.0
    %7618 = vmatprep.subr.mxu0 0.0
    %7619 = vmatpush1.xpose.msra.mxu0 0.0
    %7620 = vmatprep.subr.mxu0 0.0
    %7621 = vmatpush1.xpose.msra.mxu0 0.0
    %7622 = vmatprep.subr.mxu0 0.0
    %7623 = vmatpush1.xpose.msra.mxu0 0.0
    %7624 = vmatprep.subr.mxu0 0.0
    %7625 = vmatpush1.xpose.msra.mxu0 0.0
    %7626 = vmatprep.subr.mxu0 0.0
    %7627 = vmatpush1.xpose.msra.mxu0 0.0
    %7628 = vmatprep.subr.mxu0 0.0
    %7629 = vmatpush1.xpose.msra.mxu0 0.0
    %7630 = vmatprep.subr.mxu0 0.0
    %7631 = vmatpush1.xpose.msra.mxu0 0.0
    %7632 = vmatprep.subr.mxu0 0.0
    %7633 = vmatpush1.xpose.msra.mxu0 0.0
    %7634 = vmatprep.subr.mxu0 0.0
    %7635 = vmatpush1.xpose.msra.mxu0 0.0
    %7636 = vmatprep.mubr.f32.mxu0 0.0
    %7637 = vmatmul.mubr.f32.gmra.mrb[0].mxu0 %v7567
    %v7638 = vpop.f32.mrb[0].mxu0
    %v7639 = vadd.f32 0.0, %v7638
    %v7640 = vpop.f32.mrb[0].mxu0
    %7641 = vdwg.mxu0
    %v7643 = vsel %vm2005, %v5943, 0
    %v7646 = vsel %vm2005, %v6531, 0
    %7648 = vmatprep.subr.mxu0 0.0
    %7649 = vmatpush1.xpose.msra.mxu0 %v7646
    %7650 = vmatprep.subr.mxu0 0.0
    %7651 = vmatpush1.xpose.msra.mxu0 0.0
    %7652 = vmatprep.subr.mxu0 0.0
    %7653 = vmatpush1.xpose.msra.mxu0 0.0
    %7654 = vmatprep.subr.mxu0 0.0
    %7655 = vmatpush1.xpose.msra.mxu0 0.0
    %7656 = vmatprep.subr.mxu0 0.0
    %7657 = vmatpush1.xpose.msra.mxu0 0.0
    %7658 = vmatprep.subr.mxu0 0.0
    %7659 = vmatpush1.xpose.msra.mxu0 0.0
    %7660 = vmatprep.subr.mxu0 0.0
    %7661 = vmatpush1.xpose.msra.mxu0 0.0
    %7662 = vmatprep.subr.mxu0 0.0
    %7663 = vmatpush1.xpose.msra.mxu0 0.0
    %7664 = vmatprep.subr.mxu0 0.0
    %7665 = vmatpush1.xpose.msra.mxu0 0.0
    %7666 = vmatprep.subr.mxu0 0.0
    %7667 = vmatpush1.xpose.msra.mxu0 0.0
    %7668 = vmatprep.subr.mxu0 0.0
    %7669 = vmatpush1.xpose.msra.mxu0 0.0
    %7670 = vmatprep.subr.mxu0 0.0
    %7671 = vmatpush1.xpose.msra.mxu0 0.0
    %7672 = vmatprep.subr.mxu0 0.0
    %7673 = vmatpush1.xpose.msra.mxu0 0.0
    %7674 = vmatprep.subr.mxu0 0.0
    %7675 = vmatpush1.xpose.msra.mxu0 0.0
    %7676 = vmatprep.subr.mxu0 0.0
    %7677 = vmatpush1.xpose.msra.mxu0 0.0
    %7678 = vmatprep.subr.mxu0 0.0
    %7679 = vmatpush1.xpose.msra.mxu0 0.0
    %7680 = vmatprep.subr.mxu0 0.0
    %7681 = vmatpush1.xpose.msra.mxu0 0.0
    %7682 = vmatprep.subr.mxu0 0.0
    %7683 = vmatpush1.xpose.msra.mxu0 0.0
    %7684 = vmatprep.subr.mxu0 0.0
    %7685 = vmatpush1.xpose.msra.mxu0 0.0
    %7686 = vmatprep.subr.mxu0 0.0
    %7687 = vmatpush1.xpose.msra.mxu0 0.0
    %7688 = vmatprep.subr.mxu0 0.0
    %7689 = vmatpush1.xpose.msra.mxu0 0.0
    %7690 = vmatprep.subr.mxu0 0.0
    %7691 = vmatpush1.xpose.msra.mxu0 0.0
    %7692 = vmatprep.subr.mxu0 0.0
    %7693 = vmatpush1.xpose.msra.mxu0 0.0
    %7694 = vmatprep.subr.mxu0 0.0
    %7695 = vmatpush1.xpose.msra.mxu0 0.0
    %7696 = vmatprep.subr.mxu0 0.0
    %7697 = vmatpush1.xpose.msra.mxu0 0.0
    %7698 = vmatprep.subr.mxu0 0.0
    %7699 = vmatpush1.xpose.msra.mxu0 0.0
    %7700 = vmatprep.subr.mxu0 0.0
    %7701 = vmatpush1.xpose.msra.mxu0 0.0
    %7702 = vmatprep.subr.mxu0 0.0
    %7703 = vmatpush1.xpose.msra.mxu0 0.0
    %7704 = vmatprep.subr.mxu0 0.0
    %7705 = vmatpush1.xpose.msra.mxu0 0.0
    %7706 = vmatprep.subr.mxu0 0.0
    %7707 = vmatpush1.xpose.msra.mxu0 0.0
    %7708 = vmatprep.subr.mxu0 0.0
    %7709 = vmatpush1.xpose.msra.mxu0 0.0
    %7710 = vmatprep.subr.mxu0 0.0
    %7711 = vmatpush1.xpose.msra.mxu0 0.0
    %7712 = vmatprep.mubr.f32.mxu0 0.0
    %7713 = vmatmul.mubr.f32.gmra.mrb[0].mxu0 %v7643
    %v7714 = vpop.f32.mrb[0].mxu0
    %v7715 = vadd.f32 0.0, %v7714
    %v7716 = vpop.f32.mrb[0].mxu0
    %7717 = vdwg.mxu0
    %v7719 = vsel %vm2005, %v5944, 0
    %v7722 = vsel %vm2005, %v6532, 0
    %7724 = vmatprep.subr.mxu0 0.0
    %7725 = vmatpush1.xpose.msra.mxu0 %v7722
    %7726 = vmatprep.subr.mxu0 0.0
    %7727 = vmatpush1.xpose.msra.mxu0 0.0
    %7728 = vmatprep.subr.mxu0 0.0
    %7729 = vmatpush1.xpose.msra.mxu0 0.0
    %7730 = vmatprep.subr.mxu0 0.0
    %7731 = vmatpush1.xpose.msra.mxu0 0.0
    %7732 = vmatprep.subr.mxu0 0.0
    %7733 = vmatpush1.xpose.msra.mxu0 0.0
    %7734 = vmatprep.subr.mxu0 0.0
    %7735 = vmatpush1.xpose.msra.mxu0 0.0
    %7736 = vmatprep.subr.mxu0 0.0
    %7737 = vmatpush1.xpose.msra.mxu0 0.0
    %7738 = vmatprep.subr.mxu0 0.0
    %7739 = vmatpush1.xpose.msra.mxu0 0.0
    %7740 = vmatprep.subr.mxu0 0.0
    %7741 = vmatpush1.xpose.msra.mxu0 0.0
    %7742 = vmatprep.subr.mxu0 0.0
    %7743 = vmatpush1.xpose.msra.mxu0 0.0
    %7744 = vmatprep.subr.mxu0 0.0
    %7745 = vmatpush1.xpose.msra.mxu0 0.0
    %7746 = vmatprep.subr.mxu0 0.0
    %7747 = vmatpush1.xpose.msra.mxu0 0.0
    %7748 = vmatprep.subr.mxu0 0.0
    %7749 = vmatpush1.xpose.msra.mxu0 0.0
    %7750 = vmatprep.subr.mxu0 0.0
    %7751 = vmatpush1.xpose.msra.mxu0 0.0
    %7752 = vmatprep.subr.mxu0 0.0
    %7753 = vmatpush1.xpose.msra.mxu0 0.0
    %7754 = vmatprep.subr.mxu0 0.0
    %7755 = vmatpush1.xpose.msra.mxu0 0.0
    %7756 = vmatprep.subr.mxu0 0.0
    %7757 = vmatpush1.xpose.msra.mxu0 0.0
    %7758 = vmatprep.subr.mxu0 0.0
    %7759 = vmatpush1.xpose.msra.mxu0 0.0
    %7760 = vmatprep.subr.mxu0 0.0
    %7761 = vmatpush1.xpose.msra.mxu0 0.0
    %7762 = vmatprep.subr.mxu0 0.0
    %7763 = vmatpush1.xpose.msra.mxu0 0.0
    %7764 = vmatprep.subr.mxu0 0.0
    %7765 = vmatpush1.xpose.msra.mxu0 0.0
    %7766 = vmatprep.subr.mxu0 0.0
    %7767 = vmatpush1.xpose.msra.mxu0 0.0
    %7768 = vmatprep.subr.mxu0 0.0
    %7769 = vmatpush1.xpose.msra.mxu0 0.0
    %7770 = vmatprep.subr.mxu0 0.0
    %7771 = vmatpush1.xpose.msra.mxu0 0.0
    %7772 = vmatprep.subr.mxu0 0.0
    %7773 = vmatpush1.xpose.msra.mxu0 0.0
    %7774 = vmatprep.subr.mxu0 0.0
    %7775 = vmatpush1.xpose.msra.mxu0 0.0
    %7776 = vmatprep.subr.mxu0 0.0
    %7777 = vmatpush1.xpose.msra.mxu0 0.0
    %7778 = vmatprep.subr.mxu0 0.0
    %7779 = vmatpush1.xpose.msra.mxu0 0.0
    %7780 = vmatprep.subr.mxu0 0.0
    %7781 = vmatpush1.xpose.msra.mxu0 0.0
    %7782 = vmatprep.subr.mxu0 0.0
    %7783 = vmatpush1.xpose.msra.mxu0 0.0
    %7784 = vmatprep.subr.mxu0 0.0
    %7785 = vmatpush1.xpose.msra.mxu0 0.0
    %7786 = vmatprep.subr.mxu0 0.0
    %7787 = vmatpush1.xpose.msra.mxu0 0.0
    %7788 = vmatprep.mubr.f32.mxu0 0.0
    %7789 = vmatmul.mubr.f32.gmra.mrb[0].mxu0 %v7719
    %v7790 = vpop.f32.mrb[0].mxu0
    %v7791 = vadd.f32 0.0, %v7790
    %v7792 = vpop.f32.mrb[0].mxu0
    %7793 = vdwg.mxu0
    %v7795 = vsel %vm2005, %v5945, 0
    %v7798 = vsel %vm2005, %v6533, 0
    %7800 = vmatprep.subr.mxu0 0.0
    %7801 = vmatpush1.xpose.msra.mxu0 %v7798
    %7802 = vmatprep.subr.mxu0 0.0
    %7803 = vmatpush1.xpose.msra.mxu0 0.0
    %7804 = vmatprep.subr.mxu0 0.0
    %7805 = vmatpush1.xpose.msra.mxu0 0.0
    %7806 = vmatprep.subr.mxu0 0.0
    %7807 = vmatpush1.xpose.msra.mxu0 0.0
    %7808 = vmatprep.subr.mxu0 0.0
    %7809 = vmatpush1.xpose.msra.mxu0 0.0
    %7810 = vmatprep.subr.mxu0 0.0
    %7811 = vmatpush1.xpose.msra.mxu0 0.0
    %7812 = vmatprep.subr.mxu0 0.0
    %7813 = vmatpush1.xpose.msra.mxu0 0.0
    %7814 = vmatprep.subr.mxu0 0.0
    %7815 = vmatpush1.xpose.msra.mxu0 0.0
    %7816 = vmatprep.subr.mxu0 0.0
    %7817 = vmatpush1.xpose.msra.mxu0 0.0
    %7818 = vmatprep.subr.mxu0 0.0
    %7819 = vmatpush1.xpose.msra.mxu0 0.0
    %7820 = vmatprep.subr.mxu0 0.0
    %7821 = vmatpush1.xpose.msra.mxu0 0.0
    %7822 = vmatprep.subr.mxu0 0.0
    %7823 = vmatpush1.xpose.msra.mxu0 0.0
    %7824 = vmatprep.subr.mxu0 0.0
    %7825 = vmatpush1.xpose.msra.mxu0 0.0
    %7826 = vmatprep.subr.mxu0 0.0
    %7827 = vmatpush1.xpose.msra.mxu0 0.0
    %7828 = vmatprep.subr.mxu0 0.0
    %7829 = vmatpush1.xpose.msra.mxu0 0.0
    %7830 = vmatprep.subr.mxu0 0.0
    %7831 = vmatpush1.xpose.msra.mxu0 0.0
    %7832 = vmatprep.subr.mxu0 0.0
    %7833 = vmatpush1.xpose.msra.mxu0 0.0
    %7834 = vmatprep.subr.mxu0 0.0
    %7835 = vmatpush1.xpose.msra.mxu0 0.0
    %7836 = vmatprep.subr.mxu0 0.0
    %7837 = vmatpush1.xpose.msra.mxu0 0.0
    %7838 = vmatprep.subr.mxu0 0.0
    %7839 = vmatpush1.xpose.msra.mxu0 0.0
    %7840 = vmatprep.subr.mxu0 0.0
    %7841 = vmatpush1.xpose.msra.mxu0 0.0
    %7842 = vmatprep.subr.mxu0 0.0
    %7843 = vmatpush1.xpose.msra.mxu0 0.0
    %7844 = vmatprep.subr.mxu0 0.0
    %7845 = vmatpush1.xpose.msra.mxu0 0.0
    %7846 = vmatprep.subr.mxu0 0.0
    %7847 = vmatpush1.xpose.msra.mxu0 0.0
    %7848 = vmatprep.subr.mxu0 0.0
    %7849 = vmatpush1.xpose.msra.mxu0 0.0
    %7850 = vmatprep.subr.mxu0 0.0
    %7851 = vmatpush1.xpose.msra.mxu0 0.0
    %7852 = vmatprep.subr.mxu0 0.0
    %7853 = vmatpush1.xpose.msra.mxu0 0.0
    %7854 = vmatprep.subr.mxu0 0.0
    %7855 = vmatpush1.xpose.msra.mxu0 0.0
    %7856 = vmatprep.subr.mxu0 0.0
    %7857 = vmatpush1.xpose.msra.mxu0 0.0
    %7858 = vmatprep.subr.mxu0 0.0
    %7859 = vmatpush1.xpose.msra.mxu0 0.0
    %7860 = vmatprep.subr.mxu0 0.0
    %7861 = vmatpush1.xpose.msra.mxu0 0.0
    %7862 = vmatprep.subr.mxu0 0.0
    %7863 = vmatpush1.xpose.msra.mxu0 0.0
    %7864 = vmatprep.mubr.f32.mxu0 0.0
    %7865 = vmatmul.mubr.f32.gmra.mrb[0].mxu0 %v7795
    %v7866 = vpop.f32.mrb[0].mxu0
    %v7867 = vadd.f32 0.0, %v7866
    %v7868 = vpop.f32.mrb[0].mxu0
    %7869 = vdwg.mxu0
    %v7871 = vsel %vm2005, %v6074, 0
    %v7874 = vsel %vm2005, %v6662, 0
    %7876 = vmatprep.subr.mxu0 0.0
    %7877 = vmatpush1.xpose.msra.mxu0 %v7874
    %7878 = vmatprep.subr.mxu0 0.0
    %7879 = vmatpush1.xpose.msra.mxu0 0.0
    %7880 = vmatprep.subr.mxu0 0.0
    %7881 = vmatpush1.xpose.msra.mxu0 0.0
    %7882 = vmatprep.subr.mxu0 0.0
    %7883 = vmatpush1.xpose.msra.mxu0 0.0
    %7884 = vmatprep.subr.mxu0 0.0
    %7885 = vmatpush1.xpose.msra.mxu0 0.0
    %7886 = vmatprep.subr.mxu0 0.0
    %7887 = vmatpush1.xpose.msra.mxu0 0.0
    %7888 = vmatprep.subr.mxu0 0.0
    %7889 = vmatpush1.xpose.msra.mxu0 0.0
    %7890 = vmatprep.subr.mxu0 0.0
    %7891 = vmatpush1.xpose.msra.mxu0 0.0
    %7892 = vmatprep.subr.mxu0 0.0
    %7893 = vmatpush1.xpose.msra.mxu0 0.0
    %7894 = vmatprep.subr.mxu0 0.0
    %7895 = vmatpush1.xpose.msra.mxu0 0.0
    %7896 = vmatprep.subr.mxu0 0.0
    %7897 = vmatpush1.xpose.msra.mxu0 0.0
    %7898 = vmatprep.subr.mxu0 0.0
    %7899 = vmatpush1.xpose.msra.mxu0 0.0
    %7900 = vmatprep.subr.mxu0 0.0
    %7901 = vmatpush1.xpose.msra.mxu0 0.0
    %7902 = vmatprep.subr.mxu0 0.0
    %7903 = vmatpush1.xpose.msra.mxu0 0.0
    %7904 = vmatprep.subr.mxu0 0.0
    %7905 = vmatpush1.xpose.msra.mxu0 0.0
    %7906 = vmatprep.subr.mxu0 0.0
    %7907 = vmatpush1.xpose.msra.mxu0 0.0
    %7908 = vmatprep.subr.mxu0 0.0
    %7909 = vmatpush1.xpose.msra.mxu0 0.0
    %7910 = vmatprep.subr.mxu0 0.0
    %7911 = vmatpush1.xpose.msra.mxu0 0.0
    %7912 = vmatprep.subr.mxu0 0.0
    %7913 = vmatpush1.xpose.msra.mxu0 0.0
    %7914 = vmatprep.subr.mxu0 0.0
    %7915 = vmatpush1.xpose.msra.mxu0 0.0
    %7916 = vmatprep.subr.mxu0 0.0
    %7917 = vmatpush1.xpose.msra.mxu0 0.0
    %7918 = vmatprep.subr.mxu0 0.0
    %7919 = vmatpush1.xpose.msra.mxu0 0.0
    %7920 = vmatprep.subr.mxu0 0.0
    %7921 = vmatpush1.xpose.msra.mxu0 0.0
    %7922 = vmatprep.subr.mxu0 0.0
    %7923 = vmatpush1.xpose.msra.mxu0 0.0
    %7924 = vmatprep.subr.mxu0 0.0
    %7925 = vmatpush1.xpose.msra.mxu0 0.0
    %7926 = vmatprep.subr.mxu0 0.0
    %7927 = vmatpush1.xpose.msra.mxu0 0.0
    %7928 = vmatprep.subr.mxu0 0.0
    %7929 = vmatpush1.xpose.msra.mxu0 0.0
    %7930 = vmatprep.subr.mxu0 0.0
    %7931 = vmatpush1.xpose.msra.mxu0 0.0
    %7932 = vmatprep.subr.mxu0 0.0
    %7933 = vmatpush1.xpose.msra.mxu0 0.0
    %7934 = vmatprep.subr.mxu0 0.0
    %7935 = vmatpush1.xpose.msra.mxu0 0.0
    %7936 = vmatprep.subr.mxu0 0.0
    %7937 = vmatpush1.xpose.msra.mxu0 0.0
    %7938 = vmatprep.subr.mxu0 0.0
    %7939 = vmatpush1.xpose.msra.mxu0 0.0
    %7940 = vmatprep.mubr.f32.mxu0 0.0
    %7941 = vmatmul.mubr.f32.gmra.mrb[0].mxu0 %v7871
    %v7942 = vpop.f32.mrb[0].mxu0
    %v7943 = vadd.f32 0.0, %v7942
    %v7944 = vpop.f32.mrb[0].mxu0
    %7945 = vdwg.mxu0
    %v7947 = vsel %vm2005, %v6075, 0
    %v7950 = vsel %vm2005, %v6663, 0
    %7952 = vmatprep.subr.mxu0 0.0
    %7953 = vmatpush1.xpose.msra.mxu0 %v7950
    %7954 = vmatprep.subr.mxu0 0.0
    %7955 = vmatpush1.xpose.msra.mxu0 0.0
    %7956 = vmatprep.subr.mxu0 0.0
    %7957 = vmatpush1.xpose.msra.mxu0 0.0
    %7958 = vmatprep.subr.mxu0 0.0
    %7959 = vmatpush1.xpose.msra.mxu0 0.0
    %7960 = vmatprep.subr.mxu0 0.0
    %7961 = vmatpush1.xpose.msra.mxu0 0.0
    %7962 = vmatprep.subr.mxu0 0.0
    %7963 = vmatpush1.xpose.msra.mxu0 0.0
    %7964 = vmatprep.subr.mxu0 0.0
    %7965 = vmatpush1.xpose.msra.mxu0 0.0
    %7966 = vmatprep.subr.mxu0 0.0
    %7967 = vmatpush1.xpose.msra.mxu0 0.0
    %7968 = vmatprep.subr.mxu0 0.0
    %7969 = vmatpush1.xpose.msra.mxu0 0.0
    %7970 = vmatprep.subr.mxu0 0.0
    %7971 = vmatpush1.xpose.msra.mxu0 0.0
    %7972 = vmatprep.subr.mxu0 0.0
    %7973 = vmatpush1.xpose.msra.mxu0 0.0
    %7974 = vmatprep.subr.mxu0 0.0
    %7975 = vmatpush1.xpose.msra.mxu0 0.0
    %7976 = vmatprep.subr.mxu0 0.0
    %7977 = vmatpush1.xpose.msra.mxu0 0.0
    %7978 = vmatprep.subr.mxu0 0.0
    %7979 = vmatpush1.xpose.msra.mxu0 0.0
    %7980 = vmatprep.subr.mxu0 0.0
    %7981 = vmatpush1.xpose.msra.mxu0 0.0
    %7982 = vmatprep.subr.mxu0 0.0
    %7983 = vmatpush1.xpose.msra.mxu0 0.0
    %7984 = vmatprep.subr.mxu0 0.0
    %7985 = vmatpush1.xpose.msra.mxu0 0.0
    %7986 = vmatprep.subr.mxu0 0.0
    %7987 = vmatpush1.xpose.msra.mxu0 0.0
    %7988 = vmatprep.subr.mxu0 0.0
    %7989 = vmatpush1.xpose.msra.mxu0 0.0
    %7990 = vmatprep.subr.mxu0 0.0
    %7991 = vmatpush1.xpose.msra.mxu0 0.0
    %7992 = vmatprep.subr.mxu0 0.0
    %7993 = vmatpush1.xpose.msra.mxu0 0.0
    %7994 = vmatprep.subr.mxu0 0.0
    %7995 = vmatpush1.xpose.msra.mxu0 0.0
    %7996 = vmatprep.subr.mxu0 0.0
    %7997 = vmatpush1.xpose.msra.mxu0 0.0
    %7998 = vmatprep.subr.mxu0 0.0
    %7999 = vmatpush1.xpose.msra.mxu0 0.0
    %8000 = vmatprep.subr.mxu0 0.0
    %8001 = vmatpush1.xpose.msra.mxu0 0.0
    %8002 = vmatprep.subr.mxu0 0.0
    %8003 = vmatpush1.xpose.msra.mxu0 0.0
    %8004 = vmatprep.subr.mxu0 0.0
    %8005 = vmatpush1.xpose.msra.mxu0 0.0
    %8006 = vmatprep.subr.mxu0 0.0
    %8007 = vmatpush1.xpose.msra.mxu0 0.0
    %8008 = vmatprep.subr.mxu0 0.0
    %8009 = vmatpush1.xpose.msra.mxu0 0.0
    %8010 = vmatprep.subr.mxu0 0.0
    %8011 = vmatpush1.xpose.msra.mxu0 0.0
    %8012 = vmatprep.subr.mxu0 0.0
    %8013 = vmatpush1.xpose.msra.mxu0 0.0
    %8014 = vmatprep.subr.mxu0 0.0
    %8015 = vmatpush1.xpose.msra.mxu0 0.0
    %8016 = vmatprep.mubr.f32.mxu0 0.0
    %8017 = vmatmul.mubr.f32.gmra.mrb[0].mxu0 %v7947
    %v8018 = vpop.f32.mrb[0].mxu0
    %v8019 = vadd.f32 0.0, %v8018
    %v8020 = vpop.f32.mrb[0].mxu0
    %8021 = vdwg.mxu0
    %v8023 = vsel %vm2005, %v6076, 0
    %v8026 = vsel %vm2005, %v6664, 0
    %8028 = vmatprep.subr.mxu0 0.0
    %8029 = vmatpush1.xpose.msra.mxu0 %v8026
    %8030 = vmatprep.subr.mxu0 0.0
    %8031 = vmatpush1.xpose.msra.mxu0 0.0
    %8032 = vmatprep.subr.mxu0 0.0
    %8033 = vmatpush1.xpose.msra.mxu0 0.0
    %8034 = vmatprep.subr.mxu0 0.0
    %8035 = vmatpush1.xpose.msra.mxu0 0.0
    %8036 = vmatprep.subr.mxu0 0.0
    %8037 = vmatpush1.xpose.msra.mxu0 0.0
    %8038 = vmatprep.subr.mxu0 0.0
    %8039 = vmatpush1.xpose.msra.mxu0 0.0
    %8040 = vmatprep.subr.mxu0 0.0
    %8041 = vmatpush1.xpose.msra.mxu0 0.0
    %8042 = vmatprep.subr.mxu0 0.0
    %8043 = vmatpush1.xpose.msra.mxu0 0.0
    %8044 = vmatprep.subr.mxu0 0.0
    %8045 = vmatpush1.xpose.msra.mxu0 0.0
    %8046 = vmatprep.subr.mxu0 0.0
    %8047 = vmatpush1.xpose.msra.mxu0 0.0
    %8048 = vmatprep.subr.mxu0 0.0
    %8049 = vmatpush1.xpose.msra.mxu0 0.0
    %8050 = vmatprep.subr.mxu0 0.0
    %8051 = vmatpush1.xpose.msra.mxu0 0.0
    %8052 = vmatprep.subr.mxu0 0.0
    %8053 = vmatpush1.xpose.msra.mxu0 0.0
    %8054 = vmatprep.subr.mxu0 0.0
    %8055 = vmatpush1.xpose.msra.mxu0 0.0
    %8056 = vmatprep.subr.mxu0 0.0
    %8057 = vmatpush1.xpose.msra.mxu0 0.0
    %8058 = vmatprep.subr.mxu0 0.0
    %8059 = vmatpush1.xpose.msra.mxu0 0.0
    %8060 = vmatprep.subr.mxu0 0.0
    %8061 = vmatpush1.xpose.msra.mxu0 0.0
    %8062 = vmatprep.subr.mxu0 0.0
    %8063 = vmatpush1.xpose.msra.mxu0 0.0
    %8064 = vmatprep.subr.mxu0 0.0
    %8065 = vmatpush1.xpose.msra.mxu0 0.0
    %8066 = vmatprep.subr.mxu0 0.0
    %8067 = vmatpush1.xpose.msra.mxu0 0.0
    %8068 = vmatprep.subr.mxu0 0.0
    %8069 = vmatpush1.xpose.msra.mxu0 0.0
    %8070 = vmatprep.subr.mxu0 0.0
    %8071 = vmatpush1.xpose.msra.mxu0 0.0
    %8072 = vmatprep.subr.mxu0 0.0
    %8073 = vmatpush1.xpose.msra.mxu0 0.0
    %8074 = vmatprep.subr.mxu0 0.0
    %8075 = vmatpush1.xpose.msra.mxu0 0.0
    %8076 = vmatprep.subr.mxu0 0.0
    %8077 = vmatpush1.xpose.msra.mxu0 0.0
    %8078 = vmatprep.subr.mxu0 0.0
    %8079 = vmatpush1.xpose.msra.mxu0 0.0
    %8080 = vmatprep.subr.mxu0 0.0
    %8081 = vmatpush1.xpose.msra.mxu0 0.0
    %8082 = vmatprep.subr.mxu0 0.0
    %8083 = vmatpush1.xpose.msra.mxu0 0.0
    %8084 = vmatprep.subr.mxu0 0.0
    %8085 = vmatpush1.xpose.msra.mxu0 0.0
    %8086 = vmatprep.subr.mxu0 0.0
    %8087 = vmatpush1.xpose.msra.mxu0 0.0
    %8088 = vmatprep.subr.mxu0 0.0
    %8089 = vmatpush1.xpose.msra.mxu0 0.0
    %8090 = vmatprep.subr.mxu0 0.0
    %8091 = vmatpush1.xpose.msra.mxu0 0.0
    %8092 = vmatprep.mubr.f32.mxu0 0.0
    %8093 = vmatmul.mubr.f32.gmra.mrb[0].mxu0 %v8023
    %v8094 = vpop.f32.mrb[0].mxu0
    %v8095 = vadd.f32 0.0, %v8094
    %v8096 = vpop.f32.mrb[0].mxu0
    %8097 = vdwg.mxu0
    %v8099 = vsel %vm2005, %v6077, 0
    %v8102 = vsel %vm2005, %v6665, 0
    %8104 = vmatprep.subr.mxu0 0.0
    %8105 = vmatpush1.xpose.msra.mxu0 %v8102
    %8106 = vmatprep.subr.mxu0 0.0
    %8107 = vmatpush1.xpose.msra.mxu0 0.0
    %8108 = vmatprep.subr.mxu0 0.0
    %8109 = vmatpush1.xpose.msra.mxu0 0.0
    %8110 = vmatprep.subr.mxu0 0.0
    %8111 = vmatpush1.xpose.msra.mxu0 0.0
    %8112 = vmatprep.subr.mxu0 0.0
    %8113 = vmatpush1.xpose.msra.mxu0 0.0
    %8114 = vmatprep.subr.mxu0 0.0
    %8115 = vmatpush1.xpose.msra.mxu0 0.0
    %8116 = vmatprep.subr.mxu0 0.0
    %8117 = vmatpush1.xpose.msra.mxu0 0.0
    %8118 = vmatprep.subr.mxu0 0.0
    %8119 = vmatpush1.xpose.msra.mxu0 0.0
    %8120 = vmatprep.subr.mxu0 0.0
    %8121 = vmatpush1.xpose.msra.mxu0 0.0
    %8122 = vmatprep.subr.mxu0 0.0
    %8123 = vmatpush1.xpose.msra.mxu0 0.0
    %8124 = vmatprep.subr.mxu0 0.0
    %8125 = vmatpush1.xpose.msra.mxu0 0.0
    %8126 = vmatprep.subr.mxu0 0.0
    %8127 = vmatpush1.xpose.msra.mxu0 0.0
    %8128 = vmatprep.subr.mxu0 0.0
    %8129 = vmatpush1.xpose.msra.mxu0 0.0
    %8130 = vmatprep.subr.mxu0 0.0
    %8131 = vmatpush1.xpose.msra.mxu0 0.0
    %8132 = vmatprep.subr.mxu0 0.0
    %8133 = vmatpush1.xpose.msra.mxu0 0.0
    %8134 = vmatprep.subr.mxu0 0.0
    %8135 = vmatpush1.xpose.msra.mxu0 0.0
    %8136 = vmatprep.subr.mxu0 0.0
    %8137 = vmatpush1.xpose.msra.mxu0 0.0
    %8138 = vmatprep.subr.mxu0 0.0
    %8139 = vmatpush1.xpose.msra.mxu0 0.0
    %8140 = vmatprep.subr.mxu0 0.0
    %8141 = vmatpush1.xpose.msra.mxu0 0.0
    %8142 = vmatprep.subr.mxu0 0.0
    %8143 = vmatpush1.xpose.msra.mxu0 0.0
    %8144 = vmatprep.subr.mxu0 0.0
    %8145 = vmatpush1.xpose.msra.mxu0 0.0
    %8146 = vmatprep.subr.mxu0 0.0
    %8147 = vmatpush1.xpose.msra.mxu0 0.0
    %8148 = vmatprep.subr.mxu0 0.0
    %8149 = vmatpush1.xpose.msra.mxu0 0.0
    %8150 = vmatprep.subr.mxu0 0.0
    %8151 = vmatpush1.xpose.msra.mxu0 0.0
    %8152 = vmatprep.subr.mxu0 0.0
    %8153 = vmatpush1.xpose.msra.mxu0 0.0
    %8154 = vmatprep.subr.mxu0 0.0
    %8155 = vmatpush1.xpose.msra.mxu0 0.0
    %8156 = vmatprep.subr.mxu0 0.0
    %8157 = vmatpush1.xpose.msra.mxu0 0.0
    %8158 = vmatprep.subr.mxu0 0.0
    %8159 = vmatpush1.xpose.msra.mxu0 0.0
    %8160 = vmatprep.subr.mxu0 0.0
    %8161 = vmatpush1.xpose.msra.mxu0 0.0
    %8162 = vmatprep.subr.mxu0 0.0
    %8163 = vmatpush1.xpose.msra.mxu0 0.0
    %8164 = vmatprep.subr.mxu0 0.0
    %8165 = vmatpush1.xpose.msra.mxu0 0.0
    %8166 = vmatprep.subr.mxu0 0.0
    %8167 = vmatpush1.xpose.msra.mxu0 0.0
    %8168 = vmatprep.mubr.f32.mxu0 0.0
    %8169 = vmatmul.mubr.f32.gmra.mrb[0].mxu0 %v8099
    %v8170 = vpop.f32.mrb[0].mxu0
    %v8171 = vadd.f32 0.0, %v8170
    %v8172 = vpop.f32.mrb[0].mxu0
    %8173 = vdwg.mxu0
    %v8175 = vsel %vm2005, %v6078, 0
    %v8178 = vsel %vm2005, %v6666, 0
    %8180 = vmatprep.subr.mxu0 0.0
    %8181 = vmatpush1.xpose.msra.mxu0 %v8178
    %8182 = vmatprep.subr.mxu0 0.0
    %8183 = vmatpush1.xpose.msra.mxu0 0.0
    %8184 = vmatprep.subr.mxu0 0.0
    %8185 = vmatpush1.xpose.msra.mxu0 0.0
    %8186 = vmatprep.subr.mxu0 0.0
    %8187 = vmatpush1.xpose.msra.mxu0 0.0
    %8188 = vmatprep.subr.mxu0 0.0
    %8189 = vmatpush1.xpose.msra.mxu0 0.0
    %8190 = vmatprep.subr.mxu0 0.0
    %8191 = vmatpush1.xpose.msra.mxu0 0.0
    %8192 = vmatprep.subr.mxu0 0.0
    %8193 = vmatpush1.xpose.msra.mxu0 0.0
    %8194 = vmatprep.subr.mxu0 0.0
    %8195 = vmatpush1.xpose.msra.mxu0 0.0
    %8196 = vmatprep.subr.mxu0 0.0
    %8197 = vmatpush1.xpose.msra.mxu0 0.0
    %8198 = vmatprep.subr.mxu0 0.0
    %8199 = vmatpush1.xpose.msra.mxu0 0.0
    %8200 = vmatprep.subr.mxu0 0.0
    %8201 = vmatpush1.xpose.msra.mxu0 0.0
    %8202 = vmatprep.subr.mxu0 0.0
    %8203 = vmatpush1.xpose.msra.mxu0 0.0
    %8204 = vmatprep.subr.mxu0 0.0
    %8205 = vmatpush1.xpose.msra.mxu0 0.0
    %8206 = vmatprep.subr.mxu0 0.0
    %8207 = vmatpush1.xpose.msra.mxu0 0.0
    %8208 = vmatprep.subr.mxu0 0.0
    %8209 = vmatpush1.xpose.msra.mxu0 0.0
    %8210 = vmatprep.subr.mxu0 0.0
    %8211 = vmatpush1.xpose.msra.mxu0 0.0
    %8212 = vmatprep.subr.mxu0 0.0
    %8213 = vmatpush1.xpose.msra.mxu0 0.0
    %8214 = vmatprep.subr.mxu0 0.0
    %8215 = vmatpush1.xpose.msra.mxu0 0.0
    %8216 = vmatprep.subr.mxu0 0.0
    %8217 = vmatpush1.xpose.msra.mxu0 0.0
    %8218 = vmatprep.subr.mxu0 0.0
    %8219 = vmatpush1.xpose.msra.mxu0 0.0
    %8220 = vmatprep.subr.mxu0 0.0
    %8221 = vmatpush1.xpose.msra.mxu0 0.0
    %8222 = vmatprep.subr.mxu0 0.0
    %8223 = vmatpush1.xpose.msra.mxu0 0.0
    %8224 = vmatprep.subr.mxu0 0.0
    %8225 = vmatpush1.xpose.msra.mxu0 0.0
    %8226 = vmatprep.subr.mxu0 0.0
    %8227 = vmatpush1.xpose.msra.mxu0 0.0
    %8228 = vmatprep.subr.mxu0 0.0
    %8229 = vmatpush1.xpose.msra.mxu0 0.0
    %8230 = vmatprep.subr.mxu0 0.0
    %8231 = vmatpush1.xpose.msra.mxu0 0.0
    %8232 = vmatprep.subr.mxu0 0.0
    %8233 = vmatpush1.xpose.msra.mxu0 0.0
    %8234 = vmatprep.subr.mxu0 0.0
    %8235 = vmatpush1.xpose.msra.mxu0 0.0
    %8236 = vmatprep.subr.mxu0 0.0
    %8237 = vmatpush1.xpose.msra.mxu0 0.0
    %8238 = vmatprep.subr.mxu0 0.0
    %8239 = vmatpush1.xpose.msra.mxu0 0.0
    %8240 = vmatprep.subr.mxu0 0.0
    %8241 = vmatpush1.xpose.msra.mxu0 0.0
    %8242 = vmatprep.subr.mxu0 0.0
    %8243 = vmatpush1.xpose.msra.mxu0 0.0
    %8244 = vmatprep.mubr.f32.mxu0 0.0
    %8245 = vmatmul.mubr.f32.gmra.mrb[0].mxu0 %v8175
    %v8246 = vpop.f32.mrb[0].mxu0
    %v8247 = vadd.f32 0.0, %v8246
    %v8248 = vpop.f32.mrb[0].mxu0
    %8249 = vdwg.mxu0
    %v8251 = vsel %vm2005, %v6079, 0
    %v8254 = vsel %vm2005, %v6667, 0
    %8256 = vmatprep.subr.mxu0 0.0
    %8257 = vmatpush1.xpose.msra.mxu0 %v8254
    %8258 = vmatprep.subr.mxu0 0.0
    %8259 = vmatpush1.xpose.msra.mxu0 0.0
    %8260 = vmatprep.subr.mxu0 0.0
    %8261 = vmatpush1.xpose.msra.mxu0 0.0
    %8262 = vmatprep.subr.mxu0 0.0
    %8263 = vmatpush1.xpose.msra.mxu0 0.0
    %8264 = vmatprep.subr.mxu0 0.0
    %8265 = vmatpush1.xpose.msra.mxu0 0.0
    %8266 = vmatprep.subr.mxu0 0.0
    %8267 = vmatpush1.xpose.msra.mxu0 0.0
    %8268 = vmatprep.subr.mxu0 0.0
    %8269 = vmatpush1.xpose.msra.mxu0 0.0
    %8270 = vmatprep.subr.mxu0 0.0
    %8271 = vmatpush1.xpose.msra.mxu0 0.0
    %8272 = vmatprep.subr.mxu0 0.0
    %8273 = vmatpush1.xpose.msra.mxu0 0.0
    %8274 = vmatprep.subr.mxu0 0.0
    %8275 = vmatpush1.xpose.msra.mxu0 0.0
    %8276 = vmatprep.subr.mxu0 0.0
    %8277 = vmatpush1.xpose.msra.mxu0 0.0
    %8278 = vmatprep.subr.mxu0 0.0
    %8279 = vmatpush1.xpose.msra.mxu0 0.0
    %8280 = vmatprep.subr.mxu0 0.0
    %8281 = vmatpush1.xpose.msra.mxu0 0.0
    %8282 = vmatprep.subr.mxu0 0.0
    %8283 = vmatpush1.xpose.msra.mxu0 0.0
    %8284 = vmatprep.subr.mxu0 0.0
    %8285 = vmatpush1.xpose.msra.mxu0 0.0
    %8286 = vmatprep.subr.mxu0 0.0
    %8287 = vmatpush1.xpose.msra.mxu0 0.0
    %8288 = vmatprep.subr.mxu0 0.0
    %8289 = vmatpush1.xpose.msra.mxu0 0.0
    %8290 = vmatprep.subr.mxu0 0.0
    %8291 = vmatpush1.xpose.msra.mxu0 0.0
    %8292 = vmatprep.subr.mxu0 0.0
    %8293 = vmatpush1.xpose.msra.mxu0 0.0
    %8294 = vmatprep.subr.mxu0 0.0
    %8295 = vmatpush1.xpose.msra.mxu0 0.0
    %8296 = vmatprep.subr.mxu0 0.0
    %8297 = vmatpush1.xpose.msra.mxu0 0.0
    %8298 = vmatprep.subr.mxu0 0.0
    %8299 = vmatpush1.xpose.msra.mxu0 0.0
    %8300 = vmatprep.subr.mxu0 0.0
    %8301 = vmatpush1.xpose.msra.mxu0 0.0
    %8302 = vmatprep.subr.mxu0 0.0
    %8303 = vmatpush1.xpose.msra.mxu0 0.0
    %8304 = vmatprep.subr.mxu0 0.0
    %8305 = vmatpush1.xpose.msra.mxu0 0.0
    %8306 = vmatprep.subr.mxu0 0.0
    %8307 = vmatpush1.xpose.msra.mxu0 0.0
    %8308 = vmatprep.subr.mxu0 0.0
    %8309 = vmatpush1.xpose.msra.mxu0 0.0
    %8310 = vmatprep.subr.mxu0 0.0
    %8311 = vmatpush1.xpose.msra.mxu0 0.0
    %8312 = vmatprep.subr.mxu0 0.0
    %8313 = vmatpush1.xpose.msra.mxu0 0.0
    %8314 = vmatprep.subr.mxu0 0.0
    %8315 = vmatpush1.xpose.msra.mxu0 0.0
    %8316 = vmatprep.subr.mxu0 0.0
    %8317 = vmatpush1.xpose.msra.mxu0 0.0
    %8318 = vmatprep.subr.mxu0 0.0
    %8319 = vmatpush1.xpose.msra.mxu0 0.0
    %8320 = vmatprep.mubr.f32.mxu0 0.0
    %8321 = vmatmul.mubr.f32.gmra.mrb[0].mxu0 %v8251
    %v8322 = vpop.f32.mrb[0].mxu0
    %v8323 = vadd.f32 0.0, %v8322
    %v8324 = vpop.f32.mrb[0].mxu0
    %8325 = vdwg.mxu0
    %v8327 = vsel %vm2005, %v6080, 0
    %v8330 = vsel %vm2005, %v6668, 0
    %8332 = vmatprep.subr.mxu0 0.0
    %8333 = vmatpush1.xpose.msra.mxu0 %v8330
    %8334 = vmatprep.subr.mxu0 0.0
    %8335 = vmatpush1.xpose.msra.mxu0 0.0
    %8336 = vmatprep.subr.mxu0 0.0
    %8337 = vmatpush1.xpose.msra.mxu0 0.0
    %8338 = vmatprep.subr.mxu0 0.0
    %8339 = vmatpush1.xpose.msra.mxu0 0.0
    %8340 = vmatprep.subr.mxu0 0.0
    %8341 = vmatpush1.xpose.msra.mxu0 0.0
    %8342 = vmatprep.subr.mxu0 0.0
    %8343 = vmatpush1.xpose.msra.mxu0 0.0
    %8344 = vmatprep.subr.mxu0 0.0
    %8345 = vmatpush1.xpose.msra.mxu0 0.0
    %8346 = vmatprep.subr.mxu0 0.0
    %8347 = vmatpush1.xpose.msra.mxu0 0.0
    %8348 = vmatprep.subr.mxu0 0.0
    %8349 = vmatpush1.xpose.msra.mxu0 0.0
    %8350 = vmatprep.subr.mxu0 0.0
    %8351 = vmatpush1.xpose.msra.mxu0 0.0
    %8352 = vmatprep.subr.mxu0 0.0
    %8353 = vmatpush1.xpose.msra.mxu0 0.0
    %8354 = vmatprep.subr.mxu0 0.0
    %8355 = vmatpush1.xpose.msra.mxu0 0.0
    %8356 = vmatprep.subr.mxu0 0.0
    %8357 = vmatpush1.xpose.msra.mxu0 0.0
    %8358 = vmatprep.subr.mxu0 0.0
    %8359 = vmatpush1.xpose.msra.mxu0 0.0
    %8360 = vmatprep.subr.mxu0 0.0
    %8361 = vmatpush1.xpose.msra.mxu0 0.0
    %8362 = vmatprep.subr.mxu0 0.0
    %8363 = vmatpush1.xpose.msra.mxu0 0.0
    %8364 = vmatprep.subr.mxu0 0.0
    %8365 = vmatpush1.xpose.msra.mxu0 0.0
    %8366 = vmatprep.subr.mxu0 0.0
    %8367 = vmatpush1.xpose.msra.mxu0 0.0
    %8368 = vmatprep.subr.mxu0 0.0
    %8369 = vmatpush1.xpose.msra.mxu0 0.0
    %8370 = vmatprep.subr.mxu0 0.0
    %8371 = vmatpush1.xpose.msra.mxu0 0.0
    %8372 = vmatprep.subr.mxu0 0.0
    %8373 = vmatpush1.xpose.msra.mxu0 0.0
    %8374 = vmatprep.subr.mxu0 0.0
    %8375 = vmatpush1.xpose.msra.mxu0 0.0
    %8376 = vmatprep.subr.mxu0 0.0
    %8377 = vmatpush1.xpose.msra.mxu0 0.0
    %8378 = vmatprep.subr.mxu0 0.0
    %8379 = vmatpush1.xpose.msra.mxu0 0.0
    %8380 = vmatprep.subr.mxu0 0.0
    %8381 = vmatpush1.xpose.msra.mxu0 0.0
    %8382 = vmatprep.subr.mxu0 0.0
    %8383 = vmatpush1.xpose.msra.mxu0 0.0
    %8384 = vmatprep.subr.mxu0 0.0
    %8385 = vmatpush1.xpose.msra.mxu0 0.0
    %8386 = vmatprep.subr.mxu0 0.0
    %8387 = vmatpush1.xpose.msra.mxu0 0.0
    %8388 = vmatprep.subr.mxu0 0.0
    %8389 = vmatpush1.xpose.msra.mxu0 0.0
    %8390 = vmatprep.subr.mxu0 0.0
    %8391 = vmatpush1.xpose.msra.mxu0 0.0
    %8392 = vmatprep.subr.mxu0 0.0
    %8393 = vmatpush1.xpose.msra.mxu0 0.0
    %8394 = vmatprep.subr.mxu0 0.0
    %8395 = vmatpush1.xpose.msra.mxu0 0.0
    %8396 = vmatprep.mubr.f32.mxu0 0.0
    %8397 = vmatmul.mubr.f32.gmra.mrb[0].mxu0 %v8327
    %v8398 = vpop.f32.mrb[0].mxu0
    %v8399 = vadd.f32 0.0, %v8398
    %v8400 = vpop.f32.mrb[0].mxu0
    %8401 = vdwg.mxu0
    %v8403 = vsel %vm2005, %v6081, 0
    %v8406 = vsel %vm2005, %v6669, 0
    %8408 = vmatprep.subr.mxu0 0.0
    %8409 = vmatpush1.xpose.msra.mxu0 %v8406
    %8410 = vmatprep.subr.mxu0 0.0
    %8411 = vmatpush1.xpose.msra.mxu0 0.0
    %8412 = vmatprep.subr.mxu0 0.0
    %8413 = vmatpush1.xpose.msra.mxu0 0.0
    %8414 = vmatprep.subr.mxu0 0.0
    %8415 = vmatpush1.xpose.msra.mxu0 0.0
    %8416 = vmatprep.subr.mxu0 0.0
    %8417 = vmatpush1.xpose.msra.mxu0 0.0
    %8418 = vmatprep.subr.mxu0 0.0
    %8419 = vmatpush1.xpose.msra.mxu0 0.0
    %8420 = vmatprep.subr.mxu0 0.0
    %8421 = vmatpush1.xpose.msra.mxu0 0.0
    %8422 = vmatprep.subr.mxu0 0.0
    %8423 = vmatpush1.xpose.msra.mxu0 0.0
    %8424 = vmatprep.subr.mxu0 0.0
    %8425 = vmatpush1.xpose.msra.mxu0 0.0
    %8426 = vmatprep.subr.mxu0 0.0
    %8427 = vmatpush1.xpose.msra.mxu0 0.0
    %8428 = vmatprep.subr.mxu0 0.0
    %8429 = vmatpush1.xpose.msra.mxu0 0.0
    %8430 = vmatprep.subr.mxu0 0.0
    %8431 = vmatpush1.xpose.msra.mxu0 0.0
    %8432 = vmatprep.subr.mxu0 0.0
    %8433 = vmatpush1.xpose.msra.mxu0 0.0
    %8434 = vmatprep.subr.mxu0 0.0
    %8435 = vmatpush1.xpose.msra.mxu0 0.0
    %8436 = vmatprep.subr.mxu0 0.0
    %8437 = vmatpush1.xpose.msra.mxu0 0.0
    %8438 = vmatprep.subr.mxu0 0.0
    %8439 = vmatpush1.xpose.msra.mxu0 0.0
    %8440 = vmatprep.subr.mxu0 0.0
    %8441 = vmatpush1.xpose.msra.mxu0 0.0
    %8442 = vmatprep.subr.mxu0 0.0
    %8443 = vmatpush1.xpose.msra.mxu0 0.0
    %8444 = vmatprep.subr.mxu0 0.0
    %8445 = vmatpush1.xpose.msra.mxu0 0.0
    %8446 = vmatprep.subr.mxu0 0.0
    %8447 = vmatpush1.xpose.msra.mxu0 0.0
    %8448 = vmatprep.subr.mxu0 0.0
    %8449 = vmatpush1.xpose.msra.mxu0 0.0
    %8450 = vmatprep.subr.mxu0 0.0
    %8451 = vmatpush1.xpose.msra.mxu0 0.0
    %8452 = vmatprep.subr.mxu0 0.0
    %8453 = vmatpush1.xpose.msra.mxu0 0.0
    %8454 = vmatprep.subr.mxu0 0.0
    %8455 = vmatpush1.xpose.msra.mxu0 0.0
    %8456 = vmatprep.subr.mxu0 0.0
    %8457 = vmatpush1.xpose.msra.mxu0 0.0
    %8458 = vmatprep.subr.mxu0 0.0
    %8459 = vmatpush1.xpose.msra.mxu0 0.0
    %8460 = vmatprep.subr.mxu0 0.0
    %8461 = vmatpush1.xpose.msra.mxu0 0.0
    %8462 = vmatprep.subr.mxu0 0.0
    %8463 = vmatpush1.xpose.msra.mxu0 0.0
    %8464 = vmatprep.subr.mxu0 0.0
    %8465 = vmatpush1.xpose.msra.mxu0 0.0
    %8466 = vmatprep.subr.mxu0 0.0
    %8467 = vmatpush1.xpose.msra.mxu0 0.0
    %8468 = vmatprep.subr.mxu0 0.0
    %8469 = vmatpush1.xpose.msra.mxu0 0.0
    %8470 = vmatprep.subr.mxu0 0.0
    %8471 = vmatpush1.xpose.msra.mxu0 0.0
    %8472 = vmatprep.mubr.f32.mxu0 0.0
    %8473 = vmatmul.mubr.f32.gmra.mrb[0].mxu0 %v8403
    %v8474 = vpop.f32.mrb[0].mxu0
    %v8475 = vadd.f32 0.0, %v8474
    %v8476 = vpop.f32.mrb[0].mxu0
    %8477 = vdwg.mxu0
    %v8478 = vsel %vm3222, %v7335, -inf
    %8479 = vmax.xlane.f32.xlu0 %v8478
    %v8480 = vpop.xlane.xlu0 %8479
    %v8481 = vsel %vm3222, %v7411, -inf
    %8482 = vmax.xlane.f32.xlu0 %v8481
    %v8483 = vpop.xlane.xlu0 %8482
    %v8484 = vsel %vm3222, %v7487, -inf
    %8485 = vmax.xlane.f32.xlu0 %v8484
    %v8486 = vpop.xlane.xlu0 %8485
    %v8487 = vsel %vm3222, %v7563, -inf
    %8488 = vmax.xlane.f32.xlu0 %v8487
    %v8489 = vpop.xlane.xlu0 %8488
    %v8490 = vsel %vm3222, %v7639, -inf
    %8491 = vmax.xlane.f32.xlu0 %v8490
    %v8492 = vpop.xlane.xlu0 %8491
    %v8493 = vsel %vm3222, %v7715, -inf
    %8494 = vmax.xlane.f32.xlu0 %v8493
    %v8495 = vpop.xlane.xlu0 %8494
    %v8496 = vsel %vm3222, %v7791, -inf
    %8497 = vmax.xlane.f32.xlu0 %v8496
    %v8498 = vpop.xlane.xlu0 %8497
    %v8499 = vsel %vm3222, %v7867, -inf
    %8500 = vmax.xlane.f32.xlu0 %v8499
    %v8501 = vpop.xlane.xlu0 %8500
    %v8502 = vsel %vm3222, %v7943, -inf
    %8503 = vmax.xlane.f32.xlu0 %v8502
    %v8504 = vpop.xlane.xlu0 %8503
    %v8505 = vsel %vm3222, %v8019, -inf
    %8506 = vmax.xlane.f32.xlu0 %v8505
    %v8507 = vpop.xlane.xlu0 %8506
    %v8508 = vsel %vm3222, %v8095, -inf
    %8509 = vmax.xlane.f32.xlu0 %v8508
    %v8510 = vpop.xlane.xlu0 %8509
    %v8511 = vsel %vm3222, %v8171, -inf
    %8512 = vmax.xlane.f32.xlu0 %v8511
    %v8513 = vpop.xlane.xlu0 %8512
    %v8514 = vsel %vm3222, %v8247, -inf
    %8515 = vmax.xlane.f32.xlu0 %v8514
    %v8516 = vpop.xlane.xlu0 %8515
    %v8517 = vsel %vm3222, %v8323, -inf
    %8518 = vmax.xlane.f32.xlu0 %v8517
    %v8519 = vpop.xlane.xlu0 %8518
    %v8520 = vsel %vm3222, %v8399, -inf
    %8521 = vmax.xlane.f32.xlu0 %v8520
    %v8522 = vpop.xlane.xlu0 %8521
    %v8523 = vsel %vm3222, %v8475, -inf
    %8524 = vmax.xlane.f32.xlu0 %v8523
    %v8525 = vpop.xlane.xlu0 %8524
    %v8526 = vsub.f32 %v7335, %v8480
    %v8527 = vsub.f32 %v7411, %v8483
    %v8528 = vsub.f32 %v7487, %v8486
    %v8529 = vsub.f32 %v7563, %v8489
    %v8530 = vsub.f32 %v7639, %v8492
    %v8531 = vsub.f32 %v7715, %v8495
    %v8532 = vsub.f32 %v7791, %v8498
    %v8533 = vsub.f32 %v7867, %v8501
    %v8534 = vsub.f32 %v7943, %v8504
    %v8535 = vsub.f32 %v8019, %v8507
    %v8536 = vsub.f32 %v8095, %v8510
    %v8537 = vsub.f32 %v8171, %v8513
    %v8538 = vsub.f32 %v8247, %v8516
    %v8539 = vsub.f32 %v8323, %v8519
    %v8540 = vsub.f32 %v8399, %v8522
    %v8541 = vsub.f32 %v8475, %v8525
    %v8542 = vmul.f32 %v8526, 1.442695
    %v8543 = vpow.pop %v8542
    %v8544 = vmul.f32 %v8527, 1.442695
    %v8545 = vpow.pop %v8544
    %v8546 = vmul.f32 %v8528, 1.442695
    %v8547 = vpow.pop %v8546
    %v8548 = vmul.f32 %v8529, 1.442695
    %v8549 = vpow.pop %v8548
    %v8550 = vmul.f32 %v8530, 1.442695
    %v8551 = vpow.pop %v8550
    %v8552 = vmul.f32 %v8531, 1.442695
    %v8553 = vpow.pop %v8552
    %v8554 = vmul.f32 %v8532, 1.442695
    %v8555 = vpow.pop %v8554
    %v8556 = vmul.f32 %v8533, 1.442695
    %v8557 = vpow.pop %v8556
    %v8558 = vmul.f32 %v8534, 1.442695
    %v8559 = vpow.pop %v8558
    %v8560 = vmul.f32 %v8535, 1.442695
    %v8561 = vpow.pop %v8560
    %v8562 = vmul.f32 %v8536, 1.442695
    %v8563 = vpow.pop %v8562
    %v8564 = vmul.f32 %v8537, 1.442695
    %v8565 = vpow.pop %v8564
    %v8566 = vmul.f32 %v8538, 1.442695
    %v8567 = vpow.pop %v8566
    %v8568 = vmul.f32 %v8539, 1.442695
    %v8569 = vpow.pop %v8568
    %v8570 = vmul.f32 %v8540, 1.442695
    %v8571 = vpow.pop %v8570
    %v8572 = vmul.f32 %v8541, 1.442695
    %v8573 = vpow.pop %v8572
    %v8574 = vsel %vm3222, %v8543, 0.0
    %8575 = vadd.xlane.f32.xlu0 %v8574
    %v8576 = vpop.xlane.xlu0 %8575
    %v8577 = vsel %vm3222, %v8545, 0.0
    %8578 = vadd.xlane.f32.xlu0 %v8577
    %v8579 = vpop.xlane.xlu0 %8578
    %v8580 = vsel %vm3222, %v8547, 0.0
    %8581 = vadd.xlane.f32.xlu0 %v8580
    %v8582 = vpop.xlane.xlu0 %8581
    %v8583 = vsel %vm3222, %v8549, 0.0
    %8584 = vadd.xlane.f32.xlu0 %v8583
    %v8585 = vpop.xlane.xlu0 %8584
    %v8586 = vsel %vm3222, %v8551, 0.0
    %8587 = vadd.xlane.f32.xlu0 %v8586
    %v8588 = vpop.xlane.xlu0 %8587
    %v8589 = vsel %vm3222, %v8553, 0.0
    %8590 = vadd.xlane.f32.xlu0 %v8589
    %v8591 = vpop.xlane.xlu0 %8590
    %v8592 = vsel %vm3222, %v8555, 0.0
    %8593 = vadd.xlane.f32.xlu0 %v8592
    %v8594 = vpop.xlane.xlu0 %8593
    %v8595 = vsel %vm3222, %v8557, 0.0
    %8596 = vadd.xlane.f32.xlu0 %v8595
    %v8597 = vpop.xlane.xlu0 %8596
    %v8598 = vsel %vm3222, %v8559, 0.0
    %8599 = vadd.xlane.f32.xlu0 %v8598
    %v8600 = vpop.xlane.xlu0 %8599
    %v8601 = vsel %vm3222, %v8561, 0.0
    %8602 = vadd.xlane.f32.xlu0 %v8601
    %v8603 = vpop.xlane.xlu0 %8602
    %v8604 = vsel %vm3222, %v8563, 0.0
    %8605 = vadd.xlane.f32.xlu0 %v8604
    %v8606 = vpop.xlane.xlu0 %8605
    %v8607 = vsel %vm3222, %v8565, 0.0
    %8608 = vadd.xlane.f32.xlu0 %v8607
    %v8609 = vpop.xlane.xlu0 %8608
    %v8610 = vsel %vm3222, %v8567, 0.0
    %8611 = vadd.xlane.f32.xlu0 %v8610
    %v8612 = vpop.xlane.xlu0 %8611
    %v8613 = vsel %vm3222, %v8569, 0.0
    %8614 = vadd.xlane.f32.xlu0 %v8613
    %v8615 = vpop.xlane.xlu0 %8614
    %v8616 = vsel %vm3222, %v8571, 0.0
    %8617 = vadd.xlane.f32.xlu0 %v8616
    %v8618 = vpop.xlane.xlu0 %8617
    %v8619 = vsel %vm3222, %v8573, 0.0
    %8620 = vadd.xlane.f32.xlu0 %v8619
    %v8621 = vpop.xlane.xlu0 %8620
    %v8622 = vrcp.pop %v8576
    %v8623 = vrcp.pop %v8579
    %v8624 = vrcp.pop %v8582
    %v8625 = vrcp.pop %v8585
    %v8626 = vrcp.pop %v8588
    %v8627 = vrcp.pop %v8591
    %v8628 = vrcp.pop %v8594
    %v8629 = vrcp.pop %v8597
    %v8630 = vrcp.pop %v8600
    %v8631 = vrcp.pop %v8603
    %v8632 = vrcp.pop %v8606
    %v8633 = vrcp.pop %v8609
    %v8634 = vrcp.pop %v8612
    %v8635 = vrcp.pop %v8615
    %v8636 = vrcp.pop %v8618
    %v8637 = vrcp.pop %v8621
    %v8638 = vmul.f32 %v8543, %v8622
    %v8639 = vmul.f32 %v8545, %v8623
    %v8640 = vmul.f32 %v8547, %v8624
    %v8641 = vmul.f32 %v8549, %v8625
    %v8642 = vmul.f32 %v8551, %v8626
    %v8643 = vmul.f32 %v8553, %v8627
    %v8644 = vmul.f32 %v8555, %v8628
    %v8645 = vmul.f32 %v8557, %v8629
    %v8646 = vmul.f32 %v8559, %v8630
    %v8647 = vmul.f32 %v8561, %v8631
    %v8648 = vmul.f32 %v8563, %v8632
    %v8649 = vmul.f32 %v8565, %v8633
    %v8650 = vmul.f32 %v8567, %v8634
    %v8651 = vmul.f32 %v8569, %v8635
    %v8652 = vmul.f32 %v8571, %v8636
    %v8653 = vmul.f32 %v8573, %v8637
    %v8655 = vsel %vm3222, %v8638, 0
    %8657 = vmatprep.subr.mxu0 0.0
    %8658 = vmatpush1.msra.mxu0 %v7118
    %8659 = vmatprep.subr.mxu0 0.0
    %8660 = vmatpush1.msra.mxu0 0.0
    %8661 = vmatprep.subr.mxu0 0.0
    %8662 = vmatpush1.msra.mxu0 0.0
    %8663 = vmatprep.subr.mxu0 0.0
    %8664 = vmatpush1.msra.mxu0 0.0
    %8665 = vmatprep.subr.mxu0 0.0
    %8666 = vmatpush1.msra.mxu0 0.0
    %8667 = vmatprep.subr.mxu0 0.0
    %8668 = vmatpush1.msra.mxu0 0.0
    %8669 = vmatprep.subr.mxu0 0.0
    %8670 = vmatpush1.msra.mxu0 0.0
    %8671 = vmatprep.subr.mxu0 0.0
    %8672 = vmatpush1.msra.mxu0 0.0
    %8673 = vmatprep.subr.mxu0 0.0
    %8674 = vmatpush1.msra.mxu0 0.0
    %8675 = vmatprep.subr.mxu0 0.0
    %8676 = vmatpush1.msra.mxu0 0.0
    %8677 = vmatprep.subr.mxu0 0.0
    %8678 = vmatpush1.msra.mxu0 0.0
    %8679 = vmatprep.subr.mxu0 0.0
    %8680 = vmatpush1.msra.mxu0 0.0
    %8681 = vmatprep.subr.mxu0 0.0
    %8682 = vmatpush1.msra.mxu0 0.0
    %8683 = vmatprep.subr.mxu0 0.0
    %8684 = vmatpush1.msra.mxu0 0.0
    %8685 = vmatprep.subr.mxu0 0.0
    %8686 = vmatpush1.msra.mxu0 0.0
    %8687 = vmatprep.subr.mxu0 0.0
    %8688 = vmatpush1.msra.mxu0 0.0
    %8689 = vmatprep.subr.mxu0 0.0
    %8690 = vmatpush1.msra.mxu0 0.0
    %8691 = vmatprep.subr.mxu0 0.0
    %8692 = vmatpush1.msra.mxu0 0.0
    %8693 = vmatprep.subr.mxu0 0.0
    %8694 = vmatpush1.msra.mxu0 0.0
    %8695 = vmatprep.subr.mxu0 0.0
    %8696 = vmatpush1.msra.mxu0 0.0
    %8697 = vmatprep.subr.mxu0 0.0
    %8698 = vmatpush1.msra.mxu0 0.0
    %8699 = vmatprep.subr.mxu0 0.0
    %8700 = vmatpush1.msra.mxu0 0.0
    %8701 = vmatprep.subr.mxu0 0.0
    %8702 = vmatpush1.msra.mxu0 0.0
    %8703 = vmatprep.subr.mxu0 0.0
    %8704 = vmatpush1.msra.mxu0 0.0
    %8705 = vmatprep.subr.mxu0 0.0
    %8706 = vmatpush1.msra.mxu0 0.0
    %8707 = vmatprep.subr.mxu0 0.0
    %8708 = vmatpush1.msra.mxu0 0.0
    %8709 = vmatprep.subr.mxu0 0.0
    %8710 = vmatpush1.msra.mxu0 0.0
    %8711 = vmatprep.subr.mxu0 0.0
    %8712 = vmatpush1.msra.mxu0 0.0
    %8713 = vmatprep.subr.mxu0 0.0
    %8714 = vmatpush1.msra.mxu0 0.0
    %8715 = vmatprep.subr.mxu0 0.0
    %8716 = vmatpush1.msra.mxu0 0.0
    %8717 = vmatprep.subr.mxu0 0.0
    %8718 = vmatpush1.msra.mxu0 0.0
    %8719 = vmatprep.subr.mxu0 0.0
    %8720 = vmatpush1.msra.mxu0 0.0
    %8721 = vmatprep.mubr.f32.mxu0 0.0
    %8722 = vmatmul.mubr.f32.gmra.mrb[0].mxu0 %v8655
    %v8723 = vpop.f32.mrb[0].mxu0
    %v8724 = vadd.f32 0.0, %v8723
    %v8725 = vpop.f32.mrb[0].mxu0
    %8726 = vdwg.mxu0
    %v8728 = vsel %vm3222, %v8639, 0
    %8730 = vmatprep.subr.mxu0 0.0
    %8731 = vmatpush1.msra.mxu0 %v7119
    %8732 = vmatprep.subr.mxu0 0.0
    %8733 = vmatpush1.msra.mxu0 0.0
    %8734 = vmatprep.subr.mxu0 0.0
    %8735 = vmatpush1.msra.mxu0 0.0
    %8736 = vmatprep.subr.mxu0 0.0
    %8737 = vmatpush1.msra.mxu0 0.0
    %8738 = vmatprep.subr.mxu0 0.0
    %8739 = vmatpush1.msra.mxu0 0.0
    %8740 = vmatprep.subr.mxu0 0.0
    %8741 = vmatpush1.msra.mxu0 0.0
    %8742 = vmatprep.subr.mxu0 0.0
    %8743 = vmatpush1.msra.mxu0 0.0
    %8744 = vmatprep.subr.mxu0 0.0
    %8745 = vmatpush1.msra.mxu0 0.0
    %8746 = vmatprep.subr.mxu0 0.0
    %8747 = vmatpush1.msra.mxu0 0.0
    %8748 = vmatprep.subr.mxu0 0.0
    %8749 = vmatpush1.msra.mxu0 0.0
    %8750 = vmatprep.subr.mxu0 0.0
    %8751 = vmatpush1.msra.mxu0 0.0
    %8752 = vmatprep.subr.mxu0 0.0
    %8753 = vmatpush1.msra.mxu0 0.0
    %8754 = vmatprep.subr.mxu0 0.0
    %8755 = vmatpush1.msra.mxu0 0.0
    %8756 = vmatprep.subr.mxu0 0.0
    %8757 = vmatpush1.msra.mxu0 0.0
    %8758 = vmatprep.subr.mxu0 0.0
    %8759 = vmatpush1.msra.mxu0 0.0
    %8760 = vmatprep.subr.mxu0 0.0
    %8761 = vmatpush1.msra.mxu0 0.0
    %8762 = vmatprep.subr.mxu0 0.0
    %8763 = vmatpush1.msra.mxu0 0.0
    %8764 = vmatprep.subr.mxu0 0.0
    %8765 = vmatpush1.msra.mxu0 0.0
    %8766 = vmatprep.subr.mxu0 0.0
    %8767 = vmatpush1.msra.mxu0 0.0
    %8768 = vmatprep.subr.mxu0 0.0
    %8769 = vmatpush1.msra.mxu0 0.0
    %8770 = vmatprep.subr.mxu0 0.0
    %8771 = vmatpush1.msra.mxu0 0.0
    %8772 = vmatprep.subr.mxu0 0.0
    %8773 = vmatpush1.msra.mxu0 0.0
    %8774 = vmatprep.subr.mxu0 0.0
    %8775 = vmatpush1.msra.mxu0 0.0
    %8776 = vmatprep.subr.mxu0 0.0
    %8777 = vmatpush1.msra.mxu0 0.0
    %8778 = vmatprep.subr.mxu0 0.0
    %8779 = vmatpush1.msra.mxu0 0.0
    %8780 = vmatprep.subr.mxu0 0.0
    %8781 = vmatpush1.msra.mxu0 0.0
    %8782 = vmatprep.subr.mxu0 0.0
    %8783 = vmatpush1.msra.mxu0 0.0
    %8784 = vmatprep.subr.mxu0 0.0
    %8785 = vmatpush1.msra.mxu0 0.0
    %8786 = vmatprep.subr.mxu0 0.0
    %8787 = vmatpush1.msra.mxu0 0.0
    %8788 = vmatprep.subr.mxu0 0.0
    %8789 = vmatpush1.msra.mxu0 0.0
    %8790 = vmatprep.subr.mxu0 0.0
    %8791 = vmatpush1.msra.mxu0 0.0
    %8792 = vmatprep.subr.mxu0 0.0
    %8793 = vmatpush1.msra.mxu0 0.0
    %8794 = vmatprep.mubr.f32.mxu0 0.0
    %8795 = vmatmul.mubr.f32.gmra.mrb[0].mxu0 %v8728
    %v8796 = vpop.f32.mrb[0].mxu0
    %v8797 = vadd.f32 0.0, %v8796
    %v8798 = vpop.f32.mrb[0].mxu0
    %8799 = vdwg.mxu0
    %v8801 = vsel %vm3222, %v8640, 0
    %8803 = vmatprep.subr.mxu0 0.0
    %8804 = vmatpush1.msra.mxu0 %v7120
    %8805 = vmatprep.subr.mxu0 0.0
    %8806 = vmatpush1.msra.mxu0 0.0
    %8807 = vmatprep.subr.mxu0 0.0
    %8808 = vmatpush1.msra.mxu0 0.0
    %8809 = vmatprep.subr.mxu0 0.0
    %8810 = vmatpush1.msra.mxu0 0.0
    %8811 = vmatprep.subr.mxu0 0.0
    %8812 = vmatpush1.msra.mxu0 0.0
    %8813 = vmatprep.subr.mxu0 0.0
    %8814 = vmatpush1.msra.mxu0 0.0
    %8815 = vmatprep.subr.mxu0 0.0
    %8816 = vmatpush1.msra.mxu0 0.0
    %8817 = vmatprep.subr.mxu0 0.0
    %8818 = vmatpush1.msra.mxu0 0.0
    %8819 = vmatprep.subr.mxu0 0.0
    %8820 = vmatpush1.msra.mxu0 0.0
    %8821 = vmatprep.subr.mxu0 0.0
    %8822 = vmatpush1.msra.mxu0 0.0
    %8823 = vmatprep.subr.mxu0 0.0
    %8824 = vmatpush1.msra.mxu0 0.0
    %8825 = vmatprep.subr.mxu0 0.0
    %8826 = vmatpush1.msra.mxu0 0.0
    %8827 = vmatprep.subr.mxu0 0.0
    %8828 = vmatpush1.msra.mxu0 0.0
    %8829 = vmatprep.subr.mxu0 0.0
    %8830 = vmatpush1.msra.mxu0 0.0
    %8831 = vmatprep.subr.mxu0 0.0
    %8832 = vmatpush1.msra.mxu0 0.0
    %8833 = vmatprep.subr.mxu0 0.0
    %8834 = vmatpush1.msra.mxu0 0.0
    %8835 = vmatprep.subr.mxu0 0.0
    %8836 = vmatpush1.msra.mxu0 0.0
    %8837 = vmatprep.subr.mxu0 0.0
    %8838 = vmatpush1.msra.mxu0 0.0
    %8839 = vmatprep.subr.mxu0 0.0
    %8840 = vmatpush1.msra.mxu0 0.0
    %8841 = vmatprep.subr.mxu0 0.0
    %8842 = vmatpush1.msra.mxu0 0.0
    %8843 = vmatprep.subr.mxu0 0.0
    %8844 = vmatpush1.msra.mxu0 0.0
    %8845 = vmatprep.subr.mxu0 0.0
    %8846 = vmatpush1.msra.mxu0 0.0
    %8847 = vmatprep.subr.mxu0 0.0
    %8848 = vmatpush1.msra.mxu0 0.0
    %8849 = vmatprep.subr.mxu0 0.0
    %8850 = vmatpush1.msra.mxu0 0.0
    %8851 = vmatprep.subr.mxu0 0.0
    %8852 = vmatpush1.msra.mxu0 0.0
    %8853 = vmatprep.subr.mxu0 0.0
    %8854 = vmatpush1.msra.mxu0 0.0
    %8855 = vmatprep.subr.mxu0 0.0
    %8856 = vmatpush1.msra.mxu0 0.0
    %8857 = vmatprep.subr.mxu0 0.0
    %8858 = vmatpush1.msra.mxu0 0.0
    %8859 = vmatprep.subr.mxu0 0.0
    %8860 = vmatpush1.msra.mxu0 0.0
    %8861 = vmatprep.subr.mxu0 0.0
    %8862 = vmatpush1.msra.mxu0 0.0
    %8863 = vmatprep.subr.mxu0 0.0
    %8864 = vmatpush1.msra.mxu0 0.0
    %8865 = vmatprep.subr.mxu0 0.0
    %8866 = vmatpush1.msra.mxu0 0.0
    %8867 = vmatprep.mubr.f32.mxu0 0.0
    %8868 = vmatmul.mubr.f32.gmra.mrb[0].mxu0 %v8801
    %v8869 = vpop.f32.mrb[0].mxu0
    %v8870 = vadd.f32 0.0, %v8869
    %v8871 = vpop.f32.mrb[0].mxu0
    %8872 = vdwg.mxu0
    %v8874 = vsel %vm3222, %v8641, 0
    %8876 = vmatprep.subr.mxu0 0.0
    %8877 = vmatpush1.msra.mxu0 %v7121
    %8878 = vmatprep.subr.mxu0 0.0
    %8879 = vmatpush1.msra.mxu0 0.0
    %8880 = vmatprep.subr.mxu0 0.0
    %8881 = vmatpush1.msra.mxu0 0.0
    %8882 = vmatprep.subr.mxu0 0.0
    %8883 = vmatpush1.msra.mxu0 0.0
    %8884 = vmatprep.subr.mxu0 0.0
    %8885 = vmatpush1.msra.mxu0 0.0
    %8886 = vmatprep.subr.mxu0 0.0
    %8887 = vmatpush1.msra.mxu0 0.0
    %8888 = vmatprep.subr.mxu0 0.0
    %8889 = vmatpush1.msra.mxu0 0.0
    %8890 = vmatprep.subr.mxu0 0.0
    %8891 = vmatpush1.msra.mxu0 0.0
    %8892 = vmatprep.subr.mxu0 0.0
    %8893 = vmatpush1.msra.mxu0 0.0
    %8894 = vmatprep.subr.mxu0 0.0
    %8895 = vmatpush1.msra.mxu0 0.0
    %8896 = vmatprep.subr.mxu0 0.0
    %8897 = vmatpush1.msra.mxu0 0.0
    %8898 = vmatprep.subr.mxu0 0.0
    %8899 = vmatpush1.msra.mxu0 0.0
    %8900 = vmatprep.subr.mxu0 0.0
    %8901 = vmatpush1.msra.mxu0 0.0
    %8902 = vmatprep.subr.mxu0 0.0
    %8903 = vmatpush1.msra.mxu0 0.0
    %8904 = vmatprep.subr.mxu0 0.0
    %8905 = vmatpush1.msra.mxu0 0.0
    %8906 = vmatprep.subr.mxu0 0.0
    %8907 = vmatpush1.msra.mxu0 0.0
    %8908 = vmatprep.subr.mxu0 0.0
    %8909 = vmatpush1.msra.mxu0 0.0
    %8910 = vmatprep.subr.mxu0 0.0
    %8911 = vmatpush1.msra.mxu0 0.0
    %8912 = vmatprep.subr.mxu0 0.0
    %8913 = vmatpush1.msra.mxu0 0.0
    %8914 = vmatprep.subr.mxu0 0.0
    %8915 = vmatpush1.msra.mxu0 0.0
    %8916 = vmatprep.subr.mxu0 0.0
    %8917 = vmatpush1.msra.mxu0 0.0
    %8918 = vmatprep.subr.mxu0 0.0
    %8919 = vmatpush1.msra.mxu0 0.0
    %8920 = vmatprep.subr.mxu0 0.0
    %8921 = vmatpush1.msra.mxu0 0.0
    %8922 = vmatprep.subr.mxu0 0.0
    %8923 = vmatpush1.msra.mxu0 0.0
    %8924 = vmatprep.subr.mxu0 0.0
    %8925 = vmatpush1.msra.mxu0 0.0
    %8926 = vmatprep.subr.mxu0 0.0
    %8927 = vmatpush1.msra.mxu0 0.0
    %8928 = vmatprep.subr.mxu0 0.0
    %8929 = vmatpush1.msra.mxu0 0.0
    %8930 = vmatprep.subr.mxu0 0.0
    %8931 = vmatpush1.msra.mxu0 0.0
    %8932 = vmatprep.subr.mxu0 0.0
    %8933 = vmatpush1.msra.mxu0 0.0
    %8934 = vmatprep.subr.mxu0 0.0
    %8935 = vmatpush1.msra.mxu0 0.0
    %8936 = vmatprep.subr.mxu0 0.0
    %8937 = vmatpush1.msra.mxu0 0.0
    %8938 = vmatprep.subr.mxu0 0.0
    %8939 = vmatpush1.msra.mxu0 0.0
    %8940 = vmatprep.mubr.f32.mxu0 0.0
    %8941 = vmatmul.mubr.f32.gmra.mrb[0].mxu0 %v8874
    %v8942 = vpop.f32.mrb[0].mxu0
    %v8943 = vadd.f32 0.0, %v8942
    %v8944 = vpop.f32.mrb[0].mxu0
    %8945 = vdwg.mxu0
    %v8947 = vsel %vm3222, %v8642, 0
    %8949 = vmatprep.subr.mxu0 0.0
    %8950 = vmatpush1.msra.mxu0 %v7122
    %8951 = vmatprep.subr.mxu0 0.0
    %8952 = vmatpush1.msra.mxu0 0.0
    %8953 = vmatprep.subr.mxu0 0.0
    %8954 = vmatpush1.msra.mxu0 0.0
    %8955 = vmatprep.subr.mxu0 0.0
    %8956 = vmatpush1.msra.mxu0 0.0
    %8957 = vmatprep.subr.mxu0 0.0
    %8958 = vmatpush1.msra.mxu0 0.0
    %8959 = vmatprep.subr.mxu0 0.0
    %8960 = vmatpush1.msra.mxu0 0.0
    %8961 = vmatprep.subr.mxu0 0.0
    %8962 = vmatpush1.msra.mxu0 0.0
    %8963 = vmatprep.subr.mxu0 0.0
    %8964 = vmatpush1.msra.mxu0 0.0
    %8965 = vmatprep.subr.mxu0 0.0
    %8966 = vmatpush1.msra.mxu0 0.0
    %8967 = vmatprep.subr.mxu0 0.0
    %8968 = vmatpush1.msra.mxu0 0.0
    %8969 = vmatprep.subr.mxu0 0.0
    %8970 = vmatpush1.msra.mxu0 0.0
    %8971 = vmatprep.subr.mxu0 0.0
    %8972 = vmatpush1.msra.mxu0 0.0
    %8973 = vmatprep.subr.mxu0 0.0
    %8974 = vmatpush1.msra.mxu0 0.0
    %8975 = vmatprep.subr.mxu0 0.0
    %8976 = vmatpush1.msra.mxu0 0.0
    %8977 = vmatprep.subr.mxu0 0.0
    %8978 = vmatpush1.msra.mxu0 0.0
    %8979 = vmatprep.subr.mxu0 0.0
    %8980 = vmatpush1.msra.mxu0 0.0
    %8981 = vmatprep.subr.mxu0 0.0
    %8982 = vmatpush1.msra.mxu0 0.0
    %8983 = vmatprep.subr.mxu0 0.0
    %8984 = vmatpush1.msra.mxu0 0.0
    %8985 = vmatprep.subr.mxu0 0.0
    %8986 = vmatpush1.msra.mxu0 0.0
    %8987 = vmatprep.subr.mxu0 0.0
    %8988 = vmatpush1.msra.mxu0 0.0
    %8989 = vmatprep.subr.mxu0 0.0
    %8990 = vmatpush1.msra.mxu0 0.0
    %8991 = vmatprep.subr.mxu0 0.0
    %8992 = vmatpush1.msra.mxu0 0.0
    %8993 = vmatprep.subr.mxu0 0.0
    %8994 = vmatpush1.msra.mxu0 0.0
    %8995 = vmatprep.subr.mxu0 0.0
    %8996 = vmatpush1.msra.mxu0 0.0
    %8997 = vmatprep.subr.mxu0 0.0
    %8998 = vmatpush1.msra.mxu0 0.0
    %8999 = vmatprep.subr.mxu0 0.0
    %9000 = vmatpush1.msra.mxu0 0.0
    %9001 = vmatprep.subr.mxu0 0.0
    %9002 = vmatpush1.msra.mxu0 0.0
    %9003 = vmatprep.subr.mxu0 0.0
    %9004 = vmatpush1.msra.mxu0 0.0
    %9005 = vmatprep.subr.mxu0 0.0
    %9006 = vmatpush1.msra.mxu0 0.0
    %9007 = vmatprep.subr.mxu0 0.0
    %9008 = vmatpush1.msra.mxu0 0.0
    %9009 = vmatprep.subr.mxu0 0.0
    %9010 = vmatpush1.msra.mxu0 0.0
    %9011 = vmatprep.subr.mxu0 0.0
    %9012 = vmatpush1.msra.mxu0 0.0
    %9013 = vmatprep.mubr.f32.mxu0 0.0
    %9014 = vmatmul.mubr.f32.gmra.mrb[0].mxu0 %v8947
    %v9015 = vpop.f32.mrb[0].mxu0
    %v9016 = vadd.f32 0.0, %v9015
    %v9017 = vpop.f32.mrb[0].mxu0
    %9018 = vdwg.mxu0
    %v9020 = vsel %vm3222, %v8643, 0
    %9022 = vmatprep.subr.mxu0 0.0
    %9023 = vmatpush1.msra.mxu0 %v7123
    %9024 = vmatprep.subr.mxu0 0.0
    %9025 = vmatpush1.msra.mxu0 0.0
    %9026 = vmatprep.subr.mxu0 0.0
    %9027 = vmatpush1.msra.mxu0 0.0
    %9028 = vmatprep.subr.mxu0 0.0
    %9029 = vmatpush1.msra.mxu0 0.0
    %9030 = vmatprep.subr.mxu0 0.0
    %9031 = vmatpush1.msra.mxu0 0.0
    %9032 = vmatprep.subr.mxu0 0.0
    %9033 = vmatpush1.msra.mxu0 0.0
    %9034 = vmatprep.subr.mxu0 0.0
    %9035 = vmatpush1.msra.mxu0 0.0
    %9036 = vmatprep.subr.mxu0 0.0
    %9037 = vmatpush1.msra.mxu0 0.0
    %9038 = vmatprep.subr.mxu0 0.0
    %9039 = vmatpush1.msra.mxu0 0.0
    %9040 = vmatprep.subr.mxu0 0.0
    %9041 = vmatpush1.msra.mxu0 0.0
    %9042 = vmatprep.subr.mxu0 0.0
    %9043 = vmatpush1.msra.mxu0 0.0
    %9044 = vmatprep.subr.mxu0 0.0
    %9045 = vmatpush1.msra.mxu0 0.0
    %9046 = vmatprep.subr.mxu0 0.0
    %9047 = vmatpush1.msra.mxu0 0.0
    %9048 = vmatprep.subr.mxu0 0.0
    %9049 = vmatpush1.msra.mxu0 0.0
    %9050 = vmatprep.subr.mxu0 0.0
    %9051 = vmatpush1.msra.mxu0 0.0
    %9052 = vmatprep.subr.mxu0 0.0
    %9053 = vmatpush1.msra.mxu0 0.0
    %9054 = vmatprep.subr.mxu0 0.0
    %9055 = vmatpush1.msra.mxu0 0.0
    %9056 = vmatprep.subr.mxu0 0.0
    %9057 = vmatpush1.msra.mxu0 0.0
    %9058 = vmatprep.subr.mxu0 0.0
    %9059 = vmatpush1.msra.mxu0 0.0
    %9060 = vmatprep.subr.mxu0 0.0
    %9061 = vmatpush1.msra.mxu0 0.0
    %9062 = vmatprep.subr.mxu0 0.0
    %9063 = vmatpush1.msra.mxu0 0.0
    %9064 = vmatprep.subr.mxu0 0.0
    %9065 = vmatpush1.msra.mxu0 0.0
    %9066 = vmatprep.subr.mxu0 0.0
    %9067 = vmatpush1.msra.mxu0 0.0
    %9068 = vmatprep.subr.mxu0 0.0
    %9069 = vmatpush1.msra.mxu0 0.0
    %9070 = vmatprep.subr.mxu0 0.0
    %9071 = vmatpush1.msra.mxu0 0.0
    %9072 = vmatprep.subr.mxu0 0.0
    %9073 = vmatpush1.msra.mxu0 0.0
    %9074 = vmatprep.subr.mxu0 0.0
    %9075 = vmatpush1.msra.mxu0 0.0
    %9076 = vmatprep.subr.mxu0 0.0
    %9077 = vmatpush1.msra.mxu0 0.0
    %9078 = vmatprep.subr.mxu0 0.0
    %9079 = vmatpush1.msra.mxu0 0.0
    %9080 = vmatprep.subr.mxu0 0.0
    %9081 = vmatpush1.msra.mxu0 0.0
    %9082 = vmatprep.subr.mxu0 0.0
    %9083 = vmatpush1.msra.mxu0 0.0
    %9084 = vmatprep.subr.mxu0 0.0
    %9085 = vmatpush1.msra.mxu0 0.0
    %9086 = vmatprep.mubr.f32.mxu0 0.0
    %9087 = vmatmul.mubr.f32.gmra.mrb[0].mxu0 %v9020
    %v9088 = vpop.f32.mrb[0].mxu0
    %v9089 = vadd.f32 0.0, %v9088
    %v9090 = vpop.f32.mrb[0].mxu0
    %9091 = vdwg.mxu0
    %v9093 = vsel %vm3222, %v8644, 0
    %9095 = vmatprep.subr.mxu0 0.0
    %9096 = vmatpush1.msra.mxu0 %v7124
    %9097 = vmatprep.subr.mxu0 0.0
    %9098 = vmatpush1.msra.mxu0 0.0
    %9099 = vmatprep.subr.mxu0 0.0
    %9100 = vmatpush1.msra.mxu0 0.0
    %9101 = vmatprep.subr.mxu0 0.0
    %9102 = vmatpush1.msra.mxu0 0.0
    %9103 = vmatprep.subr.mxu0 0.0
    %9104 = vmatpush1.msra.mxu0 0.0
    %9105 = vmatprep.subr.mxu0 0.0
    %9106 = vmatpush1.msra.mxu0 0.0
    %9107 = vmatprep.subr.mxu0 0.0
    %9108 = vmatpush1.msra.mxu0 0.0
    %9109 = vmatprep.subr.mxu0 0.0
    %9110 = vmatpush1.msra.mxu0 0.0
    %9111 = vmatprep.subr.mxu0 0.0
    %9112 = vmatpush1.msra.mxu0 0.0
    %9113 = vmatprep.subr.mxu0 0.0
    %9114 = vmatpush1.msra.mxu0 0.0
    %9115 = vmatprep.subr.mxu0 0.0
    %9116 = vmatpush1.msra.mxu0 0.0
    %9117 = vmatprep.subr.mxu0 0.0
    %9118 = vmatpush1.msra.mxu0 0.0
    %9119 = vmatprep.subr.mxu0 0.0
    %9120 = vmatpush1.msra.mxu0 0.0
    %9121 = vmatprep.subr.mxu0 0.0
    %9122 = vmatpush1.msra.mxu0 0.0
    %9123 = vmatprep.subr.mxu0 0.0
    %9124 = vmatpush1.msra.mxu0 0.0
    %9125 = vmatprep.subr.mxu0 0.0
    %9126 = vmatpush1.msra.mxu0 0.0
    %9127 = vmatprep.subr.mxu0 0.0
    %9128 = vmatpush1.msra.mxu0 0.0
    %9129 = vmatprep.subr.mxu0 0.0
    %9130 = vmatpush1.msra.mxu0 0.0
    %9131 = vmatprep.subr.mxu0 0.0
    %9132 = vmatpush1.msra.mxu0 0.0
    %9133 = vmatprep.subr.mxu0 0.0
    %9134 = vmatpush1.msra.mxu0 0.0
    %9135 = vmatprep.subr.mxu0 0.0
    %9136 = vmatpush1.msra.mxu0 0.0
    %9137 = vmatprep.subr.mxu0 0.0
    %9138 = vmatpush1.msra.mxu0 0.0
    %9139 = vmatprep.subr.mxu0 0.0
    %9140 = vmatpush1.msra.mxu0 0.0
    %9141 = vmatprep.subr.mxu0 0.0
    %9142 = vmatpush1.msra.mxu0 0.0
    %9143 = vmatprep.subr.mxu0 0.0
    %9144 = vmatpush1.msra.mxu0 0.0
    %9145 = vmatprep.subr.mxu0 0.0
    %9146 = vmatpush1.msra.mxu0 0.0
    %9147 = vmatprep.subr.mxu0 0.0
    %9148 = vmatpush1.msra.mxu0 0.0
    %9149 = vmatprep.subr.mxu0 0.0
    %9150 = vmatpush1.msra.mxu0 0.0
    %9151 = vmatprep.subr.mxu0 0.0
    %9152 = vmatpush1.msra.mxu0 0.0
    %9153 = vmatprep.subr.mxu0 0.0
    %9154 = vmatpush1.msra.mxu0 0.0
    %9155 = vmatprep.subr.mxu0 0.0
    %9156 = vmatpush1.msra.mxu0 0.0
    %9157 = vmatprep.subr.mxu0 0.0
    %9158 = vmatpush1.msra.mxu0 0.0
    %9159 = vmatprep.mubr.f32.mxu0 0.0
    %9160 = vmatmul.mubr.f32.gmra.mrb[0].mxu0 %v9093
    %v9161 = vpop.f32.mrb[0].mxu0
    %v9162 = vadd.f32 0.0, %v9161
    %v9163 = vpop.f32.mrb[0].mxu0
    %9164 = vdwg.mxu0
    %v9166 = vsel %vm3222, %v8645, 0
    %9168 = vmatprep.subr.mxu0 0.0
    %9169 = vmatpush1.msra.mxu0 %v7125
    %9170 = vmatprep.subr.mxu0 0.0
    %9171 = vmatpush1.msra.mxu0 0.0
    %9172 = vmatprep.subr.mxu0 0.0
    %9173 = vmatpush1.msra.mxu0 0.0
    %9174 = vmatprep.subr.mxu0 0.0
    %9175 = vmatpush1.msra.mxu0 0.0
    %9176 = vmatprep.subr.mxu0 0.0
    %9177 = vmatpush1.msra.mxu0 0.0
    %9178 = vmatprep.subr.mxu0 0.0
    %9179 = vmatpush1.msra.mxu0 0.0
    %9180 = vmatprep.subr.mxu0 0.0
    %9181 = vmatpush1.msra.mxu0 0.0
    %9182 = vmatprep.subr.mxu0 0.0
    %9183 = vmatpush1.msra.mxu0 0.0
    %9184 = vmatprep.subr.mxu0 0.0
    %9185 = vmatpush1.msra.mxu0 0.0
    %9186 = vmatprep.subr.mxu0 0.0
    %9187 = vmatpush1.msra.mxu0 0.0
    %9188 = vmatprep.subr.mxu0 0.0
    %9189 = vmatpush1.msra.mxu0 0.0
    %9190 = vmatprep.subr.mxu0 0.0
    %9191 = vmatpush1.msra.mxu0 0.0
    %9192 = vmatprep.subr.mxu0 0.0
    %9193 = vmatpush1.msra.mxu0 0.0
    %9194 = vmatprep.subr.mxu0 0.0
    %9195 = vmatpush1.msra.mxu0 0.0
    %9196 = vmatprep.subr.mxu0 0.0
    %9197 = vmatpush1.msra.mxu0 0.0
    %9198 = vmatprep.subr.mxu0 0.0
    %9199 = vmatpush1.msra.mxu0 0.0
    %9200 = vmatprep.subr.mxu0 0.0
    %9201 = vmatpush1.msra.mxu0 0.0
    %9202 = vmatprep.subr.mxu0 0.0
    %9203 = vmatpush1.msra.mxu0 0.0
    %9204 = vmatprep.subr.mxu0 0.0
    %9205 = vmatpush1.msra.mxu0 0.0
    %9206 = vmatprep.subr.mxu0 0.0
    %9207 = vmatpush1.msra.mxu0 0.0
    %9208 = vmatprep.subr.mxu0 0.0
    %9209 = vmatpush1.msra.mxu0 0.0
    %9210 = vmatprep.subr.mxu0 0.0
    %9211 = vmatpush1.msra.mxu0 0.0
    %9212 = vmatprep.subr.mxu0 0.0
    %9213 = vmatpush1.msra.mxu0 0.0
    %9214 = vmatprep.subr.mxu0 0.0
    %9215 = vmatpush1.msra.mxu0 0.0
    %9216 = vmatprep.subr.mxu0 0.0
    %9217 = vmatpush1.msra.mxu0 0.0
    %9218 = vmatprep.subr.mxu0 0.0
    %9219 = vmatpush1.msra.mxu0 0.0
    %9220 = vmatprep.subr.mxu0 0.0
    %9221 = vmatpush1.msra.mxu0 0.0
    %9222 = vmatprep.subr.mxu0 0.0
    %9223 = vmatpush1.msra.mxu0 0.0
    %9224 = vmatprep.subr.mxu0 0.0
    %9225 = vmatpush1.msra.mxu0 0.0
    %9226 = vmatprep.subr.mxu0 0.0
    %9227 = vmatpush1.msra.mxu0 0.0
    %9228 = vmatprep.subr.mxu0 0.0
    %9229 = vmatpush1.msra.mxu0 0.0
    %9230 = vmatprep.subr.mxu0 0.0
    %9231 = vmatpush1.msra.mxu0 0.0
    %9232 = vmatprep.mubr.f32.mxu0 0.0
    %9233 = vmatmul.mubr.f32.gmra.mrb[0].mxu0 %v9166
    %v9234 = vpop.f32.mrb[0].mxu0
    %v9235 = vadd.f32 0.0, %v9234
    %v9236 = vpop.f32.mrb[0].mxu0
    %9237 = vdwg.mxu0
    %v9239 = vsel %vm3222, %v8646, 0
    %9241 = vmatprep.subr.mxu0 0.0
    %9242 = vmatpush1.msra.mxu0 %v7254
    %9243 = vmatprep.subr.mxu0 0.0
    %9244 = vmatpush1.msra.mxu0 0.0
    %9245 = vmatprep.subr.mxu0 0.0
    %9246 = vmatpush1.msra.mxu0 0.0
    %9247 = vmatprep.subr.mxu0 0.0
    %9248 = vmatpush1.msra.mxu0 0.0
    %9249 = vmatprep.subr.mxu0 0.0
    %9250 = vmatpush1.msra.mxu0 0.0
    %9251 = vmatprep.subr.mxu0 0.0
    %9252 = vmatpush1.msra.mxu0 0.0
    %9253 = vmatprep.subr.mxu0 0.0
    %9254 = vmatpush1.msra.mxu0 0.0
    %9255 = vmatprep.subr.mxu0 0.0
    %9256 = vmatpush1.msra.mxu0 0.0
    %9257 = vmatprep.subr.mxu0 0.0
    %9258 = vmatpush1.msra.mxu0 0.0
    %9259 = vmatprep.subr.mxu0 0.0
    %9260 = vmatpush1.msra.mxu0 0.0
    %9261 = vmatprep.subr.mxu0 0.0
    %9262 = vmatpush1.msra.mxu0 0.0
    %9263 = vmatprep.subr.mxu0 0.0
    %9264 = vmatpush1.msra.mxu0 0.0
    %9265 = vmatprep.subr.mxu0 0.0
    %9266 = vmatpush1.msra.mxu0 0.0
    %9267 = vmatprep.subr.mxu0 0.0
    %9268 = vmatpush1.msra.mxu0 0.0
    %9269 = vmatprep.subr.mxu0 0.0
    %9270 = vmatpush1.msra.mxu0 0.0
    %9271 = vmatprep.subr.mxu0 0.0
    %9272 = vmatpush1.msra.mxu0 0.0
    %9273 = vmatprep.subr.mxu0 0.0
    %9274 = vmatpush1.msra.mxu0 0.0
    %9275 = vmatprep.subr.mxu0 0.0
    %9276 = vmatpush1.msra.mxu0 0.0
    %9277 = vmatprep.subr.mxu0 0.0
    %9278 = vmatpush1.msra.mxu0 0.0
    %9279 = vmatprep.subr.mxu0 0.0
    %9280 = vmatpush1.msra.mxu0 0.0
    %9281 = vmatprep.subr.mxu0 0.0
    %9282 = vmatpush1.msra.mxu0 0.0
    %9283 = vmatprep.subr.mxu0 0.0
    %9284 = vmatpush1.msra.mxu0 0.0
    %9285 = vmatprep.subr.mxu0 0.0
    %9286 = vmatpush1.msra.mxu0 0.0
    %9287 = vmatprep.subr.mxu0 0.0
    %9288 = vmatpush1.msra.mxu0 0.0
    %9289 = vmatprep.subr.mxu0 0.0
    %9290 = vmatpush1.msra.mxu0 0.0
    %9291 = vmatprep.subr.mxu0 0.0
    %9292 = vmatpush1.msra.mxu0 0.0
    %9293 = vmatprep.subr.mxu0 0.0
    %9294 = vmatpush1.msra.mxu0 0.0
    %9295 = vmatprep.subr.mxu0 0.0
    %9296 = vmatpush1.msra.mxu0 0.0
    %9297 = vmatprep.subr.mxu0 0.0
    %9298 = vmatpush1.msra.mxu0 0.0
    %9299 = vmatprep.subr.mxu0 0.0
    %9300 = vmatpush1.msra.mxu0 0.0
    %9301 = vmatprep.subr.mxu0 0.0
    %9302 = vmatpush1.msra.mxu0 0.0
    %9303 = vmatprep.subr.mxu0 0.0
    %9304 = vmatpush1.msra.mxu0 0.0
    %9305 = vmatprep.mubr.f32.mxu0 0.0
    %9306 = vmatmul.mubr.f32.gmra.mrb[0].mxu0 %v9239
    %v9307 = vpop.f32.mrb[0].mxu0
    %v9308 = vadd.f32 0.0, %v9307
    %v9309 = vpop.f32.mrb[0].mxu0
    %9310 = vdwg.mxu0
    %v9312 = vsel %vm3222, %v8647, 0
    %9314 = vmatprep.subr.mxu0 0.0
    %9315 = vmatpush1.msra.mxu0 %v7255
    %9316 = vmatprep.subr.mxu0 0.0
    %9317 = vmatpush1.msra.mxu0 0.0
    %9318 = vmatprep.subr.mxu0 0.0
    %9319 = vmatpush1.msra.mxu0 0.0
    %9320 = vmatprep.subr.mxu0 0.0
    %9321 = vmatpush1.msra.mxu0 0.0
    %9322 = vmatprep.subr.mxu0 0.0
    %9323 = vmatpush1.msra.mxu0 0.0
    %9324 = vmatprep.subr.mxu0 0.0
    %9325 = vmatpush1.msra.mxu0 0.0
    %9326 = vmatprep.subr.mxu0 0.0
    %9327 = vmatpush1.msra.mxu0 0.0
    %9328 = vmatprep.subr.mxu0 0.0
    %9329 = vmatpush1.msra.mxu0 0.0
    %9330 = vmatprep.subr.mxu0 0.0
    %9331 = vmatpush1.msra.mxu0 0.0
    %9332 = vmatprep.subr.mxu0 0.0
    %9333 = vmatpush1.msra.mxu0 0.0
    %9334 = vmatprep.subr.mxu0 0.0
    %9335 = vmatpush1.msra.mxu0 0.0
    %9336 = vmatprep.subr.mxu0 0.0
    %9337 = vmatpush1.msra.mxu0 0.0
    %9338 = vmatprep.subr.mxu0 0.0
    %9339 = vmatpush1.msra.mxu0 0.0
    %9340 = vmatprep.subr.mxu0 0.0
    %9341 = vmatpush1.msra.mxu0 0.0
    %9342 = vmatprep.subr.mxu0 0.0
    %9343 = vmatpush1.msra.mxu0 0.0
    %9344 = vmatprep.subr.mxu0 0.0
    %9345 = vmatpush1.msra.mxu0 0.0
    %9346 = vmatprep.subr.mxu0 0.0
    %9347 = vmatpush1.msra.mxu0 0.0
    %9348 = vmatprep.subr.mxu0 0.0
    %9349 = vmatpush1.msra.mxu0 0.0
    %9350 = vmatprep.subr.mxu0 0.0
    %9351 = vmatpush1.msra.mxu0 0.0
    %9352 = vmatprep.subr.mxu0 0.0
    %9353 = vmatpush1.msra.mxu0 0.0
    %9354 = vmatprep.subr.mxu0 0.0
    %9355 = vmatpush1.msra.mxu0 0.0
    %9356 = vmatprep.subr.mxu0 0.0
    %9357 = vmatpush1.msra.mxu0 0.0
    %9358 = vmatprep.subr.mxu0 0.0
    %9359 = vmatpush1.msra.mxu0 0.0
    %9360 = vmatprep.subr.mxu0 0.0
    %9361 = vmatpush1.msra.mxu0 0.0
    %9362 = vmatprep.subr.mxu0 0.0
    %9363 = vmatpush1.msra.mxu0 0.0
    %9364 = vmatprep.subr.mxu0 0.0
    %9365 = vmatpush1.msra.mxu0 0.0
    %9366 = vmatprep.subr.mxu0 0.0
    %9367 = vmatpush1.msra.mxu0 0.0
    %9368 = vmatprep.subr.mxu0 0.0
    %9369 = vmatpush1.msra.mxu0 0.0
    %9370 = vmatprep.subr.mxu0 0.0
    %9371 = vmatpush1.msra.mxu0 0.0
    %9372 = vmatprep.subr.mxu0 0.0
    %9373 = vmatpush1.msra.mxu0 0.0
    %9374 = vmatprep.subr.mxu0 0.0
    %9375 = vmatpush1.msra.mxu0 0.0
    %9376 = vmatprep.subr.mxu0 0.0
    %9377 = vmatpush1.msra.mxu0 0.0
    %9378 = vmatprep.mubr.f32.mxu0 0.0
    %9379 = vmatmul.mubr.f32.gmra.mrb[0].mxu0 %v9312
    %v9380 = vpop.f32.mrb[0].mxu0
    %v9381 = vadd.f32 0.0, %v9380
    %v9382 = vpop.f32.mrb[0].mxu0
    %9383 = vdwg.mxu0
    %v9385 = vsel %vm3222, %v8648, 0
    %9387 = vmatprep.subr.mxu0 0.0
    %9388 = vmatpush1.msra.mxu0 %v7256
    %9389 = vmatprep.subr.mxu0 0.0
    %9390 = vmatpush1.msra.mxu0 0.0
    %9391 = vmatprep.subr.mxu0 0.0
    %9392 = vmatpush1.msra.mxu0 0.0
    %9393 = vmatprep.subr.mxu0 0.0
    %9394 = vmatpush1.msra.mxu0 0.0
    %9395 = vmatprep.subr.mxu0 0.0
    %9396 = vmatpush1.msra.mxu0 0.0
    %9397 = vmatprep.subr.mxu0 0.0
    %9398 = vmatpush1.msra.mxu0 0.0
    %9399 = vmatprep.subr.mxu0 0.0
    %9400 = vmatpush1.msra.mxu0 0.0
    %9401 = vmatprep.subr.mxu0 0.0
    %9402 = vmatpush1.msra.mxu0 0.0
    %9403 = vmatprep.subr.mxu0 0.0
    %9404 = vmatpush1.msra.mxu0 0.0
    %9405 = vmatprep.subr.mxu0 0.0
    %9406 = vmatpush1.msra.mxu0 0.0
    %9407 = vmatprep.subr.mxu0 0.0
    %9408 = vmatpush1.msra.mxu0 0.0
    %9409 = vmatprep.subr.mxu0 0.0
    %9410 = vmatpush1.msra.mxu0 0.0
    %9411 = vmatprep.subr.mxu0 0.0
    %9412 = vmatpush1.msra.mxu0 0.0
    %9413 = vmatprep.subr.mxu0 0.0
    %9414 = vmatpush1.msra.mxu0 0.0
    %9415 = vmatprep.subr.mxu0 0.0
    %9416 = vmatpush1.msra.mxu0 0.0
    %9417 = vmatprep.subr.mxu0 0.0
    %9418 = vmatpush1.msra.mxu0 0.0
    %9419 = vmatprep.subr.mxu0 0.0
    %9420 = vmatpush1.msra.mxu0 0.0
    %9421 = vmatprep.subr.mxu0 0.0
    %9422 = vmatpush1.msra.mxu0 0.0
    %9423 = vmatprep.subr.mxu0 0.0
    %9424 = vmatpush1.msra.mxu0 0.0
    %9425 = vmatprep.subr.mxu0 0.0
    %9426 = vmatpush1.msra.mxu0 0.0
    %9427 = vmatprep.subr.mxu0 0.0
    %9428 = vmatpush1.msra.mxu0 0.0
    %9429 = vmatprep.subr.mxu0 0.0
    %9430 = vmatpush1.msra.mxu0 0.0
    %9431 = vmatprep.subr.mxu0 0.0
    %9432 = vmatpush1.msra.mxu0 0.0
    %9433 = vmatprep.subr.mxu0 0.0
    %9434 = vmatpush1.msra.mxu0 0.0
    %9435 = vmatprep.subr.mxu0 0.0
    %9436 = vmatpush1.msra.mxu0 0.0
    %9437 = vmatprep.subr.mxu0 0.0
    %9438 = vmatpush1.msra.mxu0 0.0
    %9439 = vmatprep.subr.mxu0 0.0
    %9440 = vmatpush1.msra.mxu0 0.0
    %9441 = vmatprep.subr.mxu0 0.0
    %9442 = vmatpush1.msra.mxu0 0.0
    %9443 = vmatprep.subr.mxu0 0.0
    %9444 = vmatpush1.msra.mxu0 0.0
    %9445 = vmatprep.subr.mxu0 0.0
    %9446 = vmatpush1.msra.mxu0 0.0
    %9447 = vmatprep.subr.mxu0 0.0
    %9448 = vmatpush1.msra.mxu0 0.0
    %9449 = vmatprep.subr.mxu0 0.0
    %9450 = vmatpush1.msra.mxu0 0.0
    %9451 = vmatprep.mubr.f32.mxu0 0.0
    %9452 = vmatmul.mubr.f32.gmra.mrb[0].mxu0 %v9385
    %v9453 = vpop.f32.mrb[0].mxu0
    %v9454 = vadd.f32 0.0, %v9453
    %v9455 = vpop.f32.mrb[0].mxu0
    %9456 = vdwg.mxu0
    %v9458 = vsel %vm3222, %v8649, 0
    %9460 = vmatprep.subr.mxu0 0.0
    %9461 = vmatpush1.msra.mxu0 %v7257
    %9462 = vmatprep.subr.mxu0 0.0
    %9463 = vmatpush1.msra.mxu0 0.0
    %9464 = vmatprep.subr.mxu0 0.0
    %9465 = vmatpush1.msra.mxu0 0.0
    %9466 = vmatprep.subr.mxu0 0.0
    %9467 = vmatpush1.msra.mxu0 0.0
    %9468 = vmatprep.subr.mxu0 0.0
    %9469 = vmatpush1.msra.mxu0 0.0
    %9470 = vmatprep.subr.mxu0 0.0
    %9471 = vmatpush1.msra.mxu0 0.0
    %9472 = vmatprep.subr.mxu0 0.0
    %9473 = vmatpush1.msra.mxu0 0.0
    %9474 = vmatprep.subr.mxu0 0.0
    %9475 = vmatpush1.msra.mxu0 0.0
    %9476 = vmatprep.subr.mxu0 0.0
    %9477 = vmatpush1.msra.mxu0 0.0
    %9478 = vmatprep.subr.mxu0 0.0
    %9479 = vmatpush1.msra.mxu0 0.0
    %9480 = vmatprep.subr.mxu0 0.0
    %9481 = vmatpush1.msra.mxu0 0.0
    %9482 = vmatprep.subr.mxu0 0.0
    %9483 = vmatpush1.msra.mxu0 0.0
    %9484 = vmatprep.subr.mxu0 0.0
    %9485 = vmatpush1.msra.mxu0 0.0
    %9486 = vmatprep.subr.mxu0 0.0
    %9487 = vmatpush1.msra.mxu0 0.0
    %9488 = vmatprep.subr.mxu0 0.0
    %9489 = vmatpush1.msra.mxu0 0.0
    %9490 = vmatprep.subr.mxu0 0.0
    %9491 = vmatpush1.msra.mxu0 0.0
    %9492 = vmatprep.subr.mxu0 0.0
    %9493 = vmatpush1.msra.mxu0 0.0
    %9494 = vmatprep.subr.mxu0 0.0
    %9495 = vmatpush1.msra.mxu0 0.0
    %9496 = vmatprep.subr.mxu0 0.0
    %9497 = vmatpush1.msra.mxu0 0.0
    %9498 = vmatprep.subr.mxu0 0.0
    %9499 = vmatpush1.msra.mxu0 0.0
    %9500 = vmatprep.subr.mxu0 0.0
    %9501 = vmatpush1.msra.mxu0 0.0
    %9502 = vmatprep.subr.mxu0 0.0
    %9503 = vmatpush1.msra.mxu0 0.0
    %9504 = vmatprep.subr.mxu0 0.0
    %9505 = vmatpush1.msra.mxu0 0.0
    %9506 = vmatprep.subr.mxu0 0.0
    %9507 = vmatpush1.msra.mxu0 0.0
    %9508 = vmatprep.subr.mxu0 0.0
    %9509 = vmatpush1.msra.mxu0 0.0
    %9510 = vmatprep.subr.mxu0 0.0
    %9511 = vmatpush1.msra.mxu0 0.0
    %9512 = vmatprep.subr.mxu0 0.0
    %9513 = vmatpush1.msra.mxu0 0.0
    %9514 = vmatprep.subr.mxu0 0.0
    %9515 = vmatpush1.msra.mxu0 0.0
    %9516 = vmatprep.subr.mxu0 0.0
    %9517 = vmatpush1.msra.mxu0 0.0
    %9518 = vmatprep.subr.mxu0 0.0
    %9519 = vmatpush1.msra.mxu0 0.0
    %9520 = vmatprep.subr.mxu0 0.0
    %9521 = vmatpush1.msra.mxu0 0.0
    %9522 = vmatprep.subr.mxu0 0.0
    %9523 = vmatpush1.msra.mxu0 0.0
    %9524 = vmatprep.mubr.f32.mxu0 0.0
    %9525 = vmatmul.mubr.f32.gmra.mrb[0].mxu0 %v9458
    %v9526 = vpop.f32.mrb[0].mxu0
    %v9527 = vadd.f32 0.0, %v9526
    %v9528 = vpop.f32.mrb[0].mxu0
    %9529 = vdwg.mxu0
    %v9531 = vsel %vm3222, %v8650, 0
    %9533 = vmatprep.subr.mxu0 0.0
    %9534 = vmatpush1.msra.mxu0 %v7258
    %9535 = vmatprep.subr.mxu0 0.0
    %9536 = vmatpush1.msra.mxu0 0.0
    %9537 = vmatprep.subr.mxu0 0.0
    %9538 = vmatpush1.msra.mxu0 0.0
    %9539 = vmatprep.subr.mxu0 0.0
    %9540 = vmatpush1.msra.mxu0 0.0
    %9541 = vmatprep.subr.mxu0 0.0
    %9542 = vmatpush1.msra.mxu0 0.0
    %9543 = vmatprep.subr.mxu0 0.0
    %9544 = vmatpush1.msra.mxu0 0.0
    %9545 = vmatprep.subr.mxu0 0.0
    %9546 = vmatpush1.msra.mxu0 0.0
    %9547 = vmatprep.subr.mxu0 0.0
    %9548 = vmatpush1.msra.mxu0 0.0
    %9549 = vmatprep.subr.mxu0 0.0
    %9550 = vmatpush1.msra.mxu0 0.0
    %9551 = vmatprep.subr.mxu0 0.0
    %9552 = vmatpush1.msra.mxu0 0.0
    %9553 = vmatprep.subr.mxu0 0.0
    %9554 = vmatpush1.msra.mxu0 0.0
    %9555 = vmatprep.subr.mxu0 0.0
    %9556 = vmatpush1.msra.mxu0 0.0
    %9557 = vmatprep.subr.mxu0 0.0
    %9558 = vmatpush1.msra.mxu0 0.0
    %9559 = vmatprep.subr.mxu0 0.0
    %9560 = vmatpush1.msra.mxu0 0.0
    %9561 = vmatprep.subr.mxu0 0.0
    %9562 = vmatpush1.msra.mxu0 0.0
    %9563 = vmatprep.subr.mxu0 0.0
    %9564 = vmatpush1.msra.mxu0 0.0
    %9565 = vmatprep.subr.mxu0 0.0
    %9566 = vmatpush1.msra.mxu0 0.0
    %9567 = vmatprep.subr.mxu0 0.0
    %9568 = vmatpush1.msra.mxu0 0.0
    %9569 = vmatprep.subr.mxu0 0.0
    %9570 = vmatpush1.msra.mxu0 0.0
    %9571 = vmatprep.subr.mxu0 0.0
    %9572 = vmatpush1.msra.mxu0 0.0
    %9573 = vmatprep.subr.mxu0 0.0
    %9574 = vmatpush1.msra.mxu0 0.0
    %9575 = vmatprep.subr.mxu0 0.0
    %9576 = vmatpush1.msra.mxu0 0.0
    %9577 = vmatprep.subr.mxu0 0.0
    %9578 = vmatpush1.msra.mxu0 0.0
    %9579 = vmatprep.subr.mxu0 0.0
    %9580 = vmatpush1.msra.mxu0 0.0
    %9581 = vmatprep.subr.mxu0 0.0
    %9582 = vmatpush1.msra.mxu0 0.0
    %9583 = vmatprep.subr.mxu0 0.0
    %9584 = vmatpush1.msra.mxu0 0.0
    %9585 = vmatprep.subr.mxu0 0.0
    %9586 = vmatpush1.msra.mxu0 0.0
    %9587 = vmatprep.subr.mxu0 0.0
    %9588 = vmatpush1.msra.mxu0 0.0
    %9589 = vmatprep.subr.mxu0 0.0
    %9590 = vmatpush1.msra.mxu0 0.0
    %9591 = vmatprep.subr.mxu0 0.0
    %9592 = vmatpush1.msra.mxu0 0.0
    %9593 = vmatprep.subr.mxu0 0.0
    %9594 = vmatpush1.msra.mxu0 0.0
    %9595 = vmatprep.subr.mxu0 0.0
    %9596 = vmatpush1.msra.mxu0 0.0
    %9597 = vmatprep.mubr.f32.mxu0 0.0
    %9598 = vmatmul.mubr.f32.gmra.mrb[0].mxu0 %v9531
    %v9599 = vpop.f32.mrb[0].mxu0
    %v9600 = vadd.f32 0.0, %v9599
    %v9601 = vpop.f32.mrb[0].mxu0
    %9602 = vdwg.mxu0
    %v9604 = vsel %vm3222, %v8651, 0
    %9606 = vmatprep.subr.mxu0 0.0
    %9607 = vmatpush1.msra.mxu0 %v7259
    %9608 = vmatprep.subr.mxu0 0.0
    %9609 = vmatpush1.msra.mxu0 0.0
    %9610 = vmatprep.subr.mxu0 0.0
    %9611 = vmatpush1.msra.mxu0 0.0
    %9612 = vmatprep.subr.mxu0 0.0
    %9613 = vmatpush1.msra.mxu0 0.0
    %9614 = vmatprep.subr.mxu0 0.0
    %9615 = vmatpush1.msra.mxu0 0.0
    %9616 = vmatprep.subr.mxu0 0.0
    %9617 = vmatpush1.msra.mxu0 0.0
    %9618 = vmatprep.subr.mxu0 0.0
    %9619 = vmatpush1.msra.mxu0 0.0
    %9620 = vmatprep.subr.mxu0 0.0
    %9621 = vmatpush1.msra.mxu0 0.0
    %9622 = vmatprep.subr.mxu0 0.0
    %9623 = vmatpush1.msra.mxu0 0.0
    %9624 = vmatprep.subr.mxu0 0.0
    %9625 = vmatpush1.msra.mxu0 0.0
    %9626 = vmatprep.subr.mxu0 0.0
    %9627 = vmatpush1.msra.mxu0 0.0
    %9628 = vmatprep.subr.mxu0 0.0
    %9629 = vmatpush1.msra.mxu0 0.0
    %9630 = vmatprep.subr.mxu0 0.0
    %9631 = vmatpush1.msra.mxu0 0.0
    %9632 = vmatprep.subr.mxu0 0.0
    %9633 = vmatpush1.msra.mxu0 0.0
    %9634 = vmatprep.subr.mxu0 0.0
    %9635 = vmatpush1.msra.mxu0 0.0
    %9636 = vmatprep.subr.mxu0 0.0
    %9637 = vmatpush1.msra.mxu0 0.0
    %9638 = vmatprep.subr.mxu0 0.0
    %9639 = vmatpush1.msra.mxu0 0.0
    %9640 = vmatprep.subr.mxu0 0.0
    %9641 = vmatpush1.msra.mxu0 0.0
    %9642 = vmatprep.subr.mxu0 0.0
    %9643 = vmatpush1.msra.mxu0 0.0
    %9644 = vmatprep.subr.mxu0 0.0
    %9645 = vmatpush1.msra.mxu0 0.0
    %9646 = vmatprep.subr.mxu0 0.0
    %9647 = vmatpush1.msra.mxu0 0.0
    %9648 = vmatprep.subr.mxu0 0.0
    %9649 = vmatpush1.msra.mxu0 0.0
    %9650 = vmatprep.subr.mxu0 0.0
    %9651 = vmatpush1.msra.mxu0 0.0
    %9652 = vmatprep.subr.mxu0 0.0
    %9653 = vmatpush1.msra.mxu0 0.0
    %9654 = vmatprep.subr.mxu0 0.0
    %9655 = vmatpush1.msra.mxu0 0.0
    %9656 = vmatprep.subr.mxu0 0.0
    %9657 = vmatpush1.msra.mxu0 0.0
    %9658 = vmatprep.subr.mxu0 0.0
    %9659 = vmatpush1.msra.mxu0 0.0
    %9660 = vmatprep.subr.mxu0 0.0
    %9661 = vmatpush1.msra.mxu0 0.0
    %9662 = vmatprep.subr.mxu0 0.0
    %9663 = vmatpush1.msra.mxu0 0.0
    %9664 = vmatprep.subr.mxu0 0.0
    %9665 = vmatpush1.msra.mxu0 0.0
    %9666 = vmatprep.subr.mxu0 0.0
    %9667 = vmatpush1.msra.mxu0 0.0
    %9668 = vmatprep.subr.mxu0 0.0
    %9669 = vmatpush1.msra.mxu0 0.0
    %9670 = vmatprep.mubr.f32.mxu0 0.0
    %9671 = vmatmul.mubr.f32.gmra.mrb[0].mxu0 %v9604
    %v9672 = vpop.f32.mrb[0].mxu0
    %v9673 = vadd.f32 0.0, %v9672
    %v9674 = vpop.f32.mrb[0].mxu0
    %9675 = vdwg.mxu0
    %v9677 = vsel %vm3222, %v8652, 0
    %9679 = vmatprep.subr.mxu0 0.0
    %9680 = vmatpush1.msra.mxu0 %v7260
    %9681 = vmatprep.subr.mxu0 0.0
    %9682 = vmatpush1.msra.mxu0 0.0
    %9683 = vmatprep.subr.mxu0 0.0
    %9684 = vmatpush1.msra.mxu0 0.0
    %9685 = vmatprep.subr.mxu0 0.0
    %9686 = vmatpush1.msra.mxu0 0.0
    %9687 = vmatprep.subr.mxu0 0.0
    %9688 = vmatpush1.msra.mxu0 0.0
    %9689 = vmatprep.subr.mxu0 0.0
    %9690 = vmatpush1.msra.mxu0 0.0
    %9691 = vmatprep.subr.mxu0 0.0
    %9692 = vmatpush1.msra.mxu0 0.0
    %9693 = vmatprep.subr.mxu0 0.0
    %9694 = vmatpush1.msra.mxu0 0.0
    %9695 = vmatprep.subr.mxu0 0.0
    %9696 = vmatpush1.msra.mxu0 0.0
    %9697 = vmatprep.subr.mxu0 0.0
    %9698 = vmatpush1.msra.mxu0 0.0
    %9699 = vmatprep.subr.mxu0 0.0
    %9700 = vmatpush1.msra.mxu0 0.0
    %9701 = vmatprep.subr.mxu0 0.0
    %9702 = vmatpush1.msra.mxu0 0.0
    %9703 = vmatprep.subr.mxu0 0.0
    %9704 = vmatpush1.msra.mxu0 0.0
    %9705 = vmatprep.subr.mxu0 0.0
    %9706 = vmatpush1.msra.mxu0 0.0
    %9707 = vmatprep.subr.mxu0 0.0
    %9708 = vmatpush1.msra.mxu0 0.0
    %9709 = vmatprep.subr.mxu0 0.0
    %9710 = vmatpush1.msra.mxu0 0.0
    %9711 = vmatprep.subr.mxu0 0.0
    %9712 = vmatpush1.msra.mxu0 0.0
    %9713 = vmatprep.subr.mxu0 0.0
    %9714 = vmatpush1.msra.mxu0 0.0
    %9715 = vmatprep.subr.mxu0 0.0
    %9716 = vmatpush1.msra.mxu0 0.0
    %9717 = vmatprep.subr.mxu0 0.0
    %9718 = vmatpush1.msra.mxu0 0.0
    %9719 = vmatprep.subr.mxu0 0.0
    %9720 = vmatpush1.msra.mxu0 0.0
    %9721 = vmatprep.subr.mxu0 0.0
    %9722 = vmatpush1.msra.mxu0 0.0
    %9723 = vmatprep.subr.mxu0 0.0
    %9724 = vmatpush1.msra.mxu0 0.0
    %9725 = vmatprep.subr.mxu0 0.0
    %9726 = vmatpush1.msra.mxu0 0.0
    %9727 = vmatprep.subr.mxu0 0.0
    %9728 = vmatpush1.msra.mxu0 0.0
    %9729 = vmatprep.subr.mxu0 0.0
    %9730 = vmatpush1.msra.mxu0 0.0
    %9731 = vmatprep.subr.mxu0 0.0
    %9732 = vmatpush1.msra.mxu0 0.0
    %9733 = vmatprep.subr.mxu0 0.0
    %9734 = vmatpush1.msra.mxu0 0.0
    %9735 = vmatprep.subr.mxu0 0.0
    %9736 = vmatpush1.msra.mxu0 0.0
    %9737 = vmatprep.subr.mxu0 0.0
    %9738 = vmatpush1.msra.mxu0 0.0
    %9739 = vmatprep.subr.mxu0 0.0
    %9740 = vmatpush1.msra.mxu0 0.0
    %9741 = vmatprep.subr.mxu0 0.0
    %9742 = vmatpush1.msra.mxu0 0.0
    %9743 = vmatprep.mubr.f32.mxu0 0.0
    %9744 = vmatmul.mubr.f32.gmra.mrb[0].mxu0 %v9677
    %v9745 = vpop.f32.mrb[0].mxu0
    %v9746 = vadd.f32 0.0, %v9745
    %v9747 = vpop.f32.mrb[0].mxu0
    %9748 = vdwg.mxu0
    %v9750 = vsel %vm3222, %v8653, 0
    %9752 = vmatprep.subr.mxu0 0.0
    %9753 = vmatpush1.msra.mxu0 %v7261
    %9754 = vmatprep.subr.mxu0 0.0
    %9755 = vmatpush1.msra.mxu0 0.0
    %9756 = vmatprep.subr.mxu0 0.0
    %9757 = vmatpush1.msra.mxu0 0.0
    %9758 = vmatprep.subr.mxu0 0.0
    %9759 = vmatpush1.msra.mxu0 0.0
    %9760 = vmatprep.subr.mxu0 0.0
    %9761 = vmatpush1.msra.mxu0 0.0
    %9762 = vmatprep.subr.mxu0 0.0
    %9763 = vmatpush1.msra.mxu0 0.0
    %9764 = vmatprep.subr.mxu0 0.0
    %9765 = vmatpush1.msra.mxu0 0.0
    %9766 = vmatprep.subr.mxu0 0.0
    %9767 = vmatpush1.msra.mxu0 0.0
    %9768 = vmatprep.subr.mxu0 0.0
    %9769 = vmatpush1.msra.mxu0 0.0
    %9770 = vmatprep.subr.mxu0 0.0
    %9771 = vmatpush1.msra.mxu0 0.0
    %9772 = vmatprep.subr.mxu0 0.0
    %9773 = vmatpush1.msra.mxu0 0.0
    %9774 = vmatprep.subr.mxu0 0.0
    %9775 = vmatpush1.msra.mxu0 0.0
    %9776 = vmatprep.subr.mxu0 0.0
    %9777 = vmatpush1.msra.mxu0 0.0
    %9778 = vmatprep.subr.mxu0 0.0
    %9779 = vmatpush1.msra.mxu0 0.0
    %9780 = vmatprep.subr.mxu0 0.0
    %9781 = vmatpush1.msra.mxu0 0.0
    %9782 = vmatprep.subr.mxu0 0.0
    %9783 = vmatpush1.msra.mxu0 0.0
    %9784 = vmatprep.subr.mxu0 0.0
    %9785 = vmatpush1.msra.mxu0 0.0
    %9786 = vmatprep.subr.mxu0 0.0
    %9787 = vmatpush1.msra.mxu0 0.0
    %9788 = vmatprep.subr.mxu0 0.0
    %9789 = vmatpush1.msra.mxu0 0.0
    %9790 = vmatprep.subr.mxu0 0.0
    %9791 = vmatpush1.msra.mxu0 0.0
    %9792 = vmatprep.subr.mxu0 0.0
    %9793 = vmatpush1.msra.mxu0 0.0
    %9794 = vmatprep.subr.mxu0 0.0
    %9795 = vmatpush1.msra.mxu0 0.0
    %9796 = vmatprep.subr.mxu0 0.0
    %9797 = vmatpush1.msra.mxu0 0.0
    %9798 = vmatprep.subr.mxu0 0.0
    %9799 = vmatpush1.msra.mxu0 0.0
    %9800 = vmatprep.subr.mxu0 0.0
    %9801 = vmatpush1.msra.mxu0 0.0
    %9802 = vmatprep.subr.mxu0 0.0
    %9803 = vmatpush1.msra.mxu0 0.0
    %9804 = vmatprep.subr.mxu0 0.0
    %9805 = vmatpush1.msra.mxu0 0.0
    %9806 = vmatprep.subr.mxu0 0.0
    %9807 = vmatpush1.msra.mxu0 0.0
    %9808 = vmatprep.subr.mxu0 0.0
    %9809 = vmatpush1.msra.mxu0 0.0
    %9810 = vmatprep.subr.mxu0 0.0
    %9811 = vmatpush1.msra.mxu0 0.0
    %9812 = vmatprep.subr.mxu0 0.0
    %9813 = vmatpush1.msra.mxu0 0.0
    %9814 = vmatprep.subr.mxu0 0.0
    %9815 = vmatpush1.msra.mxu0 0.0
    %9816 = vmatprep.mubr.f32.mxu0 0.0
    %9817 = vmatmul.mubr.f32.gmra.mrb[0].mxu0 %v9750
    %v9818 = vpop.f32.mrb[0].mxu0
    %v9819 = vadd.f32 0.0, %v9818
    %v9820 = vpop.f32.mrb[0].mxu0
    %9821 = vdwg.mxu0
    %v9822 = vcombine.low %v8724, %v8870
    %v9823 = vcombine.high %v8724, %v8870
    %v9825 = vunpack.c.l.s4 1983009808
    %v9826 = vunpack.c.0.s8 %v9825
    %v9827 = vlaneseq
    %v9828 = vshrl.u32 %v9827, 7
    %v9829 = vsub.s32 %v9826, %v9828
    %v9830 = vrot.slane %v9822, %v9829
    %v9832 = vunpack.c.l.s4 1983009808
    %v9833 = vunpack.c.0.s8 %v9832
    %v9834 = vlaneseq
    %v9835 = vshrl.u32 %v9834, 7
    %v9836 = vsub.s32 %v9833, %v9835
    %v9837 = vrot.slane %v9823, %v9836
    %v9838 = vcombine.low %v8797, %v8943
    %v9839 = vcombine.high %v8797, %v8943
    %v9841 = vunpack.c.l.s4 1983009808
    %v9842 = vunpack.c.0.s8 %v9841
    %v9843 = vlaneseq
    %v9844 = vshrl.u32 %v9843, 7
    %v9845 = vsub.s32 %v9842, %v9844
    %v9846 = vrot.slane %v9838, %v9845
    %v9848 = vunpack.c.l.s4 1983009808
    %v9849 = vunpack.c.0.s8 %v9848
    %v9850 = vlaneseq
    %v9851 = vshrl.u32 %v9850, 7
    %v9852 = vsub.s32 %v9849, %v9851
    %v9853 = vrot.slane %v9839, %v9852
    %v9854 = vcombine.low %v9016, %v9162
    %v9855 = vcombine.high %v9016, %v9162
    %v9857 = vunpack.c.l.s4 1983009808
    %v9858 = vunpack.c.0.s8 %v9857
    %v9859 = vlaneseq
    %v9860 = vshrl.u32 %v9859, 7
    %v9861 = vsub.s32 %v9858, %v9860
    %v9862 = vrot.slane %v9854, %v9861
    %v9864 = vunpack.c.l.s4 1983009808
    %v9865 = vunpack.c.0.s8 %v9864
    %v9866 = vlaneseq
    %v9867 = vshrl.u32 %v9866, 7
    %v9868 = vsub.s32 %v9865, %v9867
    %v9869 = vrot.slane %v9855, %v9868
    %v9870 = vcombine.low %v9089, %v9235
    %v9871 = vcombine.high %v9089, %v9235
    %v9873 = vunpack.c.l.s4 1983009808
    %v9874 = vunpack.c.0.s8 %v9873
    %v9875 = vlaneseq
    %v9876 = vshrl.u32 %v9875, 7
    %v9877 = vsub.s32 %v9874, %v9876
    %v9878 = vrot.slane %v9870, %v9877
    %v9880 = vunpack.c.l.s4 1983009808
    %v9881 = vunpack.c.0.s8 %v9880
    %v9882 = vlaneseq
    %v9883 = vshrl.u32 %v9882, 7
    %v9884 = vsub.s32 %v9881, %v9883
    %v9885 = vrot.slane %v9871, %v9884
    %v9886 = vcombine.low %v9830, %v9846
    %v9887 = vcombine.high %v9830, %v9846
    %v9889 = vunpack.c.l.s4 1934713408
    %v9890 = vunpack.c.0.s8 %v9889
    %v9891 = vlaneseq
    %v9892 = vshrl.u32 %v9891, 7
    %v9893 = vsub.s32 %v9890, %v9892
    %v9894 = vrot.slane %v9886, %v9893
    %v9896 = vunpack.c.l.s4 1934713408
    %v9897 = vunpack.c.0.s8 %v9896
    %v9898 = vlaneseq
    %v9899 = vshrl.u32 %v9898, 7
    %v9900 = vsub.s32 %v9897, %v9899
    %v9901 = vrot.slane %v9887, %v9900
    %v9902 = vcombine.low %v9837, %v9853
    %v9903 = vcombine.high %v9837, %v9853
    %v9905 = vunpack.c.l.s4 1934713408
    %v9906 = vunpack.c.0.s8 %v9905
    %v9907 = vlaneseq
    %v9908 = vshrl.u32 %v9907, 7
    %v9909 = vsub.s32 %v9906, %v9908
    %v9910 = vrot.slane %v9902, %v9909
    %v9912 = vunpack.c.l.s4 1934713408
    %v9913 = vunpack.c.0.s8 %v9912
    %v9914 = vlaneseq
    %v9915 = vshrl.u32 %v9914, 7
    %v9916 = vsub.s32 %v9913, %v9915
    %v9917 = vrot.slane %v9903, %v9916
    %v9918 = vcombine.low %v9862, %v9878
    %v9919 = vcombine.high %v9862, %v9878
    %v9921 = vunpack.c.l.s4 1934713408
    %v9922 = vunpack.c.0.s8 %v9921
    %v9923 = vlaneseq
    %v9924 = vshrl.u32 %v9923, 7
    %v9925 = vsub.s32 %v9922, %v9924
    %v9926 = vrot.slane %v9918, %v9925
    %v9928 = vunpack.c.l.s4 1934713408
    %v9929 = vunpack.c.0.s8 %v9928
    %v9930 = vlaneseq
    %v9931 = vshrl.u32 %v9930, 7
    %v9932 = vsub.s32 %v9929, %v9931
    %v9933 = vrot.slane %v9919, %v9932
    %v9934 = vcombine.low %v9869, %v9885
    %v9935 = vcombine.high %v9869, %v9885
    %v9937 = vunpack.c.l.s4 1934713408
    %v9938 = vunpack.c.0.s8 %v9937
    %v9939 = vlaneseq
    %v9940 = vshrl.u32 %v9939, 7
    %v9941 = vsub.s32 %v9938, %v9940
    %v9942 = vrot.slane %v9934, %v9941
    %v9944 = vunpack.c.l.s4 1934713408
    %v9945 = vunpack.c.0.s8 %v9944
    %v9946 = vlaneseq
    %v9947 = vshrl.u32 %v9946, 7
    %v9948 = vsub.s32 %v9945, %v9947
    %v9949 = vrot.slane %v9935, %v9948
    %v9950 = vcombine.low %v9894, %v9926
    %v9951 = vcombine.high %v9894, %v9926
    %v9952 = vcombine.low %v9901, %v9933
    %v9953 = vcombine.high %v9901, %v9933
    %v9954 = vcombine.low %v9910, %v9942
    %v9955 = vcombine.high %v9910, %v9942
    %v9956 = vcombine.low %v9917, %v9949
    %v9957 = vcombine.high %v9917, %v9949
    %v9958 = vcombine.low %v9308, %v9454
    %v9959 = vcombine.high %v9308, %v9454
    %v9961 = vunpack.c.l.s4 1983009808
    %v9962 = vunpack.c.0.s8 %v9961
    %v9963 = vlaneseq
    %v9964 = vshrl.u32 %v9963, 7
    %v9965 = vsub.s32 %v9962, %v9964
    %v9966 = vrot.slane %v9958, %v9965
    %v9968 = vunpack.c.l.s4 1983009808
    %v9969 = vunpack.c.0.s8 %v9968
    %v9970 = vlaneseq
    %v9971 = vshrl.u32 %v9970, 7
    %v9972 = vsub.s32 %v9969, %v9971
    %v9973 = vrot.slane %v9959, %v9972
    %v9974 = vcombine.low %v9381, %v9527
    %v9975 = vcombine.high %v9381, %v9527
    %v9977 = vunpack.c.l.s4 1983009808
    %v9978 = vunpack.c.0.s8 %v9977
    %v9979 = vlaneseq
    %v9980 = vshrl.u32 %v9979, 7
    %v9981 = vsub.s32 %v9978, %v9980
    %v9982 = vrot.slane %v9974, %v9981
    %v9984 = vunpack.c.l.s4 1983009808
    %v9985 = vunpack.c.0.s8 %v9984
    %v9986 = vlaneseq
    %v9987 = vshrl.u32 %v9986, 7
    %v9988 = vsub.s32 %v9985, %v9987
    %v9989 = vrot.slane %v9975, %v9988
    %v9990 = vcombine.low %v9600, %v9746
    %v9991 = vcombine.high %v9600, %v9746
    %v9993 = vunpack.c.l.s4 1983009808
    %v9994 = vunpack.c.0.s8 %v9993
    %v9995 = vlaneseq
    %v9996 = vshrl.u32 %v9995, 7
    %v9997 = vsub.s32 %v9994, %v9996
    %v9998 = vrot.slane %v9990, %v9997
    %v10000 = vunpack.c.l.s4 1983009808
    %v10001 = vunpack.c.0.s8 %v10000
    %v10002 = vlaneseq
    %v10003 = vshrl.u32 %v10002, 7
    %v10004 = vsub.s32 %v10001, %v10003
    %v10005 = vrot.slane %v9991, %v10004
    %v10006 = vcombine.low %v9673, %v9819
    %v10007 = vcombine.high %v9673, %v9819
    %v10009 = vunpack.c.l.s4 1983009808
    %v10010 = vunpack.c.0.s8 %v10009
    %v10011 = vlaneseq
    %v10012 = vshrl.u32 %v10011, 7
    %v10013 = vsub.s32 %v10010, %v10012
    %v10014 = vrot.slane %v10006, %v10013
    %v10016 = vunpack.c.l.s4 1983009808
    %v10017 = vunpack.c.0.s8 %v10016
    %v10018 = vlaneseq
    %v10019 = vshrl.u32 %v10018, 7
    %v10020 = vsub.s32 %v10017, %v10019
    %v10021 = vrot.slane %v10007, %v10020
    %v10022 = vcombine.low %v9966, %v9982
    %v10023 = vcombine.high %v9966, %v9982
    %v10025 = vunpack.c.l.s4 1934713408
    %v10026 = vunpack.c.0.s8 %v10025
    %v10027 = vlaneseq
    %v10028 = vshrl.u32 %v10027, 7
    %v10029 = vsub.s32 %v10026, %v10028
    %v10030 = vrot.slane %v10022, %v10029
    %v10032 = vunpack.c.l.s4 1934713408
    %v10033 = vunpack.c.0.s8 %v10032
    %v10034 = vlaneseq
    %v10035 = vshrl.u32 %v10034, 7
    %v10036 = vsub.s32 %v10033, %v10035
    %v10037 = vrot.slane %v10023, %v10036
    %v10038 = vcombine.low %v9973, %v9989
    %v10039 = vcombine.high %v9973, %v9989
    %v10041 = vunpack.c.l.s4 1934713408
    %v10042 = vunpack.c.0.s8 %v10041
    %v10043 = vlaneseq
    %v10044 = vshrl.u32 %v10043, 7
    %v10045 = vsub.s32 %v10042, %v10044
    %v10046 = vrot.slane %v10038, %v10045
    %v10048 = vunpack.c.l.s4 1934713408
    %v10049 = vunpack.c.0.s8 %v10048
    %v10050 = vlaneseq
    %v10051 = vshrl.u32 %v10050, 7
    %v10052 = vsub.s32 %v10049, %v10051
    %v10053 = vrot.slane %v10039, %v10052
    %v10054 = vcombine.low %v9998, %v10014
    %v10055 = vcombine.high %v9998, %v10014
    %v10057 = vunpack.c.l.s4 1934713408
    %v10058 = vunpack.c.0.s8 %v10057
    %v10059 = vlaneseq
    %v10060 = vshrl.u32 %v10059, 7
    %v10061 = vsub.s32 %v10058, %v10060
    %v10062 = vrot.slane %v10054, %v10061
    %v10064 = vunpack.c.l.s4 1934713408
    %v10065 = vunpack.c.0.s8 %v10064
    %v10066 = vlaneseq
    %v10067 = vshrl.u32 %v10066, 7
    %v10068 = vsub.s32 %v10065, %v10067
    %v10069 = vrot.slane %v10055, %v10068
    %v10070 = vcombine.low %v10005, %v10021
    %v10071 = vcombine.high %v10005, %v10021
    %v10073 = vunpack.c.l.s4 1934713408
    %v10074 = vunpack.c.0.s8 %v10073
    %v10075 = vlaneseq
    %v10076 = vshrl.u32 %v10075, 7
    %v10077 = vsub.s32 %v10074, %v10076
    %v10078 = vrot.slane %v10070, %v10077
    %v10080 = vunpack.c.l.s4 1934713408
    %v10081 = vunpack.c.0.s8 %v10080
    %v10082 = vlaneseq
    %v10083 = vshrl.u32 %v10082, 7
    %v10084 = vsub.s32 %v10081, %v10083
    %v10085 = vrot.slane %v10071, %v10084
    %v10086 = vcombine.low %v10030, %v10062
    %v10087 = vcombine.high %v10030, %v10062
    %v10088 = vcombine.low %v10037, %v10069
    %v10089 = vcombine.high %v10037, %v10069
    %v10090 = vcombine.low %v10046, %v10078
    %v10091 = vcombine.high %v10046, %v10078
    %v10092 = vcombine.low %v10053, %v10085
    %v10093 = vcombine.high %v10053, %v10085
    %v10094 = vcombine.low %v9950, %v9952
    %v10095 = vcombine.high %v9950, %v9952
    %v10097 = vunpack.c.l.s4 1983009808
    %v10098 = vunpack.c.0.s8 %v10097
    %v10099 = vlaneseq
    %v10100 = vshrl.u32 %v10099, 7
    %v10101 = vsub.s32 %v10098, %v10100
    %v10102 = vrot.slane %v10094, %v10101
    %v10104 = vunpack.c.l.s4 1983009808
    %v10105 = vunpack.c.0.s8 %v10104
    %v10106 = vlaneseq
    %v10107 = vshrl.u32 %v10106, 7
    %v10108 = vsub.s32 %v10105, %v10107
    %v10109 = vrot.slane %v10095, %v10108
    %v10110 = vcombine.low %v9951, %v9953
    %v10111 = vcombine.high %v9951, %v9953
    %v10113 = vunpack.c.l.s4 1983009808
    %v10114 = vunpack.c.0.s8 %v10113
    %v10115 = vlaneseq
    %v10116 = vshrl.u32 %v10115, 7
    %v10117 = vsub.s32 %v10114, %v10116
    %v10118 = vrot.slane %v10110, %v10117
    %v10120 = vunpack.c.l.s4 1983009808
    %v10121 = vunpack.c.0.s8 %v10120
    %v10122 = vlaneseq
    %v10123 = vshrl.u32 %v10122, 7
    %v10124 = vsub.s32 %v10121, %v10123
    %v10125 = vrot.slane %v10111, %v10124
    %v10126 = vcombine.low %v9954, %v9956
    %v10127 = vcombine.high %v9954, %v9956
    %v10129 = vunpack.c.l.s4 1983009808
    %v10130 = vunpack.c.0.s8 %v10129
    %v10131 = vlaneseq
    %v10132 = vshrl.u32 %v10131, 7
    %v10133 = vsub.s32 %v10130, %v10132
    %v10134 = vrot.slane %v10126, %v10133
    %v10136 = vunpack.c.l.s4 1983009808
    %v10137 = vunpack.c.0.s8 %v10136
    %v10138 = vlaneseq
    %v10139 = vshrl.u32 %v10138, 7
    %v10140 = vsub.s32 %v10137, %v10139
    %v10141 = vrot.slane %v10127, %v10140
    %v10142 = vcombine.low %v9955, %v9957
    %v10143 = vcombine.high %v9955, %v9957
    %v10145 = vunpack.c.l.s4 1983009808
    %v10146 = vunpack.c.0.s8 %v10145
    %v10147 = vlaneseq
    %v10148 = vshrl.u32 %v10147, 7
    %v10149 = vsub.s32 %v10146, %v10148
    %v10150 = vrot.slane %v10142, %v10149
    %v10152 = vunpack.c.l.s4 1983009808
    %v10153 = vunpack.c.0.s8 %v10152
    %v10154 = vlaneseq
    %v10155 = vshrl.u32 %v10154, 7
    %v10156 = vsub.s32 %v10153, %v10155
    %v10157 = vrot.slane %v10143, %v10156
    %v10158 = vcombine.low %v10102, %v10118
    %v10159 = vcombine.high %v10102, %v10118
    %v10161 = vunpack.c.l.s4 1934713408
    %v10162 = vunpack.c.0.s8 %v10161
    %v10163 = vlaneseq
    %v10164 = vshrl.u32 %v10163, 7
    %v10165 = vsub.s32 %v10162, %v10164
    %v10166 = vrot.slane %v10158, %v10165
    %v10168 = vunpack.c.l.s4 1934713408
    %v10169 = vunpack.c.0.s8 %v10168
    %v10170 = vlaneseq
    %v10171 = vshrl.u32 %v10170, 7
    %v10172 = vsub.s32 %v10169, %v10171
    %v10173 = vrot.slane %v10159, %v10172
    %v10174 = vcombine.low %v10109, %v10125
    %v10175 = vcombine.high %v10109, %v10125
    %v10177 = vunpack.c.l.s4 1934713408
    %v10178 = vunpack.c.0.s8 %v10177
    %v10179 = vlaneseq
    %v10180 = vshrl.u32 %v10179, 7
    %v10181 = vsub.s32 %v10178, %v10180
    %v10182 = vrot.slane %v10174, %v10181
    %v10184 = vunpack.c.l.s4 1934713408
    %v10185 = vunpack.c.0.s8 %v10184
    %v10186 = vlaneseq
    %v10187 = vshrl.u32 %v10186, 7
    %v10188 = vsub.s32 %v10185, %v10187
    %v10189 = vrot.slane %v10175, %v10188
    %v10190 = vcombine.low %v10134, %v10150
    %v10191 = vcombine.high %v10134, %v10150
    %v10193 = vunpack.c.l.s4 1934713408
    %v10194 = vunpack.c.0.s8 %v10193
    %v10195 = vlaneseq
    %v10196 = vshrl.u32 %v10195, 7
    %v10197 = vsub.s32 %v10194, %v10196
    %v10198 = vrot.slane %v10190, %v10197
    %v10200 = vunpack.c.l.s4 1934713408
    %v10201 = vunpack.c.0.s8 %v10200
    %v10202 = vlaneseq
    %v10203 = vshrl.u32 %v10202, 7
    %v10204 = vsub.s32 %v10201, %v10203
    %v10205 = vrot.slane %v10191, %v10204
    %v10206 = vcombine.low %v10141, %v10157
    %v10207 = vcombine.high %v10141, %v10157
    %v10209 = vunpack.c.l.s4 1934713408
    %v10210 = vunpack.c.0.s8 %v10209
    %v10211 = vlaneseq
    %v10212 = vshrl.u32 %v10211, 7
    %v10213 = vsub.s32 %v10210, %v10212
    %v10214 = vrot.slane %v10206, %v10213
    %v10216 = vunpack.c.l.s4 1934713408
    %v10217 = vunpack.c.0.s8 %v10216
    %v10218 = vlaneseq
    %v10219 = vshrl.u32 %v10218, 7
    %v10220 = vsub.s32 %v10217, %v10219
    %v10221 = vrot.slane %v10207, %v10220
    %v10222 = vcombine.low %v10166, %v10198
    %v10223 = vcombine.high %v10166, %v10198
    %v10224 = vcombine.low %v10173, %v10205
    %v10225 = vcombine.high %v10173, %v10205
    %v10226 = vcombine.low %v10182, %v10214
    %v10227 = vcombine.high %v10182, %v10214
    %v10228 = vcombine.low %v10189, %v10221
    %v10229 = vcombine.high %v10189, %v10221
    %v10230 = vcombine.low %v10086, %v10088
    %v10231 = vcombine.high %v10086, %v10088
    %v10233 = vunpack.c.l.s4 1983009808
    %v10234 = vunpack.c.0.s8 %v10233
    %v10235 = vlaneseq
    %v10236 = vshrl.u32 %v10235, 7
    %v10237 = vsub.s32 %v10234, %v10236
    %v10238 = vrot.slane %v10230, %v10237
    %v10240 = vunpack.c.l.s4 1983009808
    %v10241 = vunpack.c.0.s8 %v10240
    %v10242 = vlaneseq
    %v10243 = vshrl.u32 %v10242, 7
    %v10244 = vsub.s32 %v10241, %v10243
    %v10245 = vrot.slane %v10231, %v10244
    %v10246 = vcombine.low %v10087, %v10089
    %v10247 = vcombine.high %v10087, %v10089
    %v10249 = vunpack.c.l.s4 1983009808
    %v10250 = vunpack.c.0.s8 %v10249
    %v10251 = vlaneseq
    %v10252 = vshrl.u32 %v10251, 7
    %v10253 = vsub.s32 %v10250, %v10252
    %v10254 = vrot.slane %v10246, %v10253
    %v10256 = vunpack.c.l.s4 1983009808
    %v10257 = vunpack.c.0.s8 %v10256
    %v10258 = vlaneseq
    %v10259 = vshrl.u32 %v10258, 7
    %v10260 = vsub.s32 %v10257, %v10259
    %v10261 = vrot.slane %v10247, %v10260
    %v10262 = vcombine.low %v10090, %v10092
    %v10263 = vcombine.high %v10090, %v10092
    %v10265 = vunpack.c.l.s4 1983009808
    %v10266 = vunpack.c.0.s8 %v10265
    %v10267 = vlaneseq
    %v10268 = vshrl.u32 %v10267, 7
    %v10269 = vsub.s32 %v10266, %v10268
    %v10270 = vrot.slane %v10262, %v10269
    %v10272 = vunpack.c.l.s4 1983009808
    %v10273 = vunpack.c.0.s8 %v10272
    %v10274 = vlaneseq
    %v10275 = vshrl.u32 %v10274, 7
    %v10276 = vsub.s32 %v10273, %v10275
    %v10277 = vrot.slane %v10263, %v10276
    %v10278 = vcombine.low %v10091, %v10093
    %v10279 = vcombine.high %v10091, %v10093
    %v10281 = vunpack.c.l.s4 1983009808
    %v10282 = vunpack.c.0.s8 %v10281
    %v10283 = vlaneseq
    %v10284 = vshrl.u32 %v10283, 7
    %v10285 = vsub.s32 %v10282, %v10284
    %v10286 = vrot.slane %v10278, %v10285
    %v10288 = vunpack.c.l.s4 1983009808
    %v10289 = vunpack.c.0.s8 %v10288
    %v10290 = vlaneseq
    %v10291 = vshrl.u32 %v10290, 7
    %v10292 = vsub.s32 %v10289, %v10291
    %v10293 = vrot.slane %v10279, %v10292
    %v10294 = vcombine.low %v10238, %v10254
    %v10295 = vcombine.high %v10238, %v10254
    %v10297 = vunpack.c.l.s4 1934713408
    %v10298 = vunpack.c.0.s8 %v10297
    %v10299 = vlaneseq
    %v10300 = vshrl.u32 %v10299, 7
    %v10301 = vsub.s32 %v10298, %v10300
    %v10302 = vrot.slane %v10294, %v10301
    %v10304 = vunpack.c.l.s4 1934713408
    %v10305 = vunpack.c.0.s8 %v10304
    %v10306 = vlaneseq
    %v10307 = vshrl.u32 %v10306, 7
    %v10308 = vsub.s32 %v10305, %v10307
    %v10309 = vrot.slane %v10295, %v10308
    %v10310 = vcombine.low %v10245, %v10261
    %v10311 = vcombine.high %v10245, %v10261
    %v10313 = vunpack.c.l.s4 1934713408
    %v10314 = vunpack.c.0.s8 %v10313
    %v10315 = vlaneseq
    %v10316 = vshrl.u32 %v10315, 7
    %v10317 = vsub.s32 %v10314, %v10316
    %v10318 = vrot.slane %v10310, %v10317
    %v10320 = vunpack.c.l.s4 1934713408
    %v10321 = vunpack.c.0.s8 %v10320
    %v10322 = vlaneseq
    %v10323 = vshrl.u32 %v10322, 7
    %v10324 = vsub.s32 %v10321, %v10323
    %v10325 = vrot.slane %v10311, %v10324
    %v10326 = vcombine.low %v10270, %v10286
    %v10327 = vcombine.high %v10270, %v10286
    %v10329 = vunpack.c.l.s4 1934713408
    %v10330 = vunpack.c.0.s8 %v10329
    %v10331 = vlaneseq
    %v10332 = vshrl.u32 %v10331, 7
    %v10333 = vsub.s32 %v10330, %v10332
    %v10334 = vrot.slane %v10326, %v10333
    %v10336 = vunpack.c.l.s4 1934713408
    %v10337 = vunpack.c.0.s8 %v10336
    %v10338 = vlaneseq
    %v10339 = vshrl.u32 %v10338, 7
    %v10340 = vsub.s32 %v10337, %v10339
    %v10341 = vrot.slane %v10327, %v10340
    %v10342 = vcombine.low %v10277, %v10293
    %v10343 = vcombine.high %v10277, %v10293
    %v10345 = vunpack.c.l.s4 1934713408
    %v10346 = vunpack.c.0.s8 %v10345
    %v10347 = vlaneseq
    %v10348 = vshrl.u32 %v10347, 7
    %v10349 = vsub.s32 %v10346, %v10348
    %v10350 = vrot.slane %v10342, %v10349
    %v10352 = vunpack.c.l.s4 1934713408
    %v10353 = vunpack.c.0.s8 %v10352
    %v10354 = vlaneseq
    %v10355 = vshrl.u32 %v10354, 7
    %v10356 = vsub.s32 %v10353, %v10355
    %v10357 = vrot.slane %v10343, %v10356
    %v10358 = vcombine.low %v10302, %v10334
    %v10359 = vcombine.high %v10302, %v10334
    %v10360 = vcombine.low %v10309, %v10341
    %v10361 = vcombine.high %v10309, %v10341
    %v10362 = vcombine.low %v10318, %v10350
    %v10363 = vcombine.high %v10318, %v10350
    %v10364 = vcombine.low %v10325, %v10357
    %v10365 = vcombine.high %v10325, %v10357
    %10368 = vrot.lane.b32.xlu0 %v10223, 4
    %v10369 = vpop.permute.xlu0 %10368
    %10370 = vrot.lane.b32.xlu0 %v10359, 4
    %v10371 = vpop.permute.xlu0 %10370
    %10376 = vrot.lane.b32.xlu0 %v10224, 8
    %v10377 = vpop.permute.xlu0 %10376
    %10378 = vrot.lane.b32.xlu0 %v10360, 8
    %v10379 = vpop.permute.xlu0 %10378
    %10384 = vrot.lane.b32.xlu0 %v10225, 12
    %v10385 = vpop.permute.xlu0 %10384
    %10386 = vrot.lane.b32.xlu0 %v10361, 12
    %v10387 = vpop.permute.xlu0 %10386
    %10392 = vrot.lane.b32.xlu0 %v10226, 16
    %v10393 = vpop.permute.xlu0 %10392
    %10394 = vrot.lane.b32.xlu0 %v10362, 16
    %v10395 = vpop.permute.xlu0 %10394
    %10400 = vrot.lane.b32.xlu0 %v10227, 20
    %v10401 = vpop.permute.xlu0 %10400
    %10402 = vrot.lane.b32.xlu0 %v10363, 20
    %v10403 = vpop.permute.xlu0 %10402
    %10408 = vrot.lane.b32.xlu0 %v10228, 24
    %v10409 = vpop.permute.xlu0 %10408
    %10410 = vrot.lane.b32.xlu0 %v10364, 24
    %v10411 = vpop.permute.xlu0 %10410
    %10416 = vrot.lane.b32.xlu0 %v10229, 28
    %v10417 = vpop.permute.xlu0 %10416
    %10418 = vrot.lane.b32.xlu0 %v10365, 28
    %v10419 = vpop.permute.xlu0 %10418
    %v10422 = vsel %vm2005, %v10222, %v10369
    %v10423 = vsel %vm2005, %v10358, %v10371
    %v10424 = vsel %vm3222, %v10422, %v10377
    %v10425 = vsel %vm3222, %v10423, %v10379
    %v10426 = vsel %vm5171, %v10424, %v10385
    %v10427 = vsel %vm5171, %v10425, %v10387
    %v10428 = vsel %vm5174, %v10426, %v10393
    %v10429 = vsel %vm5174, %v10427, %v10395
    %v10430 = vsel %vm5177, %v10428, %v10401
    %v10431 = vsel %vm5177, %v10429, %v10403
    %v10432 = vsel %vm5180, %v10430, %v10409
    %v10433 = vsel %vm5180, %v10431, %v10411
    %v10434 = vsel %vm5183, %v10432, %v10417
    %v10435 = vsel %vm5183, %v10433, %v10419
    %v10436 = vld [vmem:[%s11] sm:$0xff]
    %v10437 = vld [vmem:[%s11 + $0x8] sm:$0xff]
    %v10438 = vld [vmem:[%s11 + $0x10] sm:$0xff]
    %v10439 = vld [vmem:[%s11 + $0x18] sm:$0xff]
    %v10440 = vld [vmem:[%s12] sm:$0x1]
    %v10442 = vlaneseq
    %v10443 = vshrl.u32 %v10442, 7
    %v10444 = vsub.s32 0, %v10443
    %v10445 = vrot.slane %v10440, %v10444
    %v10448 = vsel %vm104, %v10434, 0
    %v10451 = vsel %vm104, %v10435, 0
    %10453 = vmatprep.subr.mxu0 0.0
    %10454 = vmatpush1.msra.mxu0 %v10436
    %10455 = vmatprep.subr.mxu0 0.0
    %10456 = vmatpush1.msra.mxu0 %v10437
    %10457 = vmatprep.subr.mxu0 0.0
    %10458 = vmatpush1.msra.mxu0 %v10438
    %10459 = vmatprep.subr.mxu0 0.0
    %10460 = vmatpush1.msra.mxu0 %v10439
    %10461 = vmatprep.subr.mxu0 0.0
    %10462 = vmatpush1.msra.mxu0 0.0
    %10463 = vmatprep.subr.mxu0 0.0
    %10464 = vmatpush1.msra.mxu0 0.0
    %10465 = vmatprep.subr.mxu0 0.0
    %10466 = vmatpush1.msra.mxu0 0.0
    %10467 = vmatprep.subr.mxu0 0.0
    %10468 = vmatpush1.msra.mxu0 0.0
    %10469 = vmatprep.subr.mxu0 0.0
    %10470 = vmatpush1.msra.mxu0 0.0
    %10471 = vmatprep.subr.mxu0 0.0
    %10472 = vmatpush1.msra.mxu0 0.0
    %10473 = vmatprep.subr.mxu0 0.0
    %10474 = vmatpush1.msra.mxu0 0.0
    %10475 = vmatprep.subr.mxu0 0.0
    %10476 = vmatpush1.msra.mxu0 0.0
    %10477 = vmatprep.subr.mxu0 0.0
    %10478 = vmatpush1.msra.mxu0 0.0
    %10479 = vmatprep.subr.mxu0 0.0
    %10480 = vmatpush1.msra.mxu0 0.0
    %10481 = vmatprep.subr.mxu0 0.0
    %10482 = vmatpush1.msra.mxu0 0.0
    %10483 = vmatprep.subr.mxu0 0.0
    %10484 = vmatpush1.msra.mxu0 0.0
    %10485 = vmatprep.subr.mxu0 0.0
    %10486 = vmatpush1.msra.mxu0 0.0
    %10487 = vmatprep.subr.mxu0 0.0
    %10488 = vmatpush1.msra.mxu0 0.0
    %10489 = vmatprep.subr.mxu0 0.0
    %10490 = vmatpush1.msra.mxu0 0.0
    %10491 = vmatprep.subr.mxu0 0.0
    %10492 = vmatpush1.msra.mxu0 0.0
    %10493 = vmatprep.subr.mxu0 0.0
    %10494 = vmatpush1.msra.mxu0 0.0
    %10495 = vmatprep.subr.mxu0 0.0
    %10496 = vmatpush1.msra.mxu0 0.0
    %10497 = vmatprep.subr.mxu0 0.0
    %10498 = vmatpush1.msra.mxu0 0.0
    %10499 = vmatprep.subr.mxu0 0.0
    %10500 = vmatpush1.msra.mxu0 0.0
    %10501 = vmatprep.subr.mxu0 0.0
    %10502 = vmatpush1.msra.mxu0 0.0
    %10503 = vmatprep.subr.mxu0 0.0
    %10504 = vmatpush1.msra.mxu0 0.0
    %10505 = vmatprep.subr.mxu0 0.0
    %10506 = vmatpush1.msra.mxu0 0.0
    %10507 = vmatprep.subr.mxu0 0.0
    %10508 = vmatpush1.msra.mxu0 0.0
    %10509 = vmatprep.subr.mxu0 0.0
    %10510 = vmatpush1.msra.mxu0 0.0
    %10511 = vmatprep.subr.mxu0 0.0
    %10512 = vmatpush1.msra.mxu0 0.0
    %10513 = vmatprep.subr.mxu0 0.0
    %10514 = vmatpush1.msra.mxu0 0.0
    %10515 = vmatprep.subr.mxu0 0.0
    %10516 = vmatpush1.msra.mxu0 0.0
    %10517 = vmatprep.mubr.f32.mxu0 0.0
    %10518 = vmatmul.mubr.f32.gmra.mrb[0].mxu0 %v10448
    %v10519 = vpop.f32.mrb[0].mxu0
    %v10520 = vadd.f32 %v10445, %v10519
    %v10521 = vpop.f32.mrb[0].mxu0
    %10522 = vmatprep.mubr.f32.mxu0 0.0
    %10523 = vmatmul.mubr.f32.gmra.mrb[0].mxu0 %v10451
    %v10524 = vpop.f32.mrb[0].mxu0
    %v10525 = vadd.f32 %v10445, %v10524
    %v10526 = vpop.f32.mrb[0].mxu0
    %10527 = vdwg.mxu0
    %v10528 = vld [vmem:[#allocation7] sm:$0xff]
    %v10529 = vld [vmem:[#allocation7 + $0x8] sm:$0xff]
    %v10530 = vld [vmem:[#allocation7 + $0x10] sm:$0xff]
    %v10531 = vld [vmem:[#allocation7 + $0x18] sm:$0xff]
    %v10532 = vld [vmem:[%s14] sm:$0x1]
    %v10534 = vlaneseq
    %v10535 = vshrl.u32 %v10534, 7
    %v10536 = vsub.s32 0, %v10535
    %v10537 = vrot.slane %v10532, %v10536
    %v10540 = vsel %vm104, %v10520, 0
    %v10543 = vsel %vm104, %v10525, 0
    %10545 = vmatprep.subr.mxu0 0.0
    %10546 = vmatpush1.msra.mxu0 %v10528
    %10547 = vmatprep.subr.mxu0 0.0
    %10548 = vmatpush1.msra.mxu0 %v10529
    %10549 = vmatprep.subr.mxu0 0.0
    %10550 = vmatpush1.msra.mxu0 %v10530
    %10551 = vmatprep.subr.mxu0 0.0
    %10552 = vmatpush1.msra.mxu0 %v10531
    %10553 = vmatprep.subr.mxu0 0.0
    %10554 = vmatpush1.msra.mxu0 0.0
    %10555 = vmatprep.subr.mxu0 0.0
    %10556 = vmatpush1.msra.mxu0 0.0
    %10557 = vmatprep.subr.mxu0 0.0
    %10558 = vmatpush1.msra.mxu0 0.0
    %10559 = vmatprep.subr.mxu0 0.0
    %10560 = vmatpush1.msra.mxu0 0.0
    %10561 = vmatprep.subr.mxu0 0.0
    %10562 = vmatpush1.msra.mxu0 0.0
    %10563 = vmatprep.subr.mxu0 0.0
    %10564 = vmatpush1.msra.mxu0 0.0
    %10565 = vmatprep.subr.mxu0 0.0
    %10566 = vmatpush1.msra.mxu0 0.0
    %10567 = vmatprep.subr.mxu0 0.0
    %10568 = vmatpush1.msra.mxu0 0.0
    %10569 = vmatprep.subr.mxu0 0.0
    %10570 = vmatpush1.msra.mxu0 0.0
    %10571 = vmatprep.subr.mxu0 0.0
    %10572 = vmatpush1.msra.mxu0 0.0
    %10573 = vmatprep.subr.mxu0 0.0
    %10574 = vmatpush1.msra.mxu0 0.0
    %10575 = vmatprep.subr.mxu0 0.0
    %10576 = vmatpush1.msra.mxu0 0.0
    %10577 = vmatprep.subr.mxu0 0.0
    %10578 = vmatpush1.msra.mxu0 0.0
    %10579 = vmatprep.subr.mxu0 0.0
    %10580 = vmatpush1.msra.mxu0 0.0
    %10581 = vmatprep.subr.mxu0 0.0
    %10582 = vmatpush1.msra.mxu0 0.0
    %10583 = vmatprep.subr.mxu0 0.0
    %10584 = vmatpush1.msra.mxu0 0.0
    %10585 = vmatprep.subr.mxu0 0.0
    %10586 = vmatpush1.msra.mxu0 0.0
    %10587 = vmatprep.subr.mxu0 0.0
    %10588 = vmatpush1.msra.mxu0 0.0
    %10589 = vmatprep.subr.mxu0 0.0
    %10590 = vmatpush1.msra.mxu0 0.0
    %10591 = vmatprep.subr.mxu0 0.0
    %10592 = vmatpush1.msra.mxu0 0.0
    %10593 = vmatprep.subr.mxu0 0.0
    %10594 = vmatpush1.msra.mxu0 0.0
    %10595 = vmatprep.subr.mxu0 0.0
    %10596 = vmatpush1.msra.mxu0 0.0
    %10597 = vmatprep.subr.mxu0 0.0
    %10598 = vmatpush1.msra.mxu0 0.0
    %10599 = vmatprep.subr.mxu0 0.0
    %10600 = vmatpush1.msra.mxu0 0.0
    %10601 = vmatprep.subr.mxu0 0.0
    %10602 = vmatpush1.msra.mxu0 0.0
    %10603 = vmatprep.subr.mxu0 0.0
    %10604 = vmatpush1.msra.mxu0 0.0
    %10605 = vmatprep.subr.mxu0 0.0
    %10606 = vmatpush1.msra.mxu0 0.0
    %10607 = vmatprep.subr.mxu0 0.0
    %10608 = vmatpush1.msra.mxu0 0.0
    %10609 = vmatprep.mubr.f32.mxu0 0.0
    %10610 = vmatmul.mubr.f32.gmra.mrb[0].mxu0 %v10540
    %v10611 = vpop.f32.mrb[0].mxu0
    %v10612 = vadd.f32 %v10537, %v10611
    %v10613 = vpop.f32.mrb[0].mxu0
    %10614 = vmatprep.mubr.f32.mxu0 0.0
    %10615 = vmatmul.mubr.f32.gmra.mrb[0].mxu0 %v10543
    %v10616 = vpop.f32.mrb[0].mxu0
    %v10617 = vadd.f32 %v10537, %v10616
    %v10618 = vpop.f32.mrb[0].mxu0
    %10619 = vmatprep.mubr.f32.mxu0 0.0
    %10620 = vmatmul.mubr.f32.gmra.mrb[0].mxu0 %v5329
    %v10621 = vpop.f32.mrb[0].mxu0
    %v10622 = vadd.f32 %v10537, %v10621
    %v10623 = vpop.f32.mrb[0].mxu0
    %10624 = vmatprep.mubr.f32.mxu0 0.0
    %10625 = vmatmul.mubr.f32.gmra.mrb[0].mxu0 %v5332
    %v10626 = vpop.f32.mrb[0].mxu0
    %v10627 = vadd.f32 %v10537, %v10626
    %v10628 = vpop.f32.mrb[0].mxu0
    %10629 = vdwg.mxu0
    %v10630 = vmul.f32 %v10612, 0.5
    %v10631 = vmul.f32 %v10617, 0.5
    %v10632 = vmul.f32 %v10622, 0.5
    %v10633 = vmul.f32 %v10627, 0.5
    %v10634 = vrcp.pop 1.4142135
    %v10635 = vmul.f32 %v10612, %v10634
    %v10636 = vmul.f32 %v10617, %v10634
    %v10637 = vmul.f32 %v10622, %v10634
    %v10638 = vmul.f32 %v10627, %v10634
    %v10639 = verf.f32.pop %v10635
    %v10640 = verf.f32.pop %v10636
    %v10641 = verf.f32.pop %v10637
    %v10642 = verf.f32.pop %v10638
    %v10643 = vadd.f32 %v10639, 1.0
    %v10644 = vadd.f32 %v10640, 1.0
    %v10645 = vadd.f32 %v10641, 1.0
    %v10646 = vadd.f32 %v10642, 1.0
    %v10647 = vmul.f32 %v10630, %v10643
    %v10648 = vmul.f32 %v10631, %v10644
    %v10649 = vmul.f32 %v10632, %v10645
    %v10650 = vmul.f32 %v10633, %v10646
    %v10651 = vld [vmem:[%s15] sm:$0xff]
    %v10652 = vld [vmem:[%s15 + $0x8] sm:$0xff]
    %v10653 = vld [vmem:[%s15 + $0x10] sm:$0xff]
    %v10654 = vld [vmem:[%s15 + $0x18] sm:$0xff]
    %v10655 = vld [vmem:[%s15 + $0x20] sm:$0xff]
    %v10656 = vld [vmem:[%s15 + $0x28] sm:$0xff]
    %v10657 = vld [vmem:[%s15 + $0x30] sm:$0xff]
    %v10658 = vld [vmem:[%s15 + $0x38] sm:$0xff]
    %v10659 = vld [vmem:[%s15 + $0x40] sm:$0xff]
    %v10660 = vld [vmem:[%s15 + $0x48] sm:$0xff]
    %v10661 = vld [vmem:[%s15 + $0x50] sm:$0xff]
    %v10662 = vld [vmem:[%s15 + $0x58] sm:$0xff]
    %v10663 = vld [vmem:[%s15 + $0x60] sm:$0xff]
    %v10664 = vld [vmem:[%s15 + $0x68] sm:$0xff]
    %v10665 = vld [vmem:[%s15 + $0x70] sm:$0xff]
    %v10666 = vld [vmem:[%s15 + $0x78] sm:$0xff]
    %v10667 = vld [vmem:[%s16] sm:$0x1]
    %v10669 = vlaneseq
    %v10670 = vshrl.u32 %v10669, 7
    %v10671 = vsub.s32 0, %v10670
    %v10672 = vrot.slane %v10667, %v10671
    %10674 = vmatprep.subr.mxu0 0.0
    %10675 = vmatpush1.msra.mxu0 %v10651
    %10676 = vmatprep.subr.mxu0 0.0
    %10677 = vmatpush1.msra.mxu0 %v10652
    %10678 = vmatprep.subr.mxu0 0.0
    %10679 = vmatpush1.msra.mxu0 %v10653
    %10680 = vmatprep.subr.mxu0 0.0
    %10681 = vmatpush1.msra.mxu0 %v10654
    %10682 = vmatprep.subr.mxu0 0.0
    %10683 = vmatpush1.msra.mxu0 %v10655
    %10684 = vmatprep.subr.mxu0 0.0
    %10685 = vmatpush1.msra.mxu0 %v10656
    %10686 = vmatprep.subr.mxu0 0.0
    %10687 = vmatpush1.msra.mxu0 %v10657
    %10688 = vmatprep.subr.mxu0 0.0
    %10689 = vmatpush1.msra.mxu0 %v10658
    %10690 = vmatprep.subr.mxu0 0.0
    %10691 = vmatpush1.msra.mxu0 %v10659
    %10692 = vmatprep.subr.mxu0 0.0
    %10693 = vmatpush1.msra.mxu0 %v10660
    %10694 = vmatprep.subr.mxu0 0.0
    %10695 = vmatpush1.msra.mxu0 %v10661
    %10696 = vmatprep.subr.mxu0 0.0
    %10697 = vmatpush1.msra.mxu0 %v10662
    %10698 = vmatprep.subr.mxu0 0.0
    %10699 = vmatpush1.msra.mxu0 %v10663
    %10700 = vmatprep.subr.mxu0 0.0
    %10701 = vmatpush1.msra.mxu0 %v10664
    %10702 = vmatprep.subr.mxu0 0.0
    %10703 = vmatpush1.msra.mxu0 %v10665
    %10704 = vmatprep.subr.mxu0 0.0
    %10705 = vmatpush1.msra.mxu0 %v10666
    %10706 = vmatprep.subr.mxu0 0.0
    %10707 = vmatpush1.msra.mxu0 0.0
    %10708 = vmatprep.subr.mxu0 0.0
    %10709 = vmatpush1.msra.mxu0 0.0
    %10710 = vmatprep.subr.mxu0 0.0
    %10711 = vmatpush1.msra.mxu0 0.0
    %10712 = vmatprep.subr.mxu0 0.0
    %10713 = vmatpush1.msra.mxu0 0.0
    %10714 = vmatprep.subr.mxu0 0.0
    %10715 = vmatpush1.msra.mxu0 0.0
    %10716 = vmatprep.subr.mxu0 0.0
    %10717 = vmatpush1.msra.mxu0 0.0
    %10718 = vmatprep.subr.mxu0 0.0
    %10719 = vmatpush1.msra.mxu0 0.0
    %10720 = vmatprep.subr.mxu0 0.0
    %10721 = vmatpush1.msra.mxu0 0.0
    %10722 = vmatprep.subr.mxu0 0.0
    %10723 = vmatpush1.msra.mxu0 0.0
    %10724 = vmatprep.subr.mxu0 0.0
    %10725 = vmatpush1.msra.mxu0 0.0
    %10726 = vmatprep.subr.mxu0 0.0
    %10727 = vmatpush1.msra.mxu0 0.0
    %10728 = vmatprep.subr.mxu0 0.0
    %10729 = vmatpush1.msra.mxu0 0.0
    %10730 = vmatprep.subr.mxu0 0.0
    %10731 = vmatpush1.msra.mxu0 0.0
    %10732 = vmatprep.subr.mxu0 0.0
    %10733 = vmatpush1.msra.mxu0 0.0
    %10734 = vmatprep.subr.mxu0 0.0
    %10735 = vmatpush1.msra.mxu0 0.0
    %10736 = vmatprep.subr.mxu0 0.0
    %10737 = vmatpush1.msra.mxu0 0.0
    %10738 = vmatprep.mubr.f32.mxu0 0.0
    %10739 = vmatmul.mubr.f32.gmra.mrb[0].mxu0 %v10647
    %v10740 = vpop.f32.mrb[0].mxu0
    %v10741 = vadd.f32 %v10672, %v10740
    %v10742 = vpop.f32.mrb[0].mxu0
    %10743 = vmatprep.mubr.f32.mxu0 0.0
    %10744 = vmatmul.mubr.f32.gmra.mrb[0].mxu0 %v10648
    %v10745 = vpop.f32.mrb[0].mxu0
    %v10746 = vadd.f32 %v10672, %v10745
    %v10747 = vpop.f32.mrb[0].mxu0
    %10748 = vmatprep.mubr.f32.mxu0 0.0
    %10749 = vmatmul.mubr.f32.gmra.mrb[0].mxu0 %v10649
    %v10750 = vpop.f32.mrb[0].mxu0
    %v10751 = vadd.f32 %v10672, %v10750
    %v10752 = vpop.f32.mrb[0].mxu0
    %10753 = vmatprep.mubr.f32.mxu0 0.0
    %10754 = vmatmul.mubr.f32.gmra.mrb[0].mxu0 %v10650
    %v10755 = vpop.f32.mrb[0].mxu0
    %v10756 = vadd.f32 %v10672, %v10755
    %v10757 = vpop.f32.mrb[0].mxu0
    %10758 = vdwg.mxu0
    %v10759 = vadd.f32 %v10741, %v10751
    %v10760 = vadd.f32 %v10746, %v10756
    %10761 = vst.msk [vmem:[#allocation8] sm:$0xff] %vm104, %v10759
    %10762 = vst.msk [vmem:[#allocation8 + $0x8] sm:$0xff] %vm104, %v10760
    // Predicated region
    $region82: #{tpu_custom_call.1} parent=1 // pred_check
      _
    $region83: #{tpu_custom_call.1} parent=1 // pred_check_branch
      %10764 = sbr.rel (0) target = $region85
    $region84: #{tpu_custom_call.1} parent=1 // pred_region
      %s10766 = ssub.s32 256, 256
      %10767 = vsyncadd [#allocation4], %s10766
      %s10768 = sshll.u32 [#allocation8], 4
      %s10769 = int_to_ptr.vmem [resolvable:$true] %s10768
      %10774 = dma.vmem_to_hbm [thread:$0]  %s10769, 256, %s17, [#allocation4], 128, 128, 8
    $region85: #{tpu_custom_call.1} parent=1 // pred_fallthru
      _
    // Predicated region
    $region86: #{tpu_custom_call.1} parent=1 // pred_check
      _
    $region87: #{tpu_custom_call.1} parent=1 // pred_check_branch
      %10776 = sbr.rel (0) target = $region89
    $region88: #{tpu_custom_call.1} parent=1 // pred_region
      %10777 = dma.done [#allocation4], 256
    $region89: #{tpu_custom_call.1} parent=1 // pred_fallthru
      _
    %10778 = vsyncpa [#allocation3], 1
    %10779 = vsyncpa [#allocation6], 1
    %10780 = vsyncpa [#allocation4], 1

</llo_original>
